<compile_context>
chip_gen: v7x
topology: tpu7x:2x2x1
jax: 0.10.0
libtpu: 0.0.40
codegen_flags: <defaults>
</compile_context>

<pallas_src>
import jax
import jax.numpy as jnp
import numpy as np
from jax.experimental import pallas as pl
from jax.experimental.pallas import tpu as pltpu

K = 16                 # conv kernel size
L = 40                 # sequence length (fixed by fc1 in_features = 128 * 10)
C1 = 64                # conv1 out channels
C2 = 128               # conv2 out channels
L1P = L // 2           # 20, after first pool
L2P = L1P // 2         # 10, after second pool
PAD_L = (K - 1) // 2   # 7   (PyTorch 'same' for even kernel: left=7, right=8)
PAD_R = (K - 1) - PAD_L
H1 = 256
NOUT = 2


def _model_kernel(x_ref, w1_ref, b1_ref, w2_ref, b2_ref,
                  wf1_ref, bf1_ref, wf2_ref, bf2_ref,
                  out_ref, p1pad_ref):
    _, bt, kcin = x_ref.shape            # (L, B_TILE, K*Cin)

    # ---- conv1: single (L*BT, K*Cin) x (K*Cin, 64) matmul (im2col in wrapper) ----
    xcol = x_ref[...].reshape(L * bt, kcin)
    y1 = jnp.dot(xcol, w1_ref[...], preferred_element_type=jnp.float32)
    y1 = jnp.maximum(y1 + b1_ref[...], 0.0)                    # (L*BT, 64)

    # ---- maxpool(2,2) over time, kept in registers/values ----
    y1 = y1.reshape(L1P, 2 * bt, C1)                           # row t*BT+b -> (t//2, (t%2)*BT+b)
    p1 = jnp.maximum(y1[:, :bt, :], y1[:, bt:, :])             # (20, BT, 64)

    # ---- 'same' padding for conv2 via zero-padded scratch (pads rewritten
    #      every step so the batch grid axis can be "parallel") ----
    p1pad_ref[0:PAD_L] = jnp.zeros((PAD_L, bt, C1), jnp.float32)
    p1pad_ref[PAD_L:PAD_L + L1P] = p1
    p1pad_ref[PAD_L + L1P:PAD_L + L1P + PAD_R] = jnp.zeros((PAD_R, bt, C1),
                                                           jnp.float32)

    # ---- conv2: K shifted matmuls with batched M = 20*BT, contraction 64 ----
    acc2 = jnp.dot(p1pad_ref[0:L1P].reshape(L1P * bt, C1), w2_ref[0],
                   preferred_element_type=jnp.float32)
    for k in range(1, K):
        acc2 = acc2 + jnp.dot(p1pad_ref[k:k + L1P].reshape(L1P * bt, C1),
                              w2_ref[k], preferred_element_type=jnp.float32)
    y2 = jnp.maximum(acc2 + b2_ref[...], 0.0)                  # (20*BT, 128)

    # ---- maxpool(2,2) ----
    y2 = y2.reshape(L2P, 2 * bt, C2)
    p2 = jnp.maximum(y2[:, :bt, :], y2[:, bt:, :])             # (10, BT, 128)

    # ---- fc1: 10 well-shaped (BT,128)x(128,256) matmuls; weight pre-permuted
    #      in the wrapper so wf1_ref[t][c, :] == fc1.weight[:, c*10 + t] ----
    h = jnp.dot(p2[0], wf1_ref[0], preferred_element_type=jnp.float32)
    for t in range(1, L2P):
        h = h + jnp.dot(p2[t], wf1_ref[t], preferred_element_type=jnp.float32)
    h = jnp.maximum(h + bf1_ref[...], 0.0)                     # (BT, 256)

    # ---- fc2 ----
    out_ref[...] = jnp.dot(h, wf2_ref[...],
                           preferred_element_type=jnp.float32) + bf2_ref[...]


def _round_up(n, m):
    return ((n + m - 1) // m) * m


def my_model_forward(x, params, b_tile=128):
    """x: (B, Cin, 40) float32 (PyTorch NCL). Returns (B, 2) float32."""
    w1, b1, w2, b2, wf1, bf1, wf2, bf2 = params
    B, Cin, Lx = x.shape
    assert Lx == L, "fc1 in_features=1280 implies input length 40"

    BT = min(b_tile, _round_up(B, 8))
    BT = _round_up(BT, 8)
    Bp = _round_up(B, BT)
    KC = K * Cin

    # --- wrapper glue: layout conversion + conv1 im2col (lane-dense input) ---
    xt = jnp.transpose(x, (2, 0, 1))                               # (L, B, Cin)
    xt = jnp.pad(xt, ((PAD_L, PAD_R), (0, Bp - B), (0, 0)))        # (L+K-1, Bp, Cin)
    idx = jnp.arange(L)[:, None] + jnp.arange(K)[None, :]          # (L, K)
    xcol = jnp.transpose(xt[idx], (0, 2, 1, 3)).reshape(L, Bp, KC)  # (L, Bp, K*Cin)

    w1col = jnp.transpose(w1, (2, 1, 0)).reshape(KC, C1)           # (K*Cin, 64)
    w2k = jnp.transpose(w2, (2, 1, 0))                             # (K, 64, 128)
    wf1k = jnp.transpose(wf1.reshape(H1, C2, L2P), (2, 1, 0))      # (10, 128, 256)
    wf2k = wf2.T                                                   # (256, 2)

    def full(shape):
        return pl.BlockSpec(shape, lambda i: (0,) * len(shape))

    out = pl.pallas_call(
        _model_kernel,
        out_shape=jax.ShapeDtypeStruct((Bp, NOUT), jnp.float32),
        grid=(Bp // BT,),
        in_specs=[
            pl.BlockSpec((L, BT, KC), lambda i: (0, i, 0)),   # im2col'd activations
            full((KC, C1)),
            full((1, C1)),
            full((K, C1, C2)),
            full((1, C2)),
            full((L2P, C2, H1)),
            full((1, H1)),
            full((H1, NOUT)),                                 # <- fixed (was (C2, NOUT))
            full((1, NOUT)),
        ],
        out_specs=pl.BlockSpec((BT, NOUT), lambda i: (i, 0)),
        scratch_shapes=[
            pltpu.VMEM((L1P + K - 1, BT, C1), jnp.float32),   # padded conv2 input
        ],
        compiler_params=pltpu.CompilerParams(
            dimension_semantics=("parallel",),
            vmem_limit_bytes=48 * 1024 * 1024),
    )(xcol, w1col, b1[None, :], w2k, b2[None, :],
      wf1k, bf1[None, :], wf2k, bf2[None, :])
    return out[:B]


def ref_forward(x, params):
    """Pure-JAX reference reproducing the PyTorch forward exactly."""
    w1, b1, w2, b2, wf1, bf1, wf2, bf2 = params

    def conv_same(z, w, b):
        out = jax.lax.conv_general_dilated(
            z, w, window_strides=(1,), padding=[(PAD_L, PAD_R)],
            dimension_numbers=('NCH', 'OIH', 'NCH'))
        return out + b[None, :, None]

    y = jax.nn.relu(conv_same(x, w1, b1))
    y = jnp.max(y.reshape(y.shape[0], y.shape[1], -1, 2), axis=-1)
    y = jax.nn.relu(conv_same(y, w2, b2))
    y = jnp.max(y.reshape(y.shape[0], y.shape[1], -1, 2), axis=-1)
    f = y.reshape(y.shape[0], -1)
    h = jax.nn.relu(f @ wf1.T + bf1)
    return h @ wf2.T + bf2


if __name__ == "__main__":
    key = jax.random.PRNGKey(0)
    ks = jax.random.split(key, 9)
    B, Cin = 2, 4

    params = (
        jax.random.normal(ks[0], (C1, Cin, K), jnp.float32) * 0.05,   # conv1.weight
        jax.random.normal(ks[1], (C1,), jnp.float32) * 0.05,          # conv1.bias
        jax.random.normal(ks[2], (C2, C1, K), jnp.float32) * 0.03,    # conv2.weight
        jax.random.normal(ks[3], (C2,), jnp.float32) * 0.03,          # conv2.bias
        jax.random.normal(ks[4], (H1, C2 * L2P), jnp.float32) * 0.02, # fc1.weight
        jax.random.normal(ks[5], (H1,), jnp.float32) * 0.02,          # fc1.bias
        jax.random.normal(ks[6], (NOUT, H1), jnp.float32) * 0.05,     # fc2.weight
        jax.random.normal(ks[7], (NOUT,), jnp.float32) * 0.05,        # fc2.bias
    )
    x = jax.random.normal(ks[8], (B, Cin, L), jnp.float32)

    out = jax.block_until_ready(my_model_forward(x, params))
    ref = jax.block_until_ready(ref_forward(x, params))

    assert out.shape == (B, NOUT)
    np.testing.assert_allclose(np.asarray(out), np.asarray(ref),
                               rtol=2e-3, atol=2e-3)
    print("KERNEL_OK")
</pallas_src>

<mosaic_0001>
module attributes {stable_mosaic.version = 11 : i64} {
  func.func @_model_kernel(%arg0: i32, %arg1: memref<40x8x64xf32, #tpu.memory_space<vmem>>, %arg2: memref<64x64xf32, #tpu.memory_space<vmem>>, %arg3: memref<1x64xf32, #tpu.memory_space<vmem>>, %arg4: memref<16x64x128xf32, #tpu.memory_space<vmem>>, %arg5: memref<1x128xf32, #tpu.memory_space<vmem>>, %arg6: memref<10x128x256xf32, #tpu.memory_space<vmem>>, %arg7: memref<1x256xf32, #tpu.memory_space<vmem>>, %arg8: memref<256x2xf32, #tpu.memory_space<vmem>>, %arg9: memref<1x2xf32, #tpu.memory_space<vmem>>, %arg10: memref<8x2xf32, #tpu.memory_space<vmem>>, %arg11: memref<35x8x64xf32, #tpu.memory_space<vmem>>) attributes {dimension_semantics = [#tpu.dimension_semantics<parallel>], iteration_bounds = array<i64: 1>, scalar_prefetch = 0 : i64, scratch_operands = 1 : i64, tpu.core_type = #tpu.core_type<tc>, window_params = [{transform_indices = @transform_0, window_bounds = array<i64: 40, 8, 64>}, {pipeline_mode = #tpu.pipeline_mode<synchronous>, transform_indices = @transform_1, window_bounds = array<i64: 64, 64>}, {pipeline_mode = #tpu.pipeline_mode<synchronous>, transform_indices = @transform_2, window_bounds = array<i64: 1, 64>}, {pipeline_mode = #tpu.pipeline_mode<synchronous>, transform_indices = @transform_3, window_bounds = array<i64: 16, 64, 128>}, {pipeline_mode = #tpu.pipeline_mode<synchronous>, transform_indices = @transform_4, window_bounds = array<i64: 1, 128>}, {pipeline_mode = #tpu.pipeline_mode<synchronous>, transform_indices = @transform_5, window_bounds = array<i64: 10, 128, 256>}, {pipeline_mode = #tpu.pipeline_mode<synchronous>, transform_indices = @transform_6, window_bounds = array<i64: 1, 256>}, {pipeline_mode = #tpu.pipeline_mode<synchronous>, transform_indices = @transform_7, window_bounds = array<i64: 256, 2>}, {pipeline_mode = #tpu.pipeline_mode<synchronous>, transform_indices = @transform_8, window_bounds = array<i64: 1, 2>}, {transform_indices = @transform_9, window_bounds = array<i64: 8, 2>}]} {
    %c0 = arith.constant 0 : index
    %c0_0 = arith.constant 0 : index
    %c0_1 = arith.constant 0 : index
    %0 = vector.load %arg1[%c0, %c0_0, %c0_1] : memref<40x8x64xf32, #tpu.memory_space<vmem>>, vector<40x8x64xf32>
    %1 = vector.shape_cast %0 : vector<40x8x64xf32> to vector<320x64xf32>
    %c0_2 = arith.constant 0 : index
    %c0_3 = arith.constant 0 : index
    %2 = vector.load %arg2[%c0_2, %c0_3] : memref<64x64xf32, #tpu.memory_space<vmem>>, vector<64x64xf32>
    %cst = arith.constant dense<0.000000e+00> : vector<320x64xf32>
    %3 = tpu.matmul %1, %2, %cst {dimension_numbers = #tpu.dot_dimension_numbers<[1], [0], [0], [1], [0, 0, 1, 1], [], []>} : vector<320x64xf32>, vector<64x64xf32>, vector<320x64xf32> -> vector<320x64xf32>
    %c0_4 = arith.constant 0 : index
    %c0_5 = arith.constant 0 : index
    %4 = vector.load %arg3[%c0_4, %c0_5] : memref<1x64xf32, #tpu.memory_space<vmem>>, vector<1x64xf32>
    %5 = vector.broadcast %4 : vector<1x64xf32> to vector<320x64xf32>
    %6 = arith.addf %3, %5 : vector<320x64xf32>
    %cst_6 = arith.constant 0.000000e+00 : f32
    %7 = vector.broadcast %cst_6 : f32 to vector<320x64xf32>
    %8 = arith.maximumf %6, %7 : vector<320x64xf32>
    %9 = vector.shape_cast %8 : vector<320x64xf32> to vector<20x16x64xf32>
    %10 = vector.extract_strided_slice %9 {offsets = [0, 0, 0], sizes = [20, 8, 64], strides = [1, 1, 1]} : vector<20x16x64xf32> to vector<20x8x64xf32>
    %11 = vector.extract_strided_slice %9 {offsets = [0, 8, 0], sizes = [20, 8, 64], strides = [1, 1, 1]} : vector<20x16x64xf32> to vector<20x8x64xf32>
    %12 = arith.maximumf %10, %11 : vector<20x8x64xf32>
    %cst_7 = arith.constant 0.000000e+00 : f32
    %13 = vector.broadcast %cst_7 : f32 to vector<7x8x64xf32>
    %c0_8 = arith.constant 0 : index
    %c0_9 = arith.constant 0 : index
    %c0_10 = arith.constant 0 : index
    %14 = vector.load %arg11[%c0_8, %c0_9, %c0_10] : memref<35x8x64xf32, #tpu.memory_space<vmem>>, vector<7x8x64xf32>
    tpu.vector_store %arg11[%c0_8, %c0_9, %c0_10], %13 {strides = array<i32>} : memref<35x8x64xf32, #tpu.memory_space<vmem>>, vector<7x8x64xf32>,
    %c7 = arith.constant 7 : index
    %c0_11 = arith.constant 0 : index
    %c0_12 = arith.constant 0 : index
    %15 = vector.load %arg11[%c7, %c0_11, %c0_12] : memref<35x8x64xf32, #tpu.memory_space<vmem>>, vector<20x8x64xf32>
    tpu.vector_store %arg11[%c7, %c0_11, %c0_12], %12 {strides = array<i32>} : memref<35x8x64xf32, #tpu.memory_space<vmem>>, vector<20x8x64xf32>,
    %cst_13 = arith.constant 0.000000e+00 : f32
    %16 = vector.broadcast %cst_13 : f32 to vector<8x8x64xf32>
    %c27 = arith.constant 27 : index
    %c0_14 = arith.constant 0 : index
    %c0_15 = arith.constant 0 : index
    %17 = vector.load %arg11[%c27, %c0_14, %c0_15] : memref<35x8x64xf32, #tpu.memory_space<vmem>>, vector<8x8x64xf32>
    tpu.vector_store %arg11[%c27, %c0_14, %c0_15], %16 {strides = array<i32>} : memref<35x8x64xf32, #tpu.memory_space<vmem>>, vector<8x8x64xf32>,
    %c0_16 = arith.constant 0 : index
    %c0_17 = arith.constant 0 : index
    %c0_18 = arith.constant 0 : index
    %18 = vector.load %arg11[%c0_16, %c0_17, %c0_18] : memref<35x8x64xf32, #tpu.memory_space<vmem>>, vector<20x8x64xf32>
    %19 = vector.shape_cast %18 : vector<20x8x64xf32> to vector<160x64xf32>
    %c0_19 = arith.constant 0 : index
    %c0_20 = arith.constant 0 : index
    %c0_21 = arith.constant 0 : index
    %20 = vector.load %arg4[%c0_19, %c0_20, %c0_21] : memref<16x64x128xf32, #tpu.memory_space<vmem>>, vector<1x64x128xf32>
    %21 = vector.shape_cast %20 : vector<1x64x128xf32> to vector<64x128xf32>
    %cst_22 = arith.constant dense<0.000000e+00> : vector<160x128xf32>
    %22 = tpu.matmul %19, %21, %cst_22 {dimension_numbers = #tpu.dot_dimension_numbers<[1], [0], [0], [1], [0, 0, 1, 1], [], []>} : vector<160x64xf32>, vector<64x128xf32>, vector<160x128xf32> -> vector<160x128xf32>
    %c1 = arith.constant 1 : index
    %c0_23 = arith.constant 0 : index
    %c0_24 = arith.constant 0 : index
    %23 = vector.load %arg11[%c1, %c0_23, %c0_24] : memref<35x8x64xf32, #tpu.memory_space<vmem>>, vector<20x8x64xf32>
    %24 = vector.shape_cast %23 : vector<20x8x64xf32> to vector<160x64xf32>
    %c1_25 = arith.constant 1 : index
    %c0_26 = arith.constant 0 : index
    %c0_27 = arith.constant 0 : index
    %25 = vector.load %arg4[%c1_25, %c0_26, %c0_27] : memref<16x64x128xf32, #tpu.memory_space<vmem>>, vector<1x64x128xf32>
    %26 = vector.shape_cast %25 : vector<1x64x128xf32> to vector<64x128xf32>
    %cst_28 = arith.constant dense<0.000000e+00> : vector<160x128xf32>
    %27 = tpu.matmul %24, %26, %cst_28 {dimension_numbers = #tpu.dot_dimension_numbers<[1], [0], [0], [1], [0, 0, 1, 1], [], []>} : vector<160x64xf32>, vector<64x128xf32>, vector<160x128xf32> -> vector<160x128xf32>
    %28 = arith.addf %22, %27 : vector<160x128xf32>
    %c2 = arith.constant 2 : index
    %c0_29 = arith.constant 0 : index
    %c0_30 = arith.constant 0 : index
    %29 = vector.load %arg11[%c2, %c0_29, %c0_30] : memref<35x8x64xf32, #tpu.memory_space<vmem>>, vector<20x8x64xf32>
    %30 = vector.shape_cast %29 : vector<20x8x64xf32> to vector<160x64xf32>
    %c2_31 = arith.constant 2 : index
    %c0_32 = arith.constant 0 : index
    %c0_33 = arith.constant 0 : index
    %31 = vector.load %arg4[%c2_31, %c0_32, %c0_33] : memref<16x64x128xf32, #tpu.memory_space<vmem>>, vector<1x64x128xf32>
    %32 = vector.shape_cast %31 : vector<1x64x128xf32> to vector<64x128xf32>
    %cst_34 = arith.constant dense<0.000000e+00> : vector<160x128xf32>
    %33 = tpu.matmul %30, %32, %cst_34 {dimension_numbers = #tpu.dot_dimension_numbers<[1], [0], [0], [1], [0, 0, 1, 1], [], []>} : vector<160x64xf32>, vector<64x128xf32>, vector<160x128xf32> -> vector<160x128xf32>
    %34 = arith.addf %28, %33 : vector<160x128xf32>
    %c3 = arith.constant 3 : index
    %c0_35 = arith.constant 0 : index
    %c0_36 = arith.constant 0 : index
    %35 = vector.load %arg11[%c3, %c0_35, %c0_36] : memref<35x8x64xf32, #tpu.memory_space<vmem>>, vector<20x8x64xf32>
    %36 = vector.shape_cast %35 : vector<20x8x64xf32> to vector<160x64xf32>
    %c3_37 = arith.constant 3 : index
    %c0_38 = arith.constant 0 : index
    %c0_39 = arith.constant 0 : index
    %37 = vector.load %arg4[%c3_37, %c0_38, %c0_39] : memref<16x64x128xf32, #tpu.memory_space<vmem>>, vector<1x64x128xf32>
    %38 = vector.shape_cast %37 : vector<1x64x128xf32> to vector<64x128xf32>
    %cst_40 = arith.constant dense<0.000000e+00> : vector<160x128xf32>
    %39 = tpu.matmul %36, %38, %cst_40 {dimension_numbers = #tpu.dot_dimension_numbers<[1], [0], [0], [1], [0, 0, 1, 1], [], []>} : vector<160x64xf32>, vector<64x128xf32>, vector<160x128xf32> -> vector<160x128xf32>
    %40 = arith.addf %34, %39 : vector<160x128xf32>
    %c4 = arith.constant 4 : index
    %c0_41 = arith.constant 0 : index
    %c0_42 = arith.constant 0 : index
    %41 = vector.load %arg11[%c4, %c0_41, %c0_42] : memref<35x8x64xf32, #tpu.memory_space<vmem>>, vector<20x8x64xf32>
    %42 = vector.shape_cast %41 : vector<20x8x64xf32> to vector<160x64xf32>
    %c4_43 = arith.constant 4 : index
    %c0_44 = arith.constant 0 : index
    %c0_45 = arith.constant 0 : index
    %43 = vector.load %arg4[%c4_43, %c0_44, %c0_45] : memref<16x64x128xf32, #tpu.memory_space<vmem>>, vector<1x64x128xf32>
    %44 = vector.shape_cast %43 : vector<1x64x128xf32> to vector<64x128xf32>
    %cst_46 = arith.constant dense<0.000000e+00> : vector<160x128xf32>
    %45 = tpu.matmul %42, %44, %cst_46 {dimension_numbers = #tpu.dot_dimension_numbers<[1], [0], [0], [1], [0, 0, 1, 1], [], []>} : vector<160x64xf32>, vector<64x128xf32>, vector<160x128xf32> -> vector<160x128xf32>
    %46 = arith.addf %40, %45 : vector<160x128xf32>
    %c5 = arith.constant 5 : index
    %c0_47 = arith.constant 0 : index
    %c0_48 = arith.constant 0 : index
    %47 = vector.load %arg11[%c5, %c0_47, %c0_48] : memref<35x8x64xf32, #tpu.memory_space<vmem>>, vector<20x8x64xf32>
    %48 = vector.shape_cast %47 : vector<20x8x64xf32> to vector<160x64xf32>
    %c5_49 = arith.constant 5 : index
    %c0_50 = arith.constant 0 : index
    %c0_51 = arith.constant 0 : index
    %49 = vector.load %arg4[%c5_49, %c0_50, %c0_51] : memref<16x64x128xf32, #tpu.memory_space<vmem>>, vector<1x64x128xf32>
    %50 = vector.shape_cast %49 : vector<1x64x128xf32> to vector<64x128xf32>
    %cst_52 = arith.constant dense<0.000000e+00> : vector<160x128xf32>
    %51 = tpu.matmul %48, %50, %cst_52 {dimension_numbers = #tpu.dot_dimension_numbers<[1], [0], [0], [1], [0, 0, 1, 1], [], []>} : vector<160x64xf32>, vector<64x128xf32>, vector<160x128xf32> -> vector<160x128xf32>
    %52 = arith.addf %46, %51 : vector<160x128xf32>
    %c6 = arith.constant 6 : index
    %c0_53 = arith.constant 0 : index
    %c0_54 = arith.constant 0 : index
    %53 = vector.load %arg11[%c6, %c0_53, %c0_54] : memref<35x8x64xf32, #tpu.memory_space<vmem>>, vector<20x8x64xf32>
    %54 = vector.shape_cast %53 : vector<20x8x64xf32> to vector<160x64xf32>
    %c6_55 = arith.constant 6 : index
    %c0_56 = arith.constant 0 : index
    %c0_57 = arith.constant 0 : index
    %55 = vector.load %arg4[%c6_55, %c0_56, %c0_57] : memref<16x64x128xf32, #tpu.memory_space<vmem>>, vector<1x64x128xf32>
    %56 = vector.shape_cast %55 : vector<1x64x128xf32> to vector<64x128xf32>
    %cst_58 = arith.constant dense<0.000000e+00> : vector<160x128xf32>
    %57 = tpu.matmul %54, %56, %cst_58 {dimension_numbers = #tpu.dot_dimension_numbers<[1], [0], [0], [1], [0, 0, 1, 1], [], []>} : vector<160x64xf32>, vector<64x128xf32>, vector<160x128xf32> -> vector<160x128xf32>
    %58 = arith.addf %52, %57 : vector<160x128xf32>
    %c7_59 = arith.constant 7 : index
    %c0_60 = arith.constant 0 : index
    %c0_61 = arith.constant 0 : index
    %59 = vector.load %arg11[%c7_59, %c0_60, %c0_61] : memref<35x8x64xf32, #tpu.memory_space<vmem>>, vector<20x8x64xf32>
    %60 = vector.shape_cast %59 : vector<20x8x64xf32> to vector<160x64xf32>
    %c7_62 = arith.constant 7 : index
    %c0_63 = arith.constant 0 : index
    %c0_64 = arith.constant 0 : index
    %61 = vector.load %arg4[%c7_62, %c0_63, %c0_64] : memref<16x64x128xf32, #tpu.memory_space<vmem>>, vector<1x64x128xf32>
    %62 = vector.shape_cast %61 : vector<1x64x128xf32> to vector<64x128xf32>
    %cst_65 = arith.constant dense<0.000000e+00> : vector<160x128xf32>
    %63 = tpu.matmul %60, %62, %cst_65 {dimension_numbers = #tpu.dot_dimension_numbers<[1], [0], [0], [1], [0, 0, 1, 1], [], []>} : vector<160x64xf32>, vector<64x128xf32>, vector<160x128xf32> -> vector<160x128xf32>
    %64 = arith.addf %58, %63 : vector<160x128xf32>
    %c8 = arith.constant 8 : index
    %c0_66 = arith.constant 0 : index
    %c0_67 = arith.constant 0 : index
    %65 = vector.load %arg11[%c8, %c0_66, %c0_67] : memref<35x8x64xf32, #tpu.memory_space<vmem>>, vector<20x8x64xf32>
    %66 = vector.shape_cast %65 : vector<20x8x64xf32> to vector<160x64xf32>
    %c8_68 = arith.constant 8 : index
    %c0_69 = arith.constant 0 : index
    %c0_70 = arith.constant 0 : index
    %67 = vector.load %arg4[%c8_68, %c0_69, %c0_70] : memref<16x64x128xf32, #tpu.memory_space<vmem>>, vector<1x64x128xf32>
    %68 = vector.shape_cast %67 : vector<1x64x128xf32> to vector<64x128xf32>
    %cst_71 = arith.constant dense<0.000000e+00> : vector<160x128xf32>
    %69 = tpu.matmul %66, %68, %cst_71 {dimension_numbers = #tpu.dot_dimension_numbers<[1], [0], [0], [1], [0, 0, 1, 1], [], []>} : vector<160x64xf32>, vector<64x128xf32>, vector<160x128xf32> -> vector<160x128xf32>
    %70 = arith.addf %64, %69 : vector<160x128xf32>
    %c9 = arith.constant 9 : index
    %c0_72 = arith.constant 0 : index
    %c0_73 = arith.constant 0 : index
    %71 = vector.load %arg11[%c9, %c0_72, %c0_73] : memref<35x8x64xf32, #tpu.memory_space<vmem>>, vector<20x8x64xf32>
    %72 = vector.shape_cast %71 : vector<20x8x64xf32> to vector<160x64xf32>
    %c9_74 = arith.constant 9 : index
    %c0_75 = arith.constant 0 : index
    %c0_76 = arith.constant 0 : index
    %73 = vector.load %arg4[%c9_74, %c0_75, %c0_76] : memref<16x64x128xf32, #tpu.memory_space<vmem>>, vector<1x64x128xf32>
    %74 = vector.shape_cast %73 : vector<1x64x128xf32> to vector<64x128xf32>
    %cst_77 = arith.constant dense<0.000000e+00> : vector<160x128xf32>
    %75 = tpu.matmul %72, %74, %cst_77 {dimension_numbers = #tpu.dot_dimension_numbers<[1], [0], [0], [1], [0, 0, 1, 1], [], []>} : vector<160x64xf32>, vector<64x128xf32>, vector<160x128xf32> -> vector<160x128xf32>
    %76 = arith.addf %70, %75 : vector<160x128xf32>
    %c10 = arith.constant 10 : index
    %c0_78 = arith.constant 0 : index
    %c0_79 = arith.constant 0 : index
    %77 = vector.load %arg11[%c10, %c0_78, %c0_79] : memref<35x8x64xf32, #tpu.memory_space<vmem>>, vector<20x8x64xf32>
    %78 = vector.shape_cast %77 : vector<20x8x64xf32> to vector<160x64xf32>
    %c10_80 = arith.constant 10 : index
    %c0_81 = arith.constant 0 : index
    %c0_82 = arith.constant 0 : index
    %79 = vector.load %arg4[%c10_80, %c0_81, %c0_82] : memref<16x64x128xf32, #tpu.memory_space<vmem>>, vector<1x64x128xf32>
    %80 = vector.shape_cast %79 : vector<1x64x128xf32> to vector<64x128xf32>
    %cst_83 = arith.constant dense<0.000000e+00> : vector<160x128xf32>
    %81 = tpu.matmul %78, %80, %cst_83 {dimension_numbers = #tpu.dot_dimension_numbers<[1], [0], [0], [1], [0, 0, 1, 1], [], []>} : vector<160x64xf32>, vector<64x128xf32>, vector<160x128xf32> -> vector<160x128xf32>
    %82 = arith.addf %76, %81 : vector<160x128xf32>
    %c11 = arith.constant 11 : index
    %c0_84 = arith.constant 0 : index
    %c0_85 = arith.constant 0 : index
    %83 = vector.load %arg11[%c11, %c0_84, %c0_85] : memref<35x8x64xf32, #tpu.memory_space<vmem>>, vector<20x8x64xf32>
    %84 = vector.shape_cast %83 : vector<20x8x64xf32> to vector<160x64xf32>
    %c11_86 = arith.constant 11 : index
    %c0_87 = arith.constant 0 : index
    %c0_88 = arith.constant 0 : index
    %85 = vector.load %arg4[%c11_86, %c0_87, %c0_88] : memref<16x64x128xf32, #tpu.memory_space<vmem>>, vector<1x64x128xf32>
    %86 = vector.shape_cast %85 : vector<1x64x128xf32> to vector<64x128xf32>
    %cst_89 = arith.constant dense<0.000000e+00> : vector<160x128xf32>
    %87 = tpu.matmul %84, %86, %cst_89 {dimension_numbers = #tpu.dot_dimension_numbers<[1], [0], [0], [1], [0, 0, 1, 1], [], []>} : vector<160x64xf32>, vector<64x128xf32>, vector<160x128xf32> -> vector<160x128xf32>
    %88 = arith.addf %82, %87 : vector<160x128xf32>
    %c12 = arith.constant 12 : index
    %c0_90 = arith.constant 0 : index
    %c0_91 = arith.constant 0 : index
    %89 = vector.load %arg11[%c12, %c0_90, %c0_91] : memref<35x8x64xf32, #tpu.memory_space<vmem>>, vector<20x8x64xf32>
    %90 = vector.shape_cast %89 : vector<20x8x64xf32> to vector<160x64xf32>
    %c12_92 = arith.constant 12 : index
    %c0_93 = arith.constant 0 : index
    %c0_94 = arith.constant 0 : index
    %91 = vector.load %arg4[%c12_92, %c0_93, %c0_94] : memref<16x64x128xf32, #tpu.memory_space<vmem>>, vector<1x64x128xf32>
    %92 = vector.shape_cast %91 : vector<1x64x128xf32> to vector<64x128xf32>
    %cst_95 = arith.constant dense<0.000000e+00> : vector<160x128xf32>
    %93 = tpu.matmul %90, %92, %cst_95 {dimension_numbers = #tpu.dot_dimension_numbers<[1], [0], [0], [1], [0, 0, 1, 1], [], []>} : vector<160x64xf32>, vector<64x128xf32>, vector<160x128xf32> -> vector<160x128xf32>
    %94 = arith.addf %88, %93 : vector<160x128xf32>
    %c13 = arith.constant 13 : index
    %c0_96 = arith.constant 0 : index
    %c0_97 = arith.constant 0 : index
    %95 = vector.load %arg11[%c13, %c0_96, %c0_97] : memref<35x8x64xf32, #tpu.memory_space<vmem>>, vector<20x8x64xf32>
    %96 = vector.shape_cast %95 : vector<20x8x64xf32> to vector<160x64xf32>
    %c13_98 = arith.constant 13 : index
    %c0_99 = arith.constant 0 : index
    %c0_100 = arith.constant 0 : index
    %97 = vector.load %arg4[%c13_98, %c0_99, %c0_100] : memref<16x64x128xf32, #tpu.memory_space<vmem>>, vector<1x64x128xf32>
    %98 = vector.shape_cast %97 : vector<1x64x128xf32> to vector<64x128xf32>
    %cst_101 = arith.constant dense<0.000000e+00> : vector<160x128xf32>
    %99 = tpu.matmul %96, %98, %cst_101 {dimension_numbers = #tpu.dot_dimension_numbers<[1], [0], [0], [1], [0, 0, 1, 1], [], []>} : vector<160x64xf32>, vector<64x128xf32>, vector<160x128xf32> -> vector<160x128xf32>
    %100 = arith.addf %94, %99 : vector<160x128xf32>
    %c14 = arith.constant 14 : index
    %c0_102 = arith.constant 0 : index
    %c0_103 = arith.constant 0 : index
    %101 = vector.load %arg11[%c14, %c0_102, %c0_103] : memref<35x8x64xf32, #tpu.memory_space<vmem>>, vector<20x8x64xf32>
    %102 = vector.shape_cast %101 : vector<20x8x64xf32> to vector<160x64xf32>
    %c14_104 = arith.constant 14 : index
    %c0_105 = arith.constant 0 : index
    %c0_106 = arith.constant 0 : index
    %103 = vector.load %arg4[%c14_104, %c0_105, %c0_106] : memref<16x64x128xf32, #tpu.memory_space<vmem>>, vector<1x64x128xf32>
    %104 = vector.shape_cast %103 : vector<1x64x128xf32> to vector<64x128xf32>
    %cst_107 = arith.constant dense<0.000000e+00> : vector<160x128xf32>
    %105 = tpu.matmul %102, %104, %cst_107 {dimension_numbers = #tpu.dot_dimension_numbers<[1], [0], [0], [1], [0, 0, 1, 1], [], []>} : vector<160x64xf32>, vector<64x128xf32>, vector<160x128xf32> -> vector<160x128xf32>
    %106 = arith.addf %100, %105 : vector<160x128xf32>
    %c15 = arith.constant 15 : index
    %c0_108 = arith.constant 0 : index
    %c0_109 = arith.constant 0 : index
    %107 = vector.load %arg11[%c15, %c0_108, %c0_109] : memref<35x8x64xf32, #tpu.memory_space<vmem>>, vector<20x8x64xf32>
    %108 = vector.shape_cast %107 : vector<20x8x64xf32> to vector<160x64xf32>
    %c15_110 = arith.constant 15 : index
    %c0_111 = arith.constant 0 : index
    %c0_112 = arith.constant 0 : index
    %109 = vector.load %arg4[%c15_110, %c0_111, %c0_112] : memref<16x64x128xf32, #tpu.memory_space<vmem>>, vector<1x64x128xf32>
    %110 = vector.shape_cast %109 : vector<1x64x128xf32> to vector<64x128xf32>
    %cst_113 = arith.constant dense<0.000000e+00> : vector<160x128xf32>
    %111 = tpu.matmul %108, %110, %cst_113 {dimension_numbers = #tpu.dot_dimension_numbers<[1], [0], [0], [1], [0, 0, 1, 1], [], []>} : vector<160x64xf32>, vector<64x128xf32>, vector<160x128xf32> -> vector<160x128xf32>
    %112 = arith.addf %106, %111 : vector<160x128xf32>
    %c0_114 = arith.constant 0 : index
    %c0_115 = arith.constant 0 : index
    %113 = vector.load %arg5[%c0_114, %c0_115] : memref<1x128xf32, #tpu.memory_space<vmem>>, vector<1x128xf32>
    %114 = vector.broadcast %113 : vector<1x128xf32> to vector<160x128xf32>
    %115 = arith.addf %112, %114 : vector<160x128xf32>
    %cst_116 = arith.constant 0.000000e+00 : f32
    %116 = vector.broadcast %cst_116 : f32 to vector<160x128xf32>
    %117 = arith.maximumf %115, %116 : vector<160x128xf32>
    %118 = vector.shape_cast %117 : vector<160x128xf32> to vector<10x16x128xf32>
    %119 = vector.extract_strided_slice %118 {offsets = [0, 0, 0], sizes = [10, 8, 128], strides = [1, 1, 1]} : vector<10x16x128xf32> to vector<10x8x128xf32>
    %120 = vector.extract_strided_slice %118 {offsets = [0, 8, 0], sizes = [10, 8, 128], strides = [1, 1, 1]} : vector<10x16x128xf32> to vector<10x8x128xf32>
    %121 = arith.maximumf %119, %120 : vector<10x8x128xf32>
    %122 = vector.extract_strided_slice %121 {offsets = [0, 0, 0], sizes = [1, 8, 128], strides = [1, 1, 1]} : vector<10x8x128xf32> to vector<1x8x128xf32>
    %123 = vector.shape_cast %122 : vector<1x8x128xf32> to vector<8x128xf32>
    %c0_117 = arith.constant 0 : index
    %c0_118 = arith.constant 0 : index
    %c0_119 = arith.constant 0 : index
    %124 = vector.load %arg6[%c0_117, %c0_118, %c0_119] : memref<10x128x256xf32, #tpu.memory_space<vmem>>, vector<1x128x256xf32>
    %125 = vector.shape_cast %124 : vector<1x128x256xf32> to vector<128x256xf32>
    %cst_120 = arith.constant dense<0.000000e+00> : vector<8x256xf32>
    %126 = tpu.matmul %123, %125, %cst_120 {dimension_numbers = #tpu.dot_dimension_numbers<[1], [0], [0], [1], [0, 0, 1, 1], [], []>} : vector<8x128xf32>, vector<128x256xf32>, vector<8x256xf32> -> vector<8x256xf32>
    %127 = vector.extract_strided_slice %121 {offsets = [1, 0, 0], sizes = [1, 8, 128], strides = [1, 1, 1]} : vector<10x8x128xf32> to vector<1x8x128xf32>
    %128 = vector.shape_cast %127 : vector<1x8x128xf32> to vector<8x128xf32>
    %c1_121 = arith.constant 1 : index
    %c0_122 = arith.constant 0 : index
    %c0_123 = arith.constant 0 : index
    %129 = vector.load %arg6[%c1_121, %c0_122, %c0_123] : memref<10x128x256xf32, #tpu.memory_space<vmem>>, vector<1x128x256xf32>
    %130 = vector.shape_cast %129 : vector<1x128x256xf32> to vector<128x256xf32>
    %cst_124 = arith.constant dense<0.000000e+00> : vector<8x256xf32>
    %131 = tpu.matmul %128, %130, %cst_124 {dimension_numbers = #tpu.dot_dimension_numbers<[1], [0], [0], [1], [0, 0, 1, 1], [], []>} : vector<8x128xf32>, vector<128x256xf32>, vector<8x256xf32> -> vector<8x256xf32>
    %132 = arith.addf %126, %131 : vector<8x256xf32>
    %133 = vector.extract_strided_slice %121 {offsets = [2, 0, 0], sizes = [1, 8, 128], strides = [1, 1, 1]} : vector<10x8x128xf32> to vector<1x8x128xf32>
    %134 = vector.shape_cast %133 : vector<1x8x128xf32> to vector<8x128xf32>
    %c2_125 = arith.constant 2 : index
    %c0_126 = arith.constant 0 : index
    %c0_127 = arith.constant 0 : index
    %135 = vector.load %arg6[%c2_125, %c0_126, %c0_127] : memref<10x128x256xf32, #tpu.memory_space<vmem>>, vector<1x128x256xf32>
    %136 = vector.shape_cast %135 : vector<1x128x256xf32> to vector<128x256xf32>
    %cst_128 = arith.constant dense<0.000000e+00> : vector<8x256xf32>
    %137 = tpu.matmul %134, %136, %cst_128 {dimension_numbers = #tpu.dot_dimension_numbers<[1], [0], [0], [1], [0, 0, 1, 1], [], []>} : vector<8x128xf32>, vector<128x256xf32>, vector<8x256xf32> -> vector<8x256xf32>
    %138 = arith.addf %132, %137 : vector<8x256xf32>
    %139 = vector.extract_strided_slice %121 {offsets = [3, 0, 0], sizes = [1, 8, 128], strides = [1, 1, 1]} : vector<10x8x128xf32> to vector<1x8x128xf32>
    %140 = vector.shape_cast %139 : vector<1x8x128xf32> to vector<8x128xf32>
    %c3_129 = arith.constant 3 : index
    %c0_130 = arith.constant 0 : index
    %c0_131 = arith.constant 0 : index
    %141 = vector.load %arg6[%c3_129, %c0_130, %c0_131] : memref<10x128x256xf32, #tpu.memory_space<vmem>>, vector<1x128x256xf32>
    %142 = vector.shape_cast %141 : vector<1x128x256xf32> to vector<128x256xf32>
    %cst_132 = arith.constant dense<0.000000e+00> : vector<8x256xf32>
    %143 = tpu.matmul %140, %142, %cst_132 {dimension_numbers = #tpu.dot_dimension_numbers<[1], [0], [0], [1], [0, 0, 1, 1], [], []>} : vector<8x128xf32>, vector<128x256xf32>, vector<8x256xf32> -> vector<8x256xf32>
    %144 = arith.addf %138, %143 : vector<8x256xf32>
    %145 = vector.extract_strided_slice %121 {offsets = [4, 0, 0], sizes = [1, 8, 128], strides = [1, 1, 1]} : vector<10x8x128xf32> to vector<1x8x128xf32>
    %146 = vector.shape_cast %145 : vector<1x8x128xf32> to vector<8x128xf32>
    %c4_133 = arith.constant 4 : index
    %c0_134 = arith.constant 0 : index
    %c0_135 = arith.constant 0 : index
    %147 = vector.load %arg6[%c4_133, %c0_134, %c0_135] : memref<10x128x256xf32, #tpu.memory_space<vmem>>, vector<1x128x256xf32>
    %148 = vector.shape_cast %147 : vector<1x128x256xf32> to vector<128x256xf32>
    %cst_136 = arith.constant dense<0.000000e+00> : vector<8x256xf32>
    %149 = tpu.matmul %146, %148, %cst_136 {dimension_numbers = #tpu.dot_dimension_numbers<[1], [0], [0], [1], [0, 0, 1, 1], [], []>} : vector<8x128xf32>, vector<128x256xf32>, vector<8x256xf32> -> vector<8x256xf32>
    %150 = arith.addf %144, %149 : vector<8x256xf32>
    %151 = vector.extract_strided_slice %121 {offsets = [5, 0, 0], sizes = [1, 8, 128], strides = [1, 1, 1]} : vector<10x8x128xf32> to vector<1x8x128xf32>
    %152 = vector.shape_cast %151 : vector<1x8x128xf32> to vector<8x128xf32>
    %c5_137 = arith.constant 5 : index
    %c0_138 = arith.constant 0 : index
    %c0_139 = arith.constant 0 : index
    %153 = vector.load %arg6[%c5_137, %c0_138, %c0_139] : memref<10x128x256xf32, #tpu.memory_space<vmem>>, vector<1x128x256xf32>
    %154 = vector.shape_cast %153 : vector<1x128x256xf32> to vector<128x256xf32>
    %cst_140 = arith.constant dense<0.000000e+00> : vector<8x256xf32>
    %155 = tpu.matmul %152, %154, %cst_140 {dimension_numbers = #tpu.dot_dimension_numbers<[1], [0], [0], [1], [0, 0, 1, 1], [], []>} : vector<8x128xf32>, vector<128x256xf32>, vector<8x256xf32> -> vector<8x256xf32>
    %156 = arith.addf %150, %155 : vector<8x256xf32>
    %157 = vector.extract_strided_slice %121 {offsets = [6, 0, 0], sizes = [1, 8, 128], strides = [1, 1, 1]} : vector<10x8x128xf32> to vector<1x8x128xf32>
    %158 = vector.shape_cast %157 : vector<1x8x128xf32> to vector<8x128xf32>
    %c6_141 = arith.constant 6 : index
    %c0_142 = arith.constant 0 : index
    %c0_143 = arith.constant 0 : index
    %159 = vector.load %arg6[%c6_141, %c0_142, %c0_143] : memref<10x128x256xf32, #tpu.memory_space<vmem>>, vector<1x128x256xf32>
    %160 = vector.shape_cast %159 : vector<1x128x256xf32> to vector<128x256xf32>
    %cst_144 = arith.constant dense<0.000000e+00> : vector<8x256xf32>
    %161 = tpu.matmul %158, %160, %cst_144 {dimension_numbers = #tpu.dot_dimension_numbers<[1], [0], [0], [1], [0, 0, 1, 1], [], []>} : vector<8x128xf32>, vector<128x256xf32>, vector<8x256xf32> -> vector<8x256xf32>
    %162 = arith.addf %156, %161 : vector<8x256xf32>
    %163 = vector.extract_strided_slice %121 {offsets = [7, 0, 0], sizes = [1, 8, 128], strides = [1, 1, 1]} : vector<10x8x128xf32> to vector<1x8x128xf32>
    %164 = vector.shape_cast %163 : vector<1x8x128xf32> to vector<8x128xf32>
    %c7_145 = arith.constant 7 : index
    %c0_146 = arith.constant 0 : index
    %c0_147 = arith.constant 0 : index
    %165 = vector.load %arg6[%c7_145, %c0_146, %c0_147] : memref<10x128x256xf32, #tpu.memory_space<vmem>>, vector<1x128x256xf32>
    %166 = vector.shape_cast %165 : vector<1x128x256xf32> to vector<128x256xf32>
    %cst_148 = arith.constant dense<0.000000e+00> : vector<8x256xf32>
    %167 = tpu.matmul %164, %166, %cst_148 {dimension_numbers = #tpu.dot_dimension_numbers<[1], [0], [0], [1], [0, 0, 1, 1], [], []>} : vector<8x128xf32>, vector<128x256xf32>, vector<8x256xf32> -> vector<8x256xf32>
    %168 = arith.addf %162, %167 : vector<8x256xf32>
    %169 = vector.extract_strided_slice %121 {offsets = [8, 0, 0], sizes = [1, 8, 128], strides = [1, 1, 1]} : vector<10x8x128xf32> to vector<1x8x128xf32>
    %170 = vector.shape_cast %169 : vector<1x8x128xf32> to vector<8x128xf32>
    %c8_149 = arith.constant 8 : index
    %c0_150 = arith.constant 0 : index
    %c0_151 = arith.constant 0 : index
    %171 = vector.load %arg6[%c8_149, %c0_150, %c0_151] : memref<10x128x256xf32, #tpu.memory_space<vmem>>, vector<1x128x256xf32>
    %172 = vector.shape_cast %171 : vector<1x128x256xf32> to vector<128x256xf32>
    %cst_152 = arith.constant dense<0.000000e+00> : vector<8x256xf32>
    %173 = tpu.matmul %170, %172, %cst_152 {dimension_numbers = #tpu.dot_dimension_numbers<[1], [0], [0], [1], [0, 0, 1, 1], [], []>} : vector<8x128xf32>, vector<128x256xf32>, vector<8x256xf32> -> vector<8x256xf32>
    %174 = arith.addf %168, %173 : vector<8x256xf32>
    %175 = vector.extract_strided_slice %121 {offsets = [9, 0, 0], sizes = [1, 8, 128], strides = [1, 1, 1]} : vector<10x8x128xf32> to vector<1x8x128xf32>
    %176 = vector.shape_cast %175 : vector<1x8x128xf32> to vector<8x128xf32>
    %c9_153 = arith.constant 9 : index
    %c0_154 = arith.constant 0 : index
    %c0_155 = arith.constant 0 : index
    %177 = vector.load %arg6[%c9_153, %c0_154, %c0_155] : memref<10x128x256xf32, #tpu.memory_space<vmem>>, vector<1x128x256xf32>
    %178 = vector.shape_cast %177 : vector<1x128x256xf32> to vector<128x256xf32>
    %cst_156 = arith.constant dense<0.000000e+00> : vector<8x256xf32>
    %179 = tpu.matmul %176, %178, %cst_156 {dimension_numbers = #tpu.dot_dimension_numbers<[1], [0], [0], [1], [0, 0, 1, 1], [], []>} : vector<8x128xf32>, vector<128x256xf32>, vector<8x256xf32> -> vector<8x256xf32>
    %180 = arith.addf %174, %179 : vector<8x256xf32>
    %c0_157 = arith.constant 0 : index
    %c0_158 = arith.constant 0 : index
    %181 = vector.load %arg7[%c0_157, %c0_158] : memref<1x256xf32, #tpu.memory_space<vmem>>, vector<1x256xf32>
    %182 = vector.broadcast %181 : vector<1x256xf32> to vector<8x256xf32>
    %183 = arith.addf %180, %182 : vector<8x256xf32>
    %cst_159 = arith.constant 0.000000e+00 : f32
    %184 = vector.broadcast %cst_159 : f32 to vector<8x256xf32>
    %185 = arith.maximumf %183, %184 : vector<8x256xf32>
    %c0_160 = arith.constant 0 : index
    %c0_161 = arith.constant 0 : index
    %186 = vector.load %arg8[%c0_160, %c0_161] : memref<256x2xf32, #tpu.memory_space<vmem>>, vector<256x2xf32>
    %cst_162 = arith.constant dense<0.000000e+00> : vector<8x2xf32>
    %187 = tpu.matmul %185, %186, %cst_162 {dimension_numbers = #tpu.dot_dimension_numbers<[1], [0], [0], [1], [0, 0, 1, 1], [], []>} : vector<8x256xf32>, vector<256x2xf32>, vector<8x2xf32> -> vector<8x2xf32>
    %c0_163 = arith.constant 0 : index
    %c0_164 = arith.constant 0 : index
    %188 = vector.load %arg9[%c0_163, %c0_164] : memref<1x2xf32, #tpu.memory_space<vmem>>, vector<1x2xf32>
    %189 = vector.broadcast %188 : vector<1x2xf32> to vector<8x2xf32>
    %190 = arith.addf %187, %189 : vector<8x2xf32>
    %c0_165 = arith.constant 0 : index
    %c0_166 = arith.constant 0 : index
    %191 = vector.load %arg10[%c0_165, %c0_166] : memref<8x2xf32, #tpu.memory_space<vmem>>, vector<8x2xf32>
    tpu.vector_store %arg10[%c0_165, %c0_166], %190 {strides = array<i32>} : memref<8x2xf32, #tpu.memory_space<vmem>>, vector<8x2xf32>,
    return
  }
  func.func @transform_0(%arg0: i32) -> (i32, i32, i32) {
    %c0_i32 = arith.constant 0 : i32
    %c0_i32_0 = arith.constant 0 : i32
    %c0_i32_1 = arith.constant 0 : i32
    return %c0_i32, %arg0, %c0_i32_0 : i32, i32, i32
  }
  func.func @transform_1(%arg0: i32) -> (i32, i32) {
    %c0_i32 = arith.constant 0 : i32
    %c0_i32_0 = arith.constant 0 : i32
    %c0_i32_1 = arith.constant 0 : i32
    return %c0_i32, %c0_i32_0 : i32, i32
  }
  func.func @transform_2(%arg0: i32) -> (i32, i32) {
    %c0_i32 = arith.constant 0 : i32
    %c0_i32_0 = arith.constant 0 : i32
    %c0_i32_1 = arith.constant 0 : i32
    return %c0_i32, %c0_i32_0 : i32, i32
  }
  func.func @transform_3(%arg0: i32) -> (i32, i32, i32) {
    %c0_i32 = arith.constant 0 : i32
    %c0_i32_0 = arith.constant 0 : i32
    %c0_i32_1 = arith.constant 0 : i32
    %c0_i32_2 = arith.constant 0 : i32
    return %c0_i32, %c0_i32_0, %c0_i32_1 : i32, i32, i32
  }
  func.func @transform_4(%arg0: i32) -> (i32, i32) {
    %c0_i32 = arith.constant 0 : i32
    %c0_i32_0 = arith.constant 0 : i32
    %c0_i32_1 = arith.constant 0 : i32
    return %c0_i32, %c0_i32_0 : i32, i32
  }
  func.func @transform_5(%arg0: i32) -> (i32, i32, i32) {
    %c0_i32 = arith.constant 0 : i32
    %c0_i32_0 = arith.constant 0 : i32
    %c0_i32_1 = arith.constant 0 : i32
    %c0_i32_2 = arith.constant 0 : i32
    return %c0_i32, %c0_i32_0, %c0_i32_1 : i32, i32, i32
  }
  func.func @transform_6(%arg0: i32) -> (i32, i32) {
    %c0_i32 = arith.constant 0 : i32
    %c0_i32_0 = arith.constant 0 : i32
    %c0_i32_1 = arith.constant 0 : i32
    return %c0_i32, %c0_i32_0 : i32, i32
  }
  func.func @transform_7(%arg0: i32) -> (i32, i32) {
    %c0_i32 = arith.constant 0 : i32
    %c0_i32_0 = arith.constant 0 : i32
    %c0_i32_1 = arith.constant 0 : i32
    return %c0_i32, %c0_i32_0 : i32, i32
  }
  func.func @transform_8(%arg0: i32) -> (i32, i32) {
    %c0_i32 = arith.constant 0 : i32
    %c0_i32_0 = arith.constant 0 : i32
    %c0_i32_1 = arith.constant 0 : i32
    return %c0_i32, %c0_i32_0 : i32, i32
  }
  func.func @transform_9(%arg0: i32) -> (i32, i32) {
    %c0_i32 = arith.constant 0 : i32
    %c0_i32_0 = arith.constant 0 : i32
    return %arg0, %c0_i32 : i32, i32
  }
}

</mosaic_0001>

<llo_original>
// kernel: tpu_custom_call.1
$region0: #{tpu_custom_call.1}
  #allocation0 [shape = 'u32[]', space=smem, size = 0x4, offset = 0x4, fixed_abs, tag = 'smem constant byte address 0x4 - core index']
  #allocation1 [shape = 'u32[144,128]{1,0:T(1,128)}', space=vmem, size = 0x12000, scoped, tag = 'internal scratch']
  #allocation2 [shape = 'f32[35,8,64]{2,1,0:T(8,128)}', space=vmem, size = 0x23000, scoped, tag = 'scratch operand']
  %s0 = inlined_call_operand.hbm [shape: f32[40,8,64], index: 0, kind: input, shape index: {}]
  %s1 = inlined_call_operand.hbm [shape: f32[64,64], index: 1, kind: input, shape index: {}]
  %s2 = inlined_call_operand.hbm [shape: f32[1,64], index: 2, kind: input, shape index: {}]
  %s3 = inlined_call_operand.hbm [shape: f32[16,64,128], index: 3, kind: input, shape index: {}]
  %s4 = inlined_call_operand.hbm [shape: f32[1,128], index: 4, kind: input, shape index: {}]
  %s5 = inlined_call_operand.hbm [shape: f32[10,128,256], index: 5, kind: input, shape index: {}]
  %s6 = inlined_call_operand.hbm [shape: f32[1,256], index: 6, kind: input, shape index: {}]
  %s7 = inlined_call_operand.vmem [shape: f32[256,2], index: 7, kind: input, shape index: {}]
  %s8 = inlined_call_operand.hbm [shape: f32[1,2], index: 8, kind: input, shape index: {}]
  %s9 = inlined_call_operand.vmem [shape: f32[8,2], index: 9, kind: output, shape index: {}]
  %s10 = sld [smem:[#allocation0]]
  $region78: #{tpu_custom_call.1} parent=0
    _
  %s12 = ssub.s32 1, %s10
  %s13 = scalar_select 0, %s12, %s10
  $region1: #{tpu_custom_call.1} parent=0
    #allocation3 [shape = 'u8[163840]{0}', space=vmem, size = 0x28000, scoped, tag = 'input window, operand 0, single buffered']
    #allocation4 [shape = 's32[1]{0}', space=sflag, size = 0x4, scoped, tag = 'scoped memory for tpu_custom_call.1']
    #allocation5 [shape = 'u8[32768]{0}', space=vmem, size = 0x8000, scoped, tag = 'input window, operand 1, single buffered']
    #allocation6 [shape = 's32[1]{0}', space=sflag, size = 0x4, scoped, tag = 'scoped memory for tpu_custom_call.1']
    #allocation7 [shape = 'u8[512]{0}', space=vmem, size = 0x400, scoped, tag = 'input window, operand 2, single buffered']
    #allocation8 [shape = 'u8[524288]{0}', space=vmem, size = 0x80000, scoped, tag = 'input window, operand 3, single buffered']
    #allocation9 [shape = 's32[1]{0}', space=sflag, size = 0x4, scoped, tag = 'scoped memory for tpu_custom_call.1']
    #allocation10 [shape = 'u8[512]{0}', space=vmem, size = 0x400, scoped, tag = 'input window, operand 4, single buffered']
    #allocation11 [shape = 'u8[1310720]{0}', space=vmem, size = 0x140000, scoped, tag = 'input window, operand 5, single buffered']
    #allocation12 [shape = 's32[1]{0}', space=sflag, size = 0x4, scoped, tag = 'scoped memory for tpu_custom_call.1']
    #allocation13 [shape = 'u8[1024]{0}', space=vmem, size = 0x400, scoped, tag = 'input window, operand 6, single buffered']
    #allocation14 [shape = 'u8[512]{0}', space=vmem, size = 0x400, scoped, tag = 'input window, operand 8, single buffered']
    #allocation15 [shape = 's32[1]{0}', space=sflag, size = 0x4, scoped, tag = 'scoped memory for tpu_custom_call.1']
    %14 = vsyncpa [#allocation4], 0
    %15 = vsyncpa [#allocation6], 0
    %16 = vsyncpa [#allocation9], 0
    %17 = vsyncpa [#allocation12], 0
    %18 = vsyncpa [#allocation15], 0
    // Predicated region
    $region2: #{tpu_custom_call.1} parent=1 // pred_check
      _
    $region3: #{tpu_custom_call.1} parent=1 // pred_check_branch
      %20 = sbr.rel (0) target = $region5
    $region4: #{tpu_custom_call.1} parent=1 // pred_region
      %s22 = ssub.s32 5120, 5120
      %23 = vsyncadd [#allocation4], %s22
      %s24 = sshll.u32 [#allocation3], 4
      %s25 = int_to_ptr.vmem [resolvable:$true] %s24
      %30 = dma.hbm_to_vmem [thread:$0]  %s0, 5120, %s25, [#allocation4], 128, 128, 8
    $region5: #{tpu_custom_call.1} parent=1 // pred_fallthru
      _
    // Predicated region
    $region6: #{tpu_custom_call.1} parent=1 // pred_check
      _
    $region7: #{tpu_custom_call.1} parent=1 // pred_check_branch
      %32 = sbr.rel (0) target = $region9
    $region8: #{tpu_custom_call.1} parent=1 // pred_region
      %s34 = ssub.s32 1024, 1024
      %35 = vsyncadd [#allocation6], %s34
      %s36 = sshll.u32 [#allocation5], 4
      %s37 = int_to_ptr.vmem [resolvable:$true] %s36
      %42 = dma.hbm_to_vmem [thread:$0]  %s1, 1024, %s37, [#allocation6], 128, 128, 8
    $region9: #{tpu_custom_call.1} parent=1 // pred_fallthru
      _
    // Predicated region
    $region10: #{tpu_custom_call.1} parent=1 // pred_check
      _
    $region11: #{tpu_custom_call.1} parent=1 // pred_check_branch
      %44 = sbr.rel (0) target = $region13
    $region12: #{tpu_custom_call.1} parent=1 // pred_region
      %s46 = ssub.s32 16, 16
      %47 = vsyncadd [#allocation6], %s46
      %s49 = sshll.u32 [#allocation7], 4
      %s50 = int_to_ptr.vmem [resolvable:$true] %s49
      %52 = dma.hbm_to_vmem [thread:$0]  %s2, 16, %s50, [#allocation6]
    $region13: #{tpu_custom_call.1} parent=1 // pred_fallthru
      _
    // Predicated region
    $region14: #{tpu_custom_call.1} parent=1 // pred_check
      _
    $region15: #{tpu_custom_call.1} parent=1 // pred_check_branch
      %54 = sbr.rel (0) target = $region17
    $region16: #{tpu_custom_call.1} parent=1 // pred_region
      %s56 = ssub.s32 16384, 16384
      %57 = vsyncadd [#allocation9], %s56
      %s58 = sshll.u32 [#allocation8], 4
      %s59 = int_to_ptr.vmem [resolvable:$true] %s58
      %64 = dma.hbm_to_vmem [thread:$0]  %s3, 16384, %s59, [#allocation9], 128, 128, 8
    $region17: #{tpu_custom_call.1} parent=1 // pred_fallthru
      _
    // Predicated region
    $region18: #{tpu_custom_call.1} parent=1 // pred_check
      _
    $region19: #{tpu_custom_call.1} parent=1 // pred_check_branch
      %66 = sbr.rel (0) target = $region21
    $region20: #{tpu_custom_call.1} parent=1 // pred_region
      %s68 = ssub.s32 16, 16
      %69 = vsyncadd [#allocation9], %s68
      %s71 = sshll.u32 [#allocation10], 4
      %s72 = int_to_ptr.vmem [resolvable:$true] %s71
      %74 = dma.hbm_to_vmem [thread:$0]  %s4, 16, %s72, [#allocation9]
    $region21: #{tpu_custom_call.1} parent=1 // pred_fallthru
      _
    // Predicated region
    $region22: #{tpu_custom_call.1} parent=1 // pred_check
      _
    $region23: #{tpu_custom_call.1} parent=1 // pred_check_branch
      %76 = sbr.rel (0) target = $region25
    $region24: #{tpu_custom_call.1} parent=1 // pred_region
      %s78 = ssub.s32 40960, 40960
      %79 = vsyncadd [#allocation12], %s78
      %s80 = sshll.u32 [#allocation11], 4
      %s81 = int_to_ptr.vmem [resolvable:$true] %s80
      %86 = dma.hbm_to_vmem [thread:$0]  %s5, 40960, %s81, [#allocation12], 256, 256, 16
    $region25: #{tpu_custom_call.1} parent=1 // pred_fallthru
      _
    // Predicated region
    $region26: #{tpu_custom_call.1} parent=1 // pred_check
      _
    $region27: #{tpu_custom_call.1} parent=1 // pred_check_branch
      %88 = sbr.rel (0) target = $region29
    $region28: #{tpu_custom_call.1} parent=1 // pred_region
      %s90 = ssub.s32 32, 32
      %91 = vsyncadd [#allocation12], %s90
      %s93 = sshll.u32 [#allocation13], 4
      %s94 = int_to_ptr.vmem [resolvable:$true] %s93
      %96 = dma.hbm_to_vmem [thread:$0]  %s6, 32, %s94, [#allocation12]
    $region29: #{tpu_custom_call.1} parent=1 // pred_fallthru
      _
    // Predicated region
    $region30: #{tpu_custom_call.1} parent=1 // pred_check
      _
    $region31: #{tpu_custom_call.1} parent=1 // pred_check_branch
      %98 = sbr.rel (0) target = $region33
    $region32: #{tpu_custom_call.1} parent=1 // pred_region
      _
    $region33: #{tpu_custom_call.1} parent=1 // pred_fallthru
      _
    // Predicated region
    $region34: #{tpu_custom_call.1} parent=1 // pred_check
      _
    $region35: #{tpu_custom_call.1} parent=1 // pred_check_branch
      %100 = sbr.rel (0) target = $region37
    $region36: #{tpu_custom_call.1} parent=1 // pred_region
      %s102 = ssub.s32 16, 16
      %103 = vsyncadd [#allocation15], %s102
      %s105 = sshll.u32 [#allocation14], 4
      %s106 = int_to_ptr.vmem [resolvable:$true] %s105
      %108 = dma.hbm_to_vmem [thread:$0]  %s8, 16, %s106, [#allocation15]
    $region37: #{tpu_custom_call.1} parent=1 // pred_fallthru
      _
    // Predicated region
    $region38: #{tpu_custom_call.1} parent=1 // pred_check
      _
    $region39: #{tpu_custom_call.1} parent=1 // pred_check_branch
      %110 = sbr.rel (0) target = $region41
    $region40: #{tpu_custom_call.1} parent=1 // pred_region
      %111 = dma.done [#allocation4], 5120
    $region41: #{tpu_custom_call.1} parent=1 // pred_fallthru
      _
    // Predicated region
    $region42: #{tpu_custom_call.1} parent=1 // pred_check
      _
    $region43: #{tpu_custom_call.1} parent=1 // pred_check_branch
      %113 = sbr.rel (0) target = $region45
    $region44: #{tpu_custom_call.1} parent=1 // pred_region
      %114 = dma.done [#allocation6], 1024
    $region45: #{tpu_custom_call.1} parent=1 // pred_fallthru
      _
    // Predicated region
    $region46: #{tpu_custom_call.1} parent=1 // pred_check
      _
    $region47: #{tpu_custom_call.1} parent=1 // pred_check_branch
      %116 = sbr.rel (0) target = $region49
    $region48: #{tpu_custom_call.1} parent=1 // pred_region
      %117 = dma.done [#allocation6], 16
    $region49: #{tpu_custom_call.1} parent=1 // pred_fallthru
      _
    // Predicated region
    $region50: #{tpu_custom_call.1} parent=1 // pred_check
      _
    $region51: #{tpu_custom_call.1} parent=1 // pred_check_branch
      %119 = sbr.rel (0) target = $region53
    $region52: #{tpu_custom_call.1} parent=1 // pred_region
      %120 = dma.done [#allocation9], 16384
    $region53: #{tpu_custom_call.1} parent=1 // pred_fallthru
      _
    // Predicated region
    $region54: #{tpu_custom_call.1} parent=1 // pred_check
      _
    $region55: #{tpu_custom_call.1} parent=1 // pred_check_branch
      %122 = sbr.rel (0) target = $region57
    $region56: #{tpu_custom_call.1} parent=1 // pred_region
      %123 = dma.done [#allocation9], 16
    $region57: #{tpu_custom_call.1} parent=1 // pred_fallthru
      _
    // Predicated region
    $region58: #{tpu_custom_call.1} parent=1 // pred_check
      _
    $region59: #{tpu_custom_call.1} parent=1 // pred_check_branch
      %125 = sbr.rel (0) target = $region61
    $region60: #{tpu_custom_call.1} parent=1 // pred_region
      %126 = dma.done [#allocation12], 40960
    $region61: #{tpu_custom_call.1} parent=1 // pred_fallthru
      _
    // Predicated region
    $region62: #{tpu_custom_call.1} parent=1 // pred_check
      _
    $region63: #{tpu_custom_call.1} parent=1 // pred_check_branch
      %128 = sbr.rel (0) target = $region65
    $region64: #{tpu_custom_call.1} parent=1 // pred_region
      %129 = dma.done [#allocation12], 32
    $region65: #{tpu_custom_call.1} parent=1 // pred_fallthru
      _
    // Predicated region
    $region66: #{tpu_custom_call.1} parent=1 // pred_check
      _
    $region67: #{tpu_custom_call.1} parent=1 // pred_check_branch
      %131 = sbr.rel (0) target = $region69
    $region68: #{tpu_custom_call.1} parent=1 // pred_region
      %132 = dma.done [#allocation15], 16
    $region69: #{tpu_custom_call.1} parent=1 // pred_fallthru
      _
    %v133 = vld [vmem:[#allocation3] sm:$0xff]
    %v134 = vld [vmem:[#allocation3 + $0x8] sm:$0xff]
    %v135 = vld [vmem:[#allocation3 + $0x10] sm:$0xff]
    %v136 = vld [vmem:[#allocation3 + $0x18] sm:$0xff]
    %v137 = vld [vmem:[#allocation3 + $0x20] sm:$0xff]
    %v138 = vld [vmem:[#allocation3 + $0x28] sm:$0xff]
    %v139 = vld [vmem:[#allocation3 + $0x30] sm:$0xff]
    %v140 = vld [vmem:[#allocation3 + $0x38] sm:$0xff]
    %v141 = vld [vmem:[#allocation3 + $0x40] sm:$0xff]
    %v142 = vld [vmem:[#allocation3 + $0x48] sm:$0xff]
    %v143 = vld [vmem:[#allocation3 + $0x50] sm:$0xff]
    %v144 = vld [vmem:[#allocation3 + $0x58] sm:$0xff]
    %v145 = vld [vmem:[#allocation3 + $0x60] sm:$0xff]
    %v146 = vld [vmem:[#allocation3 + $0x68] sm:$0xff]
    %v147 = vld [vmem:[#allocation3 + $0x70] sm:$0xff]
    %v148 = vld [vmem:[#allocation3 + $0x78] sm:$0xff]
    %v149 = vld [vmem:[#allocation3 + $0x80] sm:$0xff]
    %v150 = vld [vmem:[#allocation3 + $0x88] sm:$0xff]
    %v151 = vld [vmem:[#allocation3 + $0x90] sm:$0xff]
    %v152 = vld [vmem:[#allocation3 + $0x98] sm:$0xff]
    %v153 = vld [vmem:[#allocation3 + $0xa0] sm:$0xff]
    %v154 = vld [vmem:[#allocation3 + $0xa8] sm:$0xff]
    %v155 = vld [vmem:[#allocation3 + $0xb0] sm:$0xff]
    %v156 = vld [vmem:[#allocation3 + $0xb8] sm:$0xff]
    %v157 = vld [vmem:[#allocation3 + $0xc0] sm:$0xff]
    %v158 = vld [vmem:[#allocation3 + $0xc8] sm:$0xff]
    %v159 = vld [vmem:[#allocation3 + $0xd0] sm:$0xff]
    %v160 = vld [vmem:[#allocation3 + $0xd8] sm:$0xff]
    %v161 = vld [vmem:[#allocation3 + $0xe0] sm:$0xff]
    %v162 = vld [vmem:[#allocation3 + $0xe8] sm:$0xff]
    %v163 = vld [vmem:[#allocation3 + $0xf0] sm:$0xff]
    %v164 = vld [vmem:[#allocation3 + $0xf8] sm:$0xff]
    %v165 = vld [vmem:[#allocation3 + $0x100] sm:$0xff]
    %v166 = vld [vmem:[#allocation3 + $0x108] sm:$0xff]
    %v167 = vld [vmem:[#allocation3 + $0x110] sm:$0xff]
    %v168 = vld [vmem:[#allocation3 + $0x118] sm:$0xff]
    %v169 = vld [vmem:[#allocation3 + $0x120] sm:$0xff]
    %v170 = vld [vmem:[#allocation3 + $0x128] sm:$0xff]
    %v171 = vld [vmem:[#allocation3 + $0x130] sm:$0xff]
    %v172 = vld [vmem:[#allocation3 + $0x138] sm:$0xff]
    %v173 = vld [vmem:[#allocation5] sm:$0xff]
    %v174 = vld [vmem:[#allocation5 + $0x8] sm:$0xff]
    %v175 = vld [vmem:[#allocation5 + $0x10] sm:$0xff]
    %v176 = vld [vmem:[#allocation5 + $0x18] sm:$0xff]
    %v177 = vld [vmem:[#allocation5 + $0x20] sm:$0xff]
    %v178 = vld [vmem:[#allocation5 + $0x28] sm:$0xff]
    %v179 = vld [vmem:[#allocation5 + $0x30] sm:$0xff]
    %v180 = vld [vmem:[#allocation5 + $0x38] sm:$0xff]
    %v181 = vld [vmem:[#allocation7] sm:$0x1]
    %v183 = vlaneseq
    %v184 = vshrl.u32 %v183, 7
    %v185 = vsub.s32 0, %v184
    %v186 = vrot.slane %v181, %v185
    %vm188 = vcmask 523264
    %v190 = vsel %vm188, %v133, 0
    %v193 = vsel %vm188, %v134, 0
    %v196 = vsel %vm188, %v135, 0
    %v199 = vsel %vm188, %v136, 0
    %v202 = vsel %vm188, %v137, 0
    %v205 = vsel %vm188, %v138, 0
    %v208 = vsel %vm188, %v139, 0
    %v211 = vsel %vm188, %v140, 0
    %v214 = vsel %vm188, %v141, 0
    %v217 = vsel %vm188, %v142, 0
    %v220 = vsel %vm188, %v143, 0
    %v223 = vsel %vm188, %v144, 0
    %v226 = vsel %vm188, %v145, 0
    %v229 = vsel %vm188, %v146, 0
    %v232 = vsel %vm188, %v147, 0
    %v235 = vsel %vm188, %v148, 0
    %v238 = vsel %vm188, %v149, 0
    %v241 = vsel %vm188, %v150, 0
    %v244 = vsel %vm188, %v151, 0
    %v247 = vsel %vm188, %v152, 0
    %v250 = vsel %vm188, %v153, 0
    %v253 = vsel %vm188, %v154, 0
    %v256 = vsel %vm188, %v155, 0
    %v259 = vsel %vm188, %v156, 0
    %v262 = vsel %vm188, %v157, 0
    %v265 = vsel %vm188, %v158, 0
    %v268 = vsel %vm188, %v159, 0
    %v271 = vsel %vm188, %v160, 0
    %v274 = vsel %vm188, %v161, 0
    %v277 = vsel %vm188, %v162, 0
    %v280 = vsel %vm188, %v163, 0
    %v283 = vsel %vm188, %v164, 0
    %v286 = vsel %vm188, %v165, 0
    %v289 = vsel %vm188, %v166, 0
    %v292 = vsel %vm188, %v167, 0
    %v295 = vsel %vm188, %v168, 0
    %v298 = vsel %vm188, %v169, 0
    %v301 = vsel %vm188, %v170, 0
    %v304 = vsel %vm188, %v171, 0
    %v307 = vsel %vm188, %v172, 0
    %309 = vmatprep.subr.mxu0 0.0
    %310 = vmatpush1.msra.mxu0 %v173
    %311 = vmatprep.subr.mxu0 0.0
    %312 = vmatpush1.msra.mxu0 %v174
    %313 = vmatprep.subr.mxu0 0.0
    %314 = vmatpush1.msra.mxu0 %v175
    %315 = vmatprep.subr.mxu0 0.0
    %316 = vmatpush1.msra.mxu0 %v176
    %317 = vmatprep.subr.mxu0 0.0
    %318 = vmatpush1.msra.mxu0 %v177
    %319 = vmatprep.subr.mxu0 0.0
    %320 = vmatpush1.msra.mxu0 %v178
    %321 = vmatprep.subr.mxu0 0.0
    %322 = vmatpush1.msra.mxu0 %v179
    %323 = vmatprep.subr.mxu0 0.0
    %324 = vmatpush1.msra.mxu0 %v180
    %325 = vmatprep.subr.mxu0 0.0
    %326 = vmatpush1.msra.mxu0 0.0
    %327 = vmatprep.subr.mxu0 0.0
    %328 = vmatpush1.msra.mxu0 0.0
    %329 = vmatprep.subr.mxu0 0.0
    %330 = vmatpush1.msra.mxu0 0.0
    %331 = vmatprep.subr.mxu0 0.0
    %332 = vmatpush1.msra.mxu0 0.0
    %333 = vmatprep.subr.mxu0 0.0
    %334 = vmatpush1.msra.mxu0 0.0
    %335 = vmatprep.subr.mxu0 0.0
    %336 = vmatpush1.msra.mxu0 0.0
    %337 = vmatprep.subr.mxu0 0.0
    %338 = vmatpush1.msra.mxu0 0.0
    %339 = vmatprep.subr.mxu0 0.0
    %340 = vmatpush1.msra.mxu0 0.0
    %341 = vmatprep.subr.mxu0 0.0
    %342 = vmatpush1.msra.mxu0 0.0
    %343 = vmatprep.subr.mxu0 0.0
    %344 = vmatpush1.msra.mxu0 0.0
    %345 = vmatprep.subr.mxu0 0.0
    %346 = vmatpush1.msra.mxu0 0.0
    %347 = vmatprep.subr.mxu0 0.0
    %348 = vmatpush1.msra.mxu0 0.0
    %349 = vmatprep.subr.mxu0 0.0
    %350 = vmatpush1.msra.mxu0 0.0
    %351 = vmatprep.subr.mxu0 0.0
    %352 = vmatpush1.msra.mxu0 0.0
    %353 = vmatprep.subr.mxu0 0.0
    %354 = vmatpush1.msra.mxu0 0.0
    %355 = vmatprep.subr.mxu0 0.0
    %356 = vmatpush1.msra.mxu0 0.0
    %357 = vmatprep.subr.mxu0 0.0
    %358 = vmatpush1.msra.mxu0 0.0
    %359 = vmatprep.subr.mxu0 0.0
    %360 = vmatpush1.msra.mxu0 0.0
    %361 = vmatprep.subr.mxu0 0.0
    %362 = vmatpush1.msra.mxu0 0.0
    %363 = vmatprep.subr.mxu0 0.0
    %364 = vmatpush1.msra.mxu0 0.0
    %365 = vmatprep.subr.mxu0 0.0
    %366 = vmatpush1.msra.mxu0 0.0
    %367 = vmatprep.subr.mxu0 0.0
    %368 = vmatpush1.msra.mxu0 0.0
    %369 = vmatprep.subr.mxu0 0.0
    %370 = vmatpush1.msra.mxu0 0.0
    %371 = vmatprep.subr.mxu0 0.0
    %372 = vmatpush1.msra.mxu0 0.0
    %373 = vmatprep.mubr.f32.mxu0 0.0
    %374 = vmatmul.mubr.f32.gmra.mrb[0].mxu0 %v190
    %v375 = vpop.f32.mrb[0].mxu0
    %v376 = vadd.f32 %v186, %v375
    %v377 = vpop.f32.mrb[0].mxu0
    %378 = vmatprep.mubr.f32.mxu0 0.0
    %379 = vmatmul.mubr.f32.gmra.mrb[0].mxu0 %v193
    %v380 = vpop.f32.mrb[0].mxu0
    %v381 = vadd.f32 %v186, %v380
    %v382 = vpop.f32.mrb[0].mxu0
    %383 = vmatprep.mubr.f32.mxu0 0.0
    %384 = vmatmul.mubr.f32.gmra.mrb[0].mxu0 %v196
    %v385 = vpop.f32.mrb[0].mxu0
    %v386 = vadd.f32 %v186, %v385
    %v387 = vpop.f32.mrb[0].mxu0
    %388 = vmatprep.mubr.f32.mxu0 0.0
    %389 = vmatmul.mubr.f32.gmra.mrb[0].mxu0 %v199
    %v390 = vpop.f32.mrb[0].mxu0
    %v391 = vadd.f32 %v186, %v390
    %v392 = vpop.f32.mrb[0].mxu0
    %393 = vmatprep.mubr.f32.mxu0 0.0
    %394 = vmatmul.mubr.f32.gmra.mrb[0].mxu0 %v202
    %v395 = vpop.f32.mrb[0].mxu0
    %v396 = vadd.f32 %v186, %v395
    %v397 = vpop.f32.mrb[0].mxu0
    %398 = vmatprep.mubr.f32.mxu0 0.0
    %399 = vmatmul.mubr.f32.gmra.mrb[0].mxu0 %v205
    %v400 = vpop.f32.mrb[0].mxu0
    %v401 = vadd.f32 %v186, %v400
    %v402 = vpop.f32.mrb[0].mxu0
    %403 = vmatprep.mubr.f32.mxu0 0.0
    %404 = vmatmul.mubr.f32.gmra.mrb[0].mxu0 %v208
    %v405 = vpop.f32.mrb[0].mxu0
    %v406 = vadd.f32 %v186, %v405
    %v407 = vpop.f32.mrb[0].mxu0
    %408 = vmatprep.mubr.f32.mxu0 0.0
    %409 = vmatmul.mubr.f32.gmra.mrb[0].mxu0 %v211
    %v410 = vpop.f32.mrb[0].mxu0
    %v411 = vadd.f32 %v186, %v410
    %v412 = vpop.f32.mrb[0].mxu0
    %413 = vmatprep.mubr.f32.mxu0 0.0
    %414 = vmatmul.mubr.f32.gmra.mrb[0].mxu0 %v214
    %v415 = vpop.f32.mrb[0].mxu0
    %v416 = vadd.f32 %v186, %v415
    %v417 = vpop.f32.mrb[0].mxu0
    %418 = vmatprep.mubr.f32.mxu0 0.0
    %419 = vmatmul.mubr.f32.gmra.mrb[0].mxu0 %v217
    %v420 = vpop.f32.mrb[0].mxu0
    %v421 = vadd.f32 %v186, %v420
    %v422 = vpop.f32.mrb[0].mxu0
    %423 = vmatprep.mubr.f32.mxu0 0.0
    %424 = vmatmul.mubr.f32.gmra.mrb[0].mxu0 %v220
    %v425 = vpop.f32.mrb[0].mxu0
    %v426 = vadd.f32 %v186, %v425
    %v427 = vpop.f32.mrb[0].mxu0
    %428 = vmatprep.mubr.f32.mxu0 0.0
    %429 = vmatmul.mubr.f32.gmra.mrb[0].mxu0 %v223
    %v430 = vpop.f32.mrb[0].mxu0
    %v431 = vadd.f32 %v186, %v430
    %v432 = vpop.f32.mrb[0].mxu0
    %433 = vmatprep.mubr.f32.mxu0 0.0
    %434 = vmatmul.mubr.f32.gmra.mrb[0].mxu0 %v226
    %v435 = vpop.f32.mrb[0].mxu0
    %v436 = vadd.f32 %v186, %v435
    %v437 = vpop.f32.mrb[0].mxu0
    %438 = vmatprep.mubr.f32.mxu0 0.0
    %439 = vmatmul.mubr.f32.gmra.mrb[0].mxu0 %v229
    %v440 = vpop.f32.mrb[0].mxu0
    %v441 = vadd.f32 %v186, %v440
    %v442 = vpop.f32.mrb[0].mxu0
    %443 = vmatprep.mubr.f32.mxu0 0.0
    %444 = vmatmul.mubr.f32.gmra.mrb[0].mxu0 %v232
    %v445 = vpop.f32.mrb[0].mxu0
    %v446 = vadd.f32 %v186, %v445
    %v447 = vpop.f32.mrb[0].mxu0
    %448 = vmatprep.mubr.f32.mxu0 0.0
    %449 = vmatmul.mubr.f32.gmra.mrb[0].mxu0 %v235
    %v450 = vpop.f32.mrb[0].mxu0
    %v451 = vadd.f32 %v186, %v450
    %v452 = vpop.f32.mrb[0].mxu0
    %453 = vmatprep.mubr.f32.mxu0 0.0
    %454 = vmatmul.mubr.f32.gmra.mrb[0].mxu0 %v238
    %v455 = vpop.f32.mrb[0].mxu0
    %v456 = vadd.f32 %v186, %v455
    %v457 = vpop.f32.mrb[0].mxu0
    %458 = vmatprep.mubr.f32.mxu0 0.0
    %459 = vmatmul.mubr.f32.gmra.mrb[0].mxu0 %v241
    %v460 = vpop.f32.mrb[0].mxu0
    %v461 = vadd.f32 %v186, %v460
    %v462 = vpop.f32.mrb[0].mxu0
    %463 = vmatprep.mubr.f32.mxu0 0.0
    %464 = vmatmul.mubr.f32.gmra.mrb[0].mxu0 %v244
    %v465 = vpop.f32.mrb[0].mxu0
    %v466 = vadd.f32 %v186, %v465
    %v467 = vpop.f32.mrb[0].mxu0
    %468 = vmatprep.mubr.f32.mxu0 0.0
    %469 = vmatmul.mubr.f32.gmra.mrb[0].mxu0 %v247
    %v470 = vpop.f32.mrb[0].mxu0
    %v471 = vadd.f32 %v186, %v470
    %v472 = vpop.f32.mrb[0].mxu0
    %473 = vmatprep.mubr.f32.mxu0 0.0
    %474 = vmatmul.mubr.f32.gmra.mrb[0].mxu0 %v250
    %v475 = vpop.f32.mrb[0].mxu0
    %v476 = vadd.f32 %v186, %v475
    %v477 = vpop.f32.mrb[0].mxu0
    %478 = vmatprep.mubr.f32.mxu0 0.0
    %479 = vmatmul.mubr.f32.gmra.mrb[0].mxu0 %v253
    %v480 = vpop.f32.mrb[0].mxu0
    %v481 = vadd.f32 %v186, %v480
    %v482 = vpop.f32.mrb[0].mxu0
    %483 = vmatprep.mubr.f32.mxu0 0.0
    %484 = vmatmul.mubr.f32.gmra.mrb[0].mxu0 %v256
    %v485 = vpop.f32.mrb[0].mxu0
    %v486 = vadd.f32 %v186, %v485
    %v487 = vpop.f32.mrb[0].mxu0
    %488 = vmatprep.mubr.f32.mxu0 0.0
    %489 = vmatmul.mubr.f32.gmra.mrb[0].mxu0 %v259
    %v490 = vpop.f32.mrb[0].mxu0
    %v491 = vadd.f32 %v186, %v490
    %v492 = vpop.f32.mrb[0].mxu0
    %493 = vmatprep.mubr.f32.mxu0 0.0
    %494 = vmatmul.mubr.f32.gmra.mrb[0].mxu0 %v262
    %v495 = vpop.f32.mrb[0].mxu0
    %v496 = vadd.f32 %v186, %v495
    %v497 = vpop.f32.mrb[0].mxu0
    %498 = vmatprep.mubr.f32.mxu0 0.0
    %499 = vmatmul.mubr.f32.gmra.mrb[0].mxu0 %v265
    %v500 = vpop.f32.mrb[0].mxu0
    %v501 = vadd.f32 %v186, %v500
    %v502 = vpop.f32.mrb[0].mxu0
    %503 = vmatprep.mubr.f32.mxu0 0.0
    %504 = vmatmul.mubr.f32.gmra.mrb[0].mxu0 %v268
    %v505 = vpop.f32.mrb[0].mxu0
    %v506 = vadd.f32 %v186, %v505
    %v507 = vpop.f32.mrb[0].mxu0
    %508 = vmatprep.mubr.f32.mxu0 0.0
    %509 = vmatmul.mubr.f32.gmra.mrb[0].mxu0 %v271
    %v510 = vpop.f32.mrb[0].mxu0
    %v511 = vadd.f32 %v186, %v510
    %v512 = vpop.f32.mrb[0].mxu0
    %513 = vmatprep.mubr.f32.mxu0 0.0
    %514 = vmatmul.mubr.f32.gmra.mrb[0].mxu0 %v274
    %v515 = vpop.f32.mrb[0].mxu0
    %v516 = vadd.f32 %v186, %v515
    %v517 = vpop.f32.mrb[0].mxu0
    %518 = vmatprep.mubr.f32.mxu0 0.0
    %519 = vmatmul.mubr.f32.gmra.mrb[0].mxu0 %v277
    %v520 = vpop.f32.mrb[0].mxu0
    %v521 = vadd.f32 %v186, %v520
    %v522 = vpop.f32.mrb[0].mxu0
    %523 = vmatprep.mubr.f32.mxu0 0.0
    %524 = vmatmul.mubr.f32.gmra.mrb[0].mxu0 %v280
    %v525 = vpop.f32.mrb[0].mxu0
    %v526 = vadd.f32 %v186, %v525
    %v527 = vpop.f32.mrb[0].mxu0
    %528 = vmatprep.mubr.f32.mxu0 0.0
    %529 = vmatmul.mubr.f32.gmra.mrb[0].mxu0 %v283
    %v530 = vpop.f32.mrb[0].mxu0
    %v531 = vadd.f32 %v186, %v530
    %v532 = vpop.f32.mrb[0].mxu0
    %533 = vmatprep.mubr.f32.mxu0 0.0
    %534 = vmatmul.mubr.f32.gmra.mrb[0].mxu0 %v286
    %v535 = vpop.f32.mrb[0].mxu0
    %v536 = vadd.f32 %v186, %v535
    %v537 = vpop.f32.mrb[0].mxu0
    %538 = vmatprep.mubr.f32.mxu0 0.0
    %539 = vmatmul.mubr.f32.gmra.mrb[0].mxu0 %v289
    %v540 = vpop.f32.mrb[0].mxu0
    %v541 = vadd.f32 %v186, %v540
    %v542 = vpop.f32.mrb[0].mxu0
    %543 = vmatprep.mubr.f32.mxu0 0.0
    %544 = vmatmul.mubr.f32.gmra.mrb[0].mxu0 %v292
    %v545 = vpop.f32.mrb[0].mxu0
    %v546 = vadd.f32 %v186, %v545
    %v547 = vpop.f32.mrb[0].mxu0
    %548 = vmatprep.mubr.f32.mxu0 0.0
    %549 = vmatmul.mubr.f32.gmra.mrb[0].mxu0 %v295
    %v550 = vpop.f32.mrb[0].mxu0
    %v551 = vadd.f32 %v186, %v550
    %v552 = vpop.f32.mrb[0].mxu0
    %553 = vmatprep.mubr.f32.mxu0 0.0
    %554 = vmatmul.mubr.f32.gmra.mrb[0].mxu0 %v298
    %v555 = vpop.f32.mrb[0].mxu0
    %v556 = vadd.f32 %v186, %v555
    %v557 = vpop.f32.mrb[0].mxu0
    %558 = vmatprep.mubr.f32.mxu0 0.0
    %559 = vmatmul.mubr.f32.gmra.mrb[0].mxu0 %v301
    %v560 = vpop.f32.mrb[0].mxu0
    %v561 = vadd.f32 %v186, %v560
    %v562 = vpop.f32.mrb[0].mxu0
    %563 = vmatprep.mubr.f32.mxu0 0.0
    %564 = vmatmul.mubr.f32.gmra.mrb[0].mxu0 %v304
    %v565 = vpop.f32.mrb[0].mxu0
    %v566 = vadd.f32 %v186, %v565
    %v567 = vpop.f32.mrb[0].mxu0
    %568 = vmatprep.mubr.f32.mxu0 0.0
    %569 = vmatmul.mubr.f32.gmra.mrb[0].mxu0 %v307
    %v570 = vpop.f32.mrb[0].mxu0
    %v571 = vadd.f32 %v186, %v570
    %v572 = vpop.f32.mrb[0].mxu0
    %573 = vdwg.mxu0
    %v574 = vmax.f32 %v376, 0.0
    %v575 = vmax.f32 %v381, 0.0
    %v576 = vmax.f32 %v386, 0.0
    %v577 = vmax.f32 %v391, 0.0
    %v578 = vmax.f32 %v396, 0.0
    %v579 = vmax.f32 %v401, 0.0
    %v580 = vmax.f32 %v406, 0.0
    %v581 = vmax.f32 %v411, 0.0
    %v582 = vmax.f32 %v416, 0.0
    %v583 = vmax.f32 %v421, 0.0
    %v584 = vmax.f32 %v426, 0.0
    %v585 = vmax.f32 %v431, 0.0
    %v586 = vmax.f32 %v436, 0.0
    %v587 = vmax.f32 %v441, 0.0
    %v588 = vmax.f32 %v446, 0.0
    %v589 = vmax.f32 %v451, 0.0
    %v590 = vmax.f32 %v456, 0.0
    %v591 = vmax.f32 %v461, 0.0
    %v592 = vmax.f32 %v466, 0.0
    %v593 = vmax.f32 %v471, 0.0
    %v594 = vmax.f32 %v476, 0.0
    %v595 = vmax.f32 %v481, 0.0
    %v596 = vmax.f32 %v486, 0.0
    %v597 = vmax.f32 %v491, 0.0
    %v598 = vmax.f32 %v496, 0.0
    %v599 = vmax.f32 %v501, 0.0
    %v600 = vmax.f32 %v506, 0.0
    %v601 = vmax.f32 %v511, 0.0
    %v602 = vmax.f32 %v516, 0.0
    %v603 = vmax.f32 %v521, 0.0
    %v604 = vmax.f32 %v526, 0.0
    %v605 = vmax.f32 %v531, 0.0
    %v606 = vmax.f32 %v536, 0.0
    %v607 = vmax.f32 %v541, 0.0
    %v608 = vmax.f32 %v546, 0.0
    %v609 = vmax.f32 %v551, 0.0
    %v610 = vmax.f32 %v556, 0.0
    %v611 = vmax.f32 %v561, 0.0
    %v612 = vmax.f32 %v566, 0.0
    %v613 = vmax.f32 %v571, 0.0
    %v614 = vmax.f32 %v574, %v575
    %v615 = vmax.f32 %v576, %v577
    %v616 = vmax.f32 %v578, %v579
    %v617 = vmax.f32 %v580, %v581
    %v618 = vmax.f32 %v582, %v583
    %v619 = vmax.f32 %v584, %v585
    %v620 = vmax.f32 %v586, %v587
    %v621 = vmax.f32 %v588, %v589
    %v622 = vmax.f32 %v590, %v591
    %v623 = vmax.f32 %v592, %v593
    %v624 = vmax.f32 %v594, %v595
    %v625 = vmax.f32 %v596, %v597
    %v626 = vmax.f32 %v598, %v599
    %v627 = vmax.f32 %v600, %v601
    %v628 = vmax.f32 %v602, %v603
    %v629 = vmax.f32 %v604, %v605
    %v630 = vmax.f32 %v606, %v607
    %v631 = vmax.f32 %v608, %v609
    %v632 = vmax.f32 %v610, %v611
    %v633 = vmax.f32 %v612, %v613
    %634 = vst.msk [vmem:[#allocation2] sm:$0xff] %vm188, 0.0
    %635 = vst.msk [vmem:[#allocation2 + $0x8] sm:$0xff] %vm188, 0.0
    %636 = vst.msk [vmem:[#allocation2 + $0x10] sm:$0xff] %vm188, 0.0
    %637 = vst.msk [vmem:[#allocation2 + $0x18] sm:$0xff] %vm188, 0.0
    %638 = vst.msk [vmem:[#allocation2 + $0x20] sm:$0xff] %vm188, 0.0
    %639 = vst.msk [vmem:[#allocation2 + $0x28] sm:$0xff] %vm188, 0.0
    %640 = vst.msk [vmem:[#allocation2 + $0x30] sm:$0xff] %vm188, 0.0
    %s641 = scalar_lea.vmem [#allocation2], 56
    %642 = vst.msk [vmem:[%s641] sm:$0xff] %vm188, %v614
    %643 = vst.msk [vmem:[%s641 + $0x8] sm:$0xff] %vm188, %v615
    %644 = vst.msk [vmem:[%s641 + $0x10] sm:$0xff] %vm188, %v616
    %645 = vst.msk [vmem:[%s641 + $0x18] sm:$0xff] %vm188, %v617
    %646 = vst.msk [vmem:[%s641 + $0x20] sm:$0xff] %vm188, %v618
    %647 = vst.msk [vmem:[%s641 + $0x28] sm:$0xff] %vm188, %v619
    %648 = vst.msk [vmem:[%s641 + $0x30] sm:$0xff] %vm188, %v620
    %649 = vst.msk [vmem:[%s641 + $0x38] sm:$0xff] %vm188, %v621
    %650 = vst.msk [vmem:[%s641 + $0x40] sm:$0xff] %vm188, %v622
    %651 = vst.msk [vmem:[%s641 + $0x48] sm:$0xff] %vm188, %v623
    %652 = vst.msk [vmem:[%s641 + $0x50] sm:$0xff] %vm188, %v624
    %653 = vst.msk [vmem:[%s641 + $0x58] sm:$0xff] %vm188, %v625
    %654 = vst.msk [vmem:[%s641 + $0x60] sm:$0xff] %vm188, %v626
    %655 = vst.msk [vmem:[%s641 + $0x68] sm:$0xff] %vm188, %v627
    %656 = vst.msk [vmem:[%s641 + $0x70] sm:$0xff] %vm188, %v628
    %657 = vst.msk [vmem:[%s641 + $0x78] sm:$0xff] %vm188, %v629
    %658 = vst.msk [vmem:[%s641 + $0x80] sm:$0xff] %vm188, %v630
    %659 = vst.msk [vmem:[%s641 + $0x88] sm:$0xff] %vm188, %v631
    %660 = vst.msk [vmem:[%s641 + $0x90] sm:$0xff] %vm188, %v632
    %661 = vst.msk [vmem:[%s641 + $0x98] sm:$0xff] %vm188, %v633
    %s662 = scalar_lea.vmem [#allocation2], 216
    %663 = vst.msk [vmem:[%s662] sm:$0xff] %vm188, 0.0
    %664 = vst.msk [vmem:[%s662 + $0x8] sm:$0xff] %vm188, 0.0
    %665 = vst.msk [vmem:[%s662 + $0x10] sm:$0xff] %vm188, 0.0
    %666 = vst.msk [vmem:[%s662 + $0x18] sm:$0xff] %vm188, 0.0
    %667 = vst.msk [vmem:[%s662 + $0x20] sm:$0xff] %vm188, 0.0
    %668 = vst.msk [vmem:[%s662 + $0x28] sm:$0xff] %vm188, 0.0
    %669 = vst.msk [vmem:[%s662 + $0x30] sm:$0xff] %vm188, 0.0
    %670 = vst.msk [vmem:[%s662 + $0x38] sm:$0xff] %vm188, 0.0
    %v671 = vld [vmem:[#allocation2] sm:$0xff]
    %v672 = vld [vmem:[#allocation2 + $0x8] sm:$0xff]
    %v673 = vld [vmem:[#allocation2 + $0x10] sm:$0xff]
    %v674 = vld [vmem:[#allocation2 + $0x18] sm:$0xff]
    %v675 = vld [vmem:[#allocation2 + $0x20] sm:$0xff]
    %v676 = vld [vmem:[#allocation2 + $0x28] sm:$0xff]
    %v677 = vld [vmem:[#allocation2 + $0x30] sm:$0xff]
    %v678 = vld [vmem:[#allocation2 + $0x38] sm:$0xff]
    %v679 = vld [vmem:[#allocation2 + $0x40] sm:$0xff]
    %v680 = vld [vmem:[#allocation2 + $0x48] sm:$0xff]
    %v681 = vld [vmem:[#allocation2 + $0x50] sm:$0xff]
    %v682 = vld [vmem:[#allocation2 + $0x58] sm:$0xff]
    %v683 = vld [vmem:[#allocation2 + $0x60] sm:$0xff]
    %v684 = vld [vmem:[#allocation2 + $0x68] sm:$0xff]
    %v685 = vld [vmem:[#allocation2 + $0x70] sm:$0xff]
    %v686 = vld [vmem:[#allocation2 + $0x78] sm:$0xff]
    %v687 = vld [vmem:[#allocation2 + $0x80] sm:$0xff]
    %v688 = vld [vmem:[#allocation2 + $0x88] sm:$0xff]
    %v689 = vld [vmem:[#allocation2 + $0x90] sm:$0xff]
    %v690 = vld [vmem:[#allocation2 + $0x98] sm:$0xff]
    %v691 = vld [vmem:[#allocation8] sm:$0xff]
    %v692 = vld [vmem:[#allocation8 + $0x8] sm:$0xff]
    %v693 = vld [vmem:[#allocation8 + $0x10] sm:$0xff]
    %v694 = vld [vmem:[#allocation8 + $0x18] sm:$0xff]
    %v695 = vld [vmem:[#allocation8 + $0x20] sm:$0xff]
    %v696 = vld [vmem:[#allocation8 + $0x28] sm:$0xff]
    %v697 = vld [vmem:[#allocation8 + $0x30] sm:$0xff]
    %v698 = vld [vmem:[#allocation8 + $0x38] sm:$0xff]
    %s699 = scalar_lea.vmem [#allocation2], 8
    %v700 = vld [vmem:[%s699] sm:$0xff]
    %v701 = vld [vmem:[%s699 + $0x8] sm:$0xff]
    %v702 = vld [vmem:[%s699 + $0x10] sm:$0xff]
    %v703 = vld [vmem:[%s699 + $0x18] sm:$0xff]
    %v704 = vld [vmem:[%s699 + $0x20] sm:$0xff]
    %v705 = vld [vmem:[%s699 + $0x28] sm:$0xff]
    %v706 = vld [vmem:[%s699 + $0x30] sm:$0xff]
    %v707 = vld [vmem:[%s699 + $0x38] sm:$0xff]
    %v708 = vld [vmem:[%s699 + $0x40] sm:$0xff]
    %v709 = vld [vmem:[%s699 + $0x48] sm:$0xff]
    %v710 = vld [vmem:[%s699 + $0x50] sm:$0xff]
    %v711 = vld [vmem:[%s699 + $0x58] sm:$0xff]
    %v712 = vld [vmem:[%s699 + $0x60] sm:$0xff]
    %v713 = vld [vmem:[%s699 + $0x68] sm:$0xff]
    %v714 = vld [vmem:[%s699 + $0x70] sm:$0xff]
    %v715 = vld [vmem:[%s699 + $0x78] sm:$0xff]
    %v716 = vld [vmem:[%s699 + $0x80] sm:$0xff]
    %v717 = vld [vmem:[%s699 + $0x88] sm:$0xff]
    %v718 = vld [vmem:[%s699 + $0x90] sm:$0xff]
    %v719 = vld [vmem:[%s699 + $0x98] sm:$0xff]
    %s720 = scalar_lea.vmem [#allocation8], 64
    %v721 = vld [vmem:[%s720] sm:$0xff]
    %v722 = vld [vmem:[%s720 + $0x8] sm:$0xff]
    %v723 = vld [vmem:[%s720 + $0x10] sm:$0xff]
    %v724 = vld [vmem:[%s720 + $0x18] sm:$0xff]
    %v725 = vld [vmem:[%s720 + $0x20] sm:$0xff]
    %v726 = vld [vmem:[%s720 + $0x28] sm:$0xff]
    %v727 = vld [vmem:[%s720 + $0x30] sm:$0xff]
    %v728 = vld [vmem:[%s720 + $0x38] sm:$0xff]
    %v730 = vsel %vm188, %v700, 0
    %v733 = vsel %vm188, %v701, 0
    %v736 = vsel %vm188, %v702, 0
    %v739 = vsel %vm188, %v703, 0
    %v742 = vsel %vm188, %v704, 0
    %v745 = vsel %vm188, %v705, 0
    %v748 = vsel %vm188, %v706, 0
    %v751 = vsel %vm188, %v707, 0
    %v754 = vsel %vm188, %v708, 0
    %v757 = vsel %vm188, %v709, 0
    %v760 = vsel %vm188, %v710, 0
    %v763 = vsel %vm188, %v711, 0
    %v766 = vsel %vm188, %v712, 0
    %v769 = vsel %vm188, %v713, 0
    %v772 = vsel %vm188, %v714, 0
    %v775 = vsel %vm188, %v715, 0
    %v778 = vsel %vm188, %v716, 0
    %v781 = vsel %vm188, %v717, 0
    %v784 = vsel %vm188, %v718, 0
    %v787 = vsel %vm188, %v719, 0
    %789 = vmatprep.subr.mxu0 0.0
    %790 = vmatpush1.msra.mxu0 %v721
    %791 = vmatprep.subr.mxu0 0.0
    %792 = vmatpush1.msra.mxu0 %v722
    %793 = vmatprep.subr.mxu0 0.0
    %794 = vmatpush1.msra.mxu0 %v723
    %795 = vmatprep.subr.mxu0 0.0
    %796 = vmatpush1.msra.mxu0 %v724
    %797 = vmatprep.subr.mxu0 0.0
    %798 = vmatpush1.msra.mxu0 %v725
    %799 = vmatprep.subr.mxu0 0.0
    %800 = vmatpush1.msra.mxu0 %v726
    %801 = vmatprep.subr.mxu0 0.0
    %802 = vmatpush1.msra.mxu0 %v727
    %803 = vmatprep.subr.mxu0 0.0
    %804 = vmatpush1.msra.mxu0 %v728
    %805 = vmatprep.subr.mxu0 0.0
    %806 = vmatpush1.msra.mxu0 0.0
    %807 = vmatprep.subr.mxu0 0.0
    %808 = vmatpush1.msra.mxu0 0.0
    %809 = vmatprep.subr.mxu0 0.0
    %810 = vmatpush1.msra.mxu0 0.0
    %811 = vmatprep.subr.mxu0 0.0
    %812 = vmatpush1.msra.mxu0 0.0
    %813 = vmatprep.subr.mxu0 0.0
    %814 = vmatpush1.msra.mxu0 0.0
    %815 = vmatprep.subr.mxu0 0.0
    %816 = vmatpush1.msra.mxu0 0.0
    %817 = vmatprep.subr.mxu0 0.0
    %818 = vmatpush1.msra.mxu0 0.0
    %819 = vmatprep.subr.mxu0 0.0
    %820 = vmatpush1.msra.mxu0 0.0
    %821 = vmatprep.subr.mxu0 0.0
    %822 = vmatpush1.msra.mxu0 0.0
    %823 = vmatprep.subr.mxu0 0.0
    %824 = vmatpush1.msra.mxu0 0.0
    %825 = vmatprep.subr.mxu0 0.0
    %826 = vmatpush1.msra.mxu0 0.0
    %827 = vmatprep.subr.mxu0 0.0
    %828 = vmatpush1.msra.mxu0 0.0
    %829 = vmatprep.subr.mxu0 0.0
    %830 = vmatpush1.msra.mxu0 0.0
    %831 = vmatprep.subr.mxu0 0.0
    %832 = vmatpush1.msra.mxu0 0.0
    %833 = vmatprep.subr.mxu0 0.0
    %834 = vmatpush1.msra.mxu0 0.0
    %835 = vmatprep.subr.mxu0 0.0
    %836 = vmatpush1.msra.mxu0 0.0
    %837 = vmatprep.subr.mxu0 0.0
    %838 = vmatpush1.msra.mxu0 0.0
    %839 = vmatprep.subr.mxu0 0.0
    %840 = vmatpush1.msra.mxu0 0.0
    %841 = vmatprep.subr.mxu0 0.0
    %842 = vmatpush1.msra.mxu0 0.0
    %843 = vmatprep.subr.mxu0 0.0
    %844 = vmatpush1.msra.mxu0 0.0
    %845 = vmatprep.subr.mxu0 0.0
    %846 = vmatpush1.msra.mxu0 0.0
    %847 = vmatprep.subr.mxu0 0.0
    %848 = vmatpush1.msra.mxu0 0.0
    %849 = vmatprep.subr.mxu0 0.0
    %850 = vmatpush1.msra.mxu0 0.0
    %851 = vmatprep.subr.mxu0 0.0
    %852 = vmatpush1.msra.mxu0 0.0
    %853 = vmatprep.mubr.f32.mxu0 0.0
    %854 = vmatmul.mubr.f32.gmra.mrb[0].mxu0 %v730
    %v855 = vpop.f32.mrb[0].mxu0
    %v856 = vadd.f32 0.0, %v855
    %v857 = vpop.f32.mrb[0].mxu0
    %858 = vmatprep.mubr.f32.mxu0 0.0
    %859 = vmatmul.mubr.f32.gmra.mrb[0].mxu0 %v733
    %v860 = vpop.f32.mrb[0].mxu0
    %v861 = vadd.f32 0.0, %v860
    %v862 = vpop.f32.mrb[0].mxu0
    %863 = vmatprep.mubr.f32.mxu0 0.0
    %864 = vmatmul.mubr.f32.gmra.mrb[0].mxu0 %v736
    %v865 = vpop.f32.mrb[0].mxu0
    %v866 = vadd.f32 0.0, %v865
    %v867 = vpop.f32.mrb[0].mxu0
    %868 = vmatprep.mubr.f32.mxu0 0.0
    %869 = vmatmul.mubr.f32.gmra.mrb[0].mxu0 %v739
    %v870 = vpop.f32.mrb[0].mxu0
    %v871 = vadd.f32 0.0, %v870
    %v872 = vpop.f32.mrb[0].mxu0
    %873 = vmatprep.mubr.f32.mxu0 0.0
    %874 = vmatmul.mubr.f32.gmra.mrb[0].mxu0 %v742
    %v875 = vpop.f32.mrb[0].mxu0
    %v876 = vadd.f32 0.0, %v875
    %v877 = vpop.f32.mrb[0].mxu0
    %878 = vmatprep.mubr.f32.mxu0 0.0
    %879 = vmatmul.mubr.f32.gmra.mrb[0].mxu0 %v745
    %v880 = vpop.f32.mrb[0].mxu0
    %v881 = vadd.f32 0.0, %v880
    %v882 = vpop.f32.mrb[0].mxu0
    %883 = vmatprep.mubr.f32.mxu0 0.0
    %884 = vmatmul.mubr.f32.gmra.mrb[0].mxu0 %v748
    %v885 = vpop.f32.mrb[0].mxu0
    %v886 = vadd.f32 0.0, %v885
    %v887 = vpop.f32.mrb[0].mxu0
    %888 = vmatprep.mubr.f32.mxu0 0.0
    %889 = vmatmul.mubr.f32.gmra.mrb[0].mxu0 %v751
    %v890 = vpop.f32.mrb[0].mxu0
    %v891 = vadd.f32 0.0, %v890
    %v892 = vpop.f32.mrb[0].mxu0
    %893 = vmatprep.mubr.f32.mxu0 0.0
    %894 = vmatmul.mubr.f32.gmra.mrb[0].mxu0 %v754
    %v895 = vpop.f32.mrb[0].mxu0
    %v896 = vadd.f32 0.0, %v895
    %v897 = vpop.f32.mrb[0].mxu0
    %898 = vmatprep.mubr.f32.mxu0 0.0
    %899 = vmatmul.mubr.f32.gmra.mrb[0].mxu0 %v757
    %v900 = vpop.f32.mrb[0].mxu0
    %v901 = vadd.f32 0.0, %v900
    %v902 = vpop.f32.mrb[0].mxu0
    %903 = vmatprep.mubr.f32.mxu0 0.0
    %904 = vmatmul.mubr.f32.gmra.mrb[0].mxu0 %v760
    %v905 = vpop.f32.mrb[0].mxu0
    %v906 = vadd.f32 0.0, %v905
    %v907 = vpop.f32.mrb[0].mxu0
    %908 = vmatprep.mubr.f32.mxu0 0.0
    %909 = vmatmul.mubr.f32.gmra.mrb[0].mxu0 %v763
    %v910 = vpop.f32.mrb[0].mxu0
    %v911 = vadd.f32 0.0, %v910
    %v912 = vpop.f32.mrb[0].mxu0
    %913 = vmatprep.mubr.f32.mxu0 0.0
    %914 = vmatmul.mubr.f32.gmra.mrb[0].mxu0 %v766
    %v915 = vpop.f32.mrb[0].mxu0
    %v916 = vadd.f32 0.0, %v915
    %v917 = vpop.f32.mrb[0].mxu0
    %918 = vmatprep.mubr.f32.mxu0 0.0
    %919 = vmatmul.mubr.f32.gmra.mrb[0].mxu0 %v769
    %v920 = vpop.f32.mrb[0].mxu0
    %v921 = vadd.f32 0.0, %v920
    %v922 = vpop.f32.mrb[0].mxu0
    %923 = vmatprep.mubr.f32.mxu0 0.0
    %924 = vmatmul.mubr.f32.gmra.mrb[0].mxu0 %v772
    %v925 = vpop.f32.mrb[0].mxu0
    %v926 = vadd.f32 0.0, %v925
    %v927 = vpop.f32.mrb[0].mxu0
    %928 = vmatprep.mubr.f32.mxu0 0.0
    %929 = vmatmul.mubr.f32.gmra.mrb[0].mxu0 %v775
    %v930 = vpop.f32.mrb[0].mxu0
    %v931 = vadd.f32 0.0, %v930
    %v932 = vpop.f32.mrb[0].mxu0
    %933 = vmatprep.mubr.f32.mxu0 0.0
    %934 = vmatmul.mubr.f32.gmra.mrb[0].mxu0 %v778
    %v935 = vpop.f32.mrb[0].mxu0
    %v936 = vadd.f32 0.0, %v935
    %v937 = vpop.f32.mrb[0].mxu0
    %938 = vmatprep.mubr.f32.mxu0 0.0
    %939 = vmatmul.mubr.f32.gmra.mrb[0].mxu0 %v781
    %v940 = vpop.f32.mrb[0].mxu0
    %v941 = vadd.f32 0.0, %v940
    %v942 = vpop.f32.mrb[0].mxu0
    %943 = vmatprep.mubr.f32.mxu0 0.0
    %944 = vmatmul.mubr.f32.gmra.mrb[0].mxu0 %v784
    %v945 = vpop.f32.mrb[0].mxu0
    %v946 = vadd.f32 0.0, %v945
    %v947 = vpop.f32.mrb[0].mxu0
    %948 = vmatprep.mubr.f32.mxu0 0.0
    %949 = vmatmul.mubr.f32.gmra.mrb[0].mxu0 %v787
    %v950 = vpop.f32.mrb[0].mxu0
    %v951 = vadd.f32 0.0, %v950
    %v952 = vpop.f32.mrb[0].mxu0
    %953 = vdwg.mxu0
    %v955 = vsel %vm188, %v671, 0
    %v958 = vsel %vm188, %v672, 0
    %v961 = vsel %vm188, %v673, 0
    %v964 = vsel %vm188, %v674, 0
    %v967 = vsel %vm188, %v675, 0
    %v970 = vsel %vm188, %v676, 0
    %v973 = vsel %vm188, %v677, 0
    %v976 = vsel %vm188, %v678, 0
    %v979 = vsel %vm188, %v679, 0
    %v982 = vsel %vm188, %v680, 0
    %v985 = vsel %vm188, %v681, 0
    %v988 = vsel %vm188, %v682, 0
    %v991 = vsel %vm188, %v683, 0
    %v994 = vsel %vm188, %v684, 0
    %v997 = vsel %vm188, %v685, 0
    %v1000 = vsel %vm188, %v686, 0
    %v1003 = vsel %vm188, %v687, 0
    %v1006 = vsel %vm188, %v688, 0
    %v1009 = vsel %vm188, %v689, 0
    %v1012 = vsel %vm188, %v690, 0
    %1014 = vmatprep.subr.mxu0 0.0
    %1015 = vmatpush1.msra.mxu0 %v691
    %1016 = vmatprep.subr.mxu0 0.0
    %1017 = vmatpush1.msra.mxu0 %v692
    %1018 = vmatprep.subr.mxu0 0.0
    %1019 = vmatpush1.msra.mxu0 %v693
    %1020 = vmatprep.subr.mxu0 0.0
    %1021 = vmatpush1.msra.mxu0 %v694
    %1022 = vmatprep.subr.mxu0 0.0
    %1023 = vmatpush1.msra.mxu0 %v695
    %1024 = vmatprep.subr.mxu0 0.0
    %1025 = vmatpush1.msra.mxu0 %v696
    %1026 = vmatprep.subr.mxu0 0.0
    %1027 = vmatpush1.msra.mxu0 %v697
    %1028 = vmatprep.subr.mxu0 0.0
    %1029 = vmatpush1.msra.mxu0 %v698
    %1030 = vmatprep.subr.mxu0 0.0
    %1031 = vmatpush1.msra.mxu0 0.0
    %1032 = vmatprep.subr.mxu0 0.0
    %1033 = vmatpush1.msra.mxu0 0.0
    %1034 = vmatprep.subr.mxu0 0.0
    %1035 = vmatpush1.msra.mxu0 0.0
    %1036 = vmatprep.subr.mxu0 0.0
    %1037 = vmatpush1.msra.mxu0 0.0
    %1038 = vmatprep.subr.mxu0 0.0
    %1039 = vmatpush1.msra.mxu0 0.0
    %1040 = vmatprep.subr.mxu0 0.0
    %1041 = vmatpush1.msra.mxu0 0.0
    %1042 = vmatprep.subr.mxu0 0.0
    %1043 = vmatpush1.msra.mxu0 0.0
    %1044 = vmatprep.subr.mxu0 0.0
    %1045 = vmatpush1.msra.mxu0 0.0
    %1046 = vmatprep.subr.mxu0 0.0
    %1047 = vmatpush1.msra.mxu0 0.0
    %1048 = vmatprep.subr.mxu0 0.0
    %1049 = vmatpush1.msra.mxu0 0.0
    %1050 = vmatprep.subr.mxu0 0.0
    %1051 = vmatpush1.msra.mxu0 0.0
    %1052 = vmatprep.subr.mxu0 0.0
    %1053 = vmatpush1.msra.mxu0 0.0
    %1054 = vmatprep.subr.mxu0 0.0
    %1055 = vmatpush1.msra.mxu0 0.0
    %1056 = vmatprep.subr.mxu0 0.0
    %1057 = vmatpush1.msra.mxu0 0.0
    %1058 = vmatprep.subr.mxu0 0.0
    %1059 = vmatpush1.msra.mxu0 0.0
    %1060 = vmatprep.subr.mxu0 0.0
    %1061 = vmatpush1.msra.mxu0 0.0
    %1062 = vmatprep.subr.mxu0 0.0
    %1063 = vmatpush1.msra.mxu0 0.0
    %1064 = vmatprep.subr.mxu0 0.0
    %1065 = vmatpush1.msra.mxu0 0.0
    %1066 = vmatprep.subr.mxu0 0.0
    %1067 = vmatpush1.msra.mxu0 0.0
    %1068 = vmatprep.subr.mxu0 0.0
    %1069 = vmatpush1.msra.mxu0 0.0
    %1070 = vmatprep.subr.mxu0 0.0
    %1071 = vmatpush1.msra.mxu0 0.0
    %1072 = vmatprep.subr.mxu0 0.0
    %1073 = vmatpush1.msra.mxu0 0.0
    %1074 = vmatprep.subr.mxu0 0.0
    %1075 = vmatpush1.msra.mxu0 0.0
    %1076 = vmatprep.subr.mxu0 0.0
    %1077 = vmatpush1.msra.mxu0 0.0
    %1078 = vmatprep.mubr.f32.mxu0 0.0
    %1079 = vmatmul.mubr.f32.gmra.mrb[0].mxu0 %v955
    %v1080 = vpop.f32.mrb[0].mxu0
    %v1081 = vadd.f32 %v856, %v1080
    %v1082 = vpop.f32.mrb[0].mxu0
    %1083 = vmatprep.mubr.f32.mxu0 0.0
    %1084 = vmatmul.mubr.f32.gmra.mrb[0].mxu0 %v958
    %v1085 = vpop.f32.mrb[0].mxu0
    %v1086 = vadd.f32 %v861, %v1085
    %v1087 = vpop.f32.mrb[0].mxu0
    %1088 = vmatprep.mubr.f32.mxu0 0.0
    %1089 = vmatmul.mubr.f32.gmra.mrb[0].mxu0 %v961
    %v1090 = vpop.f32.mrb[0].mxu0
    %v1091 = vadd.f32 %v866, %v1090
    %v1092 = vpop.f32.mrb[0].mxu0
    %1093 = vmatprep.mubr.f32.mxu0 0.0
    %1094 = vmatmul.mubr.f32.gmra.mrb[0].mxu0 %v964
    %v1095 = vpop.f32.mrb[0].mxu0
    %v1096 = vadd.f32 %v871, %v1095
    %v1097 = vpop.f32.mrb[0].mxu0
    %1098 = vmatprep.mubr.f32.mxu0 0.0
    %1099 = vmatmul.mubr.f32.gmra.mrb[0].mxu0 %v967
    %v1100 = vpop.f32.mrb[0].mxu0
    %v1101 = vadd.f32 %v876, %v1100
    %v1102 = vpop.f32.mrb[0].mxu0
    %1103 = vmatprep.mubr.f32.mxu0 0.0
    %1104 = vmatmul.mubr.f32.gmra.mrb[0].mxu0 %v970
    %v1105 = vpop.f32.mrb[0].mxu0
    %v1106 = vadd.f32 %v881, %v1105
    %v1107 = vpop.f32.mrb[0].mxu0
    %1108 = vmatprep.mubr.f32.mxu0 0.0
    %1109 = vmatmul.mubr.f32.gmra.mrb[0].mxu0 %v973
    %v1110 = vpop.f32.mrb[0].mxu0
    %v1111 = vadd.f32 %v886, %v1110
    %v1112 = vpop.f32.mrb[0].mxu0
    %1113 = vmatprep.mubr.f32.mxu0 0.0
    %1114 = vmatmul.mubr.f32.gmra.mrb[0].mxu0 %v976
    %v1115 = vpop.f32.mrb[0].mxu0
    %v1116 = vadd.f32 %v891, %v1115
    %v1117 = vpop.f32.mrb[0].mxu0
    %1118 = vmatprep.mubr.f32.mxu0 0.0
    %1119 = vmatmul.mubr.f32.gmra.mrb[0].mxu0 %v979
    %v1120 = vpop.f32.mrb[0].mxu0
    %v1121 = vadd.f32 %v896, %v1120
    %v1122 = vpop.f32.mrb[0].mxu0
    %1123 = vmatprep.mubr.f32.mxu0 0.0
    %1124 = vmatmul.mubr.f32.gmra.mrb[0].mxu0 %v982
    %v1125 = vpop.f32.mrb[0].mxu0
    %v1126 = vadd.f32 %v901, %v1125
    %v1127 = vpop.f32.mrb[0].mxu0
    %1128 = vmatprep.mubr.f32.mxu0 0.0
    %1129 = vmatmul.mubr.f32.gmra.mrb[0].mxu0 %v985
    %v1130 = vpop.f32.mrb[0].mxu0
    %v1131 = vadd.f32 %v906, %v1130
    %v1132 = vpop.f32.mrb[0].mxu0
    %1133 = vmatprep.mubr.f32.mxu0 0.0
    %1134 = vmatmul.mubr.f32.gmra.mrb[0].mxu0 %v988
    %v1135 = vpop.f32.mrb[0].mxu0
    %v1136 = vadd.f32 %v911, %v1135
    %v1137 = vpop.f32.mrb[0].mxu0
    %1138 = vmatprep.mubr.f32.mxu0 0.0
    %1139 = vmatmul.mubr.f32.gmra.mrb[0].mxu0 %v991
    %v1140 = vpop.f32.mrb[0].mxu0
    %v1141 = vadd.f32 %v916, %v1140
    %v1142 = vpop.f32.mrb[0].mxu0
    %1143 = vmatprep.mubr.f32.mxu0 0.0
    %1144 = vmatmul.mubr.f32.gmra.mrb[0].mxu0 %v994
    %v1145 = vpop.f32.mrb[0].mxu0
    %v1146 = vadd.f32 %v921, %v1145
    %v1147 = vpop.f32.mrb[0].mxu0
    %1148 = vmatprep.mubr.f32.mxu0 0.0
    %1149 = vmatmul.mubr.f32.gmra.mrb[0].mxu0 %v997
    %v1150 = vpop.f32.mrb[0].mxu0
    %v1151 = vadd.f32 %v926, %v1150
    %v1152 = vpop.f32.mrb[0].mxu0
    %1153 = vmatprep.mubr.f32.mxu0 0.0
    %1154 = vmatmul.mubr.f32.gmra.mrb[0].mxu0 %v1000
    %v1155 = vpop.f32.mrb[0].mxu0
    %v1156 = vadd.f32 %v931, %v1155
    %v1157 = vpop.f32.mrb[0].mxu0
    %1158 = vmatprep.mubr.f32.mxu0 0.0
    %1159 = vmatmul.mubr.f32.gmra.mrb[0].mxu0 %v1003
    %v1160 = vpop.f32.mrb[0].mxu0
    %v1161 = vadd.f32 %v936, %v1160
    %v1162 = vpop.f32.mrb[0].mxu0
    %1163 = vmatprep.mubr.f32.mxu0 0.0
    %1164 = vmatmul.mubr.f32.gmra.mrb[0].mxu0 %v1006
    %v1165 = vpop.f32.mrb[0].mxu0
    %v1166 = vadd.f32 %v941, %v1165
    %v1167 = vpop.f32.mrb[0].mxu0
    %1168 = vmatprep.mubr.f32.mxu0 0.0
    %1169 = vmatmul.mubr.f32.gmra.mrb[0].mxu0 %v1009
    %v1170 = vpop.f32.mrb[0].mxu0
    %v1171 = vadd.f32 %v946, %v1170
    %v1172 = vpop.f32.mrb[0].mxu0
    %1173 = vmatprep.mubr.f32.mxu0 0.0
    %1174 = vmatmul.mubr.f32.gmra.mrb[0].mxu0 %v1012
    %v1175 = vpop.f32.mrb[0].mxu0
    %v1176 = vadd.f32 %v951, %v1175
    %v1177 = vpop.f32.mrb[0].mxu0
    %1178 = vdwg.mxu0
    %s1179 = scalar_lea.vmem [#allocation2], 16
    %v1180 = vld [vmem:[%s1179] sm:$0xff]
    %v1181 = vld [vmem:[%s1179 + $0x8] sm:$0xff]
    %v1182 = vld [vmem:[%s1179 + $0x10] sm:$0xff]
    %v1183 = vld [vmem:[%s1179 + $0x18] sm:$0xff]
    %v1184 = vld [vmem:[%s1179 + $0x20] sm:$0xff]
    %v1185 = vld [vmem:[%s1179 + $0x28] sm:$0xff]
    %v1186 = vld [vmem:[%s1179 + $0x30] sm:$0xff]
    %v1187 = vld [vmem:[%s1179 + $0x38] sm:$0xff]
    %v1188 = vld [vmem:[%s1179 + $0x40] sm:$0xff]
    %v1189 = vld [vmem:[%s1179 + $0x48] sm:$0xff]
    %v1190 = vld [vmem:[%s1179 + $0x50] sm:$0xff]
    %v1191 = vld [vmem:[%s1179 + $0x58] sm:$0xff]
    %v1192 = vld [vmem:[%s1179 + $0x60] sm:$0xff]
    %v1193 = vld [vmem:[%s1179 + $0x68] sm:$0xff]
    %v1194 = vld [vmem:[%s1179 + $0x70] sm:$0xff]
    %v1195 = vld [vmem:[%s1179 + $0x78] sm:$0xff]
    %v1196 = vld [vmem:[%s1179 + $0x80] sm:$0xff]
    %v1197 = vld [vmem:[%s1179 + $0x88] sm:$0xff]
    %v1198 = vld [vmem:[%s1179 + $0x90] sm:$0xff]
    %v1199 = vld [vmem:[%s1179 + $0x98] sm:$0xff]
    %s1200 = scalar_lea.vmem [#allocation8], 128
    %v1201 = vld [vmem:[%s1200] sm:$0xff]
    %v1202 = vld [vmem:[%s1200 + $0x8] sm:$0xff]
    %v1203 = vld [vmem:[%s1200 + $0x10] sm:$0xff]
    %v1204 = vld [vmem:[%s1200 + $0x18] sm:$0xff]
    %v1205 = vld [vmem:[%s1200 + $0x20] sm:$0xff]
    %v1206 = vld [vmem:[%s1200 + $0x28] sm:$0xff]
    %v1207 = vld [vmem:[%s1200 + $0x30] sm:$0xff]
    %v1208 = vld [vmem:[%s1200 + $0x38] sm:$0xff]
    %v1210 = vsel %vm188, %v1180, 0
    %v1213 = vsel %vm188, %v1181, 0
    %v1216 = vsel %vm188, %v1182, 0
    %v1219 = vsel %vm188, %v1183, 0
    %v1222 = vsel %vm188, %v1184, 0
    %v1225 = vsel %vm188, %v1185, 0
    %v1228 = vsel %vm188, %v1186, 0
    %v1231 = vsel %vm188, %v1187, 0
    %v1234 = vsel %vm188, %v1188, 0
    %v1237 = vsel %vm188, %v1189, 0
    %v1240 = vsel %vm188, %v1190, 0
    %v1243 = vsel %vm188, %v1191, 0
    %v1246 = vsel %vm188, %v1192, 0
    %v1249 = vsel %vm188, %v1193, 0
    %v1252 = vsel %vm188, %v1194, 0
    %v1255 = vsel %vm188, %v1195, 0
    %v1258 = vsel %vm188, %v1196, 0
    %v1261 = vsel %vm188, %v1197, 0
    %v1264 = vsel %vm188, %v1198, 0
    %v1267 = vsel %vm188, %v1199, 0
    %1269 = vmatprep.subr.mxu0 0.0
    %1270 = vmatpush1.msra.mxu0 %v1201
    %1271 = vmatprep.subr.mxu0 0.0
    %1272 = vmatpush1.msra.mxu0 %v1202
    %1273 = vmatprep.subr.mxu0 0.0
    %1274 = vmatpush1.msra.mxu0 %v1203
    %1275 = vmatprep.subr.mxu0 0.0
    %1276 = vmatpush1.msra.mxu0 %v1204
    %1277 = vmatprep.subr.mxu0 0.0
    %1278 = vmatpush1.msra.mxu0 %v1205
    %1279 = vmatprep.subr.mxu0 0.0
    %1280 = vmatpush1.msra.mxu0 %v1206
    %1281 = vmatprep.subr.mxu0 0.0
    %1282 = vmatpush1.msra.mxu0 %v1207
    %1283 = vmatprep.subr.mxu0 0.0
    %1284 = vmatpush1.msra.mxu0 %v1208
    %1285 = vmatprep.subr.mxu0 0.0
    %1286 = vmatpush1.msra.mxu0 0.0
    %1287 = vmatprep.subr.mxu0 0.0
    %1288 = vmatpush1.msra.mxu0 0.0
    %1289 = vmatprep.subr.mxu0 0.0
    %1290 = vmatpush1.msra.mxu0 0.0
    %1291 = vmatprep.subr.mxu0 0.0
    %1292 = vmatpush1.msra.mxu0 0.0
    %1293 = vmatprep.subr.mxu0 0.0
    %1294 = vmatpush1.msra.mxu0 0.0
    %1295 = vmatprep.subr.mxu0 0.0
    %1296 = vmatpush1.msra.mxu0 0.0
    %1297 = vmatprep.subr.mxu0 0.0
    %1298 = vmatpush1.msra.mxu0 0.0
    %1299 = vmatprep.subr.mxu0 0.0
    %1300 = vmatpush1.msra.mxu0 0.0
    %1301 = vmatprep.subr.mxu0 0.0
    %1302 = vmatpush1.msra.mxu0 0.0
    %1303 = vmatprep.subr.mxu0 0.0
    %1304 = vmatpush1.msra.mxu0 0.0
    %1305 = vmatprep.subr.mxu0 0.0
    %1306 = vmatpush1.msra.mxu0 0.0
    %1307 = vmatprep.subr.mxu0 0.0
    %1308 = vmatpush1.msra.mxu0 0.0
    %1309 = vmatprep.subr.mxu0 0.0
    %1310 = vmatpush1.msra.mxu0 0.0
    %1311 = vmatprep.subr.mxu0 0.0
    %1312 = vmatpush1.msra.mxu0 0.0
    %1313 = vmatprep.subr.mxu0 0.0
    %1314 = vmatpush1.msra.mxu0 0.0
    %1315 = vmatprep.subr.mxu0 0.0
    %1316 = vmatpush1.msra.mxu0 0.0
    %1317 = vmatprep.subr.mxu0 0.0
    %1318 = vmatpush1.msra.mxu0 0.0
    %1319 = vmatprep.subr.mxu0 0.0
    %1320 = vmatpush1.msra.mxu0 0.0
    %1321 = vmatprep.subr.mxu0 0.0
    %1322 = vmatpush1.msra.mxu0 0.0
    %1323 = vmatprep.subr.mxu0 0.0
    %1324 = vmatpush1.msra.mxu0 0.0
    %1325 = vmatprep.subr.mxu0 0.0
    %1326 = vmatpush1.msra.mxu0 0.0
    %1327 = vmatprep.subr.mxu0 0.0
    %1328 = vmatpush1.msra.mxu0 0.0
    %1329 = vmatprep.subr.mxu0 0.0
    %1330 = vmatpush1.msra.mxu0 0.0
    %1331 = vmatprep.subr.mxu0 0.0
    %1332 = vmatpush1.msra.mxu0 0.0
    %1333 = vmatprep.mubr.f32.mxu0 0.0
    %1334 = vmatmul.mubr.f32.gmra.mrb[0].mxu0 %v1210
    %v1335 = vpop.f32.mrb[0].mxu0
    %v1336 = vadd.f32 0.0, %v1335
    %v1337 = vpop.f32.mrb[0].mxu0
    %1338 = vmatprep.mubr.f32.mxu0 0.0
    %1339 = vmatmul.mubr.f32.gmra.mrb[0].mxu0 %v1213
    %v1340 = vpop.f32.mrb[0].mxu0
    %v1341 = vadd.f32 0.0, %v1340
    %v1342 = vpop.f32.mrb[0].mxu0
    %1343 = vmatprep.mubr.f32.mxu0 0.0
    %1344 = vmatmul.mubr.f32.gmra.mrb[0].mxu0 %v1216
    %v1345 = vpop.f32.mrb[0].mxu0
    %v1346 = vadd.f32 0.0, %v1345
    %v1347 = vpop.f32.mrb[0].mxu0
    %1348 = vmatprep.mubr.f32.mxu0 0.0
    %1349 = vmatmul.mubr.f32.gmra.mrb[0].mxu0 %v1219
    %v1350 = vpop.f32.mrb[0].mxu0
    %v1351 = vadd.f32 0.0, %v1350
    %v1352 = vpop.f32.mrb[0].mxu0
    %1353 = vmatprep.mubr.f32.mxu0 0.0
    %1354 = vmatmul.mubr.f32.gmra.mrb[0].mxu0 %v1222
    %v1355 = vpop.f32.mrb[0].mxu0
    %v1356 = vadd.f32 0.0, %v1355
    %v1357 = vpop.f32.mrb[0].mxu0
    %1358 = vmatprep.mubr.f32.mxu0 0.0
    %1359 = vmatmul.mubr.f32.gmra.mrb[0].mxu0 %v1225
    %v1360 = vpop.f32.mrb[0].mxu0
    %v1361 = vadd.f32 0.0, %v1360
    %v1362 = vpop.f32.mrb[0].mxu0
    %1363 = vmatprep.mubr.f32.mxu0 0.0
    %1364 = vmatmul.mubr.f32.gmra.mrb[0].mxu0 %v1228
    %v1365 = vpop.f32.mrb[0].mxu0
    %v1366 = vadd.f32 0.0, %v1365
    %v1367 = vpop.f32.mrb[0].mxu0
    %1368 = vmatprep.mubr.f32.mxu0 0.0
    %1369 = vmatmul.mubr.f32.gmra.mrb[0].mxu0 %v1231
    %v1370 = vpop.f32.mrb[0].mxu0
    %v1371 = vadd.f32 0.0, %v1370
    %v1372 = vpop.f32.mrb[0].mxu0
    %1373 = vmatprep.mubr.f32.mxu0 0.0
    %1374 = vmatmul.mubr.f32.gmra.mrb[0].mxu0 %v1234
    %v1375 = vpop.f32.mrb[0].mxu0
    %v1376 = vadd.f32 0.0, %v1375
    %v1377 = vpop.f32.mrb[0].mxu0
    %1378 = vmatprep.mubr.f32.mxu0 0.0
    %1379 = vmatmul.mubr.f32.gmra.mrb[0].mxu0 %v1237
    %v1380 = vpop.f32.mrb[0].mxu0
    %v1381 = vadd.f32 0.0, %v1380
    %v1382 = vpop.f32.mrb[0].mxu0
    %1383 = vmatprep.mubr.f32.mxu0 0.0
    %1384 = vmatmul.mubr.f32.gmra.mrb[0].mxu0 %v1240
    %v1385 = vpop.f32.mrb[0].mxu0
    %v1386 = vadd.f32 0.0, %v1385
    %v1387 = vpop.f32.mrb[0].mxu0
    %1388 = vmatprep.mubr.f32.mxu0 0.0
    %1389 = vmatmul.mubr.f32.gmra.mrb[0].mxu0 %v1243
    %v1390 = vpop.f32.mrb[0].mxu0
    %v1391 = vadd.f32 0.0, %v1390
    %v1392 = vpop.f32.mrb[0].mxu0
    %1393 = vmatprep.mubr.f32.mxu0 0.0
    %1394 = vmatmul.mubr.f32.gmra.mrb[0].mxu0 %v1246
    %v1395 = vpop.f32.mrb[0].mxu0
    %v1396 = vadd.f32 0.0, %v1395
    %v1397 = vpop.f32.mrb[0].mxu0
    %1398 = vmatprep.mubr.f32.mxu0 0.0
    %1399 = vmatmul.mubr.f32.gmra.mrb[0].mxu0 %v1249
    %v1400 = vpop.f32.mrb[0].mxu0
    %v1401 = vadd.f32 0.0, %v1400
    %v1402 = vpop.f32.mrb[0].mxu0
    %1403 = vmatprep.mubr.f32.mxu0 0.0
    %1404 = vmatmul.mubr.f32.gmra.mrb[0].mxu0 %v1252
    %v1405 = vpop.f32.mrb[0].mxu0
    %v1406 = vadd.f32 0.0, %v1405
    %v1407 = vpop.f32.mrb[0].mxu0
    %1408 = vmatprep.mubr.f32.mxu0 0.0
    %1409 = vmatmul.mubr.f32.gmra.mrb[0].mxu0 %v1255
    %v1410 = vpop.f32.mrb[0].mxu0
    %v1411 = vadd.f32 0.0, %v1410
    %v1412 = vpop.f32.mrb[0].mxu0
    %1413 = vmatprep.mubr.f32.mxu0 0.0
    %1414 = vmatmul.mubr.f32.gmra.mrb[0].mxu0 %v1258
    %v1415 = vpop.f32.mrb[0].mxu0
    %v1416 = vadd.f32 0.0, %v1415
    %v1417 = vpop.f32.mrb[0].mxu0
    %1418 = vmatprep.mubr.f32.mxu0 0.0
    %1419 = vmatmul.mubr.f32.gmra.mrb[0].mxu0 %v1261
    %v1420 = vpop.f32.mrb[0].mxu0
    %v1421 = vadd.f32 0.0, %v1420
    %v1422 = vpop.f32.mrb[0].mxu0
    %1423 = vmatprep.mubr.f32.mxu0 0.0
    %1424 = vmatmul.mubr.f32.gmra.mrb[0].mxu0 %v1264
    %v1425 = vpop.f32.mrb[0].mxu0
    %v1426 = vadd.f32 0.0, %v1425
    %v1427 = vpop.f32.mrb[0].mxu0
    %1428 = vmatprep.mubr.f32.mxu0 0.0
    %1429 = vmatmul.mubr.f32.gmra.mrb[0].mxu0 %v1267
    %v1430 = vpop.f32.mrb[0].mxu0
    %v1431 = vadd.f32 0.0, %v1430
    %v1432 = vpop.f32.mrb[0].mxu0
    %1433 = vdwg.mxu0
    %v1434 = vadd.f32 %v1081, %v1336
    %v1435 = vadd.f32 %v1086, %v1341
    %v1436 = vadd.f32 %v1091, %v1346
    %v1437 = vadd.f32 %v1096, %v1351
    %v1438 = vadd.f32 %v1101, %v1356
    %v1439 = vadd.f32 %v1106, %v1361
    %v1440 = vadd.f32 %v1111, %v1366
    %v1441 = vadd.f32 %v1116, %v1371
    %v1442 = vadd.f32 %v1121, %v1376
    %v1443 = vadd.f32 %v1126, %v1381
    %v1444 = vadd.f32 %v1131, %v1386
    %v1445 = vadd.f32 %v1136, %v1391
    %v1446 = vadd.f32 %v1141, %v1396
    %v1447 = vadd.f32 %v1146, %v1401
    %v1448 = vadd.f32 %v1151, %v1406
    %v1449 = vadd.f32 %v1156, %v1411
    %v1450 = vadd.f32 %v1161, %v1416
    %v1451 = vadd.f32 %v1166, %v1421
    %v1452 = vadd.f32 %v1171, %v1426
    %v1453 = vadd.f32 %v1176, %v1431
    %s1454 = scalar_lea.vmem [#allocation2], 24
    %v1455 = vld [vmem:[%s1454] sm:$0xff]
    %v1456 = vld [vmem:[%s1454 + $0x8] sm:$0xff]
    %v1457 = vld [vmem:[%s1454 + $0x10] sm:$0xff]
    %v1458 = vld [vmem:[%s1454 + $0x18] sm:$0xff]
    %v1459 = vld [vmem:[%s1454 + $0x20] sm:$0xff]
    %v1460 = vld [vmem:[%s1454 + $0x28] sm:$0xff]
    %v1461 = vld [vmem:[%s1454 + $0x30] sm:$0xff]
    %v1462 = vld [vmem:[%s1454 + $0x38] sm:$0xff]
    %v1463 = vld [vmem:[%s1454 + $0x40] sm:$0xff]
    %v1464 = vld [vmem:[%s1454 + $0x48] sm:$0xff]
    %v1465 = vld [vmem:[%s1454 + $0x50] sm:$0xff]
    %v1466 = vld [vmem:[%s1454 + $0x58] sm:$0xff]
    %v1467 = vld [vmem:[%s1454 + $0x60] sm:$0xff]
    %v1468 = vld [vmem:[%s1454 + $0x68] sm:$0xff]
    %v1469 = vld [vmem:[%s1454 + $0x70] sm:$0xff]
    %v1470 = vld [vmem:[%s1454 + $0x78] sm:$0xff]
    %v1471 = vld [vmem:[%s1454 + $0x80] sm:$0xff]
    %v1472 = vld [vmem:[%s1454 + $0x88] sm:$0xff]
    %v1473 = vld [vmem:[%s1454 + $0x90] sm:$0xff]
    %v1474 = vld [vmem:[%s1454 + $0x98] sm:$0xff]
    %s1475 = scalar_lea.vmem [#allocation8], 192
    %v1476 = vld [vmem:[%s1475] sm:$0xff]
    %v1477 = vld [vmem:[%s1475 + $0x8] sm:$0xff]
    %v1478 = vld [vmem:[%s1475 + $0x10] sm:$0xff]
    %v1479 = vld [vmem:[%s1475 + $0x18] sm:$0xff]
    %v1480 = vld [vmem:[%s1475 + $0x20] sm:$0xff]
    %v1481 = vld [vmem:[%s1475 + $0x28] sm:$0xff]
    %v1482 = vld [vmem:[%s1475 + $0x30] sm:$0xff]
    %v1483 = vld [vmem:[%s1475 + $0x38] sm:$0xff]
    %v1485 = vsel %vm188, %v1455, 0
    %v1488 = vsel %vm188, %v1456, 0
    %v1491 = vsel %vm188, %v1457, 0
    %v1494 = vsel %vm188, %v1458, 0
    %v1497 = vsel %vm188, %v1459, 0
    %v1500 = vsel %vm188, %v1460, 0
    %v1503 = vsel %vm188, %v1461, 0
    %v1506 = vsel %vm188, %v1462, 0
    %v1509 = vsel %vm188, %v1463, 0
    %v1512 = vsel %vm188, %v1464, 0
    %v1515 = vsel %vm188, %v1465, 0
    %v1518 = vsel %vm188, %v1466, 0
    %v1521 = vsel %vm188, %v1467, 0
    %v1524 = vsel %vm188, %v1468, 0
    %v1527 = vsel %vm188, %v1469, 0
    %v1530 = vsel %vm188, %v1470, 0
    %v1533 = vsel %vm188, %v1471, 0
    %v1536 = vsel %vm188, %v1472, 0
    %v1539 = vsel %vm188, %v1473, 0
    %v1542 = vsel %vm188, %v1474, 0
    %1544 = vmatprep.subr.mxu0 0.0
    %1545 = vmatpush1.msra.mxu0 %v1476
    %1546 = vmatprep.subr.mxu0 0.0
    %1547 = vmatpush1.msra.mxu0 %v1477
    %1548 = vmatprep.subr.mxu0 0.0
    %1549 = vmatpush1.msra.mxu0 %v1478
    %1550 = vmatprep.subr.mxu0 0.0
    %1551 = vmatpush1.msra.mxu0 %v1479
    %1552 = vmatprep.subr.mxu0 0.0
    %1553 = vmatpush1.msra.mxu0 %v1480
    %1554 = vmatprep.subr.mxu0 0.0
    %1555 = vmatpush1.msra.mxu0 %v1481
    %1556 = vmatprep.subr.mxu0 0.0
    %1557 = vmatpush1.msra.mxu0 %v1482
    %1558 = vmatprep.subr.mxu0 0.0
    %1559 = vmatpush1.msra.mxu0 %v1483
    %1560 = vmatprep.subr.mxu0 0.0
    %1561 = vmatpush1.msra.mxu0 0.0
    %1562 = vmatprep.subr.mxu0 0.0
    %1563 = vmatpush1.msra.mxu0 0.0
    %1564 = vmatprep.subr.mxu0 0.0
    %1565 = vmatpush1.msra.mxu0 0.0
    %1566 = vmatprep.subr.mxu0 0.0
    %1567 = vmatpush1.msra.mxu0 0.0
    %1568 = vmatprep.subr.mxu0 0.0
    %1569 = vmatpush1.msra.mxu0 0.0
    %1570 = vmatprep.subr.mxu0 0.0
    %1571 = vmatpush1.msra.mxu0 0.0
    %1572 = vmatprep.subr.mxu0 0.0
    %1573 = vmatpush1.msra.mxu0 0.0
    %1574 = vmatprep.subr.mxu0 0.0
    %1575 = vmatpush1.msra.mxu0 0.0
    %1576 = vmatprep.subr.mxu0 0.0
    %1577 = vmatpush1.msra.mxu0 0.0
    %1578 = vmatprep.subr.mxu0 0.0
    %1579 = vmatpush1.msra.mxu0 0.0
    %1580 = vmatprep.subr.mxu0 0.0
    %1581 = vmatpush1.msra.mxu0 0.0
    %1582 = vmatprep.subr.mxu0 0.0
    %1583 = vmatpush1.msra.mxu0 0.0
    %1584 = vmatprep.subr.mxu0 0.0
    %1585 = vmatpush1.msra.mxu0 0.0
    %1586 = vmatprep.subr.mxu0 0.0
    %1587 = vmatpush1.msra.mxu0 0.0
    %1588 = vmatprep.subr.mxu0 0.0
    %1589 = vmatpush1.msra.mxu0 0.0
    %1590 = vmatprep.subr.mxu0 0.0
    %1591 = vmatpush1.msra.mxu0 0.0
    %1592 = vmatprep.subr.mxu0 0.0
    %1593 = vmatpush1.msra.mxu0 0.0
    %1594 = vmatprep.subr.mxu0 0.0
    %1595 = vmatpush1.msra.mxu0 0.0
    %1596 = vmatprep.subr.mxu0 0.0
    %1597 = vmatpush1.msra.mxu0 0.0
    %1598 = vmatprep.subr.mxu0 0.0
    %1599 = vmatpush1.msra.mxu0 0.0
    %1600 = vmatprep.subr.mxu0 0.0
    %1601 = vmatpush1.msra.mxu0 0.0
    %1602 = vmatprep.subr.mxu0 0.0
    %1603 = vmatpush1.msra.mxu0 0.0
    %1604 = vmatprep.subr.mxu0 0.0
    %1605 = vmatpush1.msra.mxu0 0.0
    %1606 = vmatprep.subr.mxu0 0.0
    %1607 = vmatpush1.msra.mxu0 0.0
    %1608 = vmatprep.mubr.f32.mxu0 0.0
    %1609 = vmatmul.mubr.f32.gmra.mrb[0].mxu0 %v1485
    %v1610 = vpop.f32.mrb[0].mxu0
    %v1611 = vadd.f32 0.0, %v1610
    %v1612 = vpop.f32.mrb[0].mxu0
    %1613 = vmatprep.mubr.f32.mxu0 0.0
    %1614 = vmatmul.mubr.f32.gmra.mrb[0].mxu0 %v1488
    %v1615 = vpop.f32.mrb[0].mxu0
    %v1616 = vadd.f32 0.0, %v1615
    %v1617 = vpop.f32.mrb[0].mxu0
    %1618 = vmatprep.mubr.f32.mxu0 0.0
    %1619 = vmatmul.mubr.f32.gmra.mrb[0].mxu0 %v1491
    %v1620 = vpop.f32.mrb[0].mxu0
    %v1621 = vadd.f32 0.0, %v1620
    %v1622 = vpop.f32.mrb[0].mxu0
    %1623 = vmatprep.mubr.f32.mxu0 0.0
    %1624 = vmatmul.mubr.f32.gmra.mrb[0].mxu0 %v1494
    %v1625 = vpop.f32.mrb[0].mxu0
    %v1626 = vadd.f32 0.0, %v1625
    %v1627 = vpop.f32.mrb[0].mxu0
    %1628 = vmatprep.mubr.f32.mxu0 0.0
    %1629 = vmatmul.mubr.f32.gmra.mrb[0].mxu0 %v1497
    %v1630 = vpop.f32.mrb[0].mxu0
    %v1631 = vadd.f32 0.0, %v1630
    %v1632 = vpop.f32.mrb[0].mxu0
    %1633 = vmatprep.mubr.f32.mxu0 0.0
    %1634 = vmatmul.mubr.f32.gmra.mrb[0].mxu0 %v1500
    %v1635 = vpop.f32.mrb[0].mxu0
    %v1636 = vadd.f32 0.0, %v1635
    %v1637 = vpop.f32.mrb[0].mxu0
    %1638 = vmatprep.mubr.f32.mxu0 0.0
    %1639 = vmatmul.mubr.f32.gmra.mrb[0].mxu0 %v1503
    %v1640 = vpop.f32.mrb[0].mxu0
    %v1641 = vadd.f32 0.0, %v1640
    %v1642 = vpop.f32.mrb[0].mxu0
    %1643 = vmatprep.mubr.f32.mxu0 0.0
    %1644 = vmatmul.mubr.f32.gmra.mrb[0].mxu0 %v1506
    %v1645 = vpop.f32.mrb[0].mxu0
    %v1646 = vadd.f32 0.0, %v1645
    %v1647 = vpop.f32.mrb[0].mxu0
    %1648 = vmatprep.mubr.f32.mxu0 0.0
    %1649 = vmatmul.mubr.f32.gmra.mrb[0].mxu0 %v1509
    %v1650 = vpop.f32.mrb[0].mxu0
    %v1651 = vadd.f32 0.0, %v1650
    %v1652 = vpop.f32.mrb[0].mxu0
    %1653 = vmatprep.mubr.f32.mxu0 0.0
    %1654 = vmatmul.mubr.f32.gmra.mrb[0].mxu0 %v1512
    %v1655 = vpop.f32.mrb[0].mxu0
    %v1656 = vadd.f32 0.0, %v1655
    %v1657 = vpop.f32.mrb[0].mxu0
    %1658 = vmatprep.mubr.f32.mxu0 0.0
    %1659 = vmatmul.mubr.f32.gmra.mrb[0].mxu0 %v1515
    %v1660 = vpop.f32.mrb[0].mxu0
    %v1661 = vadd.f32 0.0, %v1660
    %v1662 = vpop.f32.mrb[0].mxu0
    %1663 = vmatprep.mubr.f32.mxu0 0.0
    %1664 = vmatmul.mubr.f32.gmra.mrb[0].mxu0 %v1518
    %v1665 = vpop.f32.mrb[0].mxu0
    %v1666 = vadd.f32 0.0, %v1665
    %v1667 = vpop.f32.mrb[0].mxu0
    %1668 = vmatprep.mubr.f32.mxu0 0.0
    %1669 = vmatmul.mubr.f32.gmra.mrb[0].mxu0 %v1521
    %v1670 = vpop.f32.mrb[0].mxu0
    %v1671 = vadd.f32 0.0, %v1670
    %v1672 = vpop.f32.mrb[0].mxu0
    %1673 = vmatprep.mubr.f32.mxu0 0.0
    %1674 = vmatmul.mubr.f32.gmra.mrb[0].mxu0 %v1524
    %v1675 = vpop.f32.mrb[0].mxu0
    %v1676 = vadd.f32 0.0, %v1675
    %v1677 = vpop.f32.mrb[0].mxu0
    %1678 = vmatprep.mubr.f32.mxu0 0.0
    %1679 = vmatmul.mubr.f32.gmra.mrb[0].mxu0 %v1527
    %v1680 = vpop.f32.mrb[0].mxu0
    %v1681 = vadd.f32 0.0, %v1680
    %v1682 = vpop.f32.mrb[0].mxu0
    %1683 = vmatprep.mubr.f32.mxu0 0.0
    %1684 = vmatmul.mubr.f32.gmra.mrb[0].mxu0 %v1530
    %v1685 = vpop.f32.mrb[0].mxu0
    %v1686 = vadd.f32 0.0, %v1685
    %v1687 = vpop.f32.mrb[0].mxu0
    %1688 = vmatprep.mubr.f32.mxu0 0.0
    %1689 = vmatmul.mubr.f32.gmra.mrb[0].mxu0 %v1533
    %v1690 = vpop.f32.mrb[0].mxu0
    %v1691 = vadd.f32 0.0, %v1690
    %v1692 = vpop.f32.mrb[0].mxu0
    %1693 = vmatprep.mubr.f32.mxu0 0.0
    %1694 = vmatmul.mubr.f32.gmra.mrb[0].mxu0 %v1536
    %v1695 = vpop.f32.mrb[0].mxu0
    %v1696 = vadd.f32 0.0, %v1695
    %v1697 = vpop.f32.mrb[0].mxu0
    %1698 = vmatprep.mubr.f32.mxu0 0.0
    %1699 = vmatmul.mubr.f32.gmra.mrb[0].mxu0 %v1539
    %v1700 = vpop.f32.mrb[0].mxu0
    %v1701 = vadd.f32 0.0, %v1700
    %v1702 = vpop.f32.mrb[0].mxu0
    %1703 = vmatprep.mubr.f32.mxu0 0.0
    %1704 = vmatmul.mubr.f32.gmra.mrb[0].mxu0 %v1542
    %v1705 = vpop.f32.mrb[0].mxu0
    %v1706 = vadd.f32 0.0, %v1705
    %v1707 = vpop.f32.mrb[0].mxu0
    %1708 = vdwg.mxu0
    %v1709 = vadd.f32 %v1434, %v1611
    %v1710 = vadd.f32 %v1435, %v1616
    %v1711 = vadd.f32 %v1436, %v1621
    %v1712 = vadd.f32 %v1437, %v1626
    %v1713 = vadd.f32 %v1438, %v1631
    %v1714 = vadd.f32 %v1439, %v1636
    %v1715 = vadd.f32 %v1440, %v1641
    %v1716 = vadd.f32 %v1441, %v1646
    %v1717 = vadd.f32 %v1442, %v1651
    %v1718 = vadd.f32 %v1443, %v1656
    %v1719 = vadd.f32 %v1444, %v1661
    %v1720 = vadd.f32 %v1445, %v1666
    %v1721 = vadd.f32 %v1446, %v1671
    %v1722 = vadd.f32 %v1447, %v1676
    %v1723 = vadd.f32 %v1448, %v1681
    %v1724 = vadd.f32 %v1449, %v1686
    %v1725 = vadd.f32 %v1450, %v1691
    %v1726 = vadd.f32 %v1451, %v1696
    %v1727 = vadd.f32 %v1452, %v1701
    %v1728 = vadd.f32 %v1453, %v1706
    %s1729 = scalar_lea.vmem [#allocation2], 32
    %v1730 = vld [vmem:[%s1729] sm:$0xff]
    %v1731 = vld [vmem:[%s1729 + $0x8] sm:$0xff]
    %v1732 = vld [vmem:[%s1729 + $0x10] sm:$0xff]
    %v1733 = vld [vmem:[%s1729 + $0x18] sm:$0xff]
    %v1734 = vld [vmem:[%s1729 + $0x20] sm:$0xff]
    %v1735 = vld [vmem:[%s1729 + $0x28] sm:$0xff]
    %v1736 = vld [vmem:[%s1729 + $0x30] sm:$0xff]
    %v1737 = vld [vmem:[%s1729 + $0x38] sm:$0xff]
    %v1738 = vld [vmem:[%s1729 + $0x40] sm:$0xff]
    %v1739 = vld [vmem:[%s1729 + $0x48] sm:$0xff]
    %v1740 = vld [vmem:[%s1729 + $0x50] sm:$0xff]
    %v1741 = vld [vmem:[%s1729 + $0x58] sm:$0xff]
    %v1742 = vld [vmem:[%s1729 + $0x60] sm:$0xff]
    %v1743 = vld [vmem:[%s1729 + $0x68] sm:$0xff]
    %v1744 = vld [vmem:[%s1729 + $0x70] sm:$0xff]
    %v1745 = vld [vmem:[%s1729 + $0x78] sm:$0xff]
    %v1746 = vld [vmem:[%s1729 + $0x80] sm:$0xff]
    %v1747 = vld [vmem:[%s1729 + $0x88] sm:$0xff]
    %v1748 = vld [vmem:[%s1729 + $0x90] sm:$0xff]
    %v1749 = vld [vmem:[%s1729 + $0x98] sm:$0xff]
    %s1750 = scalar_lea.vmem [#allocation8], 256
    %v1751 = vld [vmem:[%s1750] sm:$0xff]
    %v1752 = vld [vmem:[%s1750 + $0x8] sm:$0xff]
    %v1753 = vld [vmem:[%s1750 + $0x10] sm:$0xff]
    %v1754 = vld [vmem:[%s1750 + $0x18] sm:$0xff]
    %v1755 = vld [vmem:[%s1750 + $0x20] sm:$0xff]
    %v1756 = vld [vmem:[%s1750 + $0x28] sm:$0xff]
    %v1757 = vld [vmem:[%s1750 + $0x30] sm:$0xff]
    %v1758 = vld [vmem:[%s1750 + $0x38] sm:$0xff]
    %v1760 = vsel %vm188, %v1730, 0
    %v1763 = vsel %vm188, %v1731, 0
    %v1766 = vsel %vm188, %v1732, 0
    %v1769 = vsel %vm188, %v1733, 0
    %v1772 = vsel %vm188, %v1734, 0
    %v1775 = vsel %vm188, %v1735, 0
    %v1778 = vsel %vm188, %v1736, 0
    %v1781 = vsel %vm188, %v1737, 0
    %v1784 = vsel %vm188, %v1738, 0
    %v1787 = vsel %vm188, %v1739, 0
    %v1790 = vsel %vm188, %v1740, 0
    %v1793 = vsel %vm188, %v1741, 0
    %v1796 = vsel %vm188, %v1742, 0
    %v1799 = vsel %vm188, %v1743, 0
    %v1802 = vsel %vm188, %v1744, 0
    %v1805 = vsel %vm188, %v1745, 0
    %v1808 = vsel %vm188, %v1746, 0
    %v1811 = vsel %vm188, %v1747, 0
    %v1814 = vsel %vm188, %v1748, 0
    %v1817 = vsel %vm188, %v1749, 0
    %1819 = vmatprep.subr.mxu0 0.0
    %1820 = vmatpush1.msra.mxu0 %v1751
    %1821 = vmatprep.subr.mxu0 0.0
    %1822 = vmatpush1.msra.mxu0 %v1752
    %1823 = vmatprep.subr.mxu0 0.0
    %1824 = vmatpush1.msra.mxu0 %v1753
    %1825 = vmatprep.subr.mxu0 0.0
    %1826 = vmatpush1.msra.mxu0 %v1754
    %1827 = vmatprep.subr.mxu0 0.0
    %1828 = vmatpush1.msra.mxu0 %v1755
    %1829 = vmatprep.subr.mxu0 0.0
    %1830 = vmatpush1.msra.mxu0 %v1756
    %1831 = vmatprep.subr.mxu0 0.0
    %1832 = vmatpush1.msra.mxu0 %v1757
    %1833 = vmatprep.subr.mxu0 0.0
    %1834 = vmatpush1.msra.mxu0 %v1758
    %1835 = vmatprep.subr.mxu0 0.0
    %1836 = vmatpush1.msra.mxu0 0.0
    %1837 = vmatprep.subr.mxu0 0.0
    %1838 = vmatpush1.msra.mxu0 0.0
    %1839 = vmatprep.subr.mxu0 0.0
    %1840 = vmatpush1.msra.mxu0 0.0
    %1841 = vmatprep.subr.mxu0 0.0
    %1842 = vmatpush1.msra.mxu0 0.0
    %1843 = vmatprep.subr.mxu0 0.0
    %1844 = vmatpush1.msra.mxu0 0.0
    %1845 = vmatprep.subr.mxu0 0.0
    %1846 = vmatpush1.msra.mxu0 0.0
    %1847 = vmatprep.subr.mxu0 0.0
    %1848 = vmatpush1.msra.mxu0 0.0
    %1849 = vmatprep.subr.mxu0 0.0
    %1850 = vmatpush1.msra.mxu0 0.0
    %1851 = vmatprep.subr.mxu0 0.0
    %1852 = vmatpush1.msra.mxu0 0.0
    %1853 = vmatprep.subr.mxu0 0.0
    %1854 = vmatpush1.msra.mxu0 0.0
    %1855 = vmatprep.subr.mxu0 0.0
    %1856 = vmatpush1.msra.mxu0 0.0
    %1857 = vmatprep.subr.mxu0 0.0
    %1858 = vmatpush1.msra.mxu0 0.0
    %1859 = vmatprep.subr.mxu0 0.0
    %1860 = vmatpush1.msra.mxu0 0.0
    %1861 = vmatprep.subr.mxu0 0.0
    %1862 = vmatpush1.msra.mxu0 0.0
    %1863 = vmatprep.subr.mxu0 0.0
    %1864 = vmatpush1.msra.mxu0 0.0
    %1865 = vmatprep.subr.mxu0 0.0
    %1866 = vmatpush1.msra.mxu0 0.0
    %1867 = vmatprep.subr.mxu0 0.0
    %1868 = vmatpush1.msra.mxu0 0.0
    %1869 = vmatprep.subr.mxu0 0.0
    %1870 = vmatpush1.msra.mxu0 0.0
    %1871 = vmatprep.subr.mxu0 0.0
    %1872 = vmatpush1.msra.mxu0 0.0
    %1873 = vmatprep.subr.mxu0 0.0
    %1874 = vmatpush1.msra.mxu0 0.0
    %1875 = vmatprep.subr.mxu0 0.0
    %1876 = vmatpush1.msra.mxu0 0.0
    %1877 = vmatprep.subr.mxu0 0.0
    %1878 = vmatpush1.msra.mxu0 0.0
    %1879 = vmatprep.subr.mxu0 0.0
    %1880 = vmatpush1.msra.mxu0 0.0
    %1881 = vmatprep.subr.mxu0 0.0
    %1882 = vmatpush1.msra.mxu0 0.0
    %1883 = vmatprep.mubr.f32.mxu0 0.0
    %1884 = vmatmul.mubr.f32.gmra.mrb[0].mxu0 %v1760
    %v1885 = vpop.f32.mrb[0].mxu0
    %v1886 = vadd.f32 0.0, %v1885
    %v1887 = vpop.f32.mrb[0].mxu0
    %1888 = vmatprep.mubr.f32.mxu0 0.0
    %1889 = vmatmul.mubr.f32.gmra.mrb[0].mxu0 %v1763
    %v1890 = vpop.f32.mrb[0].mxu0
    %v1891 = vadd.f32 0.0, %v1890
    %v1892 = vpop.f32.mrb[0].mxu0
    %1893 = vmatprep.mubr.f32.mxu0 0.0
    %1894 = vmatmul.mubr.f32.gmra.mrb[0].mxu0 %v1766
    %v1895 = vpop.f32.mrb[0].mxu0
    %v1896 = vadd.f32 0.0, %v1895
    %v1897 = vpop.f32.mrb[0].mxu0
    %1898 = vmatprep.mubr.f32.mxu0 0.0
    %1899 = vmatmul.mubr.f32.gmra.mrb[0].mxu0 %v1769
    %v1900 = vpop.f32.mrb[0].mxu0
    %v1901 = vadd.f32 0.0, %v1900
    %v1902 = vpop.f32.mrb[0].mxu0
    %1903 = vmatprep.mubr.f32.mxu0 0.0
    %1904 = vmatmul.mubr.f32.gmra.mrb[0].mxu0 %v1772
    %v1905 = vpop.f32.mrb[0].mxu0
    %v1906 = vadd.f32 0.0, %v1905
    %v1907 = vpop.f32.mrb[0].mxu0
    %1908 = vmatprep.mubr.f32.mxu0 0.0
    %1909 = vmatmul.mubr.f32.gmra.mrb[0].mxu0 %v1775
    %v1910 = vpop.f32.mrb[0].mxu0
    %v1911 = vadd.f32 0.0, %v1910
    %v1912 = vpop.f32.mrb[0].mxu0
    %1913 = vmatprep.mubr.f32.mxu0 0.0
    %1914 = vmatmul.mubr.f32.gmra.mrb[0].mxu0 %v1778
    %v1915 = vpop.f32.mrb[0].mxu0
    %v1916 = vadd.f32 0.0, %v1915
    %v1917 = vpop.f32.mrb[0].mxu0
    %1918 = vmatprep.mubr.f32.mxu0 0.0
    %1919 = vmatmul.mubr.f32.gmra.mrb[0].mxu0 %v1781
    %v1920 = vpop.f32.mrb[0].mxu0
    %v1921 = vadd.f32 0.0, %v1920
    %v1922 = vpop.f32.mrb[0].mxu0
    %1923 = vmatprep.mubr.f32.mxu0 0.0
    %1924 = vmatmul.mubr.f32.gmra.mrb[0].mxu0 %v1784
    %v1925 = vpop.f32.mrb[0].mxu0
    %v1926 = vadd.f32 0.0, %v1925
    %v1927 = vpop.f32.mrb[0].mxu0
    %1928 = vmatprep.mubr.f32.mxu0 0.0
    %1929 = vmatmul.mubr.f32.gmra.mrb[0].mxu0 %v1787
    %v1930 = vpop.f32.mrb[0].mxu0
    %v1931 = vadd.f32 0.0, %v1930
    %v1932 = vpop.f32.mrb[0].mxu0
    %1933 = vmatprep.mubr.f32.mxu0 0.0
    %1934 = vmatmul.mubr.f32.gmra.mrb[0].mxu0 %v1790
    %v1935 = vpop.f32.mrb[0].mxu0
    %v1936 = vadd.f32 0.0, %v1935
    %v1937 = vpop.f32.mrb[0].mxu0
    %1938 = vmatprep.mubr.f32.mxu0 0.0
    %1939 = vmatmul.mubr.f32.gmra.mrb[0].mxu0 %v1793
    %v1940 = vpop.f32.mrb[0].mxu0
    %v1941 = vadd.f32 0.0, %v1940
    %v1942 = vpop.f32.mrb[0].mxu0
    %1943 = vmatprep.mubr.f32.mxu0 0.0
    %1944 = vmatmul.mubr.f32.gmra.mrb[0].mxu0 %v1796
    %v1945 = vpop.f32.mrb[0].mxu0
    %v1946 = vadd.f32 0.0, %v1945
    %v1947 = vpop.f32.mrb[0].mxu0
    %1948 = vmatprep.mubr.f32.mxu0 0.0
    %1949 = vmatmul.mubr.f32.gmra.mrb[0].mxu0 %v1799
    %v1950 = vpop.f32.mrb[0].mxu0
    %v1951 = vadd.f32 0.0, %v1950
    %v1952 = vpop.f32.mrb[0].mxu0
    %1953 = vmatprep.mubr.f32.mxu0 0.0
    %1954 = vmatmul.mubr.f32.gmra.mrb[0].mxu0 %v1802
    %v1955 = vpop.f32.mrb[0].mxu0
    %v1956 = vadd.f32 0.0, %v1955
    %v1957 = vpop.f32.mrb[0].mxu0
    %1958 = vmatprep.mubr.f32.mxu0 0.0
    %1959 = vmatmul.mubr.f32.gmra.mrb[0].mxu0 %v1805
    %v1960 = vpop.f32.mrb[0].mxu0
    %v1961 = vadd.f32 0.0, %v1960
    %v1962 = vpop.f32.mrb[0].mxu0
    %1963 = vmatprep.mubr.f32.mxu0 0.0
    %1964 = vmatmul.mubr.f32.gmra.mrb[0].mxu0 %v1808
    %v1965 = vpop.f32.mrb[0].mxu0
    %v1966 = vadd.f32 0.0, %v1965
    %v1967 = vpop.f32.mrb[0].mxu0
    %1968 = vmatprep.mubr.f32.mxu0 0.0
    %1969 = vmatmul.mubr.f32.gmra.mrb[0].mxu0 %v1811
    %v1970 = vpop.f32.mrb[0].mxu0
    %v1971 = vadd.f32 0.0, %v1970
    %v1972 = vpop.f32.mrb[0].mxu0
    %1973 = vmatprep.mubr.f32.mxu0 0.0
    %1974 = vmatmul.mubr.f32.gmra.mrb[0].mxu0 %v1814
    %v1975 = vpop.f32.mrb[0].mxu0
    %v1976 = vadd.f32 0.0, %v1975
    %v1977 = vpop.f32.mrb[0].mxu0
    %1978 = vmatprep.mubr.f32.mxu0 0.0
    %1979 = vmatmul.mubr.f32.gmra.mrb[0].mxu0 %v1817
    %v1980 = vpop.f32.mrb[0].mxu0
    %v1981 = vadd.f32 0.0, %v1980
    %v1982 = vpop.f32.mrb[0].mxu0
    %1983 = vdwg.mxu0
    %v1984 = vadd.f32 %v1709, %v1886
    %v1985 = vadd.f32 %v1710, %v1891
    %v1986 = vadd.f32 %v1711, %v1896
    %v1987 = vadd.f32 %v1712, %v1901
    %v1988 = vadd.f32 %v1713, %v1906
    %v1989 = vadd.f32 %v1714, %v1911
    %v1990 = vadd.f32 %v1715, %v1916
    %v1991 = vadd.f32 %v1716, %v1921
    %v1992 = vadd.f32 %v1717, %v1926
    %v1993 = vadd.f32 %v1718, %v1931
    %v1994 = vadd.f32 %v1719, %v1936
    %v1995 = vadd.f32 %v1720, %v1941
    %v1996 = vadd.f32 %v1721, %v1946
    %v1997 = vadd.f32 %v1722, %v1951
    %v1998 = vadd.f32 %v1723, %v1956
    %v1999 = vadd.f32 %v1724, %v1961
    %v2000 = vadd.f32 %v1725, %v1966
    %v2001 = vadd.f32 %v1726, %v1971
    %v2002 = vadd.f32 %v1727, %v1976
    %v2003 = vadd.f32 %v1728, %v1981
    %s2004 = scalar_lea.vmem [#allocation2], 40
    %v2005 = vld [vmem:[%s2004] sm:$0xff]
    %v2006 = vld [vmem:[%s2004 + $0x8] sm:$0xff]
    %v2007 = vld [vmem:[%s2004 + $0x10] sm:$0xff]
    %v2008 = vld [vmem:[%s2004 + $0x18] sm:$0xff]
    %v2009 = vld [vmem:[%s2004 + $0x20] sm:$0xff]
    %v2010 = vld [vmem:[%s2004 + $0x28] sm:$0xff]
    %v2011 = vld [vmem:[%s2004 + $0x30] sm:$0xff]
    %v2012 = vld [vmem:[%s2004 + $0x38] sm:$0xff]
    %v2013 = vld [vmem:[%s2004 + $0x40] sm:$0xff]
    %v2014 = vld [vmem:[%s2004 + $0x48] sm:$0xff]
    %v2015 = vld [vmem:[%s2004 + $0x50] sm:$0xff]
    %v2016 = vld [vmem:[%s2004 + $0x58] sm:$0xff]
    %v2017 = vld [vmem:[%s2004 + $0x60] sm:$0xff]
    %v2018 = vld [vmem:[%s2004 + $0x68] sm:$0xff]
    %v2019 = vld [vmem:[%s2004 + $0x70] sm:$0xff]
    %v2020 = vld [vmem:[%s2004 + $0x78] sm:$0xff]
    %v2021 = vld [vmem:[%s2004 + $0x80] sm:$0xff]
    %v2022 = vld [vmem:[%s2004 + $0x88] sm:$0xff]
    %v2023 = vld [vmem:[%s2004 + $0x90] sm:$0xff]
    %v2024 = vld [vmem:[%s2004 + $0x98] sm:$0xff]
    %s2025 = scalar_lea.vmem [#allocation8], 320
    %v2026 = vld [vmem:[%s2025] sm:$0xff]
    %v2027 = vld [vmem:[%s2025 + $0x8] sm:$0xff]
    %v2028 = vld [vmem:[%s2025 + $0x10] sm:$0xff]
    %v2029 = vld [vmem:[%s2025 + $0x18] sm:$0xff]
    %v2030 = vld [vmem:[%s2025 + $0x20] sm:$0xff]
    %v2031 = vld [vmem:[%s2025 + $0x28] sm:$0xff]
    %v2032 = vld [vmem:[%s2025 + $0x30] sm:$0xff]
    %v2033 = vld [vmem:[%s2025 + $0x38] sm:$0xff]
    %v2035 = vsel %vm188, %v2005, 0
    %v2038 = vsel %vm188, %v2006, 0
    %v2041 = vsel %vm188, %v2007, 0
    %v2044 = vsel %vm188, %v2008, 0
    %v2047 = vsel %vm188, %v2009, 0
    %v2050 = vsel %vm188, %v2010, 0
    %v2053 = vsel %vm188, %v2011, 0
    %v2056 = vsel %vm188, %v2012, 0
    %v2059 = vsel %vm188, %v2013, 0
    %v2062 = vsel %vm188, %v2014, 0
    %v2065 = vsel %vm188, %v2015, 0
    %v2068 = vsel %vm188, %v2016, 0
    %v2071 = vsel %vm188, %v2017, 0
    %v2074 = vsel %vm188, %v2018, 0
    %v2077 = vsel %vm188, %v2019, 0
    %v2080 = vsel %vm188, %v2020, 0
    %v2083 = vsel %vm188, %v2021, 0
    %v2086 = vsel %vm188, %v2022, 0
    %v2089 = vsel %vm188, %v2023, 0
    %v2092 = vsel %vm188, %v2024, 0
    %2094 = vmatprep.subr.mxu0 0.0
    %2095 = vmatpush1.msra.mxu0 %v2026
    %2096 = vmatprep.subr.mxu0 0.0
    %2097 = vmatpush1.msra.mxu0 %v2027
    %2098 = vmatprep.subr.mxu0 0.0
    %2099 = vmatpush1.msra.mxu0 %v2028
    %2100 = vmatprep.subr.mxu0 0.0
    %2101 = vmatpush1.msra.mxu0 %v2029
    %2102 = vmatprep.subr.mxu0 0.0
    %2103 = vmatpush1.msra.mxu0 %v2030
    %2104 = vmatprep.subr.mxu0 0.0
    %2105 = vmatpush1.msra.mxu0 %v2031
    %2106 = vmatprep.subr.mxu0 0.0
    %2107 = vmatpush1.msra.mxu0 %v2032
    %2108 = vmatprep.subr.mxu0 0.0
    %2109 = vmatpush1.msra.mxu0 %v2033
    %2110 = vmatprep.subr.mxu0 0.0
    %2111 = vmatpush1.msra.mxu0 0.0
    %2112 = vmatprep.subr.mxu0 0.0
    %2113 = vmatpush1.msra.mxu0 0.0
    %2114 = vmatprep.subr.mxu0 0.0
    %2115 = vmatpush1.msra.mxu0 0.0
    %2116 = vmatprep.subr.mxu0 0.0
    %2117 = vmatpush1.msra.mxu0 0.0
    %2118 = vmatprep.subr.mxu0 0.0
    %2119 = vmatpush1.msra.mxu0 0.0
    %2120 = vmatprep.subr.mxu0 0.0
    %2121 = vmatpush1.msra.mxu0 0.0
    %2122 = vmatprep.subr.mxu0 0.0
    %2123 = vmatpush1.msra.mxu0 0.0
    %2124 = vmatprep.subr.mxu0 0.0
    %2125 = vmatpush1.msra.mxu0 0.0
    %2126 = vmatprep.subr.mxu0 0.0
    %2127 = vmatpush1.msra.mxu0 0.0
    %2128 = vmatprep.subr.mxu0 0.0
    %2129 = vmatpush1.msra.mxu0 0.0
    %2130 = vmatprep.subr.mxu0 0.0
    %2131 = vmatpush1.msra.mxu0 0.0
    %2132 = vmatprep.subr.mxu0 0.0
    %2133 = vmatpush1.msra.mxu0 0.0
    %2134 = vmatprep.subr.mxu0 0.0
    %2135 = vmatpush1.msra.mxu0 0.0
    %2136 = vmatprep.subr.mxu0 0.0
    %2137 = vmatpush1.msra.mxu0 0.0
    %2138 = vmatprep.subr.mxu0 0.0
    %2139 = vmatpush1.msra.mxu0 0.0
    %2140 = vmatprep.subr.mxu0 0.0
    %2141 = vmatpush1.msra.mxu0 0.0
    %2142 = vmatprep.subr.mxu0 0.0
    %2143 = vmatpush1.msra.mxu0 0.0
    %2144 = vmatprep.subr.mxu0 0.0
    %2145 = vmatpush1.msra.mxu0 0.0
    %2146 = vmatprep.subr.mxu0 0.0
    %2147 = vmatpush1.msra.mxu0 0.0
    %2148 = vmatprep.subr.mxu0 0.0
    %2149 = vmatpush1.msra.mxu0 0.0
    %2150 = vmatprep.subr.mxu0 0.0
    %2151 = vmatpush1.msra.mxu0 0.0
    %2152 = vmatprep.subr.mxu0 0.0
    %2153 = vmatpush1.msra.mxu0 0.0
    %2154 = vmatprep.subr.mxu0 0.0
    %2155 = vmatpush1.msra.mxu0 0.0
    %2156 = vmatprep.subr.mxu0 0.0
    %2157 = vmatpush1.msra.mxu0 0.0
    %2158 = vmatprep.mubr.f32.mxu0 0.0
    %2159 = vmatmul.mubr.f32.gmra.mrb[0].mxu0 %v2035
    %v2160 = vpop.f32.mrb[0].mxu0
    %v2161 = vadd.f32 0.0, %v2160
    %v2162 = vpop.f32.mrb[0].mxu0
    %2163 = vmatprep.mubr.f32.mxu0 0.0
    %2164 = vmatmul.mubr.f32.gmra.mrb[0].mxu0 %v2038
    %v2165 = vpop.f32.mrb[0].mxu0
    %v2166 = vadd.f32 0.0, %v2165
    %v2167 = vpop.f32.mrb[0].mxu0
    %2168 = vmatprep.mubr.f32.mxu0 0.0
    %2169 = vmatmul.mubr.f32.gmra.mrb[0].mxu0 %v2041
    %v2170 = vpop.f32.mrb[0].mxu0
    %v2171 = vadd.f32 0.0, %v2170
    %v2172 = vpop.f32.mrb[0].mxu0
    %2173 = vmatprep.mubr.f32.mxu0 0.0
    %2174 = vmatmul.mubr.f32.gmra.mrb[0].mxu0 %v2044
    %v2175 = vpop.f32.mrb[0].mxu0
    %v2176 = vadd.f32 0.0, %v2175
    %v2177 = vpop.f32.mrb[0].mxu0
    %2178 = vmatprep.mubr.f32.mxu0 0.0
    %2179 = vmatmul.mubr.f32.gmra.mrb[0].mxu0 %v2047
    %v2180 = vpop.f32.mrb[0].mxu0
    %v2181 = vadd.f32 0.0, %v2180
    %v2182 = vpop.f32.mrb[0].mxu0
    %2183 = vmatprep.mubr.f32.mxu0 0.0
    %2184 = vmatmul.mubr.f32.gmra.mrb[0].mxu0 %v2050
    %v2185 = vpop.f32.mrb[0].mxu0
    %v2186 = vadd.f32 0.0, %v2185
    %v2187 = vpop.f32.mrb[0].mxu0
    %2188 = vmatprep.mubr.f32.mxu0 0.0
    %2189 = vmatmul.mubr.f32.gmra.mrb[0].mxu0 %v2053
    %v2190 = vpop.f32.mrb[0].mxu0
    %v2191 = vadd.f32 0.0, %v2190
    %v2192 = vpop.f32.mrb[0].mxu0
    %2193 = vmatprep.mubr.f32.mxu0 0.0
    %2194 = vmatmul.mubr.f32.gmra.mrb[0].mxu0 %v2056
    %v2195 = vpop.f32.mrb[0].mxu0
    %v2196 = vadd.f32 0.0, %v2195
    %v2197 = vpop.f32.mrb[0].mxu0
    %2198 = vmatprep.mubr.f32.mxu0 0.0
    %2199 = vmatmul.mubr.f32.gmra.mrb[0].mxu0 %v2059
    %v2200 = vpop.f32.mrb[0].mxu0
    %v2201 = vadd.f32 0.0, %v2200
    %v2202 = vpop.f32.mrb[0].mxu0
    %2203 = vmatprep.mubr.f32.mxu0 0.0
    %2204 = vmatmul.mubr.f32.gmra.mrb[0].mxu0 %v2062
    %v2205 = vpop.f32.mrb[0].mxu0
    %v2206 = vadd.f32 0.0, %v2205
    %v2207 = vpop.f32.mrb[0].mxu0
    %2208 = vmatprep.mubr.f32.mxu0 0.0
    %2209 = vmatmul.mubr.f32.gmra.mrb[0].mxu0 %v2065
    %v2210 = vpop.f32.mrb[0].mxu0
    %v2211 = vadd.f32 0.0, %v2210
    %v2212 = vpop.f32.mrb[0].mxu0
    %2213 = vmatprep.mubr.f32.mxu0 0.0
    %2214 = vmatmul.mubr.f32.gmra.mrb[0].mxu0 %v2068
    %v2215 = vpop.f32.mrb[0].mxu0
    %v2216 = vadd.f32 0.0, %v2215
    %v2217 = vpop.f32.mrb[0].mxu0
    %2218 = vmatprep.mubr.f32.mxu0 0.0
    %2219 = vmatmul.mubr.f32.gmra.mrb[0].mxu0 %v2071
    %v2220 = vpop.f32.mrb[0].mxu0
    %v2221 = vadd.f32 0.0, %v2220
    %v2222 = vpop.f32.mrb[0].mxu0
    %2223 = vmatprep.mubr.f32.mxu0 0.0
    %2224 = vmatmul.mubr.f32.gmra.mrb[0].mxu0 %v2074
    %v2225 = vpop.f32.mrb[0].mxu0
    %v2226 = vadd.f32 0.0, %v2225
    %v2227 = vpop.f32.mrb[0].mxu0
    %2228 = vmatprep.mubr.f32.mxu0 0.0
    %2229 = vmatmul.mubr.f32.gmra.mrb[0].mxu0 %v2077
    %v2230 = vpop.f32.mrb[0].mxu0
    %v2231 = vadd.f32 0.0, %v2230
    %v2232 = vpop.f32.mrb[0].mxu0
    %2233 = vmatprep.mubr.f32.mxu0 0.0
    %2234 = vmatmul.mubr.f32.gmra.mrb[0].mxu0 %v2080
    %v2235 = vpop.f32.mrb[0].mxu0
    %v2236 = vadd.f32 0.0, %v2235
    %v2237 = vpop.f32.mrb[0].mxu0
    %2238 = vmatprep.mubr.f32.mxu0 0.0
    %2239 = vmatmul.mubr.f32.gmra.mrb[0].mxu0 %v2083
    %v2240 = vpop.f32.mrb[0].mxu0
    %v2241 = vadd.f32 0.0, %v2240
    %v2242 = vpop.f32.mrb[0].mxu0
    %2243 = vmatprep.mubr.f32.mxu0 0.0
    %2244 = vmatmul.mubr.f32.gmra.mrb[0].mxu0 %v2086
    %v2245 = vpop.f32.mrb[0].mxu0
    %v2246 = vadd.f32 0.0, %v2245
    %v2247 = vpop.f32.mrb[0].mxu0
    %2248 = vmatprep.mubr.f32.mxu0 0.0
    %2249 = vmatmul.mubr.f32.gmra.mrb[0].mxu0 %v2089
    %v2250 = vpop.f32.mrb[0].mxu0
    %v2251 = vadd.f32 0.0, %v2250
    %v2252 = vpop.f32.mrb[0].mxu0
    %2253 = vmatprep.mubr.f32.mxu0 0.0
    %2254 = vmatmul.mubr.f32.gmra.mrb[0].mxu0 %v2092
    %v2255 = vpop.f32.mrb[0].mxu0
    %v2256 = vadd.f32 0.0, %v2255
    %v2257 = vpop.f32.mrb[0].mxu0
    %2258 = vdwg.mxu0
    %v2259 = vadd.f32 %v1984, %v2161
    %v2260 = vadd.f32 %v1985, %v2166
    %v2261 = vadd.f32 %v1986, %v2171
    %v2262 = vadd.f32 %v1987, %v2176
    %v2263 = vadd.f32 %v1988, %v2181
    %v2264 = vadd.f32 %v1989, %v2186
    %v2265 = vadd.f32 %v1990, %v2191
    %v2266 = vadd.f32 %v1991, %v2196
    %v2267 = vadd.f32 %v1992, %v2201
    %v2268 = vadd.f32 %v1993, %v2206
    %v2269 = vadd.f32 %v1994, %v2211
    %v2270 = vadd.f32 %v1995, %v2216
    %v2271 = vadd.f32 %v1996, %v2221
    %v2272 = vadd.f32 %v1997, %v2226
    %v2273 = vadd.f32 %v1998, %v2231
    %v2274 = vadd.f32 %v1999, %v2236
    %v2275 = vadd.f32 %v2000, %v2241
    %v2276 = vadd.f32 %v2001, %v2246
    %v2277 = vadd.f32 %v2002, %v2251
    %v2278 = vadd.f32 %v2003, %v2256
    %s2279 = scalar_lea.vmem [#allocation2], 48
    %v2280 = vld [vmem:[%s2279] sm:$0xff]
    %v2281 = vld [vmem:[%s2279 + $0x8] sm:$0xff]
    %v2282 = vld [vmem:[%s2279 + $0x10] sm:$0xff]
    %v2283 = vld [vmem:[%s2279 + $0x18] sm:$0xff]
    %v2284 = vld [vmem:[%s2279 + $0x20] sm:$0xff]
    %v2285 = vld [vmem:[%s2279 + $0x28] sm:$0xff]
    %v2286 = vld [vmem:[%s2279 + $0x30] sm:$0xff]
    %v2287 = vld [vmem:[%s2279 + $0x38] sm:$0xff]
    %v2288 = vld [vmem:[%s2279 + $0x40] sm:$0xff]
    %v2289 = vld [vmem:[%s2279 + $0x48] sm:$0xff]
    %v2290 = vld [vmem:[%s2279 + $0x50] sm:$0xff]
    %v2291 = vld [vmem:[%s2279 + $0x58] sm:$0xff]
    %v2292 = vld [vmem:[%s2279 + $0x60] sm:$0xff]
    %v2293 = vld [vmem:[%s2279 + $0x68] sm:$0xff]
    %v2294 = vld [vmem:[%s2279 + $0x70] sm:$0xff]
    %v2295 = vld [vmem:[%s2279 + $0x78] sm:$0xff]
    %v2296 = vld [vmem:[%s2279 + $0x80] sm:$0xff]
    %v2297 = vld [vmem:[%s2279 + $0x88] sm:$0xff]
    %v2298 = vld [vmem:[%s2279 + $0x90] sm:$0xff]
    %v2299 = vld [vmem:[%s2279 + $0x98] sm:$0xff]
    %s2300 = scalar_lea.vmem [#allocation8], 384
    %v2301 = vld [vmem:[%s2300] sm:$0xff]
    %v2302 = vld [vmem:[%s2300 + $0x8] sm:$0xff]
    %v2303 = vld [vmem:[%s2300 + $0x10] sm:$0xff]
    %v2304 = vld [vmem:[%s2300 + $0x18] sm:$0xff]
    %v2305 = vld [vmem:[%s2300 + $0x20] sm:$0xff]
    %v2306 = vld [vmem:[%s2300 + $0x28] sm:$0xff]
    %v2307 = vld [vmem:[%s2300 + $0x30] sm:$0xff]
    %v2308 = vld [vmem:[%s2300 + $0x38] sm:$0xff]
    %v2310 = vsel %vm188, %v2280, 0
    %v2313 = vsel %vm188, %v2281, 0
    %v2316 = vsel %vm188, %v2282, 0
    %v2319 = vsel %vm188, %v2283, 0
    %v2322 = vsel %vm188, %v2284, 0
    %v2325 = vsel %vm188, %v2285, 0
    %v2328 = vsel %vm188, %v2286, 0
    %v2331 = vsel %vm188, %v2287, 0
    %v2334 = vsel %vm188, %v2288, 0
    %v2337 = vsel %vm188, %v2289, 0
    %v2340 = vsel %vm188, %v2290, 0
    %v2343 = vsel %vm188, %v2291, 0
    %v2346 = vsel %vm188, %v2292, 0
    %v2349 = vsel %vm188, %v2293, 0
    %v2352 = vsel %vm188, %v2294, 0
    %v2355 = vsel %vm188, %v2295, 0
    %v2358 = vsel %vm188, %v2296, 0
    %v2361 = vsel %vm188, %v2297, 0
    %v2364 = vsel %vm188, %v2298, 0
    %v2367 = vsel %vm188, %v2299, 0
    %2369 = vmatprep.subr.mxu0 0.0
    %2370 = vmatpush1.msra.mxu0 %v2301
    %2371 = vmatprep.subr.mxu0 0.0
    %2372 = vmatpush1.msra.mxu0 %v2302
    %2373 = vmatprep.subr.mxu0 0.0
    %2374 = vmatpush1.msra.mxu0 %v2303
    %2375 = vmatprep.subr.mxu0 0.0
    %2376 = vmatpush1.msra.mxu0 %v2304
    %2377 = vmatprep.subr.mxu0 0.0
    %2378 = vmatpush1.msra.mxu0 %v2305
    %2379 = vmatprep.subr.mxu0 0.0
    %2380 = vmatpush1.msra.mxu0 %v2306
    %2381 = vmatprep.subr.mxu0 0.0
    %2382 = vmatpush1.msra.mxu0 %v2307
    %2383 = vmatprep.subr.mxu0 0.0
    %2384 = vmatpush1.msra.mxu0 %v2308
    %2385 = vmatprep.subr.mxu0 0.0
    %2386 = vmatpush1.msra.mxu0 0.0
    %2387 = vmatprep.subr.mxu0 0.0
    %2388 = vmatpush1.msra.mxu0 0.0
    %2389 = vmatprep.subr.mxu0 0.0
    %2390 = vmatpush1.msra.mxu0 0.0
    %2391 = vmatprep.subr.mxu0 0.0
    %2392 = vmatpush1.msra.mxu0 0.0
    %2393 = vmatprep.subr.mxu0 0.0
    %2394 = vmatpush1.msra.mxu0 0.0
    %2395 = vmatprep.subr.mxu0 0.0
    %2396 = vmatpush1.msra.mxu0 0.0
    %2397 = vmatprep.subr.mxu0 0.0
    %2398 = vmatpush1.msra.mxu0 0.0
    %2399 = vmatprep.subr.mxu0 0.0
    %2400 = vmatpush1.msra.mxu0 0.0
    %2401 = vmatprep.subr.mxu0 0.0
    %2402 = vmatpush1.msra.mxu0 0.0
    %2403 = vmatprep.subr.mxu0 0.0
    %2404 = vmatpush1.msra.mxu0 0.0
    %2405 = vmatprep.subr.mxu0 0.0
    %2406 = vmatpush1.msra.mxu0 0.0
    %2407 = vmatprep.subr.mxu0 0.0
    %2408 = vmatpush1.msra.mxu0 0.0
    %2409 = vmatprep.subr.mxu0 0.0
    %2410 = vmatpush1.msra.mxu0 0.0
    %2411 = vmatprep.subr.mxu0 0.0
    %2412 = vmatpush1.msra.mxu0 0.0
    %2413 = vmatprep.subr.mxu0 0.0
    %2414 = vmatpush1.msra.mxu0 0.0
    %2415 = vmatprep.subr.mxu0 0.0
    %2416 = vmatpush1.msra.mxu0 0.0
    %2417 = vmatprep.subr.mxu0 0.0
    %2418 = vmatpush1.msra.mxu0 0.0
    %2419 = vmatprep.subr.mxu0 0.0
    %2420 = vmatpush1.msra.mxu0 0.0
    %2421 = vmatprep.subr.mxu0 0.0
    %2422 = vmatpush1.msra.mxu0 0.0
    %2423 = vmatprep.subr.mxu0 0.0
    %2424 = vmatpush1.msra.mxu0 0.0
    %2425 = vmatprep.subr.mxu0 0.0
    %2426 = vmatpush1.msra.mxu0 0.0
    %2427 = vmatprep.subr.mxu0 0.0
    %2428 = vmatpush1.msra.mxu0 0.0
    %2429 = vmatprep.subr.mxu0 0.0
    %2430 = vmatpush1.msra.mxu0 0.0
    %2431 = vmatprep.subr.mxu0 0.0
    %2432 = vmatpush1.msra.mxu0 0.0
    %2433 = vmatprep.mubr.f32.mxu0 0.0
    %2434 = vmatmul.mubr.f32.gmra.mrb[0].mxu0 %v2310
    %v2435 = vpop.f32.mrb[0].mxu0
    %v2436 = vadd.f32 0.0, %v2435
    %v2437 = vpop.f32.mrb[0].mxu0
    %2438 = vmatprep.mubr.f32.mxu0 0.0
    %2439 = vmatmul.mubr.f32.gmra.mrb[0].mxu0 %v2313
    %v2440 = vpop.f32.mrb[0].mxu0
    %v2441 = vadd.f32 0.0, %v2440
    %v2442 = vpop.f32.mrb[0].mxu0
    %2443 = vmatprep.mubr.f32.mxu0 0.0
    %2444 = vmatmul.mubr.f32.gmra.mrb[0].mxu0 %v2316
    %v2445 = vpop.f32.mrb[0].mxu0
    %v2446 = vadd.f32 0.0, %v2445
    %v2447 = vpop.f32.mrb[0].mxu0
    %2448 = vmatprep.mubr.f32.mxu0 0.0
    %2449 = vmatmul.mubr.f32.gmra.mrb[0].mxu0 %v2319
    %v2450 = vpop.f32.mrb[0].mxu0
    %v2451 = vadd.f32 0.0, %v2450
    %v2452 = vpop.f32.mrb[0].mxu0
    %2453 = vmatprep.mubr.f32.mxu0 0.0
    %2454 = vmatmul.mubr.f32.gmra.mrb[0].mxu0 %v2322
    %v2455 = vpop.f32.mrb[0].mxu0
    %v2456 = vadd.f32 0.0, %v2455
    %v2457 = vpop.f32.mrb[0].mxu0
    %2458 = vmatprep.mubr.f32.mxu0 0.0
    %2459 = vmatmul.mubr.f32.gmra.mrb[0].mxu0 %v2325
    %v2460 = vpop.f32.mrb[0].mxu0
    %v2461 = vadd.f32 0.0, %v2460
    %v2462 = vpop.f32.mrb[0].mxu0
    %2463 = vmatprep.mubr.f32.mxu0 0.0
    %2464 = vmatmul.mubr.f32.gmra.mrb[0].mxu0 %v2328
    %v2465 = vpop.f32.mrb[0].mxu0
    %v2466 = vadd.f32 0.0, %v2465
    %v2467 = vpop.f32.mrb[0].mxu0
    %2468 = vmatprep.mubr.f32.mxu0 0.0
    %2469 = vmatmul.mubr.f32.gmra.mrb[0].mxu0 %v2331
    %v2470 = vpop.f32.mrb[0].mxu0
    %v2471 = vadd.f32 0.0, %v2470
    %v2472 = vpop.f32.mrb[0].mxu0
    %2473 = vmatprep.mubr.f32.mxu0 0.0
    %2474 = vmatmul.mubr.f32.gmra.mrb[0].mxu0 %v2334
    %v2475 = vpop.f32.mrb[0].mxu0
    %v2476 = vadd.f32 0.0, %v2475
    %v2477 = vpop.f32.mrb[0].mxu0
    %2478 = vmatprep.mubr.f32.mxu0 0.0
    %2479 = vmatmul.mubr.f32.gmra.mrb[0].mxu0 %v2337
    %v2480 = vpop.f32.mrb[0].mxu0
    %v2481 = vadd.f32 0.0, %v2480
    %v2482 = vpop.f32.mrb[0].mxu0
    %2483 = vmatprep.mubr.f32.mxu0 0.0
    %2484 = vmatmul.mubr.f32.gmra.mrb[0].mxu0 %v2340
    %v2485 = vpop.f32.mrb[0].mxu0
    %v2486 = vadd.f32 0.0, %v2485
    %v2487 = vpop.f32.mrb[0].mxu0
    %2488 = vmatprep.mubr.f32.mxu0 0.0
    %2489 = vmatmul.mubr.f32.gmra.mrb[0].mxu0 %v2343
    %v2490 = vpop.f32.mrb[0].mxu0
    %v2491 = vadd.f32 0.0, %v2490
    %v2492 = vpop.f32.mrb[0].mxu0
    %2493 = vmatprep.mubr.f32.mxu0 0.0
    %2494 = vmatmul.mubr.f32.gmra.mrb[0].mxu0 %v2346
    %v2495 = vpop.f32.mrb[0].mxu0
    %v2496 = vadd.f32 0.0, %v2495
    %v2497 = vpop.f32.mrb[0].mxu0
    %2498 = vmatprep.mubr.f32.mxu0 0.0
    %2499 = vmatmul.mubr.f32.gmra.mrb[0].mxu0 %v2349
    %v2500 = vpop.f32.mrb[0].mxu0
    %v2501 = vadd.f32 0.0, %v2500
    %v2502 = vpop.f32.mrb[0].mxu0
    %2503 = vmatprep.mubr.f32.mxu0 0.0
    %2504 = vmatmul.mubr.f32.gmra.mrb[0].mxu0 %v2352
    %v2505 = vpop.f32.mrb[0].mxu0
    %v2506 = vadd.f32 0.0, %v2505
    %v2507 = vpop.f32.mrb[0].mxu0
    %2508 = vmatprep.mubr.f32.mxu0 0.0
    %2509 = vmatmul.mubr.f32.gmra.mrb[0].mxu0 %v2355
    %v2510 = vpop.f32.mrb[0].mxu0
    %v2511 = vadd.f32 0.0, %v2510
    %v2512 = vpop.f32.mrb[0].mxu0
    %2513 = vmatprep.mubr.f32.mxu0 0.0
    %2514 = vmatmul.mubr.f32.gmra.mrb[0].mxu0 %v2358
    %v2515 = vpop.f32.mrb[0].mxu0
    %v2516 = vadd.f32 0.0, %v2515
    %v2517 = vpop.f32.mrb[0].mxu0
    %2518 = vmatprep.mubr.f32.mxu0 0.0
    %2519 = vmatmul.mubr.f32.gmra.mrb[0].mxu0 %v2361
    %v2520 = vpop.f32.mrb[0].mxu0
    %v2521 = vadd.f32 0.0, %v2520
    %v2522 = vpop.f32.mrb[0].mxu0
    %2523 = vmatprep.mubr.f32.mxu0 0.0
    %2524 = vmatmul.mubr.f32.gmra.mrb[0].mxu0 %v2364
    %v2525 = vpop.f32.mrb[0].mxu0
    %v2526 = vadd.f32 0.0, %v2525
    %v2527 = vpop.f32.mrb[0].mxu0
    %2528 = vmatprep.mubr.f32.mxu0 0.0
    %2529 = vmatmul.mubr.f32.gmra.mrb[0].mxu0 %v2367
    %v2530 = vpop.f32.mrb[0].mxu0
    %v2531 = vadd.f32 0.0, %v2530
    %v2532 = vpop.f32.mrb[0].mxu0
    %2533 = vdwg.mxu0
    %v2534 = vadd.f32 %v2259, %v2436
    %v2535 = vadd.f32 %v2260, %v2441
    %v2536 = vadd.f32 %v2261, %v2446
    %v2537 = vadd.f32 %v2262, %v2451
    %v2538 = vadd.f32 %v2263, %v2456
    %v2539 = vadd.f32 %v2264, %v2461
    %v2540 = vadd.f32 %v2265, %v2466
    %v2541 = vadd.f32 %v2266, %v2471
    %v2542 = vadd.f32 %v2267, %v2476
    %v2543 = vadd.f32 %v2268, %v2481
    %v2544 = vadd.f32 %v2269, %v2486
    %v2545 = vadd.f32 %v2270, %v2491
    %v2546 = vadd.f32 %v2271, %v2496
    %v2547 = vadd.f32 %v2272, %v2501
    %v2548 = vadd.f32 %v2273, %v2506
    %v2549 = vadd.f32 %v2274, %v2511
    %v2550 = vadd.f32 %v2275, %v2516
    %v2551 = vadd.f32 %v2276, %v2521
    %v2552 = vadd.f32 %v2277, %v2526
    %v2553 = vadd.f32 %v2278, %v2531
    %v2554 = vld [vmem:[%s641] sm:$0xff]
    %v2555 = vld [vmem:[%s641 + $0x8] sm:$0xff]
    %v2556 = vld [vmem:[%s641 + $0x10] sm:$0xff]
    %v2557 = vld [vmem:[%s641 + $0x18] sm:$0xff]
    %v2558 = vld [vmem:[%s641 + $0x20] sm:$0xff]
    %v2559 = vld [vmem:[%s641 + $0x28] sm:$0xff]
    %v2560 = vld [vmem:[%s641 + $0x30] sm:$0xff]
    %v2561 = vld [vmem:[%s641 + $0x38] sm:$0xff]
    %v2562 = vld [vmem:[%s641 + $0x40] sm:$0xff]
    %v2563 = vld [vmem:[%s641 + $0x48] sm:$0xff]
    %v2564 = vld [vmem:[%s641 + $0x50] sm:$0xff]
    %v2565 = vld [vmem:[%s641 + $0x58] sm:$0xff]
    %v2566 = vld [vmem:[%s641 + $0x60] sm:$0xff]
    %v2567 = vld [vmem:[%s641 + $0x68] sm:$0xff]
    %v2568 = vld [vmem:[%s641 + $0x70] sm:$0xff]
    %v2569 = vld [vmem:[%s641 + $0x78] sm:$0xff]
    %v2570 = vld [vmem:[%s641 + $0x80] sm:$0xff]
    %v2571 = vld [vmem:[%s641 + $0x88] sm:$0xff]
    %v2572 = vld [vmem:[%s641 + $0x90] sm:$0xff]
    %v2573 = vld [vmem:[%s641 + $0x98] sm:$0xff]
    %s2574 = scalar_lea.vmem [#allocation8], 448
    %v2575 = vld [vmem:[%s2574] sm:$0xff]
    %v2576 = vld [vmem:[%s2574 + $0x8] sm:$0xff]
    %v2577 = vld [vmem:[%s2574 + $0x10] sm:$0xff]
    %v2578 = vld [vmem:[%s2574 + $0x18] sm:$0xff]
    %v2579 = vld [vmem:[%s2574 + $0x20] sm:$0xff]
    %v2580 = vld [vmem:[%s2574 + $0x28] sm:$0xff]
    %v2581 = vld [vmem:[%s2574 + $0x30] sm:$0xff]
    %v2582 = vld [vmem:[%s2574 + $0x38] sm:$0xff]
    %v2584 = vsel %vm188, %v2554, 0
    %v2587 = vsel %vm188, %v2555, 0
    %v2590 = vsel %vm188, %v2556, 0
    %v2593 = vsel %vm188, %v2557, 0
    %v2596 = vsel %vm188, %v2558, 0
    %v2599 = vsel %vm188, %v2559, 0
    %v2602 = vsel %vm188, %v2560, 0
    %v2605 = vsel %vm188, %v2561, 0
    %v2608 = vsel %vm188, %v2562, 0
    %v2611 = vsel %vm188, %v2563, 0
    %v2614 = vsel %vm188, %v2564, 0
    %v2617 = vsel %vm188, %v2565, 0
    %v2620 = vsel %vm188, %v2566, 0
    %v2623 = vsel %vm188, %v2567, 0
    %v2626 = vsel %vm188, %v2568, 0
    %v2629 = vsel %vm188, %v2569, 0
    %v2632 = vsel %vm188, %v2570, 0
    %v2635 = vsel %vm188, %v2571, 0
    %v2638 = vsel %vm188, %v2572, 0
    %v2641 = vsel %vm188, %v2573, 0
    %2643 = vmatprep.subr.mxu0 0.0
    %2644 = vmatpush1.msra.mxu0 %v2575
    %2645 = vmatprep.subr.mxu0 0.0
    %2646 = vmatpush1.msra.mxu0 %v2576
    %2647 = vmatprep.subr.mxu0 0.0
    %2648 = vmatpush1.msra.mxu0 %v2577
    %2649 = vmatprep.subr.mxu0 0.0
    %2650 = vmatpush1.msra.mxu0 %v2578
    %2651 = vmatprep.subr.mxu0 0.0
    %2652 = vmatpush1.msra.mxu0 %v2579
    %2653 = vmatprep.subr.mxu0 0.0
    %2654 = vmatpush1.msra.mxu0 %v2580
    %2655 = vmatprep.subr.mxu0 0.0
    %2656 = vmatpush1.msra.mxu0 %v2581
    %2657 = vmatprep.subr.mxu0 0.0
    %2658 = vmatpush1.msra.mxu0 %v2582
    %2659 = vmatprep.subr.mxu0 0.0
    %2660 = vmatpush1.msra.mxu0 0.0
    %2661 = vmatprep.subr.mxu0 0.0
    %2662 = vmatpush1.msra.mxu0 0.0
    %2663 = vmatprep.subr.mxu0 0.0
    %2664 = vmatpush1.msra.mxu0 0.0
    %2665 = vmatprep.subr.mxu0 0.0
    %2666 = vmatpush1.msra.mxu0 0.0
    %2667 = vmatprep.subr.mxu0 0.0
    %2668 = vmatpush1.msra.mxu0 0.0
    %2669 = vmatprep.subr.mxu0 0.0
    %2670 = vmatpush1.msra.mxu0 0.0
    %2671 = vmatprep.subr.mxu0 0.0
    %2672 = vmatpush1.msra.mxu0 0.0
    %2673 = vmatprep.subr.mxu0 0.0
    %2674 = vmatpush1.msra.mxu0 0.0
    %2675 = vmatprep.subr.mxu0 0.0
    %2676 = vmatpush1.msra.mxu0 0.0
    %2677 = vmatprep.subr.mxu0 0.0
    %2678 = vmatpush1.msra.mxu0 0.0
    %2679 = vmatprep.subr.mxu0 0.0
    %2680 = vmatpush1.msra.mxu0 0.0
    %2681 = vmatprep.subr.mxu0 0.0
    %2682 = vmatpush1.msra.mxu0 0.0
    %2683 = vmatprep.subr.mxu0 0.0
    %2684 = vmatpush1.msra.mxu0 0.0
    %2685 = vmatprep.subr.mxu0 0.0
    %2686 = vmatpush1.msra.mxu0 0.0
    %2687 = vmatprep.subr.mxu0 0.0
    %2688 = vmatpush1.msra.mxu0 0.0
    %2689 = vmatprep.subr.mxu0 0.0
    %2690 = vmatpush1.msra.mxu0 0.0
    %2691 = vmatprep.subr.mxu0 0.0
    %2692 = vmatpush1.msra.mxu0 0.0
    %2693 = vmatprep.subr.mxu0 0.0
    %2694 = vmatpush1.msra.mxu0 0.0
    %2695 = vmatprep.subr.mxu0 0.0
    %2696 = vmatpush1.msra.mxu0 0.0
    %2697 = vmatprep.subr.mxu0 0.0
    %2698 = vmatpush1.msra.mxu0 0.0
    %2699 = vmatprep.subr.mxu0 0.0
    %2700 = vmatpush1.msra.mxu0 0.0
    %2701 = vmatprep.subr.mxu0 0.0
    %2702 = vmatpush1.msra.mxu0 0.0
    %2703 = vmatprep.subr.mxu0 0.0
    %2704 = vmatpush1.msra.mxu0 0.0
    %2705 = vmatprep.subr.mxu0 0.0
    %2706 = vmatpush1.msra.mxu0 0.0
    %2707 = vmatprep.mubr.f32.mxu0 0.0
    %2708 = vmatmul.mubr.f32.gmra.mrb[0].mxu0 %v2584
    %v2709 = vpop.f32.mrb[0].mxu0
    %v2710 = vadd.f32 0.0, %v2709
    %v2711 = vpop.f32.mrb[0].mxu0
    %2712 = vmatprep.mubr.f32.mxu0 0.0
    %2713 = vmatmul.mubr.f32.gmra.mrb[0].mxu0 %v2587
    %v2714 = vpop.f32.mrb[0].mxu0
    %v2715 = vadd.f32 0.0, %v2714
    %v2716 = vpop.f32.mrb[0].mxu0
    %2717 = vmatprep.mubr.f32.mxu0 0.0
    %2718 = vmatmul.mubr.f32.gmra.mrb[0].mxu0 %v2590
    %v2719 = vpop.f32.mrb[0].mxu0
    %v2720 = vadd.f32 0.0, %v2719
    %v2721 = vpop.f32.mrb[0].mxu0
    %2722 = vmatprep.mubr.f32.mxu0 0.0
    %2723 = vmatmul.mubr.f32.gmra.mrb[0].mxu0 %v2593
    %v2724 = vpop.f32.mrb[0].mxu0
    %v2725 = vadd.f32 0.0, %v2724
    %v2726 = vpop.f32.mrb[0].mxu0
    %2727 = vmatprep.mubr.f32.mxu0 0.0
    %2728 = vmatmul.mubr.f32.gmra.mrb[0].mxu0 %v2596
    %v2729 = vpop.f32.mrb[0].mxu0
    %v2730 = vadd.f32 0.0, %v2729
    %v2731 = vpop.f32.mrb[0].mxu0
    %2732 = vmatprep.mubr.f32.mxu0 0.0
    %2733 = vmatmul.mubr.f32.gmra.mrb[0].mxu0 %v2599
    %v2734 = vpop.f32.mrb[0].mxu0
    %v2735 = vadd.f32 0.0, %v2734
    %v2736 = vpop.f32.mrb[0].mxu0
    %2737 = vmatprep.mubr.f32.mxu0 0.0
    %2738 = vmatmul.mubr.f32.gmra.mrb[0].mxu0 %v2602
    %v2739 = vpop.f32.mrb[0].mxu0
    %v2740 = vadd.f32 0.0, %v2739
    %v2741 = vpop.f32.mrb[0].mxu0
    %2742 = vmatprep.mubr.f32.mxu0 0.0
    %2743 = vmatmul.mubr.f32.gmra.mrb[0].mxu0 %v2605
    %v2744 = vpop.f32.mrb[0].mxu0
    %v2745 = vadd.f32 0.0, %v2744
    %v2746 = vpop.f32.mrb[0].mxu0
    %2747 = vmatprep.mubr.f32.mxu0 0.0
    %2748 = vmatmul.mubr.f32.gmra.mrb[0].mxu0 %v2608
    %v2749 = vpop.f32.mrb[0].mxu0
    %v2750 = vadd.f32 0.0, %v2749
    %v2751 = vpop.f32.mrb[0].mxu0
    %2752 = vmatprep.mubr.f32.mxu0 0.0
    %2753 = vmatmul.mubr.f32.gmra.mrb[0].mxu0 %v2611
    %v2754 = vpop.f32.mrb[0].mxu0
    %v2755 = vadd.f32 0.0, %v2754
    %v2756 = vpop.f32.mrb[0].mxu0
    %2757 = vmatprep.mubr.f32.mxu0 0.0
    %2758 = vmatmul.mubr.f32.gmra.mrb[0].mxu0 %v2614
    %v2759 = vpop.f32.mrb[0].mxu0
    %v2760 = vadd.f32 0.0, %v2759
    %v2761 = vpop.f32.mrb[0].mxu0
    %2762 = vmatprep.mubr.f32.mxu0 0.0
    %2763 = vmatmul.mubr.f32.gmra.mrb[0].mxu0 %v2617
    %v2764 = vpop.f32.mrb[0].mxu0
    %v2765 = vadd.f32 0.0, %v2764
    %v2766 = vpop.f32.mrb[0].mxu0
    %2767 = vmatprep.mubr.f32.mxu0 0.0
    %2768 = vmatmul.mubr.f32.gmra.mrb[0].mxu0 %v2620
    %v2769 = vpop.f32.mrb[0].mxu0
    %v2770 = vadd.f32 0.0, %v2769
    %v2771 = vpop.f32.mrb[0].mxu0
    %2772 = vmatprep.mubr.f32.mxu0 0.0
    %2773 = vmatmul.mubr.f32.gmra.mrb[0].mxu0 %v2623
    %v2774 = vpop.f32.mrb[0].mxu0
    %v2775 = vadd.f32 0.0, %v2774
    %v2776 = vpop.f32.mrb[0].mxu0
    %2777 = vmatprep.mubr.f32.mxu0 0.0
    %2778 = vmatmul.mubr.f32.gmra.mrb[0].mxu0 %v2626
    %v2779 = vpop.f32.mrb[0].mxu0
    %v2780 = vadd.f32 0.0, %v2779
    %v2781 = vpop.f32.mrb[0].mxu0
    %2782 = vmatprep.mubr.f32.mxu0 0.0
    %2783 = vmatmul.mubr.f32.gmra.mrb[0].mxu0 %v2629
    %v2784 = vpop.f32.mrb[0].mxu0
    %v2785 = vadd.f32 0.0, %v2784
    %v2786 = vpop.f32.mrb[0].mxu0
    %2787 = vmatprep.mubr.f32.mxu0 0.0
    %2788 = vmatmul.mubr.f32.gmra.mrb[0].mxu0 %v2632
    %v2789 = vpop.f32.mrb[0].mxu0
    %v2790 = vadd.f32 0.0, %v2789
    %v2791 = vpop.f32.mrb[0].mxu0
    %2792 = vmatprep.mubr.f32.mxu0 0.0
    %2793 = vmatmul.mubr.f32.gmra.mrb[0].mxu0 %v2635
    %v2794 = vpop.f32.mrb[0].mxu0
    %v2795 = vadd.f32 0.0, %v2794
    %v2796 = vpop.f32.mrb[0].mxu0
    %2797 = vmatprep.mubr.f32.mxu0 0.0
    %2798 = vmatmul.mubr.f32.gmra.mrb[0].mxu0 %v2638
    %v2799 = vpop.f32.mrb[0].mxu0
    %v2800 = vadd.f32 0.0, %v2799
    %v2801 = vpop.f32.mrb[0].mxu0
    %2802 = vmatprep.mubr.f32.mxu0 0.0
    %2803 = vmatmul.mubr.f32.gmra.mrb[0].mxu0 %v2641
    %v2804 = vpop.f32.mrb[0].mxu0
    %v2805 = vadd.f32 0.0, %v2804
    %v2806 = vpop.f32.mrb[0].mxu0
    %2807 = vdwg.mxu0
    %v2808 = vadd.f32 %v2534, %v2710
    %v2809 = vadd.f32 %v2535, %v2715
    %v2810 = vadd.f32 %v2536, %v2720
    %v2811 = vadd.f32 %v2537, %v2725
    %v2812 = vadd.f32 %v2538, %v2730
    %v2813 = vadd.f32 %v2539, %v2735
    %v2814 = vadd.f32 %v2540, %v2740
    %v2815 = vadd.f32 %v2541, %v2745
    %v2816 = vadd.f32 %v2542, %v2750
    %v2817 = vadd.f32 %v2543, %v2755
    %v2818 = vadd.f32 %v2544, %v2760
    %v2819 = vadd.f32 %v2545, %v2765
    %v2820 = vadd.f32 %v2546, %v2770
    %v2821 = vadd.f32 %v2547, %v2775
    %v2822 = vadd.f32 %v2548, %v2780
    %v2823 = vadd.f32 %v2549, %v2785
    %v2824 = vadd.f32 %v2550, %v2790
    %v2825 = vadd.f32 %v2551, %v2795
    %v2826 = vadd.f32 %v2552, %v2800
    %v2827 = vadd.f32 %v2553, %v2805
    %s2828 = scalar_lea.vmem [#allocation2], 64
    %v2829 = vld [vmem:[%s2828] sm:$0xff]
    %v2830 = vld [vmem:[%s2828 + $0x8] sm:$0xff]
    %v2831 = vld [vmem:[%s2828 + $0x10] sm:$0xff]
    %v2832 = vld [vmem:[%s2828 + $0x18] sm:$0xff]
    %v2833 = vld [vmem:[%s2828 + $0x20] sm:$0xff]
    %v2834 = vld [vmem:[%s2828 + $0x28] sm:$0xff]
    %v2835 = vld [vmem:[%s2828 + $0x30] sm:$0xff]
    %v2836 = vld [vmem:[%s2828 + $0x38] sm:$0xff]
    %v2837 = vld [vmem:[%s2828 + $0x40] sm:$0xff]
    %v2838 = vld [vmem:[%s2828 + $0x48] sm:$0xff]
    %v2839 = vld [vmem:[%s2828 + $0x50] sm:$0xff]
    %v2840 = vld [vmem:[%s2828 + $0x58] sm:$0xff]
    %v2841 = vld [vmem:[%s2828 + $0x60] sm:$0xff]
    %v2842 = vld [vmem:[%s2828 + $0x68] sm:$0xff]
    %v2843 = vld [vmem:[%s2828 + $0x70] sm:$0xff]
    %v2844 = vld [vmem:[%s2828 + $0x78] sm:$0xff]
    %v2845 = vld [vmem:[%s2828 + $0x80] sm:$0xff]
    %v2846 = vld [vmem:[%s2828 + $0x88] sm:$0xff]
    %v2847 = vld [vmem:[%s2828 + $0x90] sm:$0xff]
    %v2848 = vld [vmem:[%s2828 + $0x98] sm:$0xff]
    %s2849 = scalar_lea.vmem [#allocation8], 512
    %v2850 = vld [vmem:[%s2849] sm:$0xff]
    %v2851 = vld [vmem:[%s2849 + $0x8] sm:$0xff]
    %v2852 = vld [vmem:[%s2849 + $0x10] sm:$0xff]
    %v2853 = vld [vmem:[%s2849 + $0x18] sm:$0xff]
    %v2854 = vld [vmem:[%s2849 + $0x20] sm:$0xff]
    %v2855 = vld [vmem:[%s2849 + $0x28] sm:$0xff]
    %v2856 = vld [vmem:[%s2849 + $0x30] sm:$0xff]
    %v2857 = vld [vmem:[%s2849 + $0x38] sm:$0xff]
    %v2859 = vsel %vm188, %v2829, 0
    %v2862 = vsel %vm188, %v2830, 0
    %v2865 = vsel %vm188, %v2831, 0
    %v2868 = vsel %vm188, %v2832, 0
    %v2871 = vsel %vm188, %v2833, 0
    %v2874 = vsel %vm188, %v2834, 0
    %v2877 = vsel %vm188, %v2835, 0
    %v2880 = vsel %vm188, %v2836, 0
    %v2883 = vsel %vm188, %v2837, 0
    %v2886 = vsel %vm188, %v2838, 0
    %v2889 = vsel %vm188, %v2839, 0
    %v2892 = vsel %vm188, %v2840, 0
    %v2895 = vsel %vm188, %v2841, 0
    %v2898 = vsel %vm188, %v2842, 0
    %v2901 = vsel %vm188, %v2843, 0
    %v2904 = vsel %vm188, %v2844, 0
    %v2907 = vsel %vm188, %v2845, 0
    %v2910 = vsel %vm188, %v2846, 0
    %v2913 = vsel %vm188, %v2847, 0
    %v2916 = vsel %vm188, %v2848, 0
    %2918 = vmatprep.subr.mxu0 0.0
    %2919 = vmatpush1.msra.mxu0 %v2850
    %2920 = vmatprep.subr.mxu0 0.0
    %2921 = vmatpush1.msra.mxu0 %v2851
    %2922 = vmatprep.subr.mxu0 0.0
    %2923 = vmatpush1.msra.mxu0 %v2852
    %2924 = vmatprep.subr.mxu0 0.0
    %2925 = vmatpush1.msra.mxu0 %v2853
    %2926 = vmatprep.subr.mxu0 0.0
    %2927 = vmatpush1.msra.mxu0 %v2854
    %2928 = vmatprep.subr.mxu0 0.0
    %2929 = vmatpush1.msra.mxu0 %v2855
    %2930 = vmatprep.subr.mxu0 0.0
    %2931 = vmatpush1.msra.mxu0 %v2856
    %2932 = vmatprep.subr.mxu0 0.0
    %2933 = vmatpush1.msra.mxu0 %v2857
    %2934 = vmatprep.subr.mxu0 0.0
    %2935 = vmatpush1.msra.mxu0 0.0
    %2936 = vmatprep.subr.mxu0 0.0
    %2937 = vmatpush1.msra.mxu0 0.0
    %2938 = vmatprep.subr.mxu0 0.0
    %2939 = vmatpush1.msra.mxu0 0.0
    %2940 = vmatprep.subr.mxu0 0.0
    %2941 = vmatpush1.msra.mxu0 0.0
    %2942 = vmatprep.subr.mxu0 0.0
    %2943 = vmatpush1.msra.mxu0 0.0
    %2944 = vmatprep.subr.mxu0 0.0
    %2945 = vmatpush1.msra.mxu0 0.0
    %2946 = vmatprep.subr.mxu0 0.0
    %2947 = vmatpush1.msra.mxu0 0.0
    %2948 = vmatprep.subr.mxu0 0.0
    %2949 = vmatpush1.msra.mxu0 0.0
    %2950 = vmatprep.subr.mxu0 0.0
    %2951 = vmatpush1.msra.mxu0 0.0
    %2952 = vmatprep.subr.mxu0 0.0
    %2953 = vmatpush1.msra.mxu0 0.0
    %2954 = vmatprep.subr.mxu0 0.0
    %2955 = vmatpush1.msra.mxu0 0.0
    %2956 = vmatprep.subr.mxu0 0.0
    %2957 = vmatpush1.msra.mxu0 0.0
    %2958 = vmatprep.subr.mxu0 0.0
    %2959 = vmatpush1.msra.mxu0 0.0
    %2960 = vmatprep.subr.mxu0 0.0
    %2961 = vmatpush1.msra.mxu0 0.0
    %2962 = vmatprep.subr.mxu0 0.0
    %2963 = vmatpush1.msra.mxu0 0.0
    %2964 = vmatprep.subr.mxu0 0.0
    %2965 = vmatpush1.msra.mxu0 0.0
    %2966 = vmatprep.subr.mxu0 0.0
    %2967 = vmatpush1.msra.mxu0 0.0
    %2968 = vmatprep.subr.mxu0 0.0
    %2969 = vmatpush1.msra.mxu0 0.0
    %2970 = vmatprep.subr.mxu0 0.0
    %2971 = vmatpush1.msra.mxu0 0.0
    %2972 = vmatprep.subr.mxu0 0.0
    %2973 = vmatpush1.msra.mxu0 0.0
    %2974 = vmatprep.subr.mxu0 0.0
    %2975 = vmatpush1.msra.mxu0 0.0
    %2976 = vmatprep.subr.mxu0 0.0
    %2977 = vmatpush1.msra.mxu0 0.0
    %2978 = vmatprep.subr.mxu0 0.0
    %2979 = vmatpush1.msra.mxu0 0.0
    %2980 = vmatprep.subr.mxu0 0.0
    %2981 = vmatpush1.msra.mxu0 0.0
    %2982 = vmatprep.mubr.f32.mxu0 0.0
    %2983 = vmatmul.mubr.f32.gmra.mrb[0].mxu0 %v2859
    %v2984 = vpop.f32.mrb[0].mxu0
    %v2985 = vadd.f32 0.0, %v2984
    %v2986 = vpop.f32.mrb[0].mxu0
    %2987 = vmatprep.mubr.f32.mxu0 0.0
    %2988 = vmatmul.mubr.f32.gmra.mrb[0].mxu0 %v2862
    %v2989 = vpop.f32.mrb[0].mxu0
    %v2990 = vadd.f32 0.0, %v2989
    %v2991 = vpop.f32.mrb[0].mxu0
    %2992 = vmatprep.mubr.f32.mxu0 0.0
    %2993 = vmatmul.mubr.f32.gmra.mrb[0].mxu0 %v2865
    %v2994 = vpop.f32.mrb[0].mxu0
    %v2995 = vadd.f32 0.0, %v2994
    %v2996 = vpop.f32.mrb[0].mxu0
    %2997 = vmatprep.mubr.f32.mxu0 0.0
    %2998 = vmatmul.mubr.f32.gmra.mrb[0].mxu0 %v2868
    %v2999 = vpop.f32.mrb[0].mxu0
    %v3000 = vadd.f32 0.0, %v2999
    %v3001 = vpop.f32.mrb[0].mxu0
    %3002 = vmatprep.mubr.f32.mxu0 0.0
    %3003 = vmatmul.mubr.f32.gmra.mrb[0].mxu0 %v2871
    %v3004 = vpop.f32.mrb[0].mxu0
    %v3005 = vadd.f32 0.0, %v3004
    %v3006 = vpop.f32.mrb[0].mxu0
    %3007 = vmatprep.mubr.f32.mxu0 0.0
    %3008 = vmatmul.mubr.f32.gmra.mrb[0].mxu0 %v2874
    %v3009 = vpop.f32.mrb[0].mxu0
    %v3010 = vadd.f32 0.0, %v3009
    %v3011 = vpop.f32.mrb[0].mxu0
    %3012 = vmatprep.mubr.f32.mxu0 0.0
    %3013 = vmatmul.mubr.f32.gmra.mrb[0].mxu0 %v2877
    %v3014 = vpop.f32.mrb[0].mxu0
    %v3015 = vadd.f32 0.0, %v3014
    %v3016 = vpop.f32.mrb[0].mxu0
    %3017 = vmatprep.mubr.f32.mxu0 0.0
    %3018 = vmatmul.mubr.f32.gmra.mrb[0].mxu0 %v2880
    %v3019 = vpop.f32.mrb[0].mxu0
    %v3020 = vadd.f32 0.0, %v3019
    %v3021 = vpop.f32.mrb[0].mxu0
    %3022 = vmatprep.mubr.f32.mxu0 0.0
    %3023 = vmatmul.mubr.f32.gmra.mrb[0].mxu0 %v2883
    %v3024 = vpop.f32.mrb[0].mxu0
    %v3025 = vadd.f32 0.0, %v3024
    %v3026 = vpop.f32.mrb[0].mxu0
    %3027 = vmatprep.mubr.f32.mxu0 0.0
    %3028 = vmatmul.mubr.f32.gmra.mrb[0].mxu0 %v2886
    %v3029 = vpop.f32.mrb[0].mxu0
    %v3030 = vadd.f32 0.0, %v3029
    %v3031 = vpop.f32.mrb[0].mxu0
    %3032 = vmatprep.mubr.f32.mxu0 0.0
    %3033 = vmatmul.mubr.f32.gmra.mrb[0].mxu0 %v2889
    %v3034 = vpop.f32.mrb[0].mxu0
    %v3035 = vadd.f32 0.0, %v3034
    %v3036 = vpop.f32.mrb[0].mxu0
    %3037 = vmatprep.mubr.f32.mxu0 0.0
    %3038 = vmatmul.mubr.f32.gmra.mrb[0].mxu0 %v2892
    %v3039 = vpop.f32.mrb[0].mxu0
    %v3040 = vadd.f32 0.0, %v3039
    %v3041 = vpop.f32.mrb[0].mxu0
    %3042 = vmatprep.mubr.f32.mxu0 0.0
    %3043 = vmatmul.mubr.f32.gmra.mrb[0].mxu0 %v2895
    %v3044 = vpop.f32.mrb[0].mxu0
    %v3045 = vadd.f32 0.0, %v3044
    %v3046 = vpop.f32.mrb[0].mxu0
    %3047 = vmatprep.mubr.f32.mxu0 0.0
    %3048 = vmatmul.mubr.f32.gmra.mrb[0].mxu0 %v2898
    %v3049 = vpop.f32.mrb[0].mxu0
    %v3050 = vadd.f32 0.0, %v3049
    %v3051 = vpop.f32.mrb[0].mxu0
    %3052 = vmatprep.mubr.f32.mxu0 0.0
    %3053 = vmatmul.mubr.f32.gmra.mrb[0].mxu0 %v2901
    %v3054 = vpop.f32.mrb[0].mxu0
    %v3055 = vadd.f32 0.0, %v3054
    %v3056 = vpop.f32.mrb[0].mxu0
    %3057 = vmatprep.mubr.f32.mxu0 0.0
    %3058 = vmatmul.mubr.f32.gmra.mrb[0].mxu0 %v2904
    %v3059 = vpop.f32.mrb[0].mxu0
    %v3060 = vadd.f32 0.0, %v3059
    %v3061 = vpop.f32.mrb[0].mxu0
    %3062 = vmatprep.mubr.f32.mxu0 0.0
    %3063 = vmatmul.mubr.f32.gmra.mrb[0].mxu0 %v2907
    %v3064 = vpop.f32.mrb[0].mxu0
    %v3065 = vadd.f32 0.0, %v3064
    %v3066 = vpop.f32.mrb[0].mxu0
    %3067 = vmatprep.mubr.f32.mxu0 0.0
    %3068 = vmatmul.mubr.f32.gmra.mrb[0].mxu0 %v2910
    %v3069 = vpop.f32.mrb[0].mxu0
    %v3070 = vadd.f32 0.0, %v3069
    %v3071 = vpop.f32.mrb[0].mxu0
    %3072 = vmatprep.mubr.f32.mxu0 0.0
    %3073 = vmatmul.mubr.f32.gmra.mrb[0].mxu0 %v2913
    %v3074 = vpop.f32.mrb[0].mxu0
    %v3075 = vadd.f32 0.0, %v3074
    %v3076 = vpop.f32.mrb[0].mxu0
    %3077 = vmatprep.mubr.f32.mxu0 0.0
    %3078 = vmatmul.mubr.f32.gmra.mrb[0].mxu0 %v2916
    %v3079 = vpop.f32.mrb[0].mxu0
    %v3080 = vadd.f32 0.0, %v3079
    %v3081 = vpop.f32.mrb[0].mxu0
    %3082 = vdwg.mxu0
    %v3083 = vadd.f32 %v2808, %v2985
    %v3084 = vadd.f32 %v2809, %v2990
    %v3085 = vadd.f32 %v2810, %v2995
    %v3086 = vadd.f32 %v2811, %v3000
    %v3087 = vadd.f32 %v2812, %v3005
    %v3088 = vadd.f32 %v2813, %v3010
    %v3089 = vadd.f32 %v2814, %v3015
    %v3090 = vadd.f32 %v2815, %v3020
    %v3091 = vadd.f32 %v2816, %v3025
    %v3092 = vadd.f32 %v2817, %v3030
    %v3093 = vadd.f32 %v2818, %v3035
    %v3094 = vadd.f32 %v2819, %v3040
    %v3095 = vadd.f32 %v2820, %v3045
    %v3096 = vadd.f32 %v2821, %v3050
    %v3097 = vadd.f32 %v2822, %v3055
    %v3098 = vadd.f32 %v2823, %v3060
    %v3099 = vadd.f32 %v2824, %v3065
    %v3100 = vadd.f32 %v2825, %v3070
    %v3101 = vadd.f32 %v2826, %v3075
    %v3102 = vadd.f32 %v2827, %v3080
    %s3103 = scalar_lea.vmem [#allocation2], 72
    %v3104 = vld [vmem:[%s3103] sm:$0xff]
    %v3105 = vld [vmem:[%s3103 + $0x8] sm:$0xff]
    %v3106 = vld [vmem:[%s3103 + $0x10] sm:$0xff]
    %v3107 = vld [vmem:[%s3103 + $0x18] sm:$0xff]
    %v3108 = vld [vmem:[%s3103 + $0x20] sm:$0xff]
    %v3109 = vld [vmem:[%s3103 + $0x28] sm:$0xff]
    %v3110 = vld [vmem:[%s3103 + $0x30] sm:$0xff]
    %v3111 = vld [vmem:[%s3103 + $0x38] sm:$0xff]
    %v3112 = vld [vmem:[%s3103 + $0x40] sm:$0xff]
    %v3113 = vld [vmem:[%s3103 + $0x48] sm:$0xff]
    %v3114 = vld [vmem:[%s3103 + $0x50] sm:$0xff]
    %v3115 = vld [vmem:[%s3103 + $0x58] sm:$0xff]
    %v3116 = vld [vmem:[%s3103 + $0x60] sm:$0xff]
    %v3117 = vld [vmem:[%s3103 + $0x68] sm:$0xff]
    %v3118 = vld [vmem:[%s3103 + $0x70] sm:$0xff]
    %v3119 = vld [vmem:[%s3103 + $0x78] sm:$0xff]
    %v3120 = vld [vmem:[%s3103 + $0x80] sm:$0xff]
    %v3121 = vld [vmem:[%s3103 + $0x88] sm:$0xff]
    %v3122 = vld [vmem:[%s3103 + $0x90] sm:$0xff]
    %v3123 = vld [vmem:[%s3103 + $0x98] sm:$0xff]
    %s3124 = scalar_lea.vmem [#allocation8], 576
    %v3125 = vld [vmem:[%s3124] sm:$0xff]
    %v3126 = vld [vmem:[%s3124 + $0x8] sm:$0xff]
    %v3127 = vld [vmem:[%s3124 + $0x10] sm:$0xff]
    %v3128 = vld [vmem:[%s3124 + $0x18] sm:$0xff]
    %v3129 = vld [vmem:[%s3124 + $0x20] sm:$0xff]
    %v3130 = vld [vmem:[%s3124 + $0x28] sm:$0xff]
    %v3131 = vld [vmem:[%s3124 + $0x30] sm:$0xff]
    %v3132 = vld [vmem:[%s3124 + $0x38] sm:$0xff]
    %v3134 = vsel %vm188, %v3104, 0
    %v3137 = vsel %vm188, %v3105, 0
    %v3140 = vsel %vm188, %v3106, 0
    %v3143 = vsel %vm188, %v3107, 0
    %v3146 = vsel %vm188, %v3108, 0
    %v3149 = vsel %vm188, %v3109, 0
    %v3152 = vsel %vm188, %v3110, 0
    %v3155 = vsel %vm188, %v3111, 0
    %v3158 = vsel %vm188, %v3112, 0
    %v3161 = vsel %vm188, %v3113, 0
    %v3164 = vsel %vm188, %v3114, 0
    %v3167 = vsel %vm188, %v3115, 0
    %v3170 = vsel %vm188, %v3116, 0
    %v3173 = vsel %vm188, %v3117, 0
    %v3176 = vsel %vm188, %v3118, 0
    %v3179 = vsel %vm188, %v3119, 0
    %v3182 = vsel %vm188, %v3120, 0
    %v3185 = vsel %vm188, %v3121, 0
    %v3188 = vsel %vm188, %v3122, 0
    %v3191 = vsel %vm188, %v3123, 0
    %3193 = vmatprep.subr.mxu0 0.0
    %3194 = vmatpush1.msra.mxu0 %v3125
    %3195 = vmatprep.subr.mxu0 0.0
    %3196 = vmatpush1.msra.mxu0 %v3126
    %3197 = vmatprep.subr.mxu0 0.0
    %3198 = vmatpush1.msra.mxu0 %v3127
    %3199 = vmatprep.subr.mxu0 0.0
    %3200 = vmatpush1.msra.mxu0 %v3128
    %3201 = vmatprep.subr.mxu0 0.0
    %3202 = vmatpush1.msra.mxu0 %v3129
    %3203 = vmatprep.subr.mxu0 0.0
    %3204 = vmatpush1.msra.mxu0 %v3130
    %3205 = vmatprep.subr.mxu0 0.0
    %3206 = vmatpush1.msra.mxu0 %v3131
    %3207 = vmatprep.subr.mxu0 0.0
    %3208 = vmatpush1.msra.mxu0 %v3132
    %3209 = vmatprep.subr.mxu0 0.0
    %3210 = vmatpush1.msra.mxu0 0.0
    %3211 = vmatprep.subr.mxu0 0.0
    %3212 = vmatpush1.msra.mxu0 0.0
    %3213 = vmatprep.subr.mxu0 0.0
    %3214 = vmatpush1.msra.mxu0 0.0
    %3215 = vmatprep.subr.mxu0 0.0
    %3216 = vmatpush1.msra.mxu0 0.0
    %3217 = vmatprep.subr.mxu0 0.0
    %3218 = vmatpush1.msra.mxu0 0.0
    %3219 = vmatprep.subr.mxu0 0.0
    %3220 = vmatpush1.msra.mxu0 0.0
    %3221 = vmatprep.subr.mxu0 0.0
    %3222 = vmatpush1.msra.mxu0 0.0
    %3223 = vmatprep.subr.mxu0 0.0
    %3224 = vmatpush1.msra.mxu0 0.0
    %3225 = vmatprep.subr.mxu0 0.0
    %3226 = vmatpush1.msra.mxu0 0.0
    %3227 = vmatprep.subr.mxu0 0.0
    %3228 = vmatpush1.msra.mxu0 0.0
    %3229 = vmatprep.subr.mxu0 0.0
    %3230 = vmatpush1.msra.mxu0 0.0
    %3231 = vmatprep.subr.mxu0 0.0
    %3232 = vmatpush1.msra.mxu0 0.0
    %3233 = vmatprep.subr.mxu0 0.0
    %3234 = vmatpush1.msra.mxu0 0.0
    %3235 = vmatprep.subr.mxu0 0.0
    %3236 = vmatpush1.msra.mxu0 0.0
    %3237 = vmatprep.subr.mxu0 0.0
    %3238 = vmatpush1.msra.mxu0 0.0
    %3239 = vmatprep.subr.mxu0 0.0
    %3240 = vmatpush1.msra.mxu0 0.0
    %3241 = vmatprep.subr.mxu0 0.0
    %3242 = vmatpush1.msra.mxu0 0.0
    %3243 = vmatprep.subr.mxu0 0.0
    %3244 = vmatpush1.msra.mxu0 0.0
    %3245 = vmatprep.subr.mxu0 0.0
    %3246 = vmatpush1.msra.mxu0 0.0
    %3247 = vmatprep.subr.mxu0 0.0
    %3248 = vmatpush1.msra.mxu0 0.0
    %3249 = vmatprep.subr.mxu0 0.0
    %3250 = vmatpush1.msra.mxu0 0.0
    %3251 = vmatprep.subr.mxu0 0.0
    %3252 = vmatpush1.msra.mxu0 0.0
    %3253 = vmatprep.subr.mxu0 0.0
    %3254 = vmatpush1.msra.mxu0 0.0
    %3255 = vmatprep.subr.mxu0 0.0
    %3256 = vmatpush1.msra.mxu0 0.0
    %3257 = vmatprep.mubr.f32.mxu0 0.0
    %3258 = vmatmul.mubr.f32.gmra.mrb[0].mxu0 %v3134
    %v3259 = vpop.f32.mrb[0].mxu0
    %v3260 = vadd.f32 0.0, %v3259
    %v3261 = vpop.f32.mrb[0].mxu0
    %3262 = vmatprep.mubr.f32.mxu0 0.0
    %3263 = vmatmul.mubr.f32.gmra.mrb[0].mxu0 %v3137
    %v3264 = vpop.f32.mrb[0].mxu0
    %v3265 = vadd.f32 0.0, %v3264
    %v3266 = vpop.f32.mrb[0].mxu0
    %3267 = vmatprep.mubr.f32.mxu0 0.0
    %3268 = vmatmul.mubr.f32.gmra.mrb[0].mxu0 %v3140
    %v3269 = vpop.f32.mrb[0].mxu0
    %v3270 = vadd.f32 0.0, %v3269
    %v3271 = vpop.f32.mrb[0].mxu0
    %3272 = vmatprep.mubr.f32.mxu0 0.0
    %3273 = vmatmul.mubr.f32.gmra.mrb[0].mxu0 %v3143
    %v3274 = vpop.f32.mrb[0].mxu0
    %v3275 = vadd.f32 0.0, %v3274
    %v3276 = vpop.f32.mrb[0].mxu0
    %3277 = vmatprep.mubr.f32.mxu0 0.0
    %3278 = vmatmul.mubr.f32.gmra.mrb[0].mxu0 %v3146
    %v3279 = vpop.f32.mrb[0].mxu0
    %v3280 = vadd.f32 0.0, %v3279
    %v3281 = vpop.f32.mrb[0].mxu0
    %3282 = vmatprep.mubr.f32.mxu0 0.0
    %3283 = vmatmul.mubr.f32.gmra.mrb[0].mxu0 %v3149
    %v3284 = vpop.f32.mrb[0].mxu0
    %v3285 = vadd.f32 0.0, %v3284
    %v3286 = vpop.f32.mrb[0].mxu0
    %3287 = vmatprep.mubr.f32.mxu0 0.0
    %3288 = vmatmul.mubr.f32.gmra.mrb[0].mxu0 %v3152
    %v3289 = vpop.f32.mrb[0].mxu0
    %v3290 = vadd.f32 0.0, %v3289
    %v3291 = vpop.f32.mrb[0].mxu0
    %3292 = vmatprep.mubr.f32.mxu0 0.0
    %3293 = vmatmul.mubr.f32.gmra.mrb[0].mxu0 %v3155
    %v3294 = vpop.f32.mrb[0].mxu0
    %v3295 = vadd.f32 0.0, %v3294
    %v3296 = vpop.f32.mrb[0].mxu0
    %3297 = vmatprep.mubr.f32.mxu0 0.0
    %3298 = vmatmul.mubr.f32.gmra.mrb[0].mxu0 %v3158
    %v3299 = vpop.f32.mrb[0].mxu0
    %v3300 = vadd.f32 0.0, %v3299
    %v3301 = vpop.f32.mrb[0].mxu0
    %3302 = vmatprep.mubr.f32.mxu0 0.0
    %3303 = vmatmul.mubr.f32.gmra.mrb[0].mxu0 %v3161
    %v3304 = vpop.f32.mrb[0].mxu0
    %v3305 = vadd.f32 0.0, %v3304
    %v3306 = vpop.f32.mrb[0].mxu0
    %3307 = vmatprep.mubr.f32.mxu0 0.0
    %3308 = vmatmul.mubr.f32.gmra.mrb[0].mxu0 %v3164
    %v3309 = vpop.f32.mrb[0].mxu0
    %v3310 = vadd.f32 0.0, %v3309
    %v3311 = vpop.f32.mrb[0].mxu0
    %3312 = vmatprep.mubr.f32.mxu0 0.0
    %3313 = vmatmul.mubr.f32.gmra.mrb[0].mxu0 %v3167
    %v3314 = vpop.f32.mrb[0].mxu0
    %v3315 = vadd.f32 0.0, %v3314
    %v3316 = vpop.f32.mrb[0].mxu0
    %3317 = vmatprep.mubr.f32.mxu0 0.0
    %3318 = vmatmul.mubr.f32.gmra.mrb[0].mxu0 %v3170
    %v3319 = vpop.f32.mrb[0].mxu0
    %v3320 = vadd.f32 0.0, %v3319
    %v3321 = vpop.f32.mrb[0].mxu0
    %3322 = vmatprep.mubr.f32.mxu0 0.0
    %3323 = vmatmul.mubr.f32.gmra.mrb[0].mxu0 %v3173
    %v3324 = vpop.f32.mrb[0].mxu0
    %v3325 = vadd.f32 0.0, %v3324
    %v3326 = vpop.f32.mrb[0].mxu0
    %3327 = vmatprep.mubr.f32.mxu0 0.0
    %3328 = vmatmul.mubr.f32.gmra.mrb[0].mxu0 %v3176
    %v3329 = vpop.f32.mrb[0].mxu0
    %v3330 = vadd.f32 0.0, %v3329
    %v3331 = vpop.f32.mrb[0].mxu0
    %3332 = vmatprep.mubr.f32.mxu0 0.0
    %3333 = vmatmul.mubr.f32.gmra.mrb[0].mxu0 %v3179
    %v3334 = vpop.f32.mrb[0].mxu0
    %v3335 = vadd.f32 0.0, %v3334
    %v3336 = vpop.f32.mrb[0].mxu0
    %3337 = vmatprep.mubr.f32.mxu0 0.0
    %3338 = vmatmul.mubr.f32.gmra.mrb[0].mxu0 %v3182
    %v3339 = vpop.f32.mrb[0].mxu0
    %v3340 = vadd.f32 0.0, %v3339
    %v3341 = vpop.f32.mrb[0].mxu0
    %3342 = vmatprep.mubr.f32.mxu0 0.0
    %3343 = vmatmul.mubr.f32.gmra.mrb[0].mxu0 %v3185
    %v3344 = vpop.f32.mrb[0].mxu0
    %v3345 = vadd.f32 0.0, %v3344
    %v3346 = vpop.f32.mrb[0].mxu0
    %3347 = vmatprep.mubr.f32.mxu0 0.0
    %3348 = vmatmul.mubr.f32.gmra.mrb[0].mxu0 %v3188
    %v3349 = vpop.f32.mrb[0].mxu0
    %v3350 = vadd.f32 0.0, %v3349
    %v3351 = vpop.f32.mrb[0].mxu0
    %3352 = vmatprep.mubr.f32.mxu0 0.0
    %3353 = vmatmul.mubr.f32.gmra.mrb[0].mxu0 %v3191
    %v3354 = vpop.f32.mrb[0].mxu0
    %v3355 = vadd.f32 0.0, %v3354
    %v3356 = vpop.f32.mrb[0].mxu0
    %3357 = vdwg.mxu0
    %v3358 = vadd.f32 %v3083, %v3260
    %v3359 = vadd.f32 %v3084, %v3265
    %v3360 = vadd.f32 %v3085, %v3270
    %v3361 = vadd.f32 %v3086, %v3275
    %v3362 = vadd.f32 %v3087, %v3280
    %v3363 = vadd.f32 %v3088, %v3285
    %v3364 = vadd.f32 %v3089, %v3290
    %v3365 = vadd.f32 %v3090, %v3295
    %v3366 = vadd.f32 %v3091, %v3300
    %v3367 = vadd.f32 %v3092, %v3305
    %v3368 = vadd.f32 %v3093, %v3310
    %v3369 = vadd.f32 %v3094, %v3315
    %v3370 = vadd.f32 %v3095, %v3320
    %v3371 = vadd.f32 %v3096, %v3325
    %v3372 = vadd.f32 %v3097, %v3330
    %v3373 = vadd.f32 %v3098, %v3335
    %v3374 = vadd.f32 %v3099, %v3340
    %v3375 = vadd.f32 %v3100, %v3345
    %v3376 = vadd.f32 %v3101, %v3350
    %v3377 = vadd.f32 %v3102, %v3355
    %s3378 = scalar_lea.vmem [#allocation2], 80
    %v3379 = vld [vmem:[%s3378] sm:$0xff]
    %v3380 = vld [vmem:[%s3378 + $0x8] sm:$0xff]
    %v3381 = vld [vmem:[%s3378 + $0x10] sm:$0xff]
    %v3382 = vld [vmem:[%s3378 + $0x18] sm:$0xff]
    %v3383 = vld [vmem:[%s3378 + $0x20] sm:$0xff]
    %v3384 = vld [vmem:[%s3378 + $0x28] sm:$0xff]
    %v3385 = vld [vmem:[%s3378 + $0x30] sm:$0xff]
    %v3386 = vld [vmem:[%s3378 + $0x38] sm:$0xff]
    %v3387 = vld [vmem:[%s3378 + $0x40] sm:$0xff]
    %v3388 = vld [vmem:[%s3378 + $0x48] sm:$0xff]
    %v3389 = vld [vmem:[%s3378 + $0x50] sm:$0xff]
    %v3390 = vld [vmem:[%s3378 + $0x58] sm:$0xff]
    %v3391 = vld [vmem:[%s3378 + $0x60] sm:$0xff]
    %v3392 = vld [vmem:[%s3378 + $0x68] sm:$0xff]
    %v3393 = vld [vmem:[%s3378 + $0x70] sm:$0xff]
    %v3394 = vld [vmem:[%s3378 + $0x78] sm:$0xff]
    %v3395 = vld [vmem:[%s3378 + $0x80] sm:$0xff]
    %v3396 = vld [vmem:[%s3378 + $0x88] sm:$0xff]
    %v3397 = vld [vmem:[%s3378 + $0x90] sm:$0xff]
    %v3398 = vld [vmem:[%s3378 + $0x98] sm:$0xff]
    %s3399 = scalar_lea.vmem [#allocation8], 640
    %v3400 = vld [vmem:[%s3399] sm:$0xff]
    %v3401 = vld [vmem:[%s3399 + $0x8] sm:$0xff]
    %v3402 = vld [vmem:[%s3399 + $0x10] sm:$0xff]
    %v3403 = vld [vmem:[%s3399 + $0x18] sm:$0xff]
    %v3404 = vld [vmem:[%s3399 + $0x20] sm:$0xff]
    %v3405 = vld [vmem:[%s3399 + $0x28] sm:$0xff]
    %v3406 = vld [vmem:[%s3399 + $0x30] sm:$0xff]
    %v3407 = vld [vmem:[%s3399 + $0x38] sm:$0xff]
    %v3409 = vsel %vm188, %v3379, 0
    %v3412 = vsel %vm188, %v3380, 0
    %v3415 = vsel %vm188, %v3381, 0
    %v3418 = vsel %vm188, %v3382, 0
    %v3421 = vsel %vm188, %v3383, 0
    %v3424 = vsel %vm188, %v3384, 0
    %v3427 = vsel %vm188, %v3385, 0
    %v3430 = vsel %vm188, %v3386, 0
    %v3433 = vsel %vm188, %v3387, 0
    %v3436 = vsel %vm188, %v3388, 0
    %v3439 = vsel %vm188, %v3389, 0
    %v3442 = vsel %vm188, %v3390, 0
    %v3445 = vsel %vm188, %v3391, 0
    %v3448 = vsel %vm188, %v3392, 0
    %v3451 = vsel %vm188, %v3393, 0
    %v3454 = vsel %vm188, %v3394, 0
    %v3457 = vsel %vm188, %v3395, 0
    %v3460 = vsel %vm188, %v3396, 0
    %v3463 = vsel %vm188, %v3397, 0
    %v3466 = vsel %vm188, %v3398, 0
    %3468 = vmatprep.subr.mxu0 0.0
    %3469 = vmatpush1.msra.mxu0 %v3400
    %3470 = vmatprep.subr.mxu0 0.0
    %3471 = vmatpush1.msra.mxu0 %v3401
    %3472 = vmatprep.subr.mxu0 0.0
    %3473 = vmatpush1.msra.mxu0 %v3402
    %3474 = vmatprep.subr.mxu0 0.0
    %3475 = vmatpush1.msra.mxu0 %v3403
    %3476 = vmatprep.subr.mxu0 0.0
    %3477 = vmatpush1.msra.mxu0 %v3404
    %3478 = vmatprep.subr.mxu0 0.0
    %3479 = vmatpush1.msra.mxu0 %v3405
    %3480 = vmatprep.subr.mxu0 0.0
    %3481 = vmatpush1.msra.mxu0 %v3406
    %3482 = vmatprep.subr.mxu0 0.0
    %3483 = vmatpush1.msra.mxu0 %v3407
    %3484 = vmatprep.subr.mxu0 0.0
    %3485 = vmatpush1.msra.mxu0 0.0
    %3486 = vmatprep.subr.mxu0 0.0
    %3487 = vmatpush1.msra.mxu0 0.0
    %3488 = vmatprep.subr.mxu0 0.0
    %3489 = vmatpush1.msra.mxu0 0.0
    %3490 = vmatprep.subr.mxu0 0.0
    %3491 = vmatpush1.msra.mxu0 0.0
    %3492 = vmatprep.subr.mxu0 0.0
    %3493 = vmatpush1.msra.mxu0 0.0
    %3494 = vmatprep.subr.mxu0 0.0
    %3495 = vmatpush1.msra.mxu0 0.0
    %3496 = vmatprep.subr.mxu0 0.0
    %3497 = vmatpush1.msra.mxu0 0.0
    %3498 = vmatprep.subr.mxu0 0.0
    %3499 = vmatpush1.msra.mxu0 0.0
    %3500 = vmatprep.subr.mxu0 0.0
    %3501 = vmatpush1.msra.mxu0 0.0
    %3502 = vmatprep.subr.mxu0 0.0
    %3503 = vmatpush1.msra.mxu0 0.0
    %3504 = vmatprep.subr.mxu0 0.0
    %3505 = vmatpush1.msra.mxu0 0.0
    %3506 = vmatprep.subr.mxu0 0.0
    %3507 = vmatpush1.msra.mxu0 0.0
    %3508 = vmatprep.subr.mxu0 0.0
    %3509 = vmatpush1.msra.mxu0 0.0
    %3510 = vmatprep.subr.mxu0 0.0
    %3511 = vmatpush1.msra.mxu0 0.0
    %3512 = vmatprep.subr.mxu0 0.0
    %3513 = vmatpush1.msra.mxu0 0.0
    %3514 = vmatprep.subr.mxu0 0.0
    %3515 = vmatpush1.msra.mxu0 0.0
    %3516 = vmatprep.subr.mxu0 0.0
    %3517 = vmatpush1.msra.mxu0 0.0
    %3518 = vmatprep.subr.mxu0 0.0
    %3519 = vmatpush1.msra.mxu0 0.0
    %3520 = vmatprep.subr.mxu0 0.0
    %3521 = vmatpush1.msra.mxu0 0.0
    %3522 = vmatprep.subr.mxu0 0.0
    %3523 = vmatpush1.msra.mxu0 0.0
    %3524 = vmatprep.subr.mxu0 0.0
    %3525 = vmatpush1.msra.mxu0 0.0
    %3526 = vmatprep.subr.mxu0 0.0
    %3527 = vmatpush1.msra.mxu0 0.0
    %3528 = vmatprep.subr.mxu0 0.0
    %3529 = vmatpush1.msra.mxu0 0.0
    %3530 = vmatprep.subr.mxu0 0.0
    %3531 = vmatpush1.msra.mxu0 0.0
    %3532 = vmatprep.mubr.f32.mxu0 0.0
    %3533 = vmatmul.mubr.f32.gmra.mrb[0].mxu0 %v3409
    %v3534 = vpop.f32.mrb[0].mxu0
    %v3535 = vadd.f32 0.0, %v3534
    %v3536 = vpop.f32.mrb[0].mxu0
    %3537 = vmatprep.mubr.f32.mxu0 0.0
    %3538 = vmatmul.mubr.f32.gmra.mrb[0].mxu0 %v3412
    %v3539 = vpop.f32.mrb[0].mxu0
    %v3540 = vadd.f32 0.0, %v3539
    %v3541 = vpop.f32.mrb[0].mxu0
    %3542 = vmatprep.mubr.f32.mxu0 0.0
    %3543 = vmatmul.mubr.f32.gmra.mrb[0].mxu0 %v3415
    %v3544 = vpop.f32.mrb[0].mxu0
    %v3545 = vadd.f32 0.0, %v3544
    %v3546 = vpop.f32.mrb[0].mxu0
    %3547 = vmatprep.mubr.f32.mxu0 0.0
    %3548 = vmatmul.mubr.f32.gmra.mrb[0].mxu0 %v3418
    %v3549 = vpop.f32.mrb[0].mxu0
    %v3550 = vadd.f32 0.0, %v3549
    %v3551 = vpop.f32.mrb[0].mxu0
    %3552 = vmatprep.mubr.f32.mxu0 0.0
    %3553 = vmatmul.mubr.f32.gmra.mrb[0].mxu0 %v3421
    %v3554 = vpop.f32.mrb[0].mxu0
    %v3555 = vadd.f32 0.0, %v3554
    %v3556 = vpop.f32.mrb[0].mxu0
    %3557 = vmatprep.mubr.f32.mxu0 0.0
    %3558 = vmatmul.mubr.f32.gmra.mrb[0].mxu0 %v3424
    %v3559 = vpop.f32.mrb[0].mxu0
    %v3560 = vadd.f32 0.0, %v3559
    %v3561 = vpop.f32.mrb[0].mxu0
    %3562 = vmatprep.mubr.f32.mxu0 0.0
    %3563 = vmatmul.mubr.f32.gmra.mrb[0].mxu0 %v3427
    %v3564 = vpop.f32.mrb[0].mxu0
    %v3565 = vadd.f32 0.0, %v3564
    %v3566 = vpop.f32.mrb[0].mxu0
    %3567 = vmatprep.mubr.f32.mxu0 0.0
    %3568 = vmatmul.mubr.f32.gmra.mrb[0].mxu0 %v3430
    %v3569 = vpop.f32.mrb[0].mxu0
    %v3570 = vadd.f32 0.0, %v3569
    %v3571 = vpop.f32.mrb[0].mxu0
    %3572 = vmatprep.mubr.f32.mxu0 0.0
    %3573 = vmatmul.mubr.f32.gmra.mrb[0].mxu0 %v3433
    %v3574 = vpop.f32.mrb[0].mxu0
    %v3575 = vadd.f32 0.0, %v3574
    %v3576 = vpop.f32.mrb[0].mxu0
    %3577 = vmatprep.mubr.f32.mxu0 0.0
    %3578 = vmatmul.mubr.f32.gmra.mrb[0].mxu0 %v3436
    %v3579 = vpop.f32.mrb[0].mxu0
    %v3580 = vadd.f32 0.0, %v3579
    %v3581 = vpop.f32.mrb[0].mxu0
    %3582 = vmatprep.mubr.f32.mxu0 0.0
    %3583 = vmatmul.mubr.f32.gmra.mrb[0].mxu0 %v3439
    %v3584 = vpop.f32.mrb[0].mxu0
    %v3585 = vadd.f32 0.0, %v3584
    %v3586 = vpop.f32.mrb[0].mxu0
    %3587 = vmatprep.mubr.f32.mxu0 0.0
    %3588 = vmatmul.mubr.f32.gmra.mrb[0].mxu0 %v3442
    %v3589 = vpop.f32.mrb[0].mxu0
    %v3590 = vadd.f32 0.0, %v3589
    %v3591 = vpop.f32.mrb[0].mxu0
    %3592 = vmatprep.mubr.f32.mxu0 0.0
    %3593 = vmatmul.mubr.f32.gmra.mrb[0].mxu0 %v3445
    %v3594 = vpop.f32.mrb[0].mxu0
    %v3595 = vadd.f32 0.0, %v3594
    %v3596 = vpop.f32.mrb[0].mxu0
    %3597 = vmatprep.mubr.f32.mxu0 0.0
    %3598 = vmatmul.mubr.f32.gmra.mrb[0].mxu0 %v3448
    %v3599 = vpop.f32.mrb[0].mxu0
    %v3600 = vadd.f32 0.0, %v3599
    %v3601 = vpop.f32.mrb[0].mxu0
    %3602 = vmatprep.mubr.f32.mxu0 0.0
    %3603 = vmatmul.mubr.f32.gmra.mrb[0].mxu0 %v3451
    %v3604 = vpop.f32.mrb[0].mxu0
    %v3605 = vadd.f32 0.0, %v3604
    %v3606 = vpop.f32.mrb[0].mxu0
    %3607 = vmatprep.mubr.f32.mxu0 0.0
    %3608 = vmatmul.mubr.f32.gmra.mrb[0].mxu0 %v3454
    %v3609 = vpop.f32.mrb[0].mxu0
    %v3610 = vadd.f32 0.0, %v3609
    %v3611 = vpop.f32.mrb[0].mxu0
    %3612 = vmatprep.mubr.f32.mxu0 0.0
    %3613 = vmatmul.mubr.f32.gmra.mrb[0].mxu0 %v3457
    %v3614 = vpop.f32.mrb[0].mxu0
    %v3615 = vadd.f32 0.0, %v3614
    %v3616 = vpop.f32.mrb[0].mxu0
    %3617 = vmatprep.mubr.f32.mxu0 0.0
    %3618 = vmatmul.mubr.f32.gmra.mrb[0].mxu0 %v3460
    %v3619 = vpop.f32.mrb[0].mxu0
    %v3620 = vadd.f32 0.0, %v3619
    %v3621 = vpop.f32.mrb[0].mxu0
    %3622 = vmatprep.mubr.f32.mxu0 0.0
    %3623 = vmatmul.mubr.f32.gmra.mrb[0].mxu0 %v3463
    %v3624 = vpop.f32.mrb[0].mxu0
    %v3625 = vadd.f32 0.0, %v3624
    %v3626 = vpop.f32.mrb[0].mxu0
    %3627 = vmatprep.mubr.f32.mxu0 0.0
    %3628 = vmatmul.mubr.f32.gmra.mrb[0].mxu0 %v3466
    %v3629 = vpop.f32.mrb[0].mxu0
    %v3630 = vadd.f32 0.0, %v3629
    %v3631 = vpop.f32.mrb[0].mxu0
    %3632 = vdwg.mxu0
    %v3633 = vadd.f32 %v3358, %v3535
    %v3634 = vadd.f32 %v3359, %v3540
    %v3635 = vadd.f32 %v3360, %v3545
    %v3636 = vadd.f32 %v3361, %v3550
    %v3637 = vadd.f32 %v3362, %v3555
    %v3638 = vadd.f32 %v3363, %v3560
    %v3639 = vadd.f32 %v3364, %v3565
    %v3640 = vadd.f32 %v3365, %v3570
    %v3641 = vadd.f32 %v3366, %v3575
    %v3642 = vadd.f32 %v3367, %v3580
    %v3643 = vadd.f32 %v3368, %v3585
    %v3644 = vadd.f32 %v3369, %v3590
    %v3645 = vadd.f32 %v3370, %v3595
    %v3646 = vadd.f32 %v3371, %v3600
    %v3647 = vadd.f32 %v3372, %v3605
    %v3648 = vadd.f32 %v3373, %v3610
    %v3649 = vadd.f32 %v3374, %v3615
    %v3650 = vadd.f32 %v3375, %v3620
    %v3651 = vadd.f32 %v3376, %v3625
    %v3652 = vadd.f32 %v3377, %v3630
    %s3653 = scalar_lea.vmem [#allocation2], 88
    %v3654 = vld [vmem:[%s3653] sm:$0xff]
    %v3655 = vld [vmem:[%s3653 + $0x8] sm:$0xff]
    %v3656 = vld [vmem:[%s3653 + $0x10] sm:$0xff]
    %v3657 = vld [vmem:[%s3653 + $0x18] sm:$0xff]
    %v3658 = vld [vmem:[%s3653 + $0x20] sm:$0xff]
    %v3659 = vld [vmem:[%s3653 + $0x28] sm:$0xff]
    %v3660 = vld [vmem:[%s3653 + $0x30] sm:$0xff]
    %v3661 = vld [vmem:[%s3653 + $0x38] sm:$0xff]
    %v3662 = vld [vmem:[%s3653 + $0x40] sm:$0xff]
    %v3663 = vld [vmem:[%s3653 + $0x48] sm:$0xff]
    %v3664 = vld [vmem:[%s3653 + $0x50] sm:$0xff]
    %v3665 = vld [vmem:[%s3653 + $0x58] sm:$0xff]
    %v3666 = vld [vmem:[%s3653 + $0x60] sm:$0xff]
    %v3667 = vld [vmem:[%s3653 + $0x68] sm:$0xff]
    %v3668 = vld [vmem:[%s3653 + $0x70] sm:$0xff]
    %v3669 = vld [vmem:[%s3653 + $0x78] sm:$0xff]
    %v3670 = vld [vmem:[%s3653 + $0x80] sm:$0xff]
    %v3671 = vld [vmem:[%s3653 + $0x88] sm:$0xff]
    %v3672 = vld [vmem:[%s3653 + $0x90] sm:$0xff]
    %v3673 = vld [vmem:[%s3653 + $0x98] sm:$0xff]
    %s3674 = scalar_lea.vmem [#allocation8], 704
    %v3675 = vld [vmem:[%s3674] sm:$0xff]
    %v3676 = vld [vmem:[%s3674 + $0x8] sm:$0xff]
    %v3677 = vld [vmem:[%s3674 + $0x10] sm:$0xff]
    %v3678 = vld [vmem:[%s3674 + $0x18] sm:$0xff]
    %v3679 = vld [vmem:[%s3674 + $0x20] sm:$0xff]
    %v3680 = vld [vmem:[%s3674 + $0x28] sm:$0xff]
    %v3681 = vld [vmem:[%s3674 + $0x30] sm:$0xff]
    %v3682 = vld [vmem:[%s3674 + $0x38] sm:$0xff]
    %v3684 = vsel %vm188, %v3654, 0
    %v3687 = vsel %vm188, %v3655, 0
    %v3690 = vsel %vm188, %v3656, 0
    %v3693 = vsel %vm188, %v3657, 0
    %v3696 = vsel %vm188, %v3658, 0
    %v3699 = vsel %vm188, %v3659, 0
    %v3702 = vsel %vm188, %v3660, 0
    %v3705 = vsel %vm188, %v3661, 0
    %v3708 = vsel %vm188, %v3662, 0
    %v3711 = vsel %vm188, %v3663, 0
    %v3714 = vsel %vm188, %v3664, 0
    %v3717 = vsel %vm188, %v3665, 0
    %v3720 = vsel %vm188, %v3666, 0
    %v3723 = vsel %vm188, %v3667, 0
    %v3726 = vsel %vm188, %v3668, 0
    %v3729 = vsel %vm188, %v3669, 0
    %v3732 = vsel %vm188, %v3670, 0
    %v3735 = vsel %vm188, %v3671, 0
    %v3738 = vsel %vm188, %v3672, 0
    %v3741 = vsel %vm188, %v3673, 0
    %3743 = vmatprep.subr.mxu0 0.0
    %3744 = vmatpush1.msra.mxu0 %v3675
    %3745 = vmatprep.subr.mxu0 0.0
    %3746 = vmatpush1.msra.mxu0 %v3676
    %3747 = vmatprep.subr.mxu0 0.0
    %3748 = vmatpush1.msra.mxu0 %v3677
    %3749 = vmatprep.subr.mxu0 0.0
    %3750 = vmatpush1.msra.mxu0 %v3678
    %3751 = vmatprep.subr.mxu0 0.0
    %3752 = vmatpush1.msra.mxu0 %v3679
    %3753 = vmatprep.subr.mxu0 0.0
    %3754 = vmatpush1.msra.mxu0 %v3680
    %3755 = vmatprep.subr.mxu0 0.0
    %3756 = vmatpush1.msra.mxu0 %v3681
    %3757 = vmatprep.subr.mxu0 0.0
    %3758 = vmatpush1.msra.mxu0 %v3682
    %3759 = vmatprep.subr.mxu0 0.0
    %3760 = vmatpush1.msra.mxu0 0.0
    %3761 = vmatprep.subr.mxu0 0.0
    %3762 = vmatpush1.msra.mxu0 0.0
    %3763 = vmatprep.subr.mxu0 0.0
    %3764 = vmatpush1.msra.mxu0 0.0
    %3765 = vmatprep.subr.mxu0 0.0
    %3766 = vmatpush1.msra.mxu0 0.0
    %3767 = vmatprep.subr.mxu0 0.0
    %3768 = vmatpush1.msra.mxu0 0.0
    %3769 = vmatprep.subr.mxu0 0.0
    %3770 = vmatpush1.msra.mxu0 0.0
    %3771 = vmatprep.subr.mxu0 0.0
    %3772 = vmatpush1.msra.mxu0 0.0
    %3773 = vmatprep.subr.mxu0 0.0
    %3774 = vmatpush1.msra.mxu0 0.0
    %3775 = vmatprep.subr.mxu0 0.0
    %3776 = vmatpush1.msra.mxu0 0.0
    %3777 = vmatprep.subr.mxu0 0.0
    %3778 = vmatpush1.msra.mxu0 0.0
    %3779 = vmatprep.subr.mxu0 0.0
    %3780 = vmatpush1.msra.mxu0 0.0
    %3781 = vmatprep.subr.mxu0 0.0
    %3782 = vmatpush1.msra.mxu0 0.0
    %3783 = vmatprep.subr.mxu0 0.0
    %3784 = vmatpush1.msra.mxu0 0.0
    %3785 = vmatprep.subr.mxu0 0.0
    %3786 = vmatpush1.msra.mxu0 0.0
    %3787 = vmatprep.subr.mxu0 0.0
    %3788 = vmatpush1.msra.mxu0 0.0
    %3789 = vmatprep.subr.mxu0 0.0
    %3790 = vmatpush1.msra.mxu0 0.0
    %3791 = vmatprep.subr.mxu0 0.0
    %3792 = vmatpush1.msra.mxu0 0.0
    %3793 = vmatprep.subr.mxu0 0.0
    %3794 = vmatpush1.msra.mxu0 0.0
    %3795 = vmatprep.subr.mxu0 0.0
    %3796 = vmatpush1.msra.mxu0 0.0
    %3797 = vmatprep.subr.mxu0 0.0
    %3798 = vmatpush1.msra.mxu0 0.0
    %3799 = vmatprep.subr.mxu0 0.0
    %3800 = vmatpush1.msra.mxu0 0.0
    %3801 = vmatprep.subr.mxu0 0.0
    %3802 = vmatpush1.msra.mxu0 0.0
    %3803 = vmatprep.subr.mxu0 0.0
    %3804 = vmatpush1.msra.mxu0 0.0
    %3805 = vmatprep.subr.mxu0 0.0
    %3806 = vmatpush1.msra.mxu0 0.0
    %3807 = vmatprep.mubr.f32.mxu0 0.0
    %3808 = vmatmul.mubr.f32.gmra.mrb[0].mxu0 %v3684
    %v3809 = vpop.f32.mrb[0].mxu0
    %v3810 = vadd.f32 0.0, %v3809
    %v3811 = vpop.f32.mrb[0].mxu0
    %3812 = vmatprep.mubr.f32.mxu0 0.0
    %3813 = vmatmul.mubr.f32.gmra.mrb[0].mxu0 %v3687
    %v3814 = vpop.f32.mrb[0].mxu0
    %v3815 = vadd.f32 0.0, %v3814
    %v3816 = vpop.f32.mrb[0].mxu0
    %3817 = vmatprep.mubr.f32.mxu0 0.0
    %3818 = vmatmul.mubr.f32.gmra.mrb[0].mxu0 %v3690
    %v3819 = vpop.f32.mrb[0].mxu0
    %v3820 = vadd.f32 0.0, %v3819
    %v3821 = vpop.f32.mrb[0].mxu0
    %3822 = vmatprep.mubr.f32.mxu0 0.0
    %3823 = vmatmul.mubr.f32.gmra.mrb[0].mxu0 %v3693
    %v3824 = vpop.f32.mrb[0].mxu0
    %v3825 = vadd.f32 0.0, %v3824
    %v3826 = vpop.f32.mrb[0].mxu0
    %3827 = vmatprep.mubr.f32.mxu0 0.0
    %3828 = vmatmul.mubr.f32.gmra.mrb[0].mxu0 %v3696
    %v3829 = vpop.f32.mrb[0].mxu0
    %v3830 = vadd.f32 0.0, %v3829
    %v3831 = vpop.f32.mrb[0].mxu0
    %3832 = vmatprep.mubr.f32.mxu0 0.0
    %3833 = vmatmul.mubr.f32.gmra.mrb[0].mxu0 %v3699
    %v3834 = vpop.f32.mrb[0].mxu0
    %v3835 = vadd.f32 0.0, %v3834
    %v3836 = vpop.f32.mrb[0].mxu0
    %3837 = vmatprep.mubr.f32.mxu0 0.0
    %3838 = vmatmul.mubr.f32.gmra.mrb[0].mxu0 %v3702
    %v3839 = vpop.f32.mrb[0].mxu0
    %v3840 = vadd.f32 0.0, %v3839
    %v3841 = vpop.f32.mrb[0].mxu0
    %3842 = vmatprep.mubr.f32.mxu0 0.0
    %3843 = vmatmul.mubr.f32.gmra.mrb[0].mxu0 %v3705
    %v3844 = vpop.f32.mrb[0].mxu0
    %v3845 = vadd.f32 0.0, %v3844
    %v3846 = vpop.f32.mrb[0].mxu0
    %3847 = vmatprep.mubr.f32.mxu0 0.0
    %3848 = vmatmul.mubr.f32.gmra.mrb[0].mxu0 %v3708
    %v3849 = vpop.f32.mrb[0].mxu0
    %v3850 = vadd.f32 0.0, %v3849
    %v3851 = vpop.f32.mrb[0].mxu0
    %3852 = vmatprep.mubr.f32.mxu0 0.0
    %3853 = vmatmul.mubr.f32.gmra.mrb[0].mxu0 %v3711
    %v3854 = vpop.f32.mrb[0].mxu0
    %v3855 = vadd.f32 0.0, %v3854
    %v3856 = vpop.f32.mrb[0].mxu0
    %3857 = vmatprep.mubr.f32.mxu0 0.0
    %3858 = vmatmul.mubr.f32.gmra.mrb[0].mxu0 %v3714
    %v3859 = vpop.f32.mrb[0].mxu0
    %v3860 = vadd.f32 0.0, %v3859
    %v3861 = vpop.f32.mrb[0].mxu0
    %3862 = vmatprep.mubr.f32.mxu0 0.0
    %3863 = vmatmul.mubr.f32.gmra.mrb[0].mxu0 %v3717
    %v3864 = vpop.f32.mrb[0].mxu0
    %v3865 = vadd.f32 0.0, %v3864
    %v3866 = vpop.f32.mrb[0].mxu0
    %3867 = vmatprep.mubr.f32.mxu0 0.0
    %3868 = vmatmul.mubr.f32.gmra.mrb[0].mxu0 %v3720
    %v3869 = vpop.f32.mrb[0].mxu0
    %v3870 = vadd.f32 0.0, %v3869
    %v3871 = vpop.f32.mrb[0].mxu0
    %3872 = vmatprep.mubr.f32.mxu0 0.0
    %3873 = vmatmul.mubr.f32.gmra.mrb[0].mxu0 %v3723
    %v3874 = vpop.f32.mrb[0].mxu0
    %v3875 = vadd.f32 0.0, %v3874
    %v3876 = vpop.f32.mrb[0].mxu0
    %3877 = vmatprep.mubr.f32.mxu0 0.0
    %3878 = vmatmul.mubr.f32.gmra.mrb[0].mxu0 %v3726
    %v3879 = vpop.f32.mrb[0].mxu0
    %v3880 = vadd.f32 0.0, %v3879
    %v3881 = vpop.f32.mrb[0].mxu0
    %3882 = vmatprep.mubr.f32.mxu0 0.0
    %3883 = vmatmul.mubr.f32.gmra.mrb[0].mxu0 %v3729
    %v3884 = vpop.f32.mrb[0].mxu0
    %v3885 = vadd.f32 0.0, %v3884
    %v3886 = vpop.f32.mrb[0].mxu0
    %3887 = vmatprep.mubr.f32.mxu0 0.0
    %3888 = vmatmul.mubr.f32.gmra.mrb[0].mxu0 %v3732
    %v3889 = vpop.f32.mrb[0].mxu0
    %v3890 = vadd.f32 0.0, %v3889
    %v3891 = vpop.f32.mrb[0].mxu0
    %3892 = vmatprep.mubr.f32.mxu0 0.0
    %3893 = vmatmul.mubr.f32.gmra.mrb[0].mxu0 %v3735
    %v3894 = vpop.f32.mrb[0].mxu0
    %v3895 = vadd.f32 0.0, %v3894
    %v3896 = vpop.f32.mrb[0].mxu0
    %3897 = vmatprep.mubr.f32.mxu0 0.0
    %3898 = vmatmul.mubr.f32.gmra.mrb[0].mxu0 %v3738
    %v3899 = vpop.f32.mrb[0].mxu0
    %v3900 = vadd.f32 0.0, %v3899
    %v3901 = vpop.f32.mrb[0].mxu0
    %3902 = vmatprep.mubr.f32.mxu0 0.0
    %3903 = vmatmul.mubr.f32.gmra.mrb[0].mxu0 %v3741
    %v3904 = vpop.f32.mrb[0].mxu0
    %v3905 = vadd.f32 0.0, %v3904
    %v3906 = vpop.f32.mrb[0].mxu0
    %3907 = vdwg.mxu0
    %v3908 = vadd.f32 %v3633, %v3810
    %v3909 = vadd.f32 %v3634, %v3815
    %v3910 = vadd.f32 %v3635, %v3820
    %v3911 = vadd.f32 %v3636, %v3825
    %v3912 = vadd.f32 %v3637, %v3830
    %v3913 = vadd.f32 %v3638, %v3835
    %v3914 = vadd.f32 %v3639, %v3840
    %v3915 = vadd.f32 %v3640, %v3845
    %v3916 = vadd.f32 %v3641, %v3850
    %v3917 = vadd.f32 %v3642, %v3855
    %v3918 = vadd.f32 %v3643, %v3860
    %v3919 = vadd.f32 %v3644, %v3865
    %v3920 = vadd.f32 %v3645, %v3870
    %v3921 = vadd.f32 %v3646, %v3875
    %v3922 = vadd.f32 %v3647, %v3880
    %v3923 = vadd.f32 %v3648, %v3885
    %v3924 = vadd.f32 %v3649, %v3890
    %v3925 = vadd.f32 %v3650, %v3895
    %v3926 = vadd.f32 %v3651, %v3900
    %v3927 = vadd.f32 %v3652, %v3905
    %s3928 = scalar_lea.vmem [#allocation2], 96
    %v3929 = vld [vmem:[%s3928] sm:$0xff]
    %v3930 = vld [vmem:[%s3928 + $0x8] sm:$0xff]
    %v3931 = vld [vmem:[%s3928 + $0x10] sm:$0xff]
    %v3932 = vld [vmem:[%s3928 + $0x18] sm:$0xff]
    %v3933 = vld [vmem:[%s3928 + $0x20] sm:$0xff]
    %v3934 = vld [vmem:[%s3928 + $0x28] sm:$0xff]
    %v3935 = vld [vmem:[%s3928 + $0x30] sm:$0xff]
    %v3936 = vld [vmem:[%s3928 + $0x38] sm:$0xff]
    %v3937 = vld [vmem:[%s3928 + $0x40] sm:$0xff]
    %v3938 = vld [vmem:[%s3928 + $0x48] sm:$0xff]
    %v3939 = vld [vmem:[%s3928 + $0x50] sm:$0xff]
    %v3940 = vld [vmem:[%s3928 + $0x58] sm:$0xff]
    %v3941 = vld [vmem:[%s3928 + $0x60] sm:$0xff]
    %v3942 = vld [vmem:[%s3928 + $0x68] sm:$0xff]
    %v3943 = vld [vmem:[%s3928 + $0x70] sm:$0xff]
    %v3944 = vld [vmem:[%s3928 + $0x78] sm:$0xff]
    %v3945 = vld [vmem:[%s3928 + $0x80] sm:$0xff]
    %v3946 = vld [vmem:[%s3928 + $0x88] sm:$0xff]
    %v3947 = vld [vmem:[%s3928 + $0x90] sm:$0xff]
    %v3948 = vld [vmem:[%s3928 + $0x98] sm:$0xff]
    %s3949 = scalar_lea.vmem [#allocation8], 768
    %v3950 = vld [vmem:[%s3949] sm:$0xff]
    %v3951 = vld [vmem:[%s3949 + $0x8] sm:$0xff]
    %v3952 = vld [vmem:[%s3949 + $0x10] sm:$0xff]
    %v3953 = vld [vmem:[%s3949 + $0x18] sm:$0xff]
    %v3954 = vld [vmem:[%s3949 + $0x20] sm:$0xff]
    %v3955 = vld [vmem:[%s3949 + $0x28] sm:$0xff]
    %v3956 = vld [vmem:[%s3949 + $0x30] sm:$0xff]
    %v3957 = vld [vmem:[%s3949 + $0x38] sm:$0xff]
    %v3959 = vsel %vm188, %v3929, 0
    %v3962 = vsel %vm188, %v3930, 0
    %v3965 = vsel %vm188, %v3931, 0
    %v3968 = vsel %vm188, %v3932, 0
    %v3971 = vsel %vm188, %v3933, 0
    %v3974 = vsel %vm188, %v3934, 0
    %v3977 = vsel %vm188, %v3935, 0
    %v3980 = vsel %vm188, %v3936, 0
    %v3983 = vsel %vm188, %v3937, 0
    %v3986 = vsel %vm188, %v3938, 0
    %v3989 = vsel %vm188, %v3939, 0
    %v3992 = vsel %vm188, %v3940, 0
    %v3995 = vsel %vm188, %v3941, 0
    %v3998 = vsel %vm188, %v3942, 0
    %v4001 = vsel %vm188, %v3943, 0
    %v4004 = vsel %vm188, %v3944, 0
    %v4007 = vsel %vm188, %v3945, 0
    %v4010 = vsel %vm188, %v3946, 0
    %v4013 = vsel %vm188, %v3947, 0
    %v4016 = vsel %vm188, %v3948, 0
    %4018 = vmatprep.subr.mxu0 0.0
    %4019 = vmatpush1.msra.mxu0 %v3950
    %4020 = vmatprep.subr.mxu0 0.0
    %4021 = vmatpush1.msra.mxu0 %v3951
    %4022 = vmatprep.subr.mxu0 0.0
    %4023 = vmatpush1.msra.mxu0 %v3952
    %4024 = vmatprep.subr.mxu0 0.0
    %4025 = vmatpush1.msra.mxu0 %v3953
    %4026 = vmatprep.subr.mxu0 0.0
    %4027 = vmatpush1.msra.mxu0 %v3954
    %4028 = vmatprep.subr.mxu0 0.0
    %4029 = vmatpush1.msra.mxu0 %v3955
    %4030 = vmatprep.subr.mxu0 0.0
    %4031 = vmatpush1.msra.mxu0 %v3956
    %4032 = vmatprep.subr.mxu0 0.0
    %4033 = vmatpush1.msra.mxu0 %v3957
    %4034 = vmatprep.subr.mxu0 0.0
    %4035 = vmatpush1.msra.mxu0 0.0
    %4036 = vmatprep.subr.mxu0 0.0
    %4037 = vmatpush1.msra.mxu0 0.0
    %4038 = vmatprep.subr.mxu0 0.0
    %4039 = vmatpush1.msra.mxu0 0.0
    %4040 = vmatprep.subr.mxu0 0.0
    %4041 = vmatpush1.msra.mxu0 0.0
    %4042 = vmatprep.subr.mxu0 0.0
    %4043 = vmatpush1.msra.mxu0 0.0
    %4044 = vmatprep.subr.mxu0 0.0
    %4045 = vmatpush1.msra.mxu0 0.0
    %4046 = vmatprep.subr.mxu0 0.0
    %4047 = vmatpush1.msra.mxu0 0.0
    %4048 = vmatprep.subr.mxu0 0.0
    %4049 = vmatpush1.msra.mxu0 0.0
    %4050 = vmatprep.subr.mxu0 0.0
    %4051 = vmatpush1.msra.mxu0 0.0
    %4052 = vmatprep.subr.mxu0 0.0
    %4053 = vmatpush1.msra.mxu0 0.0
    %4054 = vmatprep.subr.mxu0 0.0
    %4055 = vmatpush1.msra.mxu0 0.0
    %4056 = vmatprep.subr.mxu0 0.0
    %4057 = vmatpush1.msra.mxu0 0.0
    %4058 = vmatprep.subr.mxu0 0.0
    %4059 = vmatpush1.msra.mxu0 0.0
    %4060 = vmatprep.subr.mxu0 0.0
    %4061 = vmatpush1.msra.mxu0 0.0
    %4062 = vmatprep.subr.mxu0 0.0
    %4063 = vmatpush1.msra.mxu0 0.0
    %4064 = vmatprep.subr.mxu0 0.0
    %4065 = vmatpush1.msra.mxu0 0.0
    %4066 = vmatprep.subr.mxu0 0.0
    %4067 = vmatpush1.msra.mxu0 0.0
    %4068 = vmatprep.subr.mxu0 0.0
    %4069 = vmatpush1.msra.mxu0 0.0
    %4070 = vmatprep.subr.mxu0 0.0
    %4071 = vmatpush1.msra.mxu0 0.0
    %4072 = vmatprep.subr.mxu0 0.0
    %4073 = vmatpush1.msra.mxu0 0.0
    %4074 = vmatprep.subr.mxu0 0.0
    %4075 = vmatpush1.msra.mxu0 0.0
    %4076 = vmatprep.subr.mxu0 0.0
    %4077 = vmatpush1.msra.mxu0 0.0
    %4078 = vmatprep.subr.mxu0 0.0
    %4079 = vmatpush1.msra.mxu0 0.0
    %4080 = vmatprep.subr.mxu0 0.0
    %4081 = vmatpush1.msra.mxu0 0.0
    %4082 = vmatprep.mubr.f32.mxu0 0.0
    %4083 = vmatmul.mubr.f32.gmra.mrb[0].mxu0 %v3959
    %v4084 = vpop.f32.mrb[0].mxu0
    %v4085 = vadd.f32 0.0, %v4084
    %v4086 = vpop.f32.mrb[0].mxu0
    %4087 = vmatprep.mubr.f32.mxu0 0.0
    %4088 = vmatmul.mubr.f32.gmra.mrb[0].mxu0 %v3962
    %v4089 = vpop.f32.mrb[0].mxu0
    %v4090 = vadd.f32 0.0, %v4089
    %v4091 = vpop.f32.mrb[0].mxu0
    %4092 = vmatprep.mubr.f32.mxu0 0.0
    %4093 = vmatmul.mubr.f32.gmra.mrb[0].mxu0 %v3965
    %v4094 = vpop.f32.mrb[0].mxu0
    %v4095 = vadd.f32 0.0, %v4094
    %v4096 = vpop.f32.mrb[0].mxu0
    %4097 = vmatprep.mubr.f32.mxu0 0.0
    %4098 = vmatmul.mubr.f32.gmra.mrb[0].mxu0 %v3968
    %v4099 = vpop.f32.mrb[0].mxu0
    %v4100 = vadd.f32 0.0, %v4099
    %v4101 = vpop.f32.mrb[0].mxu0
    %4102 = vmatprep.mubr.f32.mxu0 0.0
    %4103 = vmatmul.mubr.f32.gmra.mrb[0].mxu0 %v3971
    %v4104 = vpop.f32.mrb[0].mxu0
    %v4105 = vadd.f32 0.0, %v4104
    %v4106 = vpop.f32.mrb[0].mxu0
    %4107 = vmatprep.mubr.f32.mxu0 0.0
    %4108 = vmatmul.mubr.f32.gmra.mrb[0].mxu0 %v3974
    %v4109 = vpop.f32.mrb[0].mxu0
    %v4110 = vadd.f32 0.0, %v4109
    %v4111 = vpop.f32.mrb[0].mxu0
    %4112 = vmatprep.mubr.f32.mxu0 0.0
    %4113 = vmatmul.mubr.f32.gmra.mrb[0].mxu0 %v3977
    %v4114 = vpop.f32.mrb[0].mxu0
    %v4115 = vadd.f32 0.0, %v4114
    %v4116 = vpop.f32.mrb[0].mxu0
    %4117 = vmatprep.mubr.f32.mxu0 0.0
    %4118 = vmatmul.mubr.f32.gmra.mrb[0].mxu0 %v3980
    %v4119 = vpop.f32.mrb[0].mxu0
    %v4120 = vadd.f32 0.0, %v4119
    %v4121 = vpop.f32.mrb[0].mxu0
    %4122 = vmatprep.mubr.f32.mxu0 0.0
    %4123 = vmatmul.mubr.f32.gmra.mrb[0].mxu0 %v3983
    %v4124 = vpop.f32.mrb[0].mxu0
    %v4125 = vadd.f32 0.0, %v4124
    %v4126 = vpop.f32.mrb[0].mxu0
    %4127 = vmatprep.mubr.f32.mxu0 0.0
    %4128 = vmatmul.mubr.f32.gmra.mrb[0].mxu0 %v3986
    %v4129 = vpop.f32.mrb[0].mxu0
    %v4130 = vadd.f32 0.0, %v4129
    %v4131 = vpop.f32.mrb[0].mxu0
    %4132 = vmatprep.mubr.f32.mxu0 0.0
    %4133 = vmatmul.mubr.f32.gmra.mrb[0].mxu0 %v3989
    %v4134 = vpop.f32.mrb[0].mxu0
    %v4135 = vadd.f32 0.0, %v4134
    %v4136 = vpop.f32.mrb[0].mxu0
    %4137 = vmatprep.mubr.f32.mxu0 0.0
    %4138 = vmatmul.mubr.f32.gmra.mrb[0].mxu0 %v3992
    %v4139 = vpop.f32.mrb[0].mxu0
    %v4140 = vadd.f32 0.0, %v4139
    %v4141 = vpop.f32.mrb[0].mxu0
    %4142 = vmatprep.mubr.f32.mxu0 0.0
    %4143 = vmatmul.mubr.f32.gmra.mrb[0].mxu0 %v3995
    %v4144 = vpop.f32.mrb[0].mxu0
    %v4145 = vadd.f32 0.0, %v4144
    %v4146 = vpop.f32.mrb[0].mxu0
    %4147 = vmatprep.mubr.f32.mxu0 0.0
    %4148 = vmatmul.mubr.f32.gmra.mrb[0].mxu0 %v3998
    %v4149 = vpop.f32.mrb[0].mxu0
    %v4150 = vadd.f32 0.0, %v4149
    %v4151 = vpop.f32.mrb[0].mxu0
    %4152 = vmatprep.mubr.f32.mxu0 0.0
    %4153 = vmatmul.mubr.f32.gmra.mrb[0].mxu0 %v4001
    %v4154 = vpop.f32.mrb[0].mxu0
    %v4155 = vadd.f32 0.0, %v4154
    %v4156 = vpop.f32.mrb[0].mxu0
    %4157 = vmatprep.mubr.f32.mxu0 0.0
    %4158 = vmatmul.mubr.f32.gmra.mrb[0].mxu0 %v4004
    %v4159 = vpop.f32.mrb[0].mxu0
    %v4160 = vadd.f32 0.0, %v4159
    %v4161 = vpop.f32.mrb[0].mxu0
    %4162 = vmatprep.mubr.f32.mxu0 0.0
    %4163 = vmatmul.mubr.f32.gmra.mrb[0].mxu0 %v4007
    %v4164 = vpop.f32.mrb[0].mxu0
    %v4165 = vadd.f32 0.0, %v4164
    %v4166 = vpop.f32.mrb[0].mxu0
    %4167 = vmatprep.mubr.f32.mxu0 0.0
    %4168 = vmatmul.mubr.f32.gmra.mrb[0].mxu0 %v4010
    %v4169 = vpop.f32.mrb[0].mxu0
    %v4170 = vadd.f32 0.0, %v4169
    %v4171 = vpop.f32.mrb[0].mxu0
    %4172 = vmatprep.mubr.f32.mxu0 0.0
    %4173 = vmatmul.mubr.f32.gmra.mrb[0].mxu0 %v4013
    %v4174 = vpop.f32.mrb[0].mxu0
    %v4175 = vadd.f32 0.0, %v4174
    %v4176 = vpop.f32.mrb[0].mxu0
    %4177 = vmatprep.mubr.f32.mxu0 0.0
    %4178 = vmatmul.mubr.f32.gmra.mrb[0].mxu0 %v4016
    %v4179 = vpop.f32.mrb[0].mxu0
    %v4180 = vadd.f32 0.0, %v4179
    %v4181 = vpop.f32.mrb[0].mxu0
    %4182 = vdwg.mxu0
    %v4183 = vadd.f32 %v3908, %v4085
    %v4184 = vadd.f32 %v3909, %v4090
    %v4185 = vadd.f32 %v3910, %v4095
    %v4186 = vadd.f32 %v3911, %v4100
    %v4187 = vadd.f32 %v3912, %v4105
    %v4188 = vadd.f32 %v3913, %v4110
    %v4189 = vadd.f32 %v3914, %v4115
    %v4190 = vadd.f32 %v3915, %v4120
    %v4191 = vadd.f32 %v3916, %v4125
    %v4192 = vadd.f32 %v3917, %v4130
    %v4193 = vadd.f32 %v3918, %v4135
    %v4194 = vadd.f32 %v3919, %v4140
    %v4195 = vadd.f32 %v3920, %v4145
    %v4196 = vadd.f32 %v3921, %v4150
    %v4197 = vadd.f32 %v3922, %v4155
    %v4198 = vadd.f32 %v3923, %v4160
    %v4199 = vadd.f32 %v3924, %v4165
    %v4200 = vadd.f32 %v3925, %v4170
    %v4201 = vadd.f32 %v3926, %v4175
    %v4202 = vadd.f32 %v3927, %v4180
    %s4203 = scalar_lea.vmem [#allocation2], 104
    %v4204 = vld [vmem:[%s4203] sm:$0xff]
    %v4205 = vld [vmem:[%s4203 + $0x8] sm:$0xff]
    %v4206 = vld [vmem:[%s4203 + $0x10] sm:$0xff]
    %v4207 = vld [vmem:[%s4203 + $0x18] sm:$0xff]
    %v4208 = vld [vmem:[%s4203 + $0x20] sm:$0xff]
    %v4209 = vld [vmem:[%s4203 + $0x28] sm:$0xff]
    %v4210 = vld [vmem:[%s4203 + $0x30] sm:$0xff]
    %v4211 = vld [vmem:[%s4203 + $0x38] sm:$0xff]
    %v4212 = vld [vmem:[%s4203 + $0x40] sm:$0xff]
    %v4213 = vld [vmem:[%s4203 + $0x48] sm:$0xff]
    %v4214 = vld [vmem:[%s4203 + $0x50] sm:$0xff]
    %v4215 = vld [vmem:[%s4203 + $0x58] sm:$0xff]
    %v4216 = vld [vmem:[%s4203 + $0x60] sm:$0xff]
    %v4217 = vld [vmem:[%s4203 + $0x68] sm:$0xff]
    %v4218 = vld [vmem:[%s4203 + $0x70] sm:$0xff]
    %v4219 = vld [vmem:[%s4203 + $0x78] sm:$0xff]
    %v4220 = vld [vmem:[%s4203 + $0x80] sm:$0xff]
    %v4221 = vld [vmem:[%s4203 + $0x88] sm:$0xff]
    %v4222 = vld [vmem:[%s4203 + $0x90] sm:$0xff]
    %v4223 = vld [vmem:[%s4203 + $0x98] sm:$0xff]
    %s4224 = scalar_lea.vmem [#allocation8], 832
    %v4225 = vld [vmem:[%s4224] sm:$0xff]
    %v4226 = vld [vmem:[%s4224 + $0x8] sm:$0xff]
    %v4227 = vld [vmem:[%s4224 + $0x10] sm:$0xff]
    %v4228 = vld [vmem:[%s4224 + $0x18] sm:$0xff]
    %v4229 = vld [vmem:[%s4224 + $0x20] sm:$0xff]
    %v4230 = vld [vmem:[%s4224 + $0x28] sm:$0xff]
    %v4231 = vld [vmem:[%s4224 + $0x30] sm:$0xff]
    %v4232 = vld [vmem:[%s4224 + $0x38] sm:$0xff]
    %v4234 = vsel %vm188, %v4204, 0
    %v4237 = vsel %vm188, %v4205, 0
    %v4240 = vsel %vm188, %v4206, 0
    %v4243 = vsel %vm188, %v4207, 0
    %v4246 = vsel %vm188, %v4208, 0
    %v4249 = vsel %vm188, %v4209, 0
    %v4252 = vsel %vm188, %v4210, 0
    %v4255 = vsel %vm188, %v4211, 0
    %v4258 = vsel %vm188, %v4212, 0
    %v4261 = vsel %vm188, %v4213, 0
    %v4264 = vsel %vm188, %v4214, 0
    %v4267 = vsel %vm188, %v4215, 0
    %v4270 = vsel %vm188, %v4216, 0
    %v4273 = vsel %vm188, %v4217, 0
    %v4276 = vsel %vm188, %v4218, 0
    %v4279 = vsel %vm188, %v4219, 0
    %v4282 = vsel %vm188, %v4220, 0
    %v4285 = vsel %vm188, %v4221, 0
    %v4288 = vsel %vm188, %v4222, 0
    %v4291 = vsel %vm188, %v4223, 0
    %4293 = vmatprep.subr.mxu0 0.0
    %4294 = vmatpush1.msra.mxu0 %v4225
    %4295 = vmatprep.subr.mxu0 0.0
    %4296 = vmatpush1.msra.mxu0 %v4226
    %4297 = vmatprep.subr.mxu0 0.0
    %4298 = vmatpush1.msra.mxu0 %v4227
    %4299 = vmatprep.subr.mxu0 0.0
    %4300 = vmatpush1.msra.mxu0 %v4228
    %4301 = vmatprep.subr.mxu0 0.0
    %4302 = vmatpush1.msra.mxu0 %v4229
    %4303 = vmatprep.subr.mxu0 0.0
    %4304 = vmatpush1.msra.mxu0 %v4230
    %4305 = vmatprep.subr.mxu0 0.0
    %4306 = vmatpush1.msra.mxu0 %v4231
    %4307 = vmatprep.subr.mxu0 0.0
    %4308 = vmatpush1.msra.mxu0 %v4232
    %4309 = vmatprep.subr.mxu0 0.0
    %4310 = vmatpush1.msra.mxu0 0.0
    %4311 = vmatprep.subr.mxu0 0.0
    %4312 = vmatpush1.msra.mxu0 0.0
    %4313 = vmatprep.subr.mxu0 0.0
    %4314 = vmatpush1.msra.mxu0 0.0
    %4315 = vmatprep.subr.mxu0 0.0
    %4316 = vmatpush1.msra.mxu0 0.0
    %4317 = vmatprep.subr.mxu0 0.0
    %4318 = vmatpush1.msra.mxu0 0.0
    %4319 = vmatprep.subr.mxu0 0.0
    %4320 = vmatpush1.msra.mxu0 0.0
    %4321 = vmatprep.subr.mxu0 0.0
    %4322 = vmatpush1.msra.mxu0 0.0
    %4323 = vmatprep.subr.mxu0 0.0
    %4324 = vmatpush1.msra.mxu0 0.0
    %4325 = vmatprep.subr.mxu0 0.0
    %4326 = vmatpush1.msra.mxu0 0.0
    %4327 = vmatprep.subr.mxu0 0.0
    %4328 = vmatpush1.msra.mxu0 0.0
    %4329 = vmatprep.subr.mxu0 0.0
    %4330 = vmatpush1.msra.mxu0 0.0
    %4331 = vmatprep.subr.mxu0 0.0
    %4332 = vmatpush1.msra.mxu0 0.0
    %4333 = vmatprep.subr.mxu0 0.0
    %4334 = vmatpush1.msra.mxu0 0.0
    %4335 = vmatprep.subr.mxu0 0.0
    %4336 = vmatpush1.msra.mxu0 0.0
    %4337 = vmatprep.subr.mxu0 0.0
    %4338 = vmatpush1.msra.mxu0 0.0
    %4339 = vmatprep.subr.mxu0 0.0
    %4340 = vmatpush1.msra.mxu0 0.0
    %4341 = vmatprep.subr.mxu0 0.0
    %4342 = vmatpush1.msra.mxu0 0.0
    %4343 = vmatprep.subr.mxu0 0.0
    %4344 = vmatpush1.msra.mxu0 0.0
    %4345 = vmatprep.subr.mxu0 0.0
    %4346 = vmatpush1.msra.mxu0 0.0
    %4347 = vmatprep.subr.mxu0 0.0
    %4348 = vmatpush1.msra.mxu0 0.0
    %4349 = vmatprep.subr.mxu0 0.0
    %4350 = vmatpush1.msra.mxu0 0.0
    %4351 = vmatprep.subr.mxu0 0.0
    %4352 = vmatpush1.msra.mxu0 0.0
    %4353 = vmatprep.subr.mxu0 0.0
    %4354 = vmatpush1.msra.mxu0 0.0
    %4355 = vmatprep.subr.mxu0 0.0
    %4356 = vmatpush1.msra.mxu0 0.0
    %4357 = vmatprep.mubr.f32.mxu0 0.0
    %4358 = vmatmul.mubr.f32.gmra.mrb[0].mxu0 %v4234
    %v4359 = vpop.f32.mrb[0].mxu0
    %v4360 = vadd.f32 0.0, %v4359
    %v4361 = vpop.f32.mrb[0].mxu0
    %4362 = vmatprep.mubr.f32.mxu0 0.0
    %4363 = vmatmul.mubr.f32.gmra.mrb[0].mxu0 %v4237
    %v4364 = vpop.f32.mrb[0].mxu0
    %v4365 = vadd.f32 0.0, %v4364
    %v4366 = vpop.f32.mrb[0].mxu0
    %4367 = vmatprep.mubr.f32.mxu0 0.0
    %4368 = vmatmul.mubr.f32.gmra.mrb[0].mxu0 %v4240
    %v4369 = vpop.f32.mrb[0].mxu0
    %v4370 = vadd.f32 0.0, %v4369
    %v4371 = vpop.f32.mrb[0].mxu0
    %4372 = vmatprep.mubr.f32.mxu0 0.0
    %4373 = vmatmul.mubr.f32.gmra.mrb[0].mxu0 %v4243
    %v4374 = vpop.f32.mrb[0].mxu0
    %v4375 = vadd.f32 0.0, %v4374
    %v4376 = vpop.f32.mrb[0].mxu0
    %4377 = vmatprep.mubr.f32.mxu0 0.0
    %4378 = vmatmul.mubr.f32.gmra.mrb[0].mxu0 %v4246
    %v4379 = vpop.f32.mrb[0].mxu0
    %v4380 = vadd.f32 0.0, %v4379
    %v4381 = vpop.f32.mrb[0].mxu0
    %4382 = vmatprep.mubr.f32.mxu0 0.0
    %4383 = vmatmul.mubr.f32.gmra.mrb[0].mxu0 %v4249
    %v4384 = vpop.f32.mrb[0].mxu0
    %v4385 = vadd.f32 0.0, %v4384
    %v4386 = vpop.f32.mrb[0].mxu0
    %4387 = vmatprep.mubr.f32.mxu0 0.0
    %4388 = vmatmul.mubr.f32.gmra.mrb[0].mxu0 %v4252
    %v4389 = vpop.f32.mrb[0].mxu0
    %v4390 = vadd.f32 0.0, %v4389
    %v4391 = vpop.f32.mrb[0].mxu0
    %4392 = vmatprep.mubr.f32.mxu0 0.0
    %4393 = vmatmul.mubr.f32.gmra.mrb[0].mxu0 %v4255
    %v4394 = vpop.f32.mrb[0].mxu0
    %v4395 = vadd.f32 0.0, %v4394
    %v4396 = vpop.f32.mrb[0].mxu0
    %4397 = vmatprep.mubr.f32.mxu0 0.0
    %4398 = vmatmul.mubr.f32.gmra.mrb[0].mxu0 %v4258
    %v4399 = vpop.f32.mrb[0].mxu0
    %v4400 = vadd.f32 0.0, %v4399
    %v4401 = vpop.f32.mrb[0].mxu0
    %4402 = vmatprep.mubr.f32.mxu0 0.0
    %4403 = vmatmul.mubr.f32.gmra.mrb[0].mxu0 %v4261
    %v4404 = vpop.f32.mrb[0].mxu0
    %v4405 = vadd.f32 0.0, %v4404
    %v4406 = vpop.f32.mrb[0].mxu0
    %4407 = vmatprep.mubr.f32.mxu0 0.0
    %4408 = vmatmul.mubr.f32.gmra.mrb[0].mxu0 %v4264
    %v4409 = vpop.f32.mrb[0].mxu0
    %v4410 = vadd.f32 0.0, %v4409
    %v4411 = vpop.f32.mrb[0].mxu0
    %4412 = vmatprep.mubr.f32.mxu0 0.0
    %4413 = vmatmul.mubr.f32.gmra.mrb[0].mxu0 %v4267
    %v4414 = vpop.f32.mrb[0].mxu0
    %v4415 = vadd.f32 0.0, %v4414
    %v4416 = vpop.f32.mrb[0].mxu0
    %4417 = vmatprep.mubr.f32.mxu0 0.0
    %4418 = vmatmul.mubr.f32.gmra.mrb[0].mxu0 %v4270
    %v4419 = vpop.f32.mrb[0].mxu0
    %v4420 = vadd.f32 0.0, %v4419
    %v4421 = vpop.f32.mrb[0].mxu0
    %4422 = vmatprep.mubr.f32.mxu0 0.0
    %4423 = vmatmul.mubr.f32.gmra.mrb[0].mxu0 %v4273
    %v4424 = vpop.f32.mrb[0].mxu0
    %v4425 = vadd.f32 0.0, %v4424
    %v4426 = vpop.f32.mrb[0].mxu0
    %4427 = vmatprep.mubr.f32.mxu0 0.0
    %4428 = vmatmul.mubr.f32.gmra.mrb[0].mxu0 %v4276
    %v4429 = vpop.f32.mrb[0].mxu0
    %v4430 = vadd.f32 0.0, %v4429
    %v4431 = vpop.f32.mrb[0].mxu0
    %4432 = vmatprep.mubr.f32.mxu0 0.0
    %4433 = vmatmul.mubr.f32.gmra.mrb[0].mxu0 %v4279
    %v4434 = vpop.f32.mrb[0].mxu0
    %v4435 = vadd.f32 0.0, %v4434
    %v4436 = vpop.f32.mrb[0].mxu0
    %4437 = vmatprep.mubr.f32.mxu0 0.0
    %4438 = vmatmul.mubr.f32.gmra.mrb[0].mxu0 %v4282
    %v4439 = vpop.f32.mrb[0].mxu0
    %v4440 = vadd.f32 0.0, %v4439
    %v4441 = vpop.f32.mrb[0].mxu0
    %4442 = vmatprep.mubr.f32.mxu0 0.0
    %4443 = vmatmul.mubr.f32.gmra.mrb[0].mxu0 %v4285
    %v4444 = vpop.f32.mrb[0].mxu0
    %v4445 = vadd.f32 0.0, %v4444
    %v4446 = vpop.f32.mrb[0].mxu0
    %4447 = vmatprep.mubr.f32.mxu0 0.0
    %4448 = vmatmul.mubr.f32.gmra.mrb[0].mxu0 %v4288
    %v4449 = vpop.f32.mrb[0].mxu0
    %v4450 = vadd.f32 0.0, %v4449
    %v4451 = vpop.f32.mrb[0].mxu0
    %4452 = vmatprep.mubr.f32.mxu0 0.0
    %4453 = vmatmul.mubr.f32.gmra.mrb[0].mxu0 %v4291
    %v4454 = vpop.f32.mrb[0].mxu0
    %v4455 = vadd.f32 0.0, %v4454
    %v4456 = vpop.f32.mrb[0].mxu0
    %4457 = vdwg.mxu0
    %v4458 = vadd.f32 %v4183, %v4360
    %v4459 = vadd.f32 %v4184, %v4365
    %v4460 = vadd.f32 %v4185, %v4370
    %v4461 = vadd.f32 %v4186, %v4375
    %v4462 = vadd.f32 %v4187, %v4380
    %v4463 = vadd.f32 %v4188, %v4385
    %v4464 = vadd.f32 %v4189, %v4390
    %v4465 = vadd.f32 %v4190, %v4395
    %v4466 = vadd.f32 %v4191, %v4400
    %v4467 = vadd.f32 %v4192, %v4405
    %v4468 = vadd.f32 %v4193, %v4410
    %v4469 = vadd.f32 %v4194, %v4415
    %v4470 = vadd.f32 %v4195, %v4420
    %v4471 = vadd.f32 %v4196, %v4425
    %v4472 = vadd.f32 %v4197, %v4430
    %v4473 = vadd.f32 %v4198, %v4435
    %v4474 = vadd.f32 %v4199, %v4440
    %v4475 = vadd.f32 %v4200, %v4445
    %v4476 = vadd.f32 %v4201, %v4450
    %v4477 = vadd.f32 %v4202, %v4455
    %s4478 = scalar_lea.vmem [#allocation2], 112
    %v4479 = vld [vmem:[%s4478] sm:$0xff]
    %v4480 = vld [vmem:[%s4478 + $0x8] sm:$0xff]
    %v4481 = vld [vmem:[%s4478 + $0x10] sm:$0xff]
    %v4482 = vld [vmem:[%s4478 + $0x18] sm:$0xff]
    %v4483 = vld [vmem:[%s4478 + $0x20] sm:$0xff]
    %v4484 = vld [vmem:[%s4478 + $0x28] sm:$0xff]
    %v4485 = vld [vmem:[%s4478 + $0x30] sm:$0xff]
    %v4486 = vld [vmem:[%s4478 + $0x38] sm:$0xff]
    %v4487 = vld [vmem:[%s4478 + $0x40] sm:$0xff]
    %v4488 = vld [vmem:[%s4478 + $0x48] sm:$0xff]
    %v4489 = vld [vmem:[%s4478 + $0x50] sm:$0xff]
    %v4490 = vld [vmem:[%s4478 + $0x58] sm:$0xff]
    %v4491 = vld [vmem:[%s4478 + $0x60] sm:$0xff]
    %v4492 = vld [vmem:[%s4478 + $0x68] sm:$0xff]
    %v4493 = vld [vmem:[%s4478 + $0x70] sm:$0xff]
    %v4494 = vld [vmem:[%s4478 + $0x78] sm:$0xff]
    %v4495 = vld [vmem:[%s4478 + $0x80] sm:$0xff]
    %v4496 = vld [vmem:[%s4478 + $0x88] sm:$0xff]
    %v4497 = vld [vmem:[%s4478 + $0x90] sm:$0xff]
    %v4498 = vld [vmem:[%s4478 + $0x98] sm:$0xff]
    %s4499 = scalar_lea.vmem [#allocation8], 896
    %v4500 = vld [vmem:[%s4499] sm:$0xff]
    %v4501 = vld [vmem:[%s4499 + $0x8] sm:$0xff]
    %v4502 = vld [vmem:[%s4499 + $0x10] sm:$0xff]
    %v4503 = vld [vmem:[%s4499 + $0x18] sm:$0xff]
    %v4504 = vld [vmem:[%s4499 + $0x20] sm:$0xff]
    %v4505 = vld [vmem:[%s4499 + $0x28] sm:$0xff]
    %v4506 = vld [vmem:[%s4499 + $0x30] sm:$0xff]
    %v4507 = vld [vmem:[%s4499 + $0x38] sm:$0xff]
    %v4509 = vsel %vm188, %v4479, 0
    %v4512 = vsel %vm188, %v4480, 0
    %v4515 = vsel %vm188, %v4481, 0
    %v4518 = vsel %vm188, %v4482, 0
    %v4521 = vsel %vm188, %v4483, 0
    %v4524 = vsel %vm188, %v4484, 0
    %v4527 = vsel %vm188, %v4485, 0
    %v4530 = vsel %vm188, %v4486, 0
    %v4533 = vsel %vm188, %v4487, 0
    %v4536 = vsel %vm188, %v4488, 0
    %v4539 = vsel %vm188, %v4489, 0
    %v4542 = vsel %vm188, %v4490, 0
    %v4545 = vsel %vm188, %v4491, 0
    %v4548 = vsel %vm188, %v4492, 0
    %v4551 = vsel %vm188, %v4493, 0
    %v4554 = vsel %vm188, %v4494, 0
    %v4557 = vsel %vm188, %v4495, 0
    %v4560 = vsel %vm188, %v4496, 0
    %v4563 = vsel %vm188, %v4497, 0
    %v4566 = vsel %vm188, %v4498, 0
    %4568 = vmatprep.subr.mxu0 0.0
    %4569 = vmatpush1.msra.mxu0 %v4500
    %4570 = vmatprep.subr.mxu0 0.0
    %4571 = vmatpush1.msra.mxu0 %v4501
    %4572 = vmatprep.subr.mxu0 0.0
    %4573 = vmatpush1.msra.mxu0 %v4502
    %4574 = vmatprep.subr.mxu0 0.0
    %4575 = vmatpush1.msra.mxu0 %v4503
    %4576 = vmatprep.subr.mxu0 0.0
    %4577 = vmatpush1.msra.mxu0 %v4504
    %4578 = vmatprep.subr.mxu0 0.0
    %4579 = vmatpush1.msra.mxu0 %v4505
    %4580 = vmatprep.subr.mxu0 0.0
    %4581 = vmatpush1.msra.mxu0 %v4506
    %4582 = vmatprep.subr.mxu0 0.0
    %4583 = vmatpush1.msra.mxu0 %v4507
    %4584 = vmatprep.subr.mxu0 0.0
    %4585 = vmatpush1.msra.mxu0 0.0
    %4586 = vmatprep.subr.mxu0 0.0
    %4587 = vmatpush1.msra.mxu0 0.0
    %4588 = vmatprep.subr.mxu0 0.0
    %4589 = vmatpush1.msra.mxu0 0.0
    %4590 = vmatprep.subr.mxu0 0.0
    %4591 = vmatpush1.msra.mxu0 0.0
    %4592 = vmatprep.subr.mxu0 0.0
    %4593 = vmatpush1.msra.mxu0 0.0
    %4594 = vmatprep.subr.mxu0 0.0
    %4595 = vmatpush1.msra.mxu0 0.0
    %4596 = vmatprep.subr.mxu0 0.0
    %4597 = vmatpush1.msra.mxu0 0.0
    %4598 = vmatprep.subr.mxu0 0.0
    %4599 = vmatpush1.msra.mxu0 0.0
    %4600 = vmatprep.subr.mxu0 0.0
    %4601 = vmatpush1.msra.mxu0 0.0
    %4602 = vmatprep.subr.mxu0 0.0
    %4603 = vmatpush1.msra.mxu0 0.0
    %4604 = vmatprep.subr.mxu0 0.0
    %4605 = vmatpush1.msra.mxu0 0.0
    %4606 = vmatprep.subr.mxu0 0.0
    %4607 = vmatpush1.msra.mxu0 0.0
    %4608 = vmatprep.subr.mxu0 0.0
    %4609 = vmatpush1.msra.mxu0 0.0
    %4610 = vmatprep.subr.mxu0 0.0
    %4611 = vmatpush1.msra.mxu0 0.0
    %4612 = vmatprep.subr.mxu0 0.0
    %4613 = vmatpush1.msra.mxu0 0.0
    %4614 = vmatprep.subr.mxu0 0.0
    %4615 = vmatpush1.msra.mxu0 0.0
    %4616 = vmatprep.subr.mxu0 0.0
    %4617 = vmatpush1.msra.mxu0 0.0
    %4618 = vmatprep.subr.mxu0 0.0
    %4619 = vmatpush1.msra.mxu0 0.0
    %4620 = vmatprep.subr.mxu0 0.0
    %4621 = vmatpush1.msra.mxu0 0.0
    %4622 = vmatprep.subr.mxu0 0.0
    %4623 = vmatpush1.msra.mxu0 0.0
    %4624 = vmatprep.subr.mxu0 0.0
    %4625 = vmatpush1.msra.mxu0 0.0
    %4626 = vmatprep.subr.mxu0 0.0
    %4627 = vmatpush1.msra.mxu0 0.0
    %4628 = vmatprep.subr.mxu0 0.0
    %4629 = vmatpush1.msra.mxu0 0.0
    %4630 = vmatprep.subr.mxu0 0.0
    %4631 = vmatpush1.msra.mxu0 0.0
    %4632 = vmatprep.mubr.f32.mxu0 0.0
    %4633 = vmatmul.mubr.f32.gmra.mrb[0].mxu0 %v4509
    %v4634 = vpop.f32.mrb[0].mxu0
    %v4635 = vadd.f32 0.0, %v4634
    %v4636 = vpop.f32.mrb[0].mxu0
    %4637 = vmatprep.mubr.f32.mxu0 0.0
    %4638 = vmatmul.mubr.f32.gmra.mrb[0].mxu0 %v4512
    %v4639 = vpop.f32.mrb[0].mxu0
    %v4640 = vadd.f32 0.0, %v4639
    %v4641 = vpop.f32.mrb[0].mxu0
    %4642 = vmatprep.mubr.f32.mxu0 0.0
    %4643 = vmatmul.mubr.f32.gmra.mrb[0].mxu0 %v4515
    %v4644 = vpop.f32.mrb[0].mxu0
    %v4645 = vadd.f32 0.0, %v4644
    %v4646 = vpop.f32.mrb[0].mxu0
    %4647 = vmatprep.mubr.f32.mxu0 0.0
    %4648 = vmatmul.mubr.f32.gmra.mrb[0].mxu0 %v4518
    %v4649 = vpop.f32.mrb[0].mxu0
    %v4650 = vadd.f32 0.0, %v4649
    %v4651 = vpop.f32.mrb[0].mxu0
    %4652 = vmatprep.mubr.f32.mxu0 0.0
    %4653 = vmatmul.mubr.f32.gmra.mrb[0].mxu0 %v4521
    %v4654 = vpop.f32.mrb[0].mxu0
    %v4655 = vadd.f32 0.0, %v4654
    %v4656 = vpop.f32.mrb[0].mxu0
    %4657 = vmatprep.mubr.f32.mxu0 0.0
    %4658 = vmatmul.mubr.f32.gmra.mrb[0].mxu0 %v4524
    %v4659 = vpop.f32.mrb[0].mxu0
    %v4660 = vadd.f32 0.0, %v4659
    %v4661 = vpop.f32.mrb[0].mxu0
    %4662 = vmatprep.mubr.f32.mxu0 0.0
    %4663 = vmatmul.mubr.f32.gmra.mrb[0].mxu0 %v4527
    %v4664 = vpop.f32.mrb[0].mxu0
    %v4665 = vadd.f32 0.0, %v4664
    %v4666 = vpop.f32.mrb[0].mxu0
    %4667 = vmatprep.mubr.f32.mxu0 0.0
    %4668 = vmatmul.mubr.f32.gmra.mrb[0].mxu0 %v4530
    %v4669 = vpop.f32.mrb[0].mxu0
    %v4670 = vadd.f32 0.0, %v4669
    %v4671 = vpop.f32.mrb[0].mxu0
    %4672 = vmatprep.mubr.f32.mxu0 0.0
    %4673 = vmatmul.mubr.f32.gmra.mrb[0].mxu0 %v4533
    %v4674 = vpop.f32.mrb[0].mxu0
    %v4675 = vadd.f32 0.0, %v4674
    %v4676 = vpop.f32.mrb[0].mxu0
    %4677 = vmatprep.mubr.f32.mxu0 0.0
    %4678 = vmatmul.mubr.f32.gmra.mrb[0].mxu0 %v4536
    %v4679 = vpop.f32.mrb[0].mxu0
    %v4680 = vadd.f32 0.0, %v4679
    %v4681 = vpop.f32.mrb[0].mxu0
    %4682 = vmatprep.mubr.f32.mxu0 0.0
    %4683 = vmatmul.mubr.f32.gmra.mrb[0].mxu0 %v4539
    %v4684 = vpop.f32.mrb[0].mxu0
    %v4685 = vadd.f32 0.0, %v4684
    %v4686 = vpop.f32.mrb[0].mxu0
    %4687 = vmatprep.mubr.f32.mxu0 0.0
    %4688 = vmatmul.mubr.f32.gmra.mrb[0].mxu0 %v4542
    %v4689 = vpop.f32.mrb[0].mxu0
    %v4690 = vadd.f32 0.0, %v4689
    %v4691 = vpop.f32.mrb[0].mxu0
    %4692 = vmatprep.mubr.f32.mxu0 0.0
    %4693 = vmatmul.mubr.f32.gmra.mrb[0].mxu0 %v4545
    %v4694 = vpop.f32.mrb[0].mxu0
    %v4695 = vadd.f32 0.0, %v4694
    %v4696 = vpop.f32.mrb[0].mxu0
    %4697 = vmatprep.mubr.f32.mxu0 0.0
    %4698 = vmatmul.mubr.f32.gmra.mrb[0].mxu0 %v4548
    %v4699 = vpop.f32.mrb[0].mxu0
    %v4700 = vadd.f32 0.0, %v4699
    %v4701 = vpop.f32.mrb[0].mxu0
    %4702 = vmatprep.mubr.f32.mxu0 0.0
    %4703 = vmatmul.mubr.f32.gmra.mrb[0].mxu0 %v4551
    %v4704 = vpop.f32.mrb[0].mxu0
    %v4705 = vadd.f32 0.0, %v4704
    %v4706 = vpop.f32.mrb[0].mxu0
    %4707 = vmatprep.mubr.f32.mxu0 0.0
    %4708 = vmatmul.mubr.f32.gmra.mrb[0].mxu0 %v4554
    %v4709 = vpop.f32.mrb[0].mxu0
    %v4710 = vadd.f32 0.0, %v4709
    %v4711 = vpop.f32.mrb[0].mxu0
    %4712 = vmatprep.mubr.f32.mxu0 0.0
    %4713 = vmatmul.mubr.f32.gmra.mrb[0].mxu0 %v4557
    %v4714 = vpop.f32.mrb[0].mxu0
    %v4715 = vadd.f32 0.0, %v4714
    %v4716 = vpop.f32.mrb[0].mxu0
    %4717 = vmatprep.mubr.f32.mxu0 0.0
    %4718 = vmatmul.mubr.f32.gmra.mrb[0].mxu0 %v4560
    %v4719 = vpop.f32.mrb[0].mxu0
    %v4720 = vadd.f32 0.0, %v4719
    %v4721 = vpop.f32.mrb[0].mxu0
    %4722 = vmatprep.mubr.f32.mxu0 0.0
    %4723 = vmatmul.mubr.f32.gmra.mrb[0].mxu0 %v4563
    %v4724 = vpop.f32.mrb[0].mxu0
    %v4725 = vadd.f32 0.0, %v4724
    %v4726 = vpop.f32.mrb[0].mxu0
    %4727 = vmatprep.mubr.f32.mxu0 0.0
    %4728 = vmatmul.mubr.f32.gmra.mrb[0].mxu0 %v4566
    %v4729 = vpop.f32.mrb[0].mxu0
    %v4730 = vadd.f32 0.0, %v4729
    %v4731 = vpop.f32.mrb[0].mxu0
    %4732 = vdwg.mxu0
    %v4733 = vadd.f32 %v4458, %v4635
    %v4734 = vadd.f32 %v4459, %v4640
    %v4735 = vadd.f32 %v4460, %v4645
    %v4736 = vadd.f32 %v4461, %v4650
    %v4737 = vadd.f32 %v4462, %v4655
    %v4738 = vadd.f32 %v4463, %v4660
    %v4739 = vadd.f32 %v4464, %v4665
    %v4740 = vadd.f32 %v4465, %v4670
    %v4741 = vadd.f32 %v4466, %v4675
    %v4742 = vadd.f32 %v4467, %v4680
    %v4743 = vadd.f32 %v4468, %v4685
    %v4744 = vadd.f32 %v4469, %v4690
    %v4745 = vadd.f32 %v4470, %v4695
    %v4746 = vadd.f32 %v4471, %v4700
    %v4747 = vadd.f32 %v4472, %v4705
    %v4748 = vadd.f32 %v4473, %v4710
    %v4749 = vadd.f32 %v4474, %v4715
    %v4750 = vadd.f32 %v4475, %v4720
    %v4751 = vadd.f32 %v4476, %v4725
    %v4752 = vadd.f32 %v4477, %v4730
    %s4753 = scalar_lea.vmem [#allocation2], 120
    %v4754 = vld [vmem:[%s4753] sm:$0xff]
    %v4755 = vld [vmem:[%s4753 + $0x8] sm:$0xff]
    %v4756 = vld [vmem:[%s4753 + $0x10] sm:$0xff]
    %v4757 = vld [vmem:[%s4753 + $0x18] sm:$0xff]
    %v4758 = vld [vmem:[%s4753 + $0x20] sm:$0xff]
    %v4759 = vld [vmem:[%s4753 + $0x28] sm:$0xff]
    %v4760 = vld [vmem:[%s4753 + $0x30] sm:$0xff]
    %v4761 = vld [vmem:[%s4753 + $0x38] sm:$0xff]
    %v4762 = vld [vmem:[%s4753 + $0x40] sm:$0xff]
    %v4763 = vld [vmem:[%s4753 + $0x48] sm:$0xff]
    %v4764 = vld [vmem:[%s4753 + $0x50] sm:$0xff]
    %v4765 = vld [vmem:[%s4753 + $0x58] sm:$0xff]
    %v4766 = vld [vmem:[%s4753 + $0x60] sm:$0xff]
    %v4767 = vld [vmem:[%s4753 + $0x68] sm:$0xff]
    %v4768 = vld [vmem:[%s4753 + $0x70] sm:$0xff]
    %v4769 = vld [vmem:[%s4753 + $0x78] sm:$0xff]
    %v4770 = vld [vmem:[%s4753 + $0x80] sm:$0xff]
    %v4771 = vld [vmem:[%s4753 + $0x88] sm:$0xff]
    %v4772 = vld [vmem:[%s4753 + $0x90] sm:$0xff]
    %v4773 = vld [vmem:[%s4753 + $0x98] sm:$0xff]
    %s4774 = scalar_lea.vmem [#allocation8], 960
    %v4775 = vld [vmem:[%s4774] sm:$0xff]
    %v4776 = vld [vmem:[%s4774 + $0x8] sm:$0xff]
    %v4777 = vld [vmem:[%s4774 + $0x10] sm:$0xff]
    %v4778 = vld [vmem:[%s4774 + $0x18] sm:$0xff]
    %v4779 = vld [vmem:[%s4774 + $0x20] sm:$0xff]
    %v4780 = vld [vmem:[%s4774 + $0x28] sm:$0xff]
    %v4781 = vld [vmem:[%s4774 + $0x30] sm:$0xff]
    %v4782 = vld [vmem:[%s4774 + $0x38] sm:$0xff]
    %v4784 = vsel %vm188, %v4754, 0
    %v4787 = vsel %vm188, %v4755, 0
    %v4790 = vsel %vm188, %v4756, 0
    %v4793 = vsel %vm188, %v4757, 0
    %v4796 = vsel %vm188, %v4758, 0
    %v4799 = vsel %vm188, %v4759, 0
    %v4802 = vsel %vm188, %v4760, 0
    %v4805 = vsel %vm188, %v4761, 0
    %v4808 = vsel %vm188, %v4762, 0
    %v4811 = vsel %vm188, %v4763, 0
    %v4814 = vsel %vm188, %v4764, 0
    %v4817 = vsel %vm188, %v4765, 0
    %v4820 = vsel %vm188, %v4766, 0
    %v4823 = vsel %vm188, %v4767, 0
    %v4826 = vsel %vm188, %v4768, 0
    %v4829 = vsel %vm188, %v4769, 0
    %v4832 = vsel %vm188, %v4770, 0
    %v4835 = vsel %vm188, %v4771, 0
    %v4838 = vsel %vm188, %v4772, 0
    %v4841 = vsel %vm188, %v4773, 0
    %4843 = vmatprep.subr.mxu0 0.0
    %4844 = vmatpush1.msra.mxu0 %v4775
    %4845 = vmatprep.subr.mxu0 0.0
    %4846 = vmatpush1.msra.mxu0 %v4776
    %4847 = vmatprep.subr.mxu0 0.0
    %4848 = vmatpush1.msra.mxu0 %v4777
    %4849 = vmatprep.subr.mxu0 0.0
    %4850 = vmatpush1.msra.mxu0 %v4778
    %4851 = vmatprep.subr.mxu0 0.0
    %4852 = vmatpush1.msra.mxu0 %v4779
    %4853 = vmatprep.subr.mxu0 0.0
    %4854 = vmatpush1.msra.mxu0 %v4780
    %4855 = vmatprep.subr.mxu0 0.0
    %4856 = vmatpush1.msra.mxu0 %v4781
    %4857 = vmatprep.subr.mxu0 0.0
    %4858 = vmatpush1.msra.mxu0 %v4782
    %4859 = vmatprep.subr.mxu0 0.0
    %4860 = vmatpush1.msra.mxu0 0.0
    %4861 = vmatprep.subr.mxu0 0.0
    %4862 = vmatpush1.msra.mxu0 0.0
    %4863 = vmatprep.subr.mxu0 0.0
    %4864 = vmatpush1.msra.mxu0 0.0
    %4865 = vmatprep.subr.mxu0 0.0
    %4866 = vmatpush1.msra.mxu0 0.0
    %4867 = vmatprep.subr.mxu0 0.0
    %4868 = vmatpush1.msra.mxu0 0.0
    %4869 = vmatprep.subr.mxu0 0.0
    %4870 = vmatpush1.msra.mxu0 0.0
    %4871 = vmatprep.subr.mxu0 0.0
    %4872 = vmatpush1.msra.mxu0 0.0
    %4873 = vmatprep.subr.mxu0 0.0
    %4874 = vmatpush1.msra.mxu0 0.0
    %4875 = vmatprep.subr.mxu0 0.0
    %4876 = vmatpush1.msra.mxu0 0.0
    %4877 = vmatprep.subr.mxu0 0.0
    %4878 = vmatpush1.msra.mxu0 0.0
    %4879 = vmatprep.subr.mxu0 0.0
    %4880 = vmatpush1.msra.mxu0 0.0
    %4881 = vmatprep.subr.mxu0 0.0
    %4882 = vmatpush1.msra.mxu0 0.0
    %4883 = vmatprep.subr.mxu0 0.0
    %4884 = vmatpush1.msra.mxu0 0.0
    %4885 = vmatprep.subr.mxu0 0.0
    %4886 = vmatpush1.msra.mxu0 0.0
    %4887 = vmatprep.subr.mxu0 0.0
    %4888 = vmatpush1.msra.mxu0 0.0
    %4889 = vmatprep.subr.mxu0 0.0
    %4890 = vmatpush1.msra.mxu0 0.0
    %4891 = vmatprep.subr.mxu0 0.0
    %4892 = vmatpush1.msra.mxu0 0.0
    %4893 = vmatprep.subr.mxu0 0.0
    %4894 = vmatpush1.msra.mxu0 0.0
    %4895 = vmatprep.subr.mxu0 0.0
    %4896 = vmatpush1.msra.mxu0 0.0
    %4897 = vmatprep.subr.mxu0 0.0
    %4898 = vmatpush1.msra.mxu0 0.0
    %4899 = vmatprep.subr.mxu0 0.0
    %4900 = vmatpush1.msra.mxu0 0.0
    %4901 = vmatprep.subr.mxu0 0.0
    %4902 = vmatpush1.msra.mxu0 0.0
    %4903 = vmatprep.subr.mxu0 0.0
    %4904 = vmatpush1.msra.mxu0 0.0
    %4905 = vmatprep.subr.mxu0 0.0
    %4906 = vmatpush1.msra.mxu0 0.0
    %4907 = vmatprep.mubr.f32.mxu0 0.0
    %4908 = vmatmul.mubr.f32.gmra.mrb[0].mxu0 %v4784
    %v4909 = vpop.f32.mrb[0].mxu0
    %v4910 = vadd.f32 0.0, %v4909
    %v4911 = vpop.f32.mrb[0].mxu0
    %4912 = vmatprep.mubr.f32.mxu0 0.0
    %4913 = vmatmul.mubr.f32.gmra.mrb[0].mxu0 %v4787
    %v4914 = vpop.f32.mrb[0].mxu0
    %v4915 = vadd.f32 0.0, %v4914
    %v4916 = vpop.f32.mrb[0].mxu0
    %4917 = vmatprep.mubr.f32.mxu0 0.0
    %4918 = vmatmul.mubr.f32.gmra.mrb[0].mxu0 %v4790
    %v4919 = vpop.f32.mrb[0].mxu0
    %v4920 = vadd.f32 0.0, %v4919
    %v4921 = vpop.f32.mrb[0].mxu0
    %4922 = vmatprep.mubr.f32.mxu0 0.0
    %4923 = vmatmul.mubr.f32.gmra.mrb[0].mxu0 %v4793
    %v4924 = vpop.f32.mrb[0].mxu0
    %v4925 = vadd.f32 0.0, %v4924
    %v4926 = vpop.f32.mrb[0].mxu0
    %4927 = vmatprep.mubr.f32.mxu0 0.0
    %4928 = vmatmul.mubr.f32.gmra.mrb[0].mxu0 %v4796
    %v4929 = vpop.f32.mrb[0].mxu0
    %v4930 = vadd.f32 0.0, %v4929
    %v4931 = vpop.f32.mrb[0].mxu0
    %4932 = vmatprep.mubr.f32.mxu0 0.0
    %4933 = vmatmul.mubr.f32.gmra.mrb[0].mxu0 %v4799
    %v4934 = vpop.f32.mrb[0].mxu0
    %v4935 = vadd.f32 0.0, %v4934
    %v4936 = vpop.f32.mrb[0].mxu0
    %4937 = vmatprep.mubr.f32.mxu0 0.0
    %4938 = vmatmul.mubr.f32.gmra.mrb[0].mxu0 %v4802
    %v4939 = vpop.f32.mrb[0].mxu0
    %v4940 = vadd.f32 0.0, %v4939
    %v4941 = vpop.f32.mrb[0].mxu0
    %4942 = vmatprep.mubr.f32.mxu0 0.0
    %4943 = vmatmul.mubr.f32.gmra.mrb[0].mxu0 %v4805
    %v4944 = vpop.f32.mrb[0].mxu0
    %v4945 = vadd.f32 0.0, %v4944
    %v4946 = vpop.f32.mrb[0].mxu0
    %4947 = vmatprep.mubr.f32.mxu0 0.0
    %4948 = vmatmul.mubr.f32.gmra.mrb[0].mxu0 %v4808
    %v4949 = vpop.f32.mrb[0].mxu0
    %v4950 = vadd.f32 0.0, %v4949
    %v4951 = vpop.f32.mrb[0].mxu0
    %4952 = vmatprep.mubr.f32.mxu0 0.0
    %4953 = vmatmul.mubr.f32.gmra.mrb[0].mxu0 %v4811
    %v4954 = vpop.f32.mrb[0].mxu0
    %v4955 = vadd.f32 0.0, %v4954
    %v4956 = vpop.f32.mrb[0].mxu0
    %4957 = vmatprep.mubr.f32.mxu0 0.0
    %4958 = vmatmul.mubr.f32.gmra.mrb[0].mxu0 %v4814
    %v4959 = vpop.f32.mrb[0].mxu0
    %v4960 = vadd.f32 0.0, %v4959
    %v4961 = vpop.f32.mrb[0].mxu0
    %4962 = vmatprep.mubr.f32.mxu0 0.0
    %4963 = vmatmul.mubr.f32.gmra.mrb[0].mxu0 %v4817
    %v4964 = vpop.f32.mrb[0].mxu0
    %v4965 = vadd.f32 0.0, %v4964
    %v4966 = vpop.f32.mrb[0].mxu0
    %4967 = vmatprep.mubr.f32.mxu0 0.0
    %4968 = vmatmul.mubr.f32.gmra.mrb[0].mxu0 %v4820
    %v4969 = vpop.f32.mrb[0].mxu0
    %v4970 = vadd.f32 0.0, %v4969
    %v4971 = vpop.f32.mrb[0].mxu0
    %4972 = vmatprep.mubr.f32.mxu0 0.0
    %4973 = vmatmul.mubr.f32.gmra.mrb[0].mxu0 %v4823
    %v4974 = vpop.f32.mrb[0].mxu0
    %v4975 = vadd.f32 0.0, %v4974
    %v4976 = vpop.f32.mrb[0].mxu0
    %4977 = vmatprep.mubr.f32.mxu0 0.0
    %4978 = vmatmul.mubr.f32.gmra.mrb[0].mxu0 %v4826
    %v4979 = vpop.f32.mrb[0].mxu0
    %v4980 = vadd.f32 0.0, %v4979
    %v4981 = vpop.f32.mrb[0].mxu0
    %4982 = vmatprep.mubr.f32.mxu0 0.0
    %4983 = vmatmul.mubr.f32.gmra.mrb[0].mxu0 %v4829
    %v4984 = vpop.f32.mrb[0].mxu0
    %v4985 = vadd.f32 0.0, %v4984
    %v4986 = vpop.f32.mrb[0].mxu0
    %4987 = vmatprep.mubr.f32.mxu0 0.0
    %4988 = vmatmul.mubr.f32.gmra.mrb[0].mxu0 %v4832
    %v4989 = vpop.f32.mrb[0].mxu0
    %v4990 = vadd.f32 0.0, %v4989
    %v4991 = vpop.f32.mrb[0].mxu0
    %4992 = vmatprep.mubr.f32.mxu0 0.0
    %4993 = vmatmul.mubr.f32.gmra.mrb[0].mxu0 %v4835
    %v4994 = vpop.f32.mrb[0].mxu0
    %v4995 = vadd.f32 0.0, %v4994
    %v4996 = vpop.f32.mrb[0].mxu0
    %4997 = vmatprep.mubr.f32.mxu0 0.0
    %4998 = vmatmul.mubr.f32.gmra.mrb[0].mxu0 %v4838
    %v4999 = vpop.f32.mrb[0].mxu0
    %v5000 = vadd.f32 0.0, %v4999
    %v5001 = vpop.f32.mrb[0].mxu0
    %5002 = vmatprep.mubr.f32.mxu0 0.0
    %5003 = vmatmul.mubr.f32.gmra.mrb[0].mxu0 %v4841
    %v5004 = vpop.f32.mrb[0].mxu0
    %v5005 = vadd.f32 0.0, %v5004
    %v5006 = vpop.f32.mrb[0].mxu0
    %5007 = vdwg.mxu0
    %v5008 = vadd.f32 %v4733, %v4910
    %v5009 = vadd.f32 %v4734, %v4915
    %v5010 = vadd.f32 %v4735, %v4920
    %v5011 = vadd.f32 %v4736, %v4925
    %v5012 = vadd.f32 %v4737, %v4930
    %v5013 = vadd.f32 %v4738, %v4935
    %v5014 = vadd.f32 %v4739, %v4940
    %v5015 = vadd.f32 %v4740, %v4945
    %v5016 = vadd.f32 %v4741, %v4950
    %v5017 = vadd.f32 %v4742, %v4955
    %v5018 = vadd.f32 %v4743, %v4960
    %v5019 = vadd.f32 %v4744, %v4965
    %v5020 = vadd.f32 %v4745, %v4970
    %v5021 = vadd.f32 %v4746, %v4975
    %v5022 = vadd.f32 %v4747, %v4980
    %v5023 = vadd.f32 %v4748, %v4985
    %v5024 = vadd.f32 %v4749, %v4990
    %v5025 = vadd.f32 %v4750, %v4995
    %v5026 = vadd.f32 %v4751, %v5000
    %v5027 = vadd.f32 %v4752, %v5005
    %v5028 = vld [vmem:[#allocation10] sm:$0x1]
    %v5030 = vlaneseq
    %v5031 = vshrl.u32 %v5030, 7
    %v5032 = vsub.s32 0, %v5031
    %v5033 = vrot.slane %v5028, %v5032
    %v5035 = vadd.f32 %v5008, %v5033
    %v5036 = vadd.f32 %v5009, %v5033
    %v5037 = vadd.f32 %v5010, %v5033
    %v5038 = vadd.f32 %v5011, %v5033
    %v5039 = vadd.f32 %v5012, %v5033
    %v5040 = vadd.f32 %v5013, %v5033
    %v5041 = vadd.f32 %v5014, %v5033
    %v5042 = vadd.f32 %v5015, %v5033
    %v5043 = vadd.f32 %v5016, %v5033
    %v5044 = vadd.f32 %v5017, %v5033
    %v5045 = vadd.f32 %v5018, %v5033
    %v5046 = vadd.f32 %v5019, %v5033
    %v5047 = vadd.f32 %v5020, %v5033
    %v5048 = vadd.f32 %v5021, %v5033
    %v5049 = vadd.f32 %v5022, %v5033
    %v5050 = vadd.f32 %v5023, %v5033
    %v5051 = vadd.f32 %v5024, %v5033
    %v5052 = vadd.f32 %v5025, %v5033
    %v5053 = vadd.f32 %v5026, %v5033
    %v5054 = vadd.f32 %v5027, %v5033
    %v5055 = vmax.f32 %v5035, 0.0
    %v5056 = vmax.f32 %v5036, 0.0
    %v5057 = vmax.f32 %v5037, 0.0
    %v5058 = vmax.f32 %v5038, 0.0
    %v5059 = vmax.f32 %v5039, 0.0
    %v5060 = vmax.f32 %v5040, 0.0
    %v5061 = vmax.f32 %v5041, 0.0
    %v5062 = vmax.f32 %v5042, 0.0
    %v5063 = vmax.f32 %v5043, 0.0
    %v5064 = vmax.f32 %v5044, 0.0
    %v5065 = vmax.f32 %v5045, 0.0
    %v5066 = vmax.f32 %v5046, 0.0
    %v5067 = vmax.f32 %v5047, 0.0
    %v5068 = vmax.f32 %v5048, 0.0
    %v5069 = vmax.f32 %v5049, 0.0
    %v5070 = vmax.f32 %v5050, 0.0
    %v5071 = vmax.f32 %v5051, 0.0
    %v5072 = vmax.f32 %v5052, 0.0
    %v5073 = vmax.f32 %v5053, 0.0
    %v5074 = vmax.f32 %v5054, 0.0
    %v5075 = vmax.f32 %v5055, %v5056
    %v5076 = vmax.f32 %v5057, %v5058
    %v5077 = vmax.f32 %v5059, %v5060
    %v5078 = vmax.f32 %v5061, %v5062
    %v5079 = vmax.f32 %v5063, %v5064
    %v5080 = vmax.f32 %v5065, %v5066
    %v5081 = vmax.f32 %v5067, %v5068
    %v5082 = vmax.f32 %v5069, %v5070
    %v5083 = vmax.f32 %v5071, %v5072
    %v5084 = vmax.f32 %v5073, %v5074
    %v5085 = vld [vmem:[#allocation11] sm:$0xff]
    %v5086 = vld [vmem:[#allocation11 + $0x8] sm:$0xff]
    %v5087 = vld [vmem:[#allocation11 + $0x10] sm:$0xff]
    %v5088 = vld [vmem:[#allocation11 + $0x18] sm:$0xff]
    %v5089 = vld [vmem:[#allocation11 + $0x20] sm:$0xff]
    %v5090 = vld [vmem:[#allocation11 + $0x28] sm:$0xff]
    %v5091 = vld [vmem:[#allocation11 + $0x30] sm:$0xff]
    %v5092 = vld [vmem:[#allocation11 + $0x38] sm:$0xff]
    %v5093 = vld [vmem:[#allocation11 + $0x40] sm:$0xff]
    %v5094 = vld [vmem:[#allocation11 + $0x48] sm:$0xff]
    %v5095 = vld [vmem:[#allocation11 + $0x50] sm:$0xff]
    %v5096 = vld [vmem:[#allocation11 + $0x58] sm:$0xff]
    %v5097 = vld [vmem:[#allocation11 + $0x60] sm:$0xff]
    %v5098 = vld [vmem:[#allocation11 + $0x68] sm:$0xff]
    %v5099 = vld [vmem:[#allocation11 + $0x70] sm:$0xff]
    %v5100 = vld [vmem:[#allocation11 + $0x78] sm:$0xff]
    %v5101 = vld [vmem:[#allocation11 + $0x80] sm:$0xff]
    %v5102 = vld [vmem:[#allocation11 + $0x88] sm:$0xff]
    %v5103 = vld [vmem:[#allocation11 + $0x90] sm:$0xff]
    %v5104 = vld [vmem:[#allocation11 + $0x98] sm:$0xff]
    %v5105 = vld [vmem:[#allocation11 + $0xa0] sm:$0xff]
    %v5106 = vld [vmem:[#allocation11 + $0xa8] sm:$0xff]
    %v5107 = vld [vmem:[#allocation11 + $0xb0] sm:$0xff]
    %v5108 = vld [vmem:[#allocation11 + $0xb8] sm:$0xff]
    %v5109 = vld [vmem:[#allocation11 + $0xc0] sm:$0xff]
    %v5110 = vld [vmem:[#allocation11 + $0xc8] sm:$0xff]
    %v5111 = vld [vmem:[#allocation11 + $0xd0] sm:$0xff]
    %v5112 = vld [vmem:[#allocation11 + $0xd8] sm:$0xff]
    %v5113 = vld [vmem:[#allocation11 + $0xe0] sm:$0xff]
    %v5114 = vld [vmem:[#allocation11 + $0xe8] sm:$0xff]
    %v5115 = vld [vmem:[#allocation11 + $0xf0] sm:$0xff]
    %v5116 = vld [vmem:[#allocation11 + $0xf8] sm:$0xff]
    %s5117 = scalar_lea.vmem [#allocation11], 256
    %v5118 = vld [vmem:[%s5117] sm:$0xff]
    %v5119 = vld [vmem:[%s5117 + $0x8] sm:$0xff]
    %v5120 = vld [vmem:[%s5117 + $0x10] sm:$0xff]
    %v5121 = vld [vmem:[%s5117 + $0x18] sm:$0xff]
    %v5122 = vld [vmem:[%s5117 + $0x20] sm:$0xff]
    %v5123 = vld [vmem:[%s5117 + $0x28] sm:$0xff]
    %v5124 = vld [vmem:[%s5117 + $0x30] sm:$0xff]
    %v5125 = vld [vmem:[%s5117 + $0x38] sm:$0xff]
    %v5126 = vld [vmem:[%s5117 + $0x40] sm:$0xff]
    %v5127 = vld [vmem:[%s5117 + $0x48] sm:$0xff]
    %v5128 = vld [vmem:[%s5117 + $0x50] sm:$0xff]
    %v5129 = vld [vmem:[%s5117 + $0x58] sm:$0xff]
    %v5130 = vld [vmem:[%s5117 + $0x60] sm:$0xff]
    %v5131 = vld [vmem:[%s5117 + $0x68] sm:$0xff]
    %v5132 = vld [vmem:[%s5117 + $0x70] sm:$0xff]
    %v5133 = vld [vmem:[%s5117 + $0x78] sm:$0xff]
    %v5134 = vld [vmem:[%s5117 + $0x80] sm:$0xff]
    %v5135 = vld [vmem:[%s5117 + $0x88] sm:$0xff]
    %v5136 = vld [vmem:[%s5117 + $0x90] sm:$0xff]
    %v5137 = vld [vmem:[%s5117 + $0x98] sm:$0xff]
    %v5138 = vld [vmem:[%s5117 + $0xa0] sm:$0xff]
    %v5139 = vld [vmem:[%s5117 + $0xa8] sm:$0xff]
    %v5140 = vld [vmem:[%s5117 + $0xb0] sm:$0xff]
    %v5141 = vld [vmem:[%s5117 + $0xb8] sm:$0xff]
    %v5142 = vld [vmem:[%s5117 + $0xc0] sm:$0xff]
    %v5143 = vld [vmem:[%s5117 + $0xc8] sm:$0xff]
    %v5144 = vld [vmem:[%s5117 + $0xd0] sm:$0xff]
    %v5145 = vld [vmem:[%s5117 + $0xd8] sm:$0xff]
    %v5146 = vld [vmem:[%s5117 + $0xe0] sm:$0xff]
    %v5147 = vld [vmem:[%s5117 + $0xe8] sm:$0xff]
    %v5148 = vld [vmem:[%s5117 + $0xf0] sm:$0xff]
    %v5149 = vld [vmem:[%s5117 + $0xf8] sm:$0xff]
    %5150 = vmatprep.subr.mxu0 %v5119
    %5151 = vmatpush1.msra.mxu0 %v5118
    %5152 = vmatprep.subr.mxu0 %v5121
    %5153 = vmatpush1.msra.mxu0 %v5120
    %5154 = vmatprep.subr.mxu0 %v5123
    %5155 = vmatpush1.msra.mxu0 %v5122
    %5156 = vmatprep.subr.mxu0 %v5125
    %5157 = vmatpush1.msra.mxu0 %v5124
    %5158 = vmatprep.subr.mxu0 %v5127
    %5159 = vmatpush1.msra.mxu0 %v5126
    %5160 = vmatprep.subr.mxu0 %v5129
    %5161 = vmatpush1.msra.mxu0 %v5128
    %5162 = vmatprep.subr.mxu0 %v5131
    %5163 = vmatpush1.msra.mxu0 %v5130
    %5164 = vmatprep.subr.mxu0 %v5133
    %5165 = vmatpush1.msra.mxu0 %v5132
    %5166 = vmatprep.subr.mxu0 %v5135
    %5167 = vmatpush1.msra.mxu0 %v5134
    %5168 = vmatprep.subr.mxu0 %v5137
    %5169 = vmatpush1.msra.mxu0 %v5136
    %5170 = vmatprep.subr.mxu0 %v5139
    %5171 = vmatpush1.msra.mxu0 %v5138
    %5172 = vmatprep.subr.mxu0 %v5141
    %5173 = vmatpush1.msra.mxu0 %v5140
    %5174 = vmatprep.subr.mxu0 %v5143
    %5175 = vmatpush1.msra.mxu0 %v5142
    %5176 = vmatprep.subr.mxu0 %v5145
    %5177 = vmatpush1.msra.mxu0 %v5144
    %5178 = vmatprep.subr.mxu0 %v5147
    %5179 = vmatpush1.msra.mxu0 %v5146
    %5180 = vmatprep.subr.mxu0 %v5149
    %5181 = vmatpush1.msra.mxu0 %v5148
    %5182 = vmatprep.subr.mxu0 0.0
    %5183 = vmatpush1.msra.mxu0 0.0
    %5184 = vmatprep.subr.mxu0 0.0
    %5185 = vmatpush1.msra.mxu0 0.0
    %5186 = vmatprep.subr.mxu0 0.0
    %5187 = vmatpush1.msra.mxu0 0.0
    %5188 = vmatprep.subr.mxu0 0.0
    %5189 = vmatpush1.msra.mxu0 0.0
    %5190 = vmatprep.subr.mxu0 0.0
    %5191 = vmatpush1.msra.mxu0 0.0
    %5192 = vmatprep.subr.mxu0 0.0
    %5193 = vmatpush1.msra.mxu0 0.0
    %5194 = vmatprep.subr.mxu0 0.0
    %5195 = vmatpush1.msra.mxu0 0.0
    %5196 = vmatprep.subr.mxu0 0.0
    %5197 = vmatpush1.msra.mxu0 0.0
    %5198 = vmatprep.subr.mxu0 0.0
    %5199 = vmatpush1.msra.mxu0 0.0
    %5200 = vmatprep.subr.mxu0 0.0
    %5201 = vmatpush1.msra.mxu0 0.0
    %5202 = vmatprep.subr.mxu0 0.0
    %5203 = vmatpush1.msra.mxu0 0.0
    %5204 = vmatprep.subr.mxu0 0.0
    %5205 = vmatpush1.msra.mxu0 0.0
    %5206 = vmatprep.subr.mxu0 0.0
    %5207 = vmatpush1.msra.mxu0 0.0
    %5208 = vmatprep.subr.mxu0 0.0
    %5209 = vmatpush1.msra.mxu0 0.0
    %5210 = vmatprep.subr.mxu0 0.0
    %5211 = vmatpush1.msra.mxu0 0.0
    %5212 = vmatprep.subr.mxu0 0.0
    %5213 = vmatpush1.msra.mxu0 0.0
    %5214 = vmatprep.mubr.f32.mxu0 0.0
    %5215 = vmatmul.mubr.f32.gmra.mrb[0].mxu0 %v5076
    %v5216 = vpop.f32.mrb[0].mxu0
    %v5217 = vadd.f32 0.0, %v5216
    %v5218 = vpop.f32.mrb[0].mxu0
    %v5219 = vadd.f32 0.0, %v5218
    %5220 = vdwg.mxu0
    %5221 = vmatprep.subr.mxu0 %v5086
    %5222 = vmatpush1.msra.mxu0 %v5085
    %5223 = vmatprep.subr.mxu0 %v5088
    %5224 = vmatpush1.msra.mxu0 %v5087
    %5225 = vmatprep.subr.mxu0 %v5090
    %5226 = vmatpush1.msra.mxu0 %v5089
    %5227 = vmatprep.subr.mxu0 %v5092
    %5228 = vmatpush1.msra.mxu0 %v5091
    %5229 = vmatprep.subr.mxu0 %v5094
    %5230 = vmatpush1.msra.mxu0 %v5093
    %5231 = vmatprep.subr.mxu0 %v5096
    %5232 = vmatpush1.msra.mxu0 %v5095
    %5233 = vmatprep.subr.mxu0 %v5098
    %5234 = vmatpush1.msra.mxu0 %v5097
    %5235 = vmatprep.subr.mxu0 %v5100
    %5236 = vmatpush1.msra.mxu0 %v5099
    %5237 = vmatprep.subr.mxu0 %v5102
    %5238 = vmatpush1.msra.mxu0 %v5101
    %5239 = vmatprep.subr.mxu0 %v5104
    %5240 = vmatpush1.msra.mxu0 %v5103
    %5241 = vmatprep.subr.mxu0 %v5106
    %5242 = vmatpush1.msra.mxu0 %v5105
    %5243 = vmatprep.subr.mxu0 %v5108
    %5244 = vmatpush1.msra.mxu0 %v5107
    %5245 = vmatprep.subr.mxu0 %v5110
    %5246 = vmatpush1.msra.mxu0 %v5109
    %5247 = vmatprep.subr.mxu0 %v5112
    %5248 = vmatpush1.msra.mxu0 %v5111
    %5249 = vmatprep.subr.mxu0 %v5114
    %5250 = vmatpush1.msra.mxu0 %v5113
    %5251 = vmatprep.subr.mxu0 %v5116
    %5252 = vmatpush1.msra.mxu0 %v5115
    %5253 = vmatprep.subr.mxu0 0.0
    %5254 = vmatpush1.msra.mxu0 0.0
    %5255 = vmatprep.subr.mxu0 0.0
    %5256 = vmatpush1.msra.mxu0 0.0
    %5257 = vmatprep.subr.mxu0 0.0
    %5258 = vmatpush1.msra.mxu0 0.0
    %5259 = vmatprep.subr.mxu0 0.0
    %5260 = vmatpush1.msra.mxu0 0.0
    %5261 = vmatprep.subr.mxu0 0.0
    %5262 = vmatpush1.msra.mxu0 0.0
    %5263 = vmatprep.subr.mxu0 0.0
    %5264 = vmatpush1.msra.mxu0 0.0
    %5265 = vmatprep.subr.mxu0 0.0
    %5266 = vmatpush1.msra.mxu0 0.0
    %5267 = vmatprep.subr.mxu0 0.0
    %5268 = vmatpush1.msra.mxu0 0.0
    %5269 = vmatprep.subr.mxu0 0.0
    %5270 = vmatpush1.msra.mxu0 0.0
    %5271 = vmatprep.subr.mxu0 0.0
    %5272 = vmatpush1.msra.mxu0 0.0
    %5273 = vmatprep.subr.mxu0 0.0
    %5274 = vmatpush1.msra.mxu0 0.0
    %5275 = vmatprep.subr.mxu0 0.0
    %5276 = vmatpush1.msra.mxu0 0.0
    %5277 = vmatprep.subr.mxu0 0.0
    %5278 = vmatpush1.msra.mxu0 0.0
    %5279 = vmatprep.subr.mxu0 0.0
    %5280 = vmatpush1.msra.mxu0 0.0
    %5281 = vmatprep.subr.mxu0 0.0
    %5282 = vmatpush1.msra.mxu0 0.0
    %5283 = vmatprep.subr.mxu0 0.0
    %5284 = vmatpush1.msra.mxu0 0.0
    %5285 = vmatprep.mubr.f32.mxu0 0.0
    %5286 = vmatmul.mubr.f32.gmra.mrb[0].mxu0 %v5075
    %v5287 = vpop.f32.mrb[0].mxu0
    %v5288 = vadd.f32 %v5217, %v5287
    %v5289 = vpop.f32.mrb[0].mxu0
    %v5290 = vadd.f32 %v5219, %v5289
    %5291 = vdwg.mxu0
    %s5292 = scalar_lea.vmem [#allocation11], 512
    %v5293 = vld [vmem:[%s5292] sm:$0xff]
    %v5294 = vld [vmem:[%s5292 + $0x8] sm:$0xff]
    %v5295 = vld [vmem:[%s5292 + $0x10] sm:$0xff]
    %v5296 = vld [vmem:[%s5292 + $0x18] sm:$0xff]
    %v5297 = vld [vmem:[%s5292 + $0x20] sm:$0xff]
    %v5298 = vld [vmem:[%s5292 + $0x28] sm:$0xff]
    %v5299 = vld [vmem:[%s5292 + $0x30] sm:$0xff]
    %v5300 = vld [vmem:[%s5292 + $0x38] sm:$0xff]
    %v5301 = vld [vmem:[%s5292 + $0x40] sm:$0xff]
    %v5302 = vld [vmem:[%s5292 + $0x48] sm:$0xff]
    %v5303 = vld [vmem:[%s5292 + $0x50] sm:$0xff]
    %v5304 = vld [vmem:[%s5292 + $0x58] sm:$0xff]
    %v5305 = vld [vmem:[%s5292 + $0x60] sm:$0xff]
    %v5306 = vld [vmem:[%s5292 + $0x68] sm:$0xff]
    %v5307 = vld [vmem:[%s5292 + $0x70] sm:$0xff]
    %v5308 = vld [vmem:[%s5292 + $0x78] sm:$0xff]
    %v5309 = vld [vmem:[%s5292 + $0x80] sm:$0xff]
    %v5310 = vld [vmem:[%s5292 + $0x88] sm:$0xff]
    %v5311 = vld [vmem:[%s5292 + $0x90] sm:$0xff]
    %v5312 = vld [vmem:[%s5292 + $0x98] sm:$0xff]
    %v5313 = vld [vmem:[%s5292 + $0xa0] sm:$0xff]
    %v5314 = vld [vmem:[%s5292 + $0xa8] sm:$0xff]
    %v5315 = vld [vmem:[%s5292 + $0xb0] sm:$0xff]
    %v5316 = vld [vmem:[%s5292 + $0xb8] sm:$0xff]
    %v5317 = vld [vmem:[%s5292 + $0xc0] sm:$0xff]
    %v5318 = vld [vmem:[%s5292 + $0xc8] sm:$0xff]
    %v5319 = vld [vmem:[%s5292 + $0xd0] sm:$0xff]
    %v5320 = vld [vmem:[%s5292 + $0xd8] sm:$0xff]
    %v5321 = vld [vmem:[%s5292 + $0xe0] sm:$0xff]
    %v5322 = vld [vmem:[%s5292 + $0xe8] sm:$0xff]
    %v5323 = vld [vmem:[%s5292 + $0xf0] sm:$0xff]
    %v5324 = vld [vmem:[%s5292 + $0xf8] sm:$0xff]
    %5325 = vmatprep.subr.mxu0 %v5294
    %5326 = vmatpush1.msra.mxu0 %v5293
    %5327 = vmatprep.subr.mxu0 %v5296
    %5328 = vmatpush1.msra.mxu0 %v5295
    %5329 = vmatprep.subr.mxu0 %v5298
    %5330 = vmatpush1.msra.mxu0 %v5297
    %5331 = vmatprep.subr.mxu0 %v5300
    %5332 = vmatpush1.msra.mxu0 %v5299
    %5333 = vmatprep.subr.mxu0 %v5302
    %5334 = vmatpush1.msra.mxu0 %v5301
    %5335 = vmatprep.subr.mxu0 %v5304
    %5336 = vmatpush1.msra.mxu0 %v5303
    %5337 = vmatprep.subr.mxu0 %v5306
    %5338 = vmatpush1.msra.mxu0 %v5305
    %5339 = vmatprep.subr.mxu0 %v5308
    %5340 = vmatpush1.msra.mxu0 %v5307
    %5341 = vmatprep.subr.mxu0 %v5310
    %5342 = vmatpush1.msra.mxu0 %v5309
    %5343 = vmatprep.subr.mxu0 %v5312
    %5344 = vmatpush1.msra.mxu0 %v5311
    %5345 = vmatprep.subr.mxu0 %v5314
    %5346 = vmatpush1.msra.mxu0 %v5313
    %5347 = vmatprep.subr.mxu0 %v5316
    %5348 = vmatpush1.msra.mxu0 %v5315
    %5349 = vmatprep.subr.mxu0 %v5318
    %5350 = vmatpush1.msra.mxu0 %v5317
    %5351 = vmatprep.subr.mxu0 %v5320
    %5352 = vmatpush1.msra.mxu0 %v5319
    %5353 = vmatprep.subr.mxu0 %v5322
    %5354 = vmatpush1.msra.mxu0 %v5321
    %5355 = vmatprep.subr.mxu0 %v5324
    %5356 = vmatpush1.msra.mxu0 %v5323
    %5357 = vmatprep.subr.mxu0 0.0
    %5358 = vmatpush1.msra.mxu0 0.0
    %5359 = vmatprep.subr.mxu0 0.0
    %5360 = vmatpush1.msra.mxu0 0.0
    %5361 = vmatprep.subr.mxu0 0.0
    %5362 = vmatpush1.msra.mxu0 0.0
    %5363 = vmatprep.subr.mxu0 0.0
    %5364 = vmatpush1.msra.mxu0 0.0
    %5365 = vmatprep.subr.mxu0 0.0
    %5366 = vmatpush1.msra.mxu0 0.0
    %5367 = vmatprep.subr.mxu0 0.0
    %5368 = vmatpush1.msra.mxu0 0.0
    %5369 = vmatprep.subr.mxu0 0.0
    %5370 = vmatpush1.msra.mxu0 0.0
    %5371 = vmatprep.subr.mxu0 0.0
    %5372 = vmatpush1.msra.mxu0 0.0
    %5373 = vmatprep.subr.mxu0 0.0
    %5374 = vmatpush1.msra.mxu0 0.0
    %5375 = vmatprep.subr.mxu0 0.0
    %5376 = vmatpush1.msra.mxu0 0.0
    %5377 = vmatprep.subr.mxu0 0.0
    %5378 = vmatpush1.msra.mxu0 0.0
    %5379 = vmatprep.subr.mxu0 0.0
    %5380 = vmatpush1.msra.mxu0 0.0
    %5381 = vmatprep.subr.mxu0 0.0
    %5382 = vmatpush1.msra.mxu0 0.0
    %5383 = vmatprep.subr.mxu0 0.0
    %5384 = vmatpush1.msra.mxu0 0.0
    %5385 = vmatprep.subr.mxu0 0.0
    %5386 = vmatpush1.msra.mxu0 0.0
    %5387 = vmatprep.subr.mxu0 0.0
    %5388 = vmatpush1.msra.mxu0 0.0
    %5389 = vmatprep.mubr.f32.mxu0 0.0
    %5390 = vmatmul.mubr.f32.gmra.mrb[0].mxu0 %v5077
    %v5391 = vpop.f32.mrb[0].mxu0
    %v5392 = vadd.f32 0.0, %v5391
    %v5393 = vpop.f32.mrb[0].mxu0
    %v5394 = vadd.f32 0.0, %v5393
    %5395 = vdwg.mxu0
    %v5396 = vadd.f32 %v5288, %v5392
    %v5397 = vadd.f32 %v5290, %v5394
    %s5398 = scalar_lea.vmem [#allocation11], 768
    %v5399 = vld [vmem:[%s5398] sm:$0xff]
    %v5400 = vld [vmem:[%s5398 + $0x8] sm:$0xff]
    %v5401 = vld [vmem:[%s5398 + $0x10] sm:$0xff]
    %v5402 = vld [vmem:[%s5398 + $0x18] sm:$0xff]
    %v5403 = vld [vmem:[%s5398 + $0x20] sm:$0xff]
    %v5404 = vld [vmem:[%s5398 + $0x28] sm:$0xff]
    %v5405 = vld [vmem:[%s5398 + $0x30] sm:$0xff]
    %v5406 = vld [vmem:[%s5398 + $0x38] sm:$0xff]
    %v5407 = vld [vmem:[%s5398 + $0x40] sm:$0xff]
    %v5408 = vld [vmem:[%s5398 + $0x48] sm:$0xff]
    %v5409 = vld [vmem:[%s5398 + $0x50] sm:$0xff]
    %v5410 = vld [vmem:[%s5398 + $0x58] sm:$0xff]
    %v5411 = vld [vmem:[%s5398 + $0x60] sm:$0xff]
    %v5412 = vld [vmem:[%s5398 + $0x68] sm:$0xff]
    %v5413 = vld [vmem:[%s5398 + $0x70] sm:$0xff]
    %v5414 = vld [vmem:[%s5398 + $0x78] sm:$0xff]
    %v5415 = vld [vmem:[%s5398 + $0x80] sm:$0xff]
    %v5416 = vld [vmem:[%s5398 + $0x88] sm:$0xff]
    %v5417 = vld [vmem:[%s5398 + $0x90] sm:$0xff]
    %v5418 = vld [vmem:[%s5398 + $0x98] sm:$0xff]
    %v5419 = vld [vmem:[%s5398 + $0xa0] sm:$0xff]
    %v5420 = vld [vmem:[%s5398 + $0xa8] sm:$0xff]
    %v5421 = vld [vmem:[%s5398 + $0xb0] sm:$0xff]
    %v5422 = vld [vmem:[%s5398 + $0xb8] sm:$0xff]
    %v5423 = vld [vmem:[%s5398 + $0xc0] sm:$0xff]
    %v5424 = vld [vmem:[%s5398 + $0xc8] sm:$0xff]
    %v5425 = vld [vmem:[%s5398 + $0xd0] sm:$0xff]
    %v5426 = vld [vmem:[%s5398 + $0xd8] sm:$0xff]
    %v5427 = vld [vmem:[%s5398 + $0xe0] sm:$0xff]
    %v5428 = vld [vmem:[%s5398 + $0xe8] sm:$0xff]
    %v5429 = vld [vmem:[%s5398 + $0xf0] sm:$0xff]
    %v5430 = vld [vmem:[%s5398 + $0xf8] sm:$0xff]
    %5431 = vmatprep.subr.mxu0 %v5400
    %5432 = vmatpush1.msra.mxu0 %v5399
    %5433 = vmatprep.subr.mxu0 %v5402
    %5434 = vmatpush1.msra.mxu0 %v5401
    %5435 = vmatprep.subr.mxu0 %v5404
    %5436 = vmatpush1.msra.mxu0 %v5403
    %5437 = vmatprep.subr.mxu0 %v5406
    %5438 = vmatpush1.msra.mxu0 %v5405
    %5439 = vmatprep.subr.mxu0 %v5408
    %5440 = vmatpush1.msra.mxu0 %v5407
    %5441 = vmatprep.subr.mxu0 %v5410
    %5442 = vmatpush1.msra.mxu0 %v5409
    %5443 = vmatprep.subr.mxu0 %v5412
    %5444 = vmatpush1.msra.mxu0 %v5411
    %5445 = vmatprep.subr.mxu0 %v5414
    %5446 = vmatpush1.msra.mxu0 %v5413
    %5447 = vmatprep.subr.mxu0 %v5416
    %5448 = vmatpush1.msra.mxu0 %v5415
    %5449 = vmatprep.subr.mxu0 %v5418
    %5450 = vmatpush1.msra.mxu0 %v5417
    %5451 = vmatprep.subr.mxu0 %v5420
    %5452 = vmatpush1.msra.mxu0 %v5419
    %5453 = vmatprep.subr.mxu0 %v5422
    %5454 = vmatpush1.msra.mxu0 %v5421
    %5455 = vmatprep.subr.mxu0 %v5424
    %5456 = vmatpush1.msra.mxu0 %v5423
    %5457 = vmatprep.subr.mxu0 %v5426
    %5458 = vmatpush1.msra.mxu0 %v5425
    %5459 = vmatprep.subr.mxu0 %v5428
    %5460 = vmatpush1.msra.mxu0 %v5427
    %5461 = vmatprep.subr.mxu0 %v5430
    %5462 = vmatpush1.msra.mxu0 %v5429
    %5463 = vmatprep.subr.mxu0 0.0
    %5464 = vmatpush1.msra.mxu0 0.0
    %5465 = vmatprep.subr.mxu0 0.0
    %5466 = vmatpush1.msra.mxu0 0.0
    %5467 = vmatprep.subr.mxu0 0.0
    %5468 = vmatpush1.msra.mxu0 0.0
    %5469 = vmatprep.subr.mxu0 0.0
    %5470 = vmatpush1.msra.mxu0 0.0
    %5471 = vmatprep.subr.mxu0 0.0
    %5472 = vmatpush1.msra.mxu0 0.0
    %5473 = vmatprep.subr.mxu0 0.0
    %5474 = vmatpush1.msra.mxu0 0.0
    %5475 = vmatprep.subr.mxu0 0.0
    %5476 = vmatpush1.msra.mxu0 0.0
    %5477 = vmatprep.subr.mxu0 0.0
    %5478 = vmatpush1.msra.mxu0 0.0
    %5479 = vmatprep.subr.mxu0 0.0
    %5480 = vmatpush1.msra.mxu0 0.0
    %5481 = vmatprep.subr.mxu0 0.0
    %5482 = vmatpush1.msra.mxu0 0.0
    %5483 = vmatprep.subr.mxu0 0.0
    %5484 = vmatpush1.msra.mxu0 0.0
    %5485 = vmatprep.subr.mxu0 0.0
    %5486 = vmatpush1.msra.mxu0 0.0
    %5487 = vmatprep.subr.mxu0 0.0
    %5488 = vmatpush1.msra.mxu0 0.0
    %5489 = vmatprep.subr.mxu0 0.0
    %5490 = vmatpush1.msra.mxu0 0.0
    %5491 = vmatprep.subr.mxu0 0.0
    %5492 = vmatpush1.msra.mxu0 0.0
    %5493 = vmatprep.subr.mxu0 0.0
    %5494 = vmatpush1.msra.mxu0 0.0
    %5495 = vmatprep.mubr.f32.mxu0 0.0
    %5496 = vmatmul.mubr.f32.gmra.mrb[0].mxu0 %v5078
    %v5497 = vpop.f32.mrb[0].mxu0
    %v5498 = vadd.f32 0.0, %v5497
    %v5499 = vpop.f32.mrb[0].mxu0
    %v5500 = vadd.f32 0.0, %v5499
    %5501 = vdwg.mxu0
    %v5502 = vadd.f32 %v5396, %v5498
    %v5503 = vadd.f32 %v5397, %v5500
    %s5504 = scalar_lea.vmem [#allocation11], 1024
    %v5505 = vld [vmem:[%s5504] sm:$0xff]
    %v5506 = vld [vmem:[%s5504 + $0x8] sm:$0xff]
    %v5507 = vld [vmem:[%s5504 + $0x10] sm:$0xff]
    %v5508 = vld [vmem:[%s5504 + $0x18] sm:$0xff]
    %v5509 = vld [vmem:[%s5504 + $0x20] sm:$0xff]
    %v5510 = vld [vmem:[%s5504 + $0x28] sm:$0xff]
    %v5511 = vld [vmem:[%s5504 + $0x30] sm:$0xff]
    %v5512 = vld [vmem:[%s5504 + $0x38] sm:$0xff]
    %v5513 = vld [vmem:[%s5504 + $0x40] sm:$0xff]
    %v5514 = vld [vmem:[%s5504 + $0x48] sm:$0xff]
    %v5515 = vld [vmem:[%s5504 + $0x50] sm:$0xff]
    %v5516 = vld [vmem:[%s5504 + $0x58] sm:$0xff]
    %v5517 = vld [vmem:[%s5504 + $0x60] sm:$0xff]
    %v5518 = vld [vmem:[%s5504 + $0x68] sm:$0xff]
    %v5519 = vld [vmem:[%s5504 + $0x70] sm:$0xff]
    %v5520 = vld [vmem:[%s5504 + $0x78] sm:$0xff]
    %v5521 = vld [vmem:[%s5504 + $0x80] sm:$0xff]
    %v5522 = vld [vmem:[%s5504 + $0x88] sm:$0xff]
    %v5523 = vld [vmem:[%s5504 + $0x90] sm:$0xff]
    %v5524 = vld [vmem:[%s5504 + $0x98] sm:$0xff]
    %v5525 = vld [vmem:[%s5504 + $0xa0] sm:$0xff]
    %v5526 = vld [vmem:[%s5504 + $0xa8] sm:$0xff]
    %v5527 = vld [vmem:[%s5504 + $0xb0] sm:$0xff]
    %v5528 = vld [vmem:[%s5504 + $0xb8] sm:$0xff]
    %v5529 = vld [vmem:[%s5504 + $0xc0] sm:$0xff]
    %v5530 = vld [vmem:[%s5504 + $0xc8] sm:$0xff]
    %v5531 = vld [vmem:[%s5504 + $0xd0] sm:$0xff]
    %v5532 = vld [vmem:[%s5504 + $0xd8] sm:$0xff]
    %v5533 = vld [vmem:[%s5504 + $0xe0] sm:$0xff]
    %v5534 = vld [vmem:[%s5504 + $0xe8] sm:$0xff]
    %v5535 = vld [vmem:[%s5504 + $0xf0] sm:$0xff]
    %v5536 = vld [vmem:[%s5504 + $0xf8] sm:$0xff]
    %5537 = vmatprep.subr.mxu0 %v5506
    %5538 = vmatpush1.msra.mxu0 %v5505
    %5539 = vmatprep.subr.mxu0 %v5508
    %5540 = vmatpush1.msra.mxu0 %v5507
    %5541 = vmatprep.subr.mxu0 %v5510
    %5542 = vmatpush1.msra.mxu0 %v5509
    %5543 = vmatprep.subr.mxu0 %v5512
    %5544 = vmatpush1.msra.mxu0 %v5511
    %5545 = vmatprep.subr.mxu0 %v5514
    %5546 = vmatpush1.msra.mxu0 %v5513
    %5547 = vmatprep.subr.mxu0 %v5516
    %5548 = vmatpush1.msra.mxu0 %v5515
    %5549 = vmatprep.subr.mxu0 %v5518
    %5550 = vmatpush1.msra.mxu0 %v5517
    %5551 = vmatprep.subr.mxu0 %v5520
    %5552 = vmatpush1.msra.mxu0 %v5519
    %5553 = vmatprep.subr.mxu0 %v5522
    %5554 = vmatpush1.msra.mxu0 %v5521
    %5555 = vmatprep.subr.mxu0 %v5524
    %5556 = vmatpush1.msra.mxu0 %v5523
    %5557 = vmatprep.subr.mxu0 %v5526
    %5558 = vmatpush1.msra.mxu0 %v5525
    %5559 = vmatprep.subr.mxu0 %v5528
    %5560 = vmatpush1.msra.mxu0 %v5527
    %5561 = vmatprep.subr.mxu0 %v5530
    %5562 = vmatpush1.msra.mxu0 %v5529
    %5563 = vmatprep.subr.mxu0 %v5532
    %5564 = vmatpush1.msra.mxu0 %v5531
    %5565 = vmatprep.subr.mxu0 %v5534
    %5566 = vmatpush1.msra.mxu0 %v5533
    %5567 = vmatprep.subr.mxu0 %v5536
    %5568 = vmatpush1.msra.mxu0 %v5535
    %5569 = vmatprep.subr.mxu0 0.0
    %5570 = vmatpush1.msra.mxu0 0.0
    %5571 = vmatprep.subr.mxu0 0.0
    %5572 = vmatpush1.msra.mxu0 0.0
    %5573 = vmatprep.subr.mxu0 0.0
    %5574 = vmatpush1.msra.mxu0 0.0
    %5575 = vmatprep.subr.mxu0 0.0
    %5576 = vmatpush1.msra.mxu0 0.0
    %5577 = vmatprep.subr.mxu0 0.0
    %5578 = vmatpush1.msra.mxu0 0.0
    %5579 = vmatprep.subr.mxu0 0.0
    %5580 = vmatpush1.msra.mxu0 0.0
    %5581 = vmatprep.subr.mxu0 0.0
    %5582 = vmatpush1.msra.mxu0 0.0
    %5583 = vmatprep.subr.mxu0 0.0
    %5584 = vmatpush1.msra.mxu0 0.0
    %5585 = vmatprep.subr.mxu0 0.0
    %5586 = vmatpush1.msra.mxu0 0.0
    %5587 = vmatprep.subr.mxu0 0.0
    %5588 = vmatpush1.msra.mxu0 0.0
    %5589 = vmatprep.subr.mxu0 0.0
    %5590 = vmatpush1.msra.mxu0 0.0
    %5591 = vmatprep.subr.mxu0 0.0
    %5592 = vmatpush1.msra.mxu0 0.0
    %5593 = vmatprep.subr.mxu0 0.0
    %5594 = vmatpush1.msra.mxu0 0.0
    %5595 = vmatprep.subr.mxu0 0.0
    %5596 = vmatpush1.msra.mxu0 0.0
    %5597 = vmatprep.subr.mxu0 0.0
    %5598 = vmatpush1.msra.mxu0 0.0
    %5599 = vmatprep.subr.mxu0 0.0
    %5600 = vmatpush1.msra.mxu0 0.0
    %5601 = vmatprep.mubr.f32.mxu0 0.0
    %5602 = vmatmul.mubr.f32.gmra.mrb[0].mxu0 %v5079
    %v5603 = vpop.f32.mrb[0].mxu0
    %v5604 = vadd.f32 0.0, %v5603
    %v5605 = vpop.f32.mrb[0].mxu0
    %v5606 = vadd.f32 0.0, %v5605
    %5607 = vdwg.mxu0
    %v5608 = vadd.f32 %v5502, %v5604
    %v5609 = vadd.f32 %v5503, %v5606
    %s5610 = scalar_lea.vmem [#allocation11], 1280
    %v5611 = vld [vmem:[%s5610] sm:$0xff]
    %v5612 = vld [vmem:[%s5610 + $0x8] sm:$0xff]
    %v5613 = vld [vmem:[%s5610 + $0x10] sm:$0xff]
    %v5614 = vld [vmem:[%s5610 + $0x18] sm:$0xff]
    %v5615 = vld [vmem:[%s5610 + $0x20] sm:$0xff]
    %v5616 = vld [vmem:[%s5610 + $0x28] sm:$0xff]
    %v5617 = vld [vmem:[%s5610 + $0x30] sm:$0xff]
    %v5618 = vld [vmem:[%s5610 + $0x38] sm:$0xff]
    %v5619 = vld [vmem:[%s5610 + $0x40] sm:$0xff]
    %v5620 = vld [vmem:[%s5610 + $0x48] sm:$0xff]
    %v5621 = vld [vmem:[%s5610 + $0x50] sm:$0xff]
    %v5622 = vld [vmem:[%s5610 + $0x58] sm:$0xff]
    %v5623 = vld [vmem:[%s5610 + $0x60] sm:$0xff]
    %v5624 = vld [vmem:[%s5610 + $0x68] sm:$0xff]
    %v5625 = vld [vmem:[%s5610 + $0x70] sm:$0xff]
    %v5626 = vld [vmem:[%s5610 + $0x78] sm:$0xff]
    %v5627 = vld [vmem:[%s5610 + $0x80] sm:$0xff]
    %v5628 = vld [vmem:[%s5610 + $0x88] sm:$0xff]
    %v5629 = vld [vmem:[%s5610 + $0x90] sm:$0xff]
    %v5630 = vld [vmem:[%s5610 + $0x98] sm:$0xff]
    %v5631 = vld [vmem:[%s5610 + $0xa0] sm:$0xff]
    %v5632 = vld [vmem:[%s5610 + $0xa8] sm:$0xff]
    %v5633 = vld [vmem:[%s5610 + $0xb0] sm:$0xff]
    %v5634 = vld [vmem:[%s5610 + $0xb8] sm:$0xff]
    %v5635 = vld [vmem:[%s5610 + $0xc0] sm:$0xff]
    %v5636 = vld [vmem:[%s5610 + $0xc8] sm:$0xff]
    %v5637 = vld [vmem:[%s5610 + $0xd0] sm:$0xff]
    %v5638 = vld [vmem:[%s5610 + $0xd8] sm:$0xff]
    %v5639 = vld [vmem:[%s5610 + $0xe0] sm:$0xff]
    %v5640 = vld [vmem:[%s5610 + $0xe8] sm:$0xff]
    %v5641 = vld [vmem:[%s5610 + $0xf0] sm:$0xff]
    %v5642 = vld [vmem:[%s5610 + $0xf8] sm:$0xff]
    %5643 = vmatprep.subr.mxu0 %v5612
    %5644 = vmatpush1.msra.mxu0 %v5611
    %5645 = vmatprep.subr.mxu0 %v5614
    %5646 = vmatpush1.msra.mxu0 %v5613
    %5647 = vmatprep.subr.mxu0 %v5616
    %5648 = vmatpush1.msra.mxu0 %v5615
    %5649 = vmatprep.subr.mxu0 %v5618
    %5650 = vmatpush1.msra.mxu0 %v5617
    %5651 = vmatprep.subr.mxu0 %v5620
    %5652 = vmatpush1.msra.mxu0 %v5619
    %5653 = vmatprep.subr.mxu0 %v5622
    %5654 = vmatpush1.msra.mxu0 %v5621
    %5655 = vmatprep.subr.mxu0 %v5624
    %5656 = vmatpush1.msra.mxu0 %v5623
    %5657 = vmatprep.subr.mxu0 %v5626
    %5658 = vmatpush1.msra.mxu0 %v5625
    %5659 = vmatprep.subr.mxu0 %v5628
    %5660 = vmatpush1.msra.mxu0 %v5627
    %5661 = vmatprep.subr.mxu0 %v5630
    %5662 = vmatpush1.msra.mxu0 %v5629
    %5663 = vmatprep.subr.mxu0 %v5632
    %5664 = vmatpush1.msra.mxu0 %v5631
    %5665 = vmatprep.subr.mxu0 %v5634
    %5666 = vmatpush1.msra.mxu0 %v5633
    %5667 = vmatprep.subr.mxu0 %v5636
    %5668 = vmatpush1.msra.mxu0 %v5635
    %5669 = vmatprep.subr.mxu0 %v5638
    %5670 = vmatpush1.msra.mxu0 %v5637
    %5671 = vmatprep.subr.mxu0 %v5640
    %5672 = vmatpush1.msra.mxu0 %v5639
    %5673 = vmatprep.subr.mxu0 %v5642
    %5674 = vmatpush1.msra.mxu0 %v5641
    %5675 = vmatprep.subr.mxu0 0.0
    %5676 = vmatpush1.msra.mxu0 0.0
    %5677 = vmatprep.subr.mxu0 0.0
    %5678 = vmatpush1.msra.mxu0 0.0
    %5679 = vmatprep.subr.mxu0 0.0
    %5680 = vmatpush1.msra.mxu0 0.0
    %5681 = vmatprep.subr.mxu0 0.0
    %5682 = vmatpush1.msra.mxu0 0.0
    %5683 = vmatprep.subr.mxu0 0.0
    %5684 = vmatpush1.msra.mxu0 0.0
    %5685 = vmatprep.subr.mxu0 0.0
    %5686 = vmatpush1.msra.mxu0 0.0
    %5687 = vmatprep.subr.mxu0 0.0
    %5688 = vmatpush1.msra.mxu0 0.0
    %5689 = vmatprep.subr.mxu0 0.0
    %5690 = vmatpush1.msra.mxu0 0.0
    %5691 = vmatprep.subr.mxu0 0.0
    %5692 = vmatpush1.msra.mxu0 0.0
    %5693 = vmatprep.subr.mxu0 0.0
    %5694 = vmatpush1.msra.mxu0 0.0
    %5695 = vmatprep.subr.mxu0 0.0
    %5696 = vmatpush1.msra.mxu0 0.0
    %5697 = vmatprep.subr.mxu0 0.0
    %5698 = vmatpush1.msra.mxu0 0.0
    %5699 = vmatprep.subr.mxu0 0.0
    %5700 = vmatpush1.msra.mxu0 0.0
    %5701 = vmatprep.subr.mxu0 0.0
    %5702 = vmatpush1.msra.mxu0 0.0
    %5703 = vmatprep.subr.mxu0 0.0
    %5704 = vmatpush1.msra.mxu0 0.0
    %5705 = vmatprep.subr.mxu0 0.0
    %5706 = vmatpush1.msra.mxu0 0.0
    %5707 = vmatprep.mubr.f32.mxu0 0.0
    %5708 = vmatmul.mubr.f32.gmra.mrb[0].mxu0 %v5080
    %v5709 = vpop.f32.mrb[0].mxu0
    %v5710 = vadd.f32 0.0, %v5709
    %v5711 = vpop.f32.mrb[0].mxu0
    %v5712 = vadd.f32 0.0, %v5711
    %5713 = vdwg.mxu0
    %v5714 = vadd.f32 %v5608, %v5710
    %v5715 = vadd.f32 %v5609, %v5712
    %s5716 = scalar_lea.vmem [#allocation11], 1536
    %v5717 = vld [vmem:[%s5716] sm:$0xff]
    %v5718 = vld [vmem:[%s5716 + $0x8] sm:$0xff]
    %v5719 = vld [vmem:[%s5716 + $0x10] sm:$0xff]
    %v5720 = vld [vmem:[%s5716 + $0x18] sm:$0xff]
    %v5721 = vld [vmem:[%s5716 + $0x20] sm:$0xff]
    %v5722 = vld [vmem:[%s5716 + $0x28] sm:$0xff]
    %v5723 = vld [vmem:[%s5716 + $0x30] sm:$0xff]
    %v5724 = vld [vmem:[%s5716 + $0x38] sm:$0xff]
    %v5725 = vld [vmem:[%s5716 + $0x40] sm:$0xff]
    %v5726 = vld [vmem:[%s5716 + $0x48] sm:$0xff]
    %v5727 = vld [vmem:[%s5716 + $0x50] sm:$0xff]
    %v5728 = vld [vmem:[%s5716 + $0x58] sm:$0xff]
    %v5729 = vld [vmem:[%s5716 + $0x60] sm:$0xff]
    %v5730 = vld [vmem:[%s5716 + $0x68] sm:$0xff]
    %v5731 = vld [vmem:[%s5716 + $0x70] sm:$0xff]
    %v5732 = vld [vmem:[%s5716 + $0x78] sm:$0xff]
    %v5733 = vld [vmem:[%s5716 + $0x80] sm:$0xff]
    %v5734 = vld [vmem:[%s5716 + $0x88] sm:$0xff]
    %v5735 = vld [vmem:[%s5716 + $0x90] sm:$0xff]
    %v5736 = vld [vmem:[%s5716 + $0x98] sm:$0xff]
    %v5737 = vld [vmem:[%s5716 + $0xa0] sm:$0xff]
    %v5738 = vld [vmem:[%s5716 + $0xa8] sm:$0xff]
    %v5739 = vld [vmem:[%s5716 + $0xb0] sm:$0xff]
    %v5740 = vld [vmem:[%s5716 + $0xb8] sm:$0xff]
    %v5741 = vld [vmem:[%s5716 + $0xc0] sm:$0xff]
    %v5742 = vld [vmem:[%s5716 + $0xc8] sm:$0xff]
    %v5743 = vld [vmem:[%s5716 + $0xd0] sm:$0xff]
    %v5744 = vld [vmem:[%s5716 + $0xd8] sm:$0xff]
    %v5745 = vld [vmem:[%s5716 + $0xe0] sm:$0xff]
    %v5746 = vld [vmem:[%s5716 + $0xe8] sm:$0xff]
    %v5747 = vld [vmem:[%s5716 + $0xf0] sm:$0xff]
    %v5748 = vld [vmem:[%s5716 + $0xf8] sm:$0xff]
    %5749 = vmatprep.subr.mxu0 %v5718
    %5750 = vmatpush1.msra.mxu0 %v5717
    %5751 = vmatprep.subr.mxu0 %v5720
    %5752 = vmatpush1.msra.mxu0 %v5719
    %5753 = vmatprep.subr.mxu0 %v5722
    %5754 = vmatpush1.msra.mxu0 %v5721
    %5755 = vmatprep.subr.mxu0 %v5724
    %5756 = vmatpush1.msra.mxu0 %v5723
    %5757 = vmatprep.subr.mxu0 %v5726
    %5758 = vmatpush1.msra.mxu0 %v5725
    %5759 = vmatprep.subr.mxu0 %v5728
    %5760 = vmatpush1.msra.mxu0 %v5727
    %5761 = vmatprep.subr.mxu0 %v5730
    %5762 = vmatpush1.msra.mxu0 %v5729
    %5763 = vmatprep.subr.mxu0 %v5732
    %5764 = vmatpush1.msra.mxu0 %v5731
    %5765 = vmatprep.subr.mxu0 %v5734
    %5766 = vmatpush1.msra.mxu0 %v5733
    %5767 = vmatprep.subr.mxu0 %v5736
    %5768 = vmatpush1.msra.mxu0 %v5735
    %5769 = vmatprep.subr.mxu0 %v5738
    %5770 = vmatpush1.msra.mxu0 %v5737
    %5771 = vmatprep.subr.mxu0 %v5740
    %5772 = vmatpush1.msra.mxu0 %v5739
    %5773 = vmatprep.subr.mxu0 %v5742
    %5774 = vmatpush1.msra.mxu0 %v5741
    %5775 = vmatprep.subr.mxu0 %v5744
    %5776 = vmatpush1.msra.mxu0 %v5743
    %5777 = vmatprep.subr.mxu0 %v5746
    %5778 = vmatpush1.msra.mxu0 %v5745
    %5779 = vmatprep.subr.mxu0 %v5748
    %5780 = vmatpush1.msra.mxu0 %v5747
    %5781 = vmatprep.subr.mxu0 0.0
    %5782 = vmatpush1.msra.mxu0 0.0
    %5783 = vmatprep.subr.mxu0 0.0
    %5784 = vmatpush1.msra.mxu0 0.0
    %5785 = vmatprep.subr.mxu0 0.0
    %5786 = vmatpush1.msra.mxu0 0.0
    %5787 = vmatprep.subr.mxu0 0.0
    %5788 = vmatpush1.msra.mxu0 0.0
    %5789 = vmatprep.subr.mxu0 0.0
    %5790 = vmatpush1.msra.mxu0 0.0
    %5791 = vmatprep.subr.mxu0 0.0
    %5792 = vmatpush1.msra.mxu0 0.0
    %5793 = vmatprep.subr.mxu0 0.0
    %5794 = vmatpush1.msra.mxu0 0.0
    %5795 = vmatprep.subr.mxu0 0.0
    %5796 = vmatpush1.msra.mxu0 0.0
    %5797 = vmatprep.subr.mxu0 0.0
    %5798 = vmatpush1.msra.mxu0 0.0
    %5799 = vmatprep.subr.mxu0 0.0
    %5800 = vmatpush1.msra.mxu0 0.0
    %5801 = vmatprep.subr.mxu0 0.0
    %5802 = vmatpush1.msra.mxu0 0.0
    %5803 = vmatprep.subr.mxu0 0.0
    %5804 = vmatpush1.msra.mxu0 0.0
    %5805 = vmatprep.subr.mxu0 0.0
    %5806 = vmatpush1.msra.mxu0 0.0
    %5807 = vmatprep.subr.mxu0 0.0
    %5808 = vmatpush1.msra.mxu0 0.0
    %5809 = vmatprep.subr.mxu0 0.0
    %5810 = vmatpush1.msra.mxu0 0.0
    %5811 = vmatprep.subr.mxu0 0.0
    %5812 = vmatpush1.msra.mxu0 0.0
    %5813 = vmatprep.mubr.f32.mxu0 0.0
    %5814 = vmatmul.mubr.f32.gmra.mrb[0].mxu0 %v5081
    %v5815 = vpop.f32.mrb[0].mxu0
    %v5816 = vadd.f32 0.0, %v5815
    %v5817 = vpop.f32.mrb[0].mxu0
    %v5818 = vadd.f32 0.0, %v5817
    %5819 = vdwg.mxu0
    %v5820 = vadd.f32 %v5714, %v5816
    %v5821 = vadd.f32 %v5715, %v5818
    %s5822 = scalar_lea.vmem [#allocation11], 1792
    %v5823 = vld [vmem:[%s5822] sm:$0xff]
    %v5824 = vld [vmem:[%s5822 + $0x8] sm:$0xff]
    %v5825 = vld [vmem:[%s5822 + $0x10] sm:$0xff]
    %v5826 = vld [vmem:[%s5822 + $0x18] sm:$0xff]
    %v5827 = vld [vmem:[%s5822 + $0x20] sm:$0xff]
    %v5828 = vld [vmem:[%s5822 + $0x28] sm:$0xff]
    %v5829 = vld [vmem:[%s5822 + $0x30] sm:$0xff]
    %v5830 = vld [vmem:[%s5822 + $0x38] sm:$0xff]
    %v5831 = vld [vmem:[%s5822 + $0x40] sm:$0xff]
    %v5832 = vld [vmem:[%s5822 + $0x48] sm:$0xff]
    %v5833 = vld [vmem:[%s5822 + $0x50] sm:$0xff]
    %v5834 = vld [vmem:[%s5822 + $0x58] sm:$0xff]
    %v5835 = vld [vmem:[%s5822 + $0x60] sm:$0xff]
    %v5836 = vld [vmem:[%s5822 + $0x68] sm:$0xff]
    %v5837 = vld [vmem:[%s5822 + $0x70] sm:$0xff]
    %v5838 = vld [vmem:[%s5822 + $0x78] sm:$0xff]
    %v5839 = vld [vmem:[%s5822 + $0x80] sm:$0xff]
    %v5840 = vld [vmem:[%s5822 + $0x88] sm:$0xff]
    %v5841 = vld [vmem:[%s5822 + $0x90] sm:$0xff]
    %v5842 = vld [vmem:[%s5822 + $0x98] sm:$0xff]
    %v5843 = vld [vmem:[%s5822 + $0xa0] sm:$0xff]
    %v5844 = vld [vmem:[%s5822 + $0xa8] sm:$0xff]
    %v5845 = vld [vmem:[%s5822 + $0xb0] sm:$0xff]
    %v5846 = vld [vmem:[%s5822 + $0xb8] sm:$0xff]
    %v5847 = vld [vmem:[%s5822 + $0xc0] sm:$0xff]
    %v5848 = vld [vmem:[%s5822 + $0xc8] sm:$0xff]
    %v5849 = vld [vmem:[%s5822 + $0xd0] sm:$0xff]
    %v5850 = vld [vmem:[%s5822 + $0xd8] sm:$0xff]
    %v5851 = vld [vmem:[%s5822 + $0xe0] sm:$0xff]
    %v5852 = vld [vmem:[%s5822 + $0xe8] sm:$0xff]
    %v5853 = vld [vmem:[%s5822 + $0xf0] sm:$0xff]
    %v5854 = vld [vmem:[%s5822 + $0xf8] sm:$0xff]
    %5855 = vmatprep.subr.mxu0 %v5824
    %5856 = vmatpush1.msra.mxu0 %v5823
    %5857 = vmatprep.subr.mxu0 %v5826
    %5858 = vmatpush1.msra.mxu0 %v5825
    %5859 = vmatprep.subr.mxu0 %v5828
    %5860 = vmatpush1.msra.mxu0 %v5827
    %5861 = vmatprep.subr.mxu0 %v5830
    %5862 = vmatpush1.msra.mxu0 %v5829
    %5863 = vmatprep.subr.mxu0 %v5832
    %5864 = vmatpush1.msra.mxu0 %v5831
    %5865 = vmatprep.subr.mxu0 %v5834
    %5866 = vmatpush1.msra.mxu0 %v5833
    %5867 = vmatprep.subr.mxu0 %v5836
    %5868 = vmatpush1.msra.mxu0 %v5835
    %5869 = vmatprep.subr.mxu0 %v5838
    %5870 = vmatpush1.msra.mxu0 %v5837
    %5871 = vmatprep.subr.mxu0 %v5840
    %5872 = vmatpush1.msra.mxu0 %v5839
    %5873 = vmatprep.subr.mxu0 %v5842
    %5874 = vmatpush1.msra.mxu0 %v5841
    %5875 = vmatprep.subr.mxu0 %v5844
    %5876 = vmatpush1.msra.mxu0 %v5843
    %5877 = vmatprep.subr.mxu0 %v5846
    %5878 = vmatpush1.msra.mxu0 %v5845
    %5879 = vmatprep.subr.mxu0 %v5848
    %5880 = vmatpush1.msra.mxu0 %v5847
    %5881 = vmatprep.subr.mxu0 %v5850
    %5882 = vmatpush1.msra.mxu0 %v5849
    %5883 = vmatprep.subr.mxu0 %v5852
    %5884 = vmatpush1.msra.mxu0 %v5851
    %5885 = vmatprep.subr.mxu0 %v5854
    %5886 = vmatpush1.msra.mxu0 %v5853
    %5887 = vmatprep.subr.mxu0 0.0
    %5888 = vmatpush1.msra.mxu0 0.0
    %5889 = vmatprep.subr.mxu0 0.0
    %5890 = vmatpush1.msra.mxu0 0.0
    %5891 = vmatprep.subr.mxu0 0.0
    %5892 = vmatpush1.msra.mxu0 0.0
    %5893 = vmatprep.subr.mxu0 0.0
    %5894 = vmatpush1.msra.mxu0 0.0
    %5895 = vmatprep.subr.mxu0 0.0
    %5896 = vmatpush1.msra.mxu0 0.0
    %5897 = vmatprep.subr.mxu0 0.0
    %5898 = vmatpush1.msra.mxu0 0.0
    %5899 = vmatprep.subr.mxu0 0.0
    %5900 = vmatpush1.msra.mxu0 0.0
    %5901 = vmatprep.subr.mxu0 0.0
    %5902 = vmatpush1.msra.mxu0 0.0
    %5903 = vmatprep.subr.mxu0 0.0
    %5904 = vmatpush1.msra.mxu0 0.0
    %5905 = vmatprep.subr.mxu0 0.0
    %5906 = vmatpush1.msra.mxu0 0.0
    %5907 = vmatprep.subr.mxu0 0.0
    %5908 = vmatpush1.msra.mxu0 0.0
    %5909 = vmatprep.subr.mxu0 0.0
    %5910 = vmatpush1.msra.mxu0 0.0
    %5911 = vmatprep.subr.mxu0 0.0
    %5912 = vmatpush1.msra.mxu0 0.0
    %5913 = vmatprep.subr.mxu0 0.0
    %5914 = vmatpush1.msra.mxu0 0.0
    %5915 = vmatprep.subr.mxu0 0.0
    %5916 = vmatpush1.msra.mxu0 0.0
    %5917 = vmatprep.subr.mxu0 0.0
    %5918 = vmatpush1.msra.mxu0 0.0
    %5919 = vmatprep.mubr.f32.mxu0 0.0
    %5920 = vmatmul.mubr.f32.gmra.mrb[0].mxu0 %v5082
    %v5921 = vpop.f32.mrb[0].mxu0
    %v5922 = vadd.f32 0.0, %v5921
    %v5923 = vpop.f32.mrb[0].mxu0
    %v5924 = vadd.f32 0.0, %v5923
    %5925 = vdwg.mxu0
    %v5926 = vadd.f32 %v5820, %v5922
    %v5927 = vadd.f32 %v5821, %v5924
    %s5928 = scalar_lea.vmem [#allocation11], 2048
    %v5929 = vld [vmem:[%s5928] sm:$0xff]
    %v5930 = vld [vmem:[%s5928 + $0x8] sm:$0xff]
    %v5931 = vld [vmem:[%s5928 + $0x10] sm:$0xff]
    %v5932 = vld [vmem:[%s5928 + $0x18] sm:$0xff]
    %v5933 = vld [vmem:[%s5928 + $0x20] sm:$0xff]
    %v5934 = vld [vmem:[%s5928 + $0x28] sm:$0xff]
    %v5935 = vld [vmem:[%s5928 + $0x30] sm:$0xff]
    %v5936 = vld [vmem:[%s5928 + $0x38] sm:$0xff]
    %v5937 = vld [vmem:[%s5928 + $0x40] sm:$0xff]
    %v5938 = vld [vmem:[%s5928 + $0x48] sm:$0xff]
    %v5939 = vld [vmem:[%s5928 + $0x50] sm:$0xff]
    %v5940 = vld [vmem:[%s5928 + $0x58] sm:$0xff]
    %v5941 = vld [vmem:[%s5928 + $0x60] sm:$0xff]
    %v5942 = vld [vmem:[%s5928 + $0x68] sm:$0xff]
    %v5943 = vld [vmem:[%s5928 + $0x70] sm:$0xff]
    %v5944 = vld [vmem:[%s5928 + $0x78] sm:$0xff]
    %v5945 = vld [vmem:[%s5928 + $0x80] sm:$0xff]
    %v5946 = vld [vmem:[%s5928 + $0x88] sm:$0xff]
    %v5947 = vld [vmem:[%s5928 + $0x90] sm:$0xff]
    %v5948 = vld [vmem:[%s5928 + $0x98] sm:$0xff]
    %v5949 = vld [vmem:[%s5928 + $0xa0] sm:$0xff]
    %v5950 = vld [vmem:[%s5928 + $0xa8] sm:$0xff]
    %v5951 = vld [vmem:[%s5928 + $0xb0] sm:$0xff]
    %v5952 = vld [vmem:[%s5928 + $0xb8] sm:$0xff]
    %v5953 = vld [vmem:[%s5928 + $0xc0] sm:$0xff]
    %v5954 = vld [vmem:[%s5928 + $0xc8] sm:$0xff]
    %v5955 = vld [vmem:[%s5928 + $0xd0] sm:$0xff]
    %v5956 = vld [vmem:[%s5928 + $0xd8] sm:$0xff]
    %v5957 = vld [vmem:[%s5928 + $0xe0] sm:$0xff]
    %v5958 = vld [vmem:[%s5928 + $0xe8] sm:$0xff]
    %v5959 = vld [vmem:[%s5928 + $0xf0] sm:$0xff]
    %v5960 = vld [vmem:[%s5928 + $0xf8] sm:$0xff]
    %5961 = vmatprep.subr.mxu0 %v5930
    %5962 = vmatpush1.msra.mxu0 %v5929
    %5963 = vmatprep.subr.mxu0 %v5932
    %5964 = vmatpush1.msra.mxu0 %v5931
    %5965 = vmatprep.subr.mxu0 %v5934
    %5966 = vmatpush1.msra.mxu0 %v5933
    %5967 = vmatprep.subr.mxu0 %v5936
    %5968 = vmatpush1.msra.mxu0 %v5935
    %5969 = vmatprep.subr.mxu0 %v5938
    %5970 = vmatpush1.msra.mxu0 %v5937
    %5971 = vmatprep.subr.mxu0 %v5940
    %5972 = vmatpush1.msra.mxu0 %v5939
    %5973 = vmatprep.subr.mxu0 %v5942
    %5974 = vmatpush1.msra.mxu0 %v5941
    %5975 = vmatprep.subr.mxu0 %v5944
    %5976 = vmatpush1.msra.mxu0 %v5943
    %5977 = vmatprep.subr.mxu0 %v5946
    %5978 = vmatpush1.msra.mxu0 %v5945
    %5979 = vmatprep.subr.mxu0 %v5948
    %5980 = vmatpush1.msra.mxu0 %v5947
    %5981 = vmatprep.subr.mxu0 %v5950
    %5982 = vmatpush1.msra.mxu0 %v5949
    %5983 = vmatprep.subr.mxu0 %v5952
    %5984 = vmatpush1.msra.mxu0 %v5951
    %5985 = vmatprep.subr.mxu0 %v5954
    %5986 = vmatpush1.msra.mxu0 %v5953
    %5987 = vmatprep.subr.mxu0 %v5956
    %5988 = vmatpush1.msra.mxu0 %v5955
    %5989 = vmatprep.subr.mxu0 %v5958
    %5990 = vmatpush1.msra.mxu0 %v5957
    %5991 = vmatprep.subr.mxu0 %v5960
    %5992 = vmatpush1.msra.mxu0 %v5959
    %5993 = vmatprep.subr.mxu0 0.0
    %5994 = vmatpush1.msra.mxu0 0.0
    %5995 = vmatprep.subr.mxu0 0.0
    %5996 = vmatpush1.msra.mxu0 0.0
    %5997 = vmatprep.subr.mxu0 0.0
    %5998 = vmatpush1.msra.mxu0 0.0
    %5999 = vmatprep.subr.mxu0 0.0
    %6000 = vmatpush1.msra.mxu0 0.0
    %6001 = vmatprep.subr.mxu0 0.0
    %6002 = vmatpush1.msra.mxu0 0.0
    %6003 = vmatprep.subr.mxu0 0.0
    %6004 = vmatpush1.msra.mxu0 0.0
    %6005 = vmatprep.subr.mxu0 0.0
    %6006 = vmatpush1.msra.mxu0 0.0
    %6007 = vmatprep.subr.mxu0 0.0
    %6008 = vmatpush1.msra.mxu0 0.0
    %6009 = vmatprep.subr.mxu0 0.0
    %6010 = vmatpush1.msra.mxu0 0.0
    %6011 = vmatprep.subr.mxu0 0.0
    %6012 = vmatpush1.msra.mxu0 0.0
    %6013 = vmatprep.subr.mxu0 0.0
    %6014 = vmatpush1.msra.mxu0 0.0
    %6015 = vmatprep.subr.mxu0 0.0
    %6016 = vmatpush1.msra.mxu0 0.0
    %6017 = vmatprep.subr.mxu0 0.0
    %6018 = vmatpush1.msra.mxu0 0.0
    %6019 = vmatprep.subr.mxu0 0.0
    %6020 = vmatpush1.msra.mxu0 0.0
    %6021 = vmatprep.subr.mxu0 0.0
    %6022 = vmatpush1.msra.mxu0 0.0
    %6023 = vmatprep.subr.mxu0 0.0
    %6024 = vmatpush1.msra.mxu0 0.0
    %6025 = vmatprep.mubr.f32.mxu0 0.0
    %6026 = vmatmul.mubr.f32.gmra.mrb[0].mxu0 %v5083
    %v6027 = vpop.f32.mrb[0].mxu0
    %v6028 = vadd.f32 0.0, %v6027
    %v6029 = vpop.f32.mrb[0].mxu0
    %v6030 = vadd.f32 0.0, %v6029
    %6031 = vdwg.mxu0
    %v6032 = vadd.f32 %v5926, %v6028
    %v6033 = vadd.f32 %v5927, %v6030
    %s6034 = scalar_lea.vmem [#allocation11], 2304
    %v6035 = vld [vmem:[%s6034] sm:$0xff]
    %v6036 = vld [vmem:[%s6034 + $0x8] sm:$0xff]
    %v6037 = vld [vmem:[%s6034 + $0x10] sm:$0xff]
    %v6038 = vld [vmem:[%s6034 + $0x18] sm:$0xff]
    %v6039 = vld [vmem:[%s6034 + $0x20] sm:$0xff]
    %v6040 = vld [vmem:[%s6034 + $0x28] sm:$0xff]
    %v6041 = vld [vmem:[%s6034 + $0x30] sm:$0xff]
    %v6042 = vld [vmem:[%s6034 + $0x38] sm:$0xff]
    %v6043 = vld [vmem:[%s6034 + $0x40] sm:$0xff]
    %v6044 = vld [vmem:[%s6034 + $0x48] sm:$0xff]
    %v6045 = vld [vmem:[%s6034 + $0x50] sm:$0xff]
    %v6046 = vld [vmem:[%s6034 + $0x58] sm:$0xff]
    %v6047 = vld [vmem:[%s6034 + $0x60] sm:$0xff]
    %v6048 = vld [vmem:[%s6034 + $0x68] sm:$0xff]
    %v6049 = vld [vmem:[%s6034 + $0x70] sm:$0xff]
    %v6050 = vld [vmem:[%s6034 + $0x78] sm:$0xff]
    %v6051 = vld [vmem:[%s6034 + $0x80] sm:$0xff]
    %v6052 = vld [vmem:[%s6034 + $0x88] sm:$0xff]
    %v6053 = vld [vmem:[%s6034 + $0x90] sm:$0xff]
    %v6054 = vld [vmem:[%s6034 + $0x98] sm:$0xff]
    %v6055 = vld [vmem:[%s6034 + $0xa0] sm:$0xff]
    %v6056 = vld [vmem:[%s6034 + $0xa8] sm:$0xff]
    %v6057 = vld [vmem:[%s6034 + $0xb0] sm:$0xff]
    %v6058 = vld [vmem:[%s6034 + $0xb8] sm:$0xff]
    %v6059 = vld [vmem:[%s6034 + $0xc0] sm:$0xff]
    %v6060 = vld [vmem:[%s6034 + $0xc8] sm:$0xff]
    %v6061 = vld [vmem:[%s6034 + $0xd0] sm:$0xff]
    %v6062 = vld [vmem:[%s6034 + $0xd8] sm:$0xff]
    %v6063 = vld [vmem:[%s6034 + $0xe0] sm:$0xff]
    %v6064 = vld [vmem:[%s6034 + $0xe8] sm:$0xff]
    %v6065 = vld [vmem:[%s6034 + $0xf0] sm:$0xff]
    %v6066 = vld [vmem:[%s6034 + $0xf8] sm:$0xff]
    %6067 = vmatprep.subr.mxu0 %v6036
    %6068 = vmatpush1.msra.mxu0 %v6035
    %6069 = vmatprep.subr.mxu0 %v6038
    %6070 = vmatpush1.msra.mxu0 %v6037
    %6071 = vmatprep.subr.mxu0 %v6040
    %6072 = vmatpush1.msra.mxu0 %v6039
    %6073 = vmatprep.subr.mxu0 %v6042
    %6074 = vmatpush1.msra.mxu0 %v6041
    %6075 = vmatprep.subr.mxu0 %v6044
    %6076 = vmatpush1.msra.mxu0 %v6043
    %6077 = vmatprep.subr.mxu0 %v6046
    %6078 = vmatpush1.msra.mxu0 %v6045
    %6079 = vmatprep.subr.mxu0 %v6048
    %6080 = vmatpush1.msra.mxu0 %v6047
    %6081 = vmatprep.subr.mxu0 %v6050
    %6082 = vmatpush1.msra.mxu0 %v6049
    %6083 = vmatprep.subr.mxu0 %v6052
    %6084 = vmatpush1.msra.mxu0 %v6051
    %6085 = vmatprep.subr.mxu0 %v6054
    %6086 = vmatpush1.msra.mxu0 %v6053
    %6087 = vmatprep.subr.mxu0 %v6056
    %6088 = vmatpush1.msra.mxu0 %v6055
    %6089 = vmatprep.subr.mxu0 %v6058
    %6090 = vmatpush1.msra.mxu0 %v6057
    %6091 = vmatprep.subr.mxu0 %v6060
    %6092 = vmatpush1.msra.mxu0 %v6059
    %6093 = vmatprep.subr.mxu0 %v6062
    %6094 = vmatpush1.msra.mxu0 %v6061
    %6095 = vmatprep.subr.mxu0 %v6064
    %6096 = vmatpush1.msra.mxu0 %v6063
    %6097 = vmatprep.subr.mxu0 %v6066
    %6098 = vmatpush1.msra.mxu0 %v6065
    %6099 = vmatprep.subr.mxu0 0.0
    %6100 = vmatpush1.msra.mxu0 0.0
    %6101 = vmatprep.subr.mxu0 0.0
    %6102 = vmatpush1.msra.mxu0 0.0
    %6103 = vmatprep.subr.mxu0 0.0
    %6104 = vmatpush1.msra.mxu0 0.0
    %6105 = vmatprep.subr.mxu0 0.0
    %6106 = vmatpush1.msra.mxu0 0.0
    %6107 = vmatprep.subr.mxu0 0.0
    %6108 = vmatpush1.msra.mxu0 0.0
    %6109 = vmatprep.subr.mxu0 0.0
    %6110 = vmatpush1.msra.mxu0 0.0
    %6111 = vmatprep.subr.mxu0 0.0
    %6112 = vmatpush1.msra.mxu0 0.0
    %6113 = vmatprep.subr.mxu0 0.0
    %6114 = vmatpush1.msra.mxu0 0.0
    %6115 = vmatprep.subr.mxu0 0.0
    %6116 = vmatpush1.msra.mxu0 0.0
    %6117 = vmatprep.subr.mxu0 0.0
    %6118 = vmatpush1.msra.mxu0 0.0
    %6119 = vmatprep.subr.mxu0 0.0
    %6120 = vmatpush1.msra.mxu0 0.0
    %6121 = vmatprep.subr.mxu0 0.0
    %6122 = vmatpush1.msra.mxu0 0.0
    %6123 = vmatprep.subr.mxu0 0.0
    %6124 = vmatpush1.msra.mxu0 0.0
    %6125 = vmatprep.subr.mxu0 0.0
    %6126 = vmatpush1.msra.mxu0 0.0
    %6127 = vmatprep.subr.mxu0 0.0
    %6128 = vmatpush1.msra.mxu0 0.0
    %6129 = vmatprep.subr.mxu0 0.0
    %6130 = vmatpush1.msra.mxu0 0.0
    %6131 = vmatprep.mubr.f32.mxu0 0.0
    %6132 = vmatmul.mubr.f32.gmra.mrb[0].mxu0 %v5084
    %v6133 = vpop.f32.mrb[0].mxu0
    %v6134 = vadd.f32 0.0, %v6133
    %v6135 = vpop.f32.mrb[0].mxu0
    %v6136 = vadd.f32 0.0, %v6135
    %6137 = vdwg.mxu0
    %v6138 = vadd.f32 %v6032, %v6134
    %v6139 = vadd.f32 %v6033, %v6136
    %v6140 = vld [vmem:[#allocation13] sm:$0x3]
    %v6142 = vlaneseq
    %v6143 = vshrl.u32 %v6142, 7
    %v6144 = vsub.s32 0, %v6143
    %v6145 = vrot.slane %v6140, %v6144
    %v6146 = vlaneseq
    %v6147 = vshrl.u32 %v6146, 7
    %v6148 = vsub.s32 1, %v6147
    %v6149 = vrot.slane %v6140, %v6148
    %v6152 = vadd.f32 %v6138, %v6145
    %v6153 = vadd.f32 %v6139, %v6149
    %v6154 = vmax.f32 %v6152, 0.0
    %v6155 = vmax.f32 %v6153, 0.0
    %v6156 = vld [vmem:[%s7] sm:$0xff]
    %v6157 = vld [vmem:[%s7 + $0x8] sm:$0xff]
    %v6158 = vld [vmem:[%s7 + $0x10] sm:$0xff]
    %v6159 = vld [vmem:[%s7 + $0x18] sm:$0xff]
    %v6160 = vld [vmem:[%s7 + $0x20] sm:$0xff]
    %v6161 = vld [vmem:[%s7 + $0x28] sm:$0xff]
    %v6162 = vld [vmem:[%s7 + $0x30] sm:$0xff]
    %v6163 = vld [vmem:[%s7 + $0x38] sm:$0xff]
    %v6164 = vld [vmem:[%s7 + $0x40] sm:$0xff]
    %v6165 = vld [vmem:[%s7 + $0x48] sm:$0xff]
    %v6166 = vld [vmem:[%s7 + $0x50] sm:$0xff]
    %v6167 = vld [vmem:[%s7 + $0x58] sm:$0xff]
    %v6168 = vld [vmem:[%s7 + $0x60] sm:$0xff]
    %v6169 = vld [vmem:[%s7 + $0x68] sm:$0xff]
    %v6170 = vld [vmem:[%s7 + $0x70] sm:$0xff]
    %v6171 = vld [vmem:[%s7 + $0x78] sm:$0xff]
    %v6172 = vld [vmem:[%s7 + $0x80] sm:$0xff]
    %v6173 = vld [vmem:[%s7 + $0x88] sm:$0xff]
    %v6174 = vld [vmem:[%s7 + $0x90] sm:$0xff]
    %v6175 = vld [vmem:[%s7 + $0x98] sm:$0xff]
    %v6176 = vld [vmem:[%s7 + $0xa0] sm:$0xff]
    %v6177 = vld [vmem:[%s7 + $0xa8] sm:$0xff]
    %v6178 = vld [vmem:[%s7 + $0xb0] sm:$0xff]
    %v6179 = vld [vmem:[%s7 + $0xb8] sm:$0xff]
    %v6180 = vld [vmem:[%s7 + $0xc0] sm:$0xff]
    %v6181 = vld [vmem:[%s7 + $0xc8] sm:$0xff]
    %v6182 = vld [vmem:[%s7 + $0xd0] sm:$0xff]
    %v6183 = vld [vmem:[%s7 + $0xd8] sm:$0xff]
    %v6184 = vld [vmem:[%s7 + $0xe0] sm:$0xff]
    %v6185 = vld [vmem:[%s7 + $0xe8] sm:$0xff]
    %v6186 = vld [vmem:[%s7 + $0xf0] sm:$0xff]
    %v6187 = vld [vmem:[%s7 + $0xf8] sm:$0xff]
    %v6188 = vld [vmem:[#allocation14] sm:$0x1]
    %v6190 = vlaneseq
    %v6191 = vshrl.u32 %v6190, 7
    %v6192 = vsub.s32 0, %v6191
    %v6193 = vrot.slane %v6188, %v6192
    %6195 = vmatprep.subr.mxu0 0.0
    %6196 = vmatpush1.msra.mxu0 %v6156
    %6197 = vmatprep.subr.mxu0 0.0
    %6198 = vmatpush1.msra.mxu0 %v6157
    %6199 = vmatprep.subr.mxu0 0.0
    %6200 = vmatpush1.msra.mxu0 %v6158
    %6201 = vmatprep.subr.mxu0 0.0
    %6202 = vmatpush1.msra.mxu0 %v6159
    %6203 = vmatprep.subr.mxu0 0.0
    %6204 = vmatpush1.msra.mxu0 %v6160
    %6205 = vmatprep.subr.mxu0 0.0
    %6206 = vmatpush1.msra.mxu0 %v6161
    %6207 = vmatprep.subr.mxu0 0.0
    %6208 = vmatpush1.msra.mxu0 %v6162
    %6209 = vmatprep.subr.mxu0 0.0
    %6210 = vmatpush1.msra.mxu0 %v6163
    %6211 = vmatprep.subr.mxu0 0.0
    %6212 = vmatpush1.msra.mxu0 %v6164
    %6213 = vmatprep.subr.mxu0 0.0
    %6214 = vmatpush1.msra.mxu0 %v6165
    %6215 = vmatprep.subr.mxu0 0.0
    %6216 = vmatpush1.msra.mxu0 %v6166
    %6217 = vmatprep.subr.mxu0 0.0
    %6218 = vmatpush1.msra.mxu0 %v6167
    %6219 = vmatprep.subr.mxu0 0.0
    %6220 = vmatpush1.msra.mxu0 %v6168
    %6221 = vmatprep.subr.mxu0 0.0
    %6222 = vmatpush1.msra.mxu0 %v6169
    %6223 = vmatprep.subr.mxu0 0.0
    %6224 = vmatpush1.msra.mxu0 %v6170
    %6225 = vmatprep.subr.mxu0 0.0
    %6226 = vmatpush1.msra.mxu0 %v6171
    %6227 = vmatprep.subr.mxu0 0.0
    %6228 = vmatpush1.msra.mxu0 %v6172
    %6229 = vmatprep.subr.mxu0 0.0
    %6230 = vmatpush1.msra.mxu0 %v6173
    %6231 = vmatprep.subr.mxu0 0.0
    %6232 = vmatpush1.msra.mxu0 %v6174
    %6233 = vmatprep.subr.mxu0 0.0
    %6234 = vmatpush1.msra.mxu0 %v6175
    %6235 = vmatprep.subr.mxu0 0.0
    %6236 = vmatpush1.msra.mxu0 %v6176
    %6237 = vmatprep.subr.mxu0 0.0
    %6238 = vmatpush1.msra.mxu0 %v6177
    %6239 = vmatprep.subr.mxu0 0.0
    %6240 = vmatpush1.msra.mxu0 %v6178
    %6241 = vmatprep.subr.mxu0 0.0
    %6242 = vmatpush1.msra.mxu0 %v6179
    %6243 = vmatprep.subr.mxu0 0.0
    %6244 = vmatpush1.msra.mxu0 %v6180
    %6245 = vmatprep.subr.mxu0 0.0
    %6246 = vmatpush1.msra.mxu0 %v6181
    %6247 = vmatprep.subr.mxu0 0.0
    %6248 = vmatpush1.msra.mxu0 %v6182
    %6249 = vmatprep.subr.mxu0 0.0
    %6250 = vmatpush1.msra.mxu0 %v6183
    %6251 = vmatprep.subr.mxu0 0.0
    %6252 = vmatpush1.msra.mxu0 %v6184
    %6253 = vmatprep.subr.mxu0 0.0
    %6254 = vmatpush1.msra.mxu0 %v6185
    %6255 = vmatprep.subr.mxu0 0.0
    %6256 = vmatpush1.msra.mxu0 %v6186
    %6257 = vmatprep.subr.mxu0 0.0
    %6258 = vmatpush1.msra.mxu0 %v6187
    %6259 = vmatprep.mubr.f32.mxu0 %v6155
    %6260 = vmatmul.mubr.f32.gmra.mrb[0].mxu0 %v6154
    %v6261 = vpop.f32.mrb[0].mxu0
    %v6262 = vadd.f32 %v6193, %v6261
    %v6263 = vpop.f32.mrb[0].mxu0
    %6264 = vdwg.mxu0
    %vm6265 = vcmask 15360
    %6266 = vst.msk [vmem:[%s9] sm:$0xff] %vm6265, %v6262
    // Predicated region
    $region70: #{tpu_custom_call.1} parent=1 // pred_check
      _
    $region71: #{tpu_custom_call.1} parent=1 // pred_check_branch
      %6268 = sbr.rel (0) target = $region73
    $region72: #{tpu_custom_call.1} parent=1 // pred_region
      _
    $region73: #{tpu_custom_call.1} parent=1 // pred_fallthru
      _
    // Predicated region
    $region74: #{tpu_custom_call.1} parent=1 // pred_check
      _
    $region75: #{tpu_custom_call.1} parent=1 // pred_check_branch
      %6270 = sbr.rel (0) target = $region77
    $region76: #{tpu_custom_call.1} parent=1 // pred_region
      _
    $region77: #{tpu_custom_call.1} parent=1 // pred_fallthru
      _
    %6271 = vsyncpa [#allocation4], 1
    %6272 = vsyncpa [#allocation6], 1
    %6273 = vsyncpa [#allocation9], 1
    %6274 = vsyncpa [#allocation12], 1
    %6275 = vsyncpa [#allocation15], 1

</llo_original>
